<compile_context>
chip_gen: v7x
topology: tpu7x:2x2x1
jax: 0.10.0
libtpu: 0.0.40
codegen_flags: <defaults>
</compile_context>

<pallas_src>
import functools

import jax
import jax.numpy as jnp
from jax.experimental import pallas as pl
from jax.experimental.pallas import tpu as pltpu


def _round_up(x: int, m: int) -> int:
    return (x + m - 1) // m * m


# ----------------------------------------------------------------------------
# Fused conv(5x5, s=1, p=2) + bias + ReLU + maxpool(2x2), batch-tiled
# ----------------------------------------------------------------------------
# Phase trick: split the zero-padded input into its four (row-parity,
# col-parity) phases, packed along the last dim.  For pooled-output row
# r = h2*wph + w2, pool corner (dy,dx) and conv tap (ky,kx), with u=dy+ky,
# v=dx+kx, the input value is
#     xph[b, r + (u//2)*wph + (v//2), ((u%2)*2 + (v%2))*cin + ci]
# i.e. a contiguous static slice of the VMEM block.  Grouping taps by
# (oy,ox)=(u//2,v//2) gives 9 tap groups; each group is one MXU matmul of
# K = 4*cin against a pre-packed weight slab whose N dim holds all 4 pool
# corners (zero weights where a tap falls outside a corner's 5x5 window).
def _conv_pool_kernel(x_ref, w_ref, b_ref, o_ref, *, wph, m_out_pad, cin, cout):
    # x_ref : (TB, m_in, 4*cin)     phase-packed padded input
    # w_ref : (9, 4*cin, 4*cout)    per-tap-group weights, 4 corners along N
    # b_ref : (1, cout)
    # o_ref : (TB, m_out_pad, cout) pooled output, rows = h2*wph + w2
    tile_b = x_ref.shape[0]
    kw = 4 * cin
    rows = tile_b * m_out_pad

    acc = jnp.zeros((rows, 4 * cout), jnp.float32)
    for oy in range(3):
        for ox in range(3):
            off = oy * wph + ox
            piece = x_ref[:, off:off + m_out_pad, :].reshape(rows, kw)
            acc = acc + jnp.dot(piece, w_ref[oy * 3 + ox],
                                preferred_element_type=jnp.float32)

    # 4-corner max, then bias + ReLU (bias shared by corners and ReLU is
    # monotone, so relu(max_c + b) == max_c relu(. + b)).
    pooled = acc[:, 0:cout]
    for c in range(1, 4):
        pooled = jnp.maximum(pooled, acc[:, c * cout:(c + 1) * cout])
    pooled = jnp.maximum(pooled + b_ref[...], 0.0)
    o_ref[...] = pooled.reshape(tile_b, m_out_pad, cout).astype(o_ref.dtype)


def conv_relu_pool(x_nhwc, w_packed, bias_row, *, tile_b_cap):
    """x: (B,H,W,Cin) NHWC; w_packed: (9,4*Cin,4*Cout); bias_row: (1,Cout).
    Returns (B, H//2, W//2, Cout) = Conv2d(k=5,s=1,p=2) + ReLU + MaxPool2d(2)."""
    B, H, W, cin = x_nhwc.shape
    cout = bias_row.shape[-1]
    Hp, Wp = H + 6, W + 4            # pad=2 each side (+2 zero guard rows)
    hph, wph = Hp // 2, Wp // 2
    m_in = hph * wph
    m_out = (H // 2) * wph
    m_out_pad = _round_up(m_out, 8)

    tile_b = max(1, min(tile_b_cap, B))
    b_pad = _round_up(B, tile_b)

    xb = x_nhwc if b_pad == B else jnp.pad(
        x_nhwc, ((0, b_pad - B), (0, 0), (0, 0), (0, 0)))
    xp = jnp.pad(xb, ((0, 0), (2, 4), (2, 2), (0, 0)))
    # pack the 4 (row-parity, col-parity) phases along the last dim
    xph = (xp.reshape(b_pad, hph, 2, wph, 2, cin)
             .transpose(0, 1, 3, 2, 4, 5)
             .reshape(b_pad, m_in, 4 * cin))

    kernel = functools.partial(_conv_pool_kernel, wph=wph, m_out_pad=m_out_pad,
                               cin=cin, cout=cout)
    flops = 2 * b_pad * m_out_pad * (36 * cin) * (4 * cout)
    bytes_accessed = 4 * (b_pad * m_in * 4 * cin + 36 * cin * 4 * cout + cout
                          + b_pad * m_out_pad * cout)

    out = pl.pallas_call(
        kernel,
        out_shape=jax.ShapeDtypeStruct((b_pad, m_out_pad, cout), jnp.float32),
        grid=(b_pad // tile_b,),
        in_specs=[pl.BlockSpec((tile_b, m_in, 4 * cin), lambda i: (i, 0, 0)),
                  pl.BlockSpec((9, 4 * cin, 4 * cout), lambda i: (0, 0, 0)),
                  pl.BlockSpec((1, cout), lambda i: (0, 0))],
        out_specs=pl.BlockSpec((tile_b, m_out_pad, cout), lambda i: (i, 0, 0)),
        compiler_params=pltpu.CompilerParams(dimension_semantics=("parallel",)),
        cost_estimate=pl.CostEstimate(flops=flops, transcendentals=0,
                                      bytes_accessed=bytes_accessed),
    )(xph, w_packed, bias_row)

    # rows are (h2, w2') with w2' over wph (includes right-pad cols); drop them
    # (and the padded garbage row for conv2) before the next stage.
    out = out[:B, :m_out, :].reshape(B, H // 2, wph, cout)[:, :, : W // 2, :]
    return out


# ----------------------------------------------------------------------------
# Row-tiled Linear with lane-dense (128-padded) output
# ----------------------------------------------------------------------------
def _linear_kernel(x_ref, w_ref, b_ref, o_ref):
    o_ref[...] = (jnp.dot(x_ref[...], w_ref[...],
                          preferred_element_type=jnp.float32)
                  + b_ref[...]).astype(o_ref.dtype)


def linear(x, w_pad, b_pad_row, n_valid, *, tile_m=256):
    """(M,K) @ (K,Npad) + b; rows tiled, padding capped at one tile."""
    M, K = x.shape
    n_pad = w_pad.shape[1]
    tm = min(tile_m, _round_up(M, 8))
    m_pad = _round_up(M, tm)
    x_p = x if m_pad == M else jnp.pad(x, ((0, m_pad - M), (0, 0)))

    out = pl.pallas_call(
        _linear_kernel,
        out_shape=jax.ShapeDtypeStruct((m_pad, n_pad), jnp.float32),
        grid=(m_pad // tm,),
        in_specs=[pl.BlockSpec((tm, K), lambda i: (i, 0)),
                  pl.BlockSpec((K, n_pad), lambda i: (0, 0)),
                  pl.BlockSpec((1, n_pad), lambda i: (0, 0))],
        out_specs=pl.BlockSpec((tm, n_pad), lambda i: (i, 0)),
        compiler_params=pltpu.CompilerParams(dimension_semantics=("parallel",)),
        cost_estimate=pl.CostEstimate(
            flops=2 * m_pad * K * n_pad, transcendentals=0,
            bytes_accessed=4 * (m_pad * K + K * n_pad + m_pad * n_pad)),
    )(x_p, w_pad, b_pad_row)
    return out[:M, :n_valid]


# ----------------------------------------------------------------------------
# One-time parameter packing (hoisted out of the forward path)
# ----------------------------------------------------------------------------
def _pack_conv_weights(w_oihw):
    """(Cout,Cin,5,5) -> (9, 4*Cin, 4*Cout) tap-group weights.

    Group t = oy*3+ox holds, for each packed lane (py,px,ci), the weight of
    conv tap (ky,kx) = (2*oy+py-dy, 2*ox+px-dx) for pool corner c = dy*2+dx
    (zero when that tap falls outside the 5x5 window)."""
    cout, cin = int(w_oihw.shape[0]), int(w_oihw.shape[1])
    wt = jnp.transpose(w_oihw, (2, 3, 1, 0)).astype(jnp.float32)   # (ky,kx,ci,co)
    w6 = jnp.zeros((6, 6, cin, 4, cout), jnp.float32)
    for dy in range(2):
        for dx in range(2):
            c = dy * 2 + dx
            w6 = w6.at[dy:dy + 5, dx:dx + 5, :, c, :].set(wt)
    w9 = (w6.reshape(3, 2, 3, 2, cin, 4, cout)
            .transpose(0, 2, 1, 3, 4, 5, 6))       # (oy, ox, py, px, ci, c, co)
    return w9.reshape(9, 4 * cin, 4 * cout)


def prepare_params(params):
    k_out, n_out = params["w_out"].shape
    n_pad = _round_up(max(n_out, 128), 128)
    return {
        "w1": _pack_conv_weights(params["w1"]),
        "b1": params["b1"].reshape(1, -1).astype(jnp.float32),
        "w2": _pack_conv_weights(params["w2"]),
        "b2": params["b2"].reshape(1, -1).astype(jnp.float32),
        "w_out": jnp.pad(params["w_out"].astype(jnp.float32),
                         ((0, 0), (0, n_pad - n_out))),
        "b_out": jnp.pad(params["b_out"].astype(jnp.float32),
                         (0, n_pad - n_out)).reshape(1, n_pad),
    }


# ----------------------------------------------------------------------------
# Full forward (matches the PyTorch module exactly)
# ----------------------------------------------------------------------------
def cnn_forward(x_nchw, prep):
    """x_nchw: (B,1,28,28) f32 -> (logits (B,10), flat_features (B,1568))."""
    B = x_nchw.shape[0]
    x = jnp.transpose(x_nchw, (0, 2, 3, 1)).astype(jnp.float32)    # NCHW -> NHWC
    x = conv_relu_pool(x, prep["w1"], prep["b1"], tile_b_cap=16)   # (B,14,14,16)
    x = conv_relu_pool(x, prep["w2"], prep["b2"], tile_b_cap=32)   # (B,7,7,32)
    # PyTorch x.view(B,-1) flattens NCHW: index = c*7*7 + h*7 + w
    flat = jnp.transpose(x, (0, 3, 1, 2)).reshape(B, -1)           # (B, 1568)
    logits = linear(flat, prep["w_out"], prep["b_out"], n_valid=10)
    return logits, flat


# ----------------------------------------------------------------------------
# Deterministic parameter init (shapes from the module's __init__)
# ----------------------------------------------------------------------------
def init_params(key):
    k1, k2, k3, k4, k5, k6 = jax.random.split(key, 6)

    def uinit(k, shape, fan_in):
        bound = 1.0 / jnp.sqrt(fan_in)
        return jax.random.uniform(k, shape, jnp.float32, -bound, bound)

    return {
        # Conv2d weights in PyTorch layout (Cout, Cin, KH, KW)
        "w1": uinit(k1, (16, 1, 5, 5), 1 * 5 * 5),
        "b1": uinit(k2, (16,), 1 * 5 * 5),
        "w2": uinit(k3, (32, 16, 5, 5), 16 * 5 * 5),
        "b2": uinit(k4, (32,), 16 * 5 * 5),
        # Linear pre-transposed: (in_features, out_features) = (1568, 10)
        "w_out": uinit(k5, (32 * 7 * 7, 10), 32 * 7 * 7),
        "b_out": uinit(k6, (10,), 32 * 7 * 7),
    }


# ----------------------------------------------------------------------------
# Pure-JAX reference (numerical check)
# ----------------------------------------------------------------------------
def cnn_forward_ref(x_nchw, params):
    def conv_block(x, w, b):
        y = jax.lax.conv_general_dilated(
            x, w, window_strides=(1, 1), padding=((2, 2), (2, 2)),
            dimension_numbers=("NCHW", "OIHW", "NCHW"))
        y = jnp.maximum(y + b[None, :, None, None], 0.0)
        y = jax.lax.reduce_window(
            y, -jnp.inf, jax.lax.max,
            window_dimensions=(1, 1, 2, 2), window_strides=(1, 1, 2, 2),
            padding="VALID")
        return y

    x = conv_block(x_nchw, params["w1"], params["b1"])
    x = conv_block(x, params["w2"], params["b2"])
    flat = x.reshape(x.shape[0], -1)
    logits = flat @ params["w_out"] + params["b_out"]
    return logits, flat


if __name__ == "__main__":
    key = jax.random.PRNGKey(0)
    kx, kp = jax.random.split(key)
    # Input implied by the module: MNIST-like, NCHW (B, 1, 28, 28)
    x = jax.random.normal(kx, (2, 1, 28, 28), jnp.float32)
    params = init_params(kp)
    prep = prepare_params(params)          # one-time weight packing

    fwd = jax.jit(cnn_forward)
    logits, flat = fwd(x, prep)
    jax.block_until_ready((logits, flat))

    assert logits.shape == (2, 10) and flat.shape == (2, 32 * 7 * 7)

    ref_logits, ref_flat = cnn_forward_ref(x, params)
    max_flat_err = float(jnp.max(jnp.abs(flat - ref_flat)))
    max_logit_err = float(jnp.max(jnp.abs(logits - ref_logits)))
    assert jnp.allclose(flat, ref_flat, atol=1e-4, rtol=1e-4), max_flat_err
    assert jnp.allclose(logits, ref_logits, atol=1e-4, rtol=1e-4), max_logit_err

    print("KERNEL_OK")
</pallas_src>

<mosaic_0001>
module attributes {stable_mosaic.version = 11 : i64} {
  func.func @_conv_pool_kernel(%arg0: i32, %arg1: memref<2x272x4xf32, #tpu.memory_space<vmem>>, %arg2: memref<9x4x64xf32, #tpu.memory_space<vmem>>, %arg3: memref<1x16xf32, #tpu.memory_space<vmem>>, %arg4: memref<2x224x16xf32, #tpu.memory_space<vmem>>) attributes {dimension_semantics = [#tpu.dimension_semantics<parallel>], iteration_bounds = array<i64: 1>, scalar_prefetch = 0 : i64, scratch_operands = 0 : i64, tpu.core_type = #tpu.core_type<tc>, window_params = [{transform_indices = @transform_0, window_bounds = array<i64: 2, 272, 4>}, {pipeline_mode = #tpu.pipeline_mode<synchronous>, transform_indices = @transform_1, window_bounds = array<i64: 9, 4, 64>}, {pipeline_mode = #tpu.pipeline_mode<synchronous>, transform_indices = @transform_2, window_bounds = array<i64: 1, 16>}, {transform_indices = @transform_3, window_bounds = array<i64: 2, 224, 16>}]} {
    %cst = arith.constant 0.000000e+00 : f32
    %0 = vector.broadcast %cst : f32 to vector<448x64xf32>
    %c0 = arith.constant 0 : index
    %c0_0 = arith.constant 0 : index
    %c0_1 = arith.constant 0 : index
    %1 = vector.load %arg1[%c0, %c0_0, %c0_1] : memref<2x272x4xf32, #tpu.memory_space<vmem>>, vector<2x224x4xf32>
    %2 = vector.shape_cast %1 : vector<2x224x4xf32> to vector<448x4xf32>
    %c0_2 = arith.constant 0 : index
    %c0_3 = arith.constant 0 : index
    %c0_4 = arith.constant 0 : index
    %3 = vector.load %arg2[%c0_2, %c0_3, %c0_4] : memref<9x4x64xf32, #tpu.memory_space<vmem>>, vector<1x4x64xf32>
    %4 = vector.shape_cast %3 : vector<1x4x64xf32> to vector<4x64xf32>
    %cst_5 = arith.constant dense<0.000000e+00> : vector<448x64xf32>
    %5 = tpu.matmul %2, %4, %cst_5 {dimension_numbers = #tpu.dot_dimension_numbers<[1], [0], [0], [1], [0, 0, 1, 1], [], []>} : vector<448x4xf32>, vector<4x64xf32>, vector<448x64xf32> -> vector<448x64xf32>
    %6 = arith.addf %0, %5 : vector<448x64xf32>
    %c0_6 = arith.constant 0 : index
    %c1 = arith.constant 1 : index
    %c0_7 = arith.constant 0 : index
    %7 = vector.load %arg1[%c0_6, %c1, %c0_7] : memref<2x272x4xf32, #tpu.memory_space<vmem>>, vector<2x224x4xf32>
    %8 = vector.shape_cast %7 : vector<2x224x4xf32> to vector<448x4xf32>
    %c1_8 = arith.constant 1 : index
    %c0_9 = arith.constant 0 : index
    %c0_10 = arith.constant 0 : index
    %9 = vector.load %arg2[%c1_8, %c0_9, %c0_10] : memref<9x4x64xf32, #tpu.memory_space<vmem>>, vector<1x4x64xf32>
    %10 = vector.shape_cast %9 : vector<1x4x64xf32> to vector<4x64xf32>
    %cst_11 = arith.constant dense<0.000000e+00> : vector<448x64xf32>
    %11 = tpu.matmul %8, %10, %cst_11 {dimension_numbers = #tpu.dot_dimension_numbers<[1], [0], [0], [1], [0, 0, 1, 1], [], []>} : vector<448x4xf32>, vector<4x64xf32>, vector<448x64xf32> -> vector<448x64xf32>
    %12 = arith.addf %6, %11 : vector<448x64xf32>
    %c0_12 = arith.constant 0 : index
    %c2 = arith.constant 2 : index
    %c0_13 = arith.constant 0 : index
    %13 = vector.load %arg1[%c0_12, %c2, %c0_13] : memref<2x272x4xf32, #tpu.memory_space<vmem>>, vector<2x224x4xf32>
    %14 = vector.shape_cast %13 : vector<2x224x4xf32> to vector<448x4xf32>
    %c2_14 = arith.constant 2 : index
    %c0_15 = arith.constant 0 : index
    %c0_16 = arith.constant 0 : index
    %15 = vector.load %arg2[%c2_14, %c0_15, %c0_16] : memref<9x4x64xf32, #tpu.memory_space<vmem>>, vector<1x4x64xf32>
    %16 = vector.shape_cast %15 : vector<1x4x64xf32> to vector<4x64xf32>
    %cst_17 = arith.constant dense<0.000000e+00> : vector<448x64xf32>
    %17 = tpu.matmul %14, %16, %cst_17 {dimension_numbers = #tpu.dot_dimension_numbers<[1], [0], [0], [1], [0, 0, 1, 1], [], []>} : vector<448x4xf32>, vector<4x64xf32>, vector<448x64xf32> -> vector<448x64xf32>
    %18 = arith.addf %12, %17 : vector<448x64xf32>
    %c0_18 = arith.constant 0 : index
    %c16 = arith.constant 16 : index
    %c0_19 = arith.constant 0 : index
    %19 = vector.load %arg1[%c0_18, %c16, %c0_19] : memref<2x272x4xf32, #tpu.memory_space<vmem>>, vector<2x224x4xf32>
    %20 = vector.shape_cast %19 : vector<2x224x4xf32> to vector<448x4xf32>
    %c3 = arith.constant 3 : index
    %c0_20 = arith.constant 0 : index
    %c0_21 = arith.constant 0 : index
    %21 = vector.load %arg2[%c3, %c0_20, %c0_21] : memref<9x4x64xf32, #tpu.memory_space<vmem>>, vector<1x4x64xf32>
    %22 = vector.shape_cast %21 : vector<1x4x64xf32> to vector<4x64xf32>
    %cst_22 = arith.constant dense<0.000000e+00> : vector<448x64xf32>
    %23 = tpu.matmul %20, %22, %cst_22 {dimension_numbers = #tpu.dot_dimension_numbers<[1], [0], [0], [1], [0, 0, 1, 1], [], []>} : vector<448x4xf32>, vector<4x64xf32>, vector<448x64xf32> -> vector<448x64xf32>
    %24 = arith.addf %18, %23 : vector<448x64xf32>
    %c0_23 = arith.constant 0 : index
    %c17 = arith.constant 17 : index
    %c0_24 = arith.constant 0 : index
    %25 = vector.load %arg1[%c0_23, %c17, %c0_24] : memref<2x272x4xf32, #tpu.memory_space<vmem>>, vector<2x224x4xf32>
    %26 = vector.shape_cast %25 : vector<2x224x4xf32> to vector<448x4xf32>
    %c4 = arith.constant 4 : index
    %c0_25 = arith.constant 0 : index
    %c0_26 = arith.constant 0 : index
    %27 = vector.load %arg2[%c4, %c0_25, %c0_26] : memref<9x4x64xf32, #tpu.memory_space<vmem>>, vector<1x4x64xf32>
    %28 = vector.shape_cast %27 : vector<1x4x64xf32> to vector<4x64xf32>
    %cst_27 = arith.constant dense<0.000000e+00> : vector<448x64xf32>
    %29 = tpu.matmul %26, %28, %cst_27 {dimension_numbers = #tpu.dot_dimension_numbers<[1], [0], [0], [1], [0, 0, 1, 1], [], []>} : vector<448x4xf32>, vector<4x64xf32>, vector<448x64xf32> -> vector<448x64xf32>
    %30 = arith.addf %24, %29 : vector<448x64xf32>
    %c0_28 = arith.constant 0 : index
    %c18 = arith.constant 18 : index
    %c0_29 = arith.constant 0 : index
    %31 = vector.load %arg1[%c0_28, %c18, %c0_29] : memref<2x272x4xf32, #tpu.memory_space<vmem>>, vector<2x224x4xf32>
    %32 = vector.shape_cast %31 : vector<2x224x4xf32> to vector<448x4xf32>
    %c5 = arith.constant 5 : index
    %c0_30 = arith.constant 0 : index
    %c0_31 = arith.constant 0 : index
    %33 = vector.load %arg2[%c5, %c0_30, %c0_31] : memref<9x4x64xf32, #tpu.memory_space<vmem>>, vector<1x4x64xf32>
    %34 = vector.shape_cast %33 : vector<1x4x64xf32> to vector<4x64xf32>
    %cst_32 = arith.constant dense<0.000000e+00> : vector<448x64xf32>
    %35 = tpu.matmul %32, %34, %cst_32 {dimension_numbers = #tpu.dot_dimension_numbers<[1], [0], [0], [1], [0, 0, 1, 1], [], []>} : vector<448x4xf32>, vector<4x64xf32>, vector<448x64xf32> -> vector<448x64xf32>
    %36 = arith.addf %30, %35 : vector<448x64xf32>
    %c0_33 = arith.constant 0 : index
    %c32 = arith.constant 32 : index
    %c0_34 = arith.constant 0 : index
    %37 = vector.load %arg1[%c0_33, %c32, %c0_34] : memref<2x272x4xf32, #tpu.memory_space<vmem>>, vector<2x224x4xf32>
    %38 = vector.shape_cast %37 : vector<2x224x4xf32> to vector<448x4xf32>
    %c6 = arith.constant 6 : index
    %c0_35 = arith.constant 0 : index
    %c0_36 = arith.constant 0 : index
    %39 = vector.load %arg2[%c6, %c0_35, %c0_36] : memref<9x4x64xf32, #tpu.memory_space<vmem>>, vector<1x4x64xf32>
    %40 = vector.shape_cast %39 : vector<1x4x64xf32> to vector<4x64xf32>
    %cst_37 = arith.constant dense<0.000000e+00> : vector<448x64xf32>
    %41 = tpu.matmul %38, %40, %cst_37 {dimension_numbers = #tpu.dot_dimension_numbers<[1], [0], [0], [1], [0, 0, 1, 1], [], []>} : vector<448x4xf32>, vector<4x64xf32>, vector<448x64xf32> -> vector<448x64xf32>
    %42 = arith.addf %36, %41 : vector<448x64xf32>
    %c0_38 = arith.constant 0 : index
    %c33 = arith.constant 33 : index
    %c0_39 = arith.constant 0 : index
    %43 = vector.load %arg1[%c0_38, %c33, %c0_39] : memref<2x272x4xf32, #tpu.memory_space<vmem>>, vector<2x224x4xf32>
    %44 = vector.shape_cast %43 : vector<2x224x4xf32> to vector<448x4xf32>
    %c7 = arith.constant 7 : index
    %c0_40 = arith.constant 0 : index
    %c0_41 = arith.constant 0 : index
    %45 = vector.load %arg2[%c7, %c0_40, %c0_41] : memref<9x4x64xf32, #tpu.memory_space<vmem>>, vector<1x4x64xf32>
    %46 = vector.shape_cast %45 : vector<1x4x64xf32> to vector<4x64xf32>
    %cst_42 = arith.constant dense<0.000000e+00> : vector<448x64xf32>
    %47 = tpu.matmul %44, %46, %cst_42 {dimension_numbers = #tpu.dot_dimension_numbers<[1], [0], [0], [1], [0, 0, 1, 1], [], []>} : vector<448x4xf32>, vector<4x64xf32>, vector<448x64xf32> -> vector<448x64xf32>
    %48 = arith.addf %42, %47 : vector<448x64xf32>
    %c0_43 = arith.constant 0 : index
    %c34 = arith.constant 34 : index
    %c0_44 = arith.constant 0 : index
    %49 = vector.load %arg1[%c0_43, %c34, %c0_44] : memref<2x272x4xf32, #tpu.memory_space<vmem>>, vector<2x224x4xf32>
    %50 = vector.shape_cast %49 : vector<2x224x4xf32> to vector<448x4xf32>
    %c8 = arith.constant 8 : index
    %c0_45 = arith.constant 0 : index
    %c0_46 = arith.constant 0 : index
    %51 = vector.load %arg2[%c8, %c0_45, %c0_46] : memref<9x4x64xf32, #tpu.memory_space<vmem>>, vector<1x4x64xf32>
    %52 = vector.shape_cast %51 : vector<1x4x64xf32> to vector<4x64xf32>
    %cst_47 = arith.constant dense<0.000000e+00> : vector<448x64xf32>
    %53 = tpu.matmul %50, %52, %cst_47 {dimension_numbers = #tpu.dot_dimension_numbers<[1], [0], [0], [1], [0, 0, 1, 1], [], []>} : vector<448x4xf32>, vector<4x64xf32>, vector<448x64xf32> -> vector<448x64xf32>
    %54 = arith.addf %48, %53 : vector<448x64xf32>
    %55 = vector.extract_strided_slice %54 {offsets = [0, 0], sizes = [448, 16], strides = [1, 1]} : vector<448x64xf32> to vector<448x16xf32>
    %56 = vector.extract_strided_slice %54 {offsets = [0, 16], sizes = [448, 16], strides = [1, 1]} : vector<448x64xf32> to vector<448x16xf32>
    %57 = arith.maximumf %55, %56 : vector<448x16xf32>
    %58 = vector.extract_strided_slice %54 {offsets = [0, 32], sizes = [448, 16], strides = [1, 1]} : vector<448x64xf32> to vector<448x16xf32>
    %59 = arith.maximumf %57, %58 : vector<448x16xf32>
    %60 = vector.extract_strided_slice %54 {offsets = [0, 48], sizes = [448, 16], strides = [1, 1]} : vector<448x64xf32> to vector<448x16xf32>
    %61 = arith.maximumf %59, %60 : vector<448x16xf32>
    %c0_48 = arith.constant 0 : index
    %c0_49 = arith.constant 0 : index
    %62 = vector.load %arg3[%c0_48, %c0_49] : memref<1x16xf32, #tpu.memory_space<vmem>>, vector<1x16xf32>
    %63 = vector.broadcast %62 : vector<1x16xf32> to vector<448x16xf32>
    %64 = arith.addf %61, %63 : vector<448x16xf32>
    %cst_50 = arith.constant 0.000000e+00 : f32
    %65 = vector.broadcast %cst_50 : f32 to vector<448x16xf32>
    %66 = arith.maximumf %64, %65 : vector<448x16xf32>
    %67 = vector.shape_cast %66 : vector<448x16xf32> to vector<2x224x16xf32>
    %c0_51 = arith.constant 0 : index
    %c0_52 = arith.constant 0 : index
    %c0_53 = arith.constant 0 : index
    %68 = vector.load %arg4[%c0_51, %c0_52, %c0_53] : memref<2x224x16xf32, #tpu.memory_space<vmem>>, vector<2x224x16xf32>
    tpu.vector_store %arg4[%c0_51, %c0_52, %c0_53], %67 {strides = array<i32>} : memref<2x224x16xf32, #tpu.memory_space<vmem>>, vector<2x224x16xf32>,
    return
  }
  func.func @transform_0(%arg0: i32) -> (i32, i32, i32) {
    %c0_i32 = arith.constant 0 : i32
    %c0_i32_0 = arith.constant 0 : i32
    %c0_i32_1 = arith.constant 0 : i32
    return %arg0, %c0_i32, %c0_i32_0 : i32, i32, i32
  }
  func.func @transform_1(%arg0: i32) -> (i32, i32, i32) {
    %c0_i32 = arith.constant 0 : i32
    %c0_i32_0 = arith.constant 0 : i32
    %c0_i32_1 = arith.constant 0 : i32
    %c0_i32_2 = arith.constant 0 : i32
    return %c0_i32, %c0_i32_0, %c0_i32_1 : i32, i32, i32
  }
  func.func @transform_2(%arg0: i32) -> (i32, i32) {
    %c0_i32 = arith.constant 0 : i32
    %c0_i32_0 = arith.constant 0 : i32
    %c0_i32_1 = arith.constant 0 : i32
    return %c0_i32, %c0_i32_0 : i32, i32
  }
  func.func @transform_3(%arg0: i32) -> (i32, i32, i32) {
    %c0_i32 = arith.constant 0 : i32
    %c0_i32_0 = arith.constant 0 : i32
    %c0_i32_1 = arith.constant 0 : i32
    return %arg0, %c0_i32, %c0_i32_0 : i32, i32, i32
  }
}

module attributes {stable_mosaic.version = 11 : i64} {
  func.func @_conv_pool_kernel(%arg0: i32, %arg1: memref<2x90x64xf32, #tpu.memory_space<vmem>>, %arg2: memref<9x64x128xf32, #tpu.memory_space<vmem>>, %arg3: memref<1x32xf32, #tpu.memory_space<vmem>>, %arg4: memref<2x64x32xf32, #tpu.memory_space<vmem>>) attributes {dimension_semantics = [#tpu.dimension_semantics<parallel>], iteration_bounds = array<i64: 1>, scalar_prefetch = 0 : i64, scratch_operands = 0 : i64, tpu.core_type = #tpu.core_type<tc>, window_params = [{transform_indices = @transform_0, window_bounds = array<i64: 2, 90, 64>}, {pipeline_mode = #tpu.pipeline_mode<synchronous>, transform_indices = @transform_1, window_bounds = array<i64: 9, 64, 128>}, {pipeline_mode = #tpu.pipeline_mode<synchronous>, transform_indices = @transform_2, window_bounds = array<i64: 1, 32>}, {transform_indices = @transform_3, window_bounds = array<i64: 2, 64, 32>}]} {
    %cst = arith.constant 0.000000e+00 : f32
    %0 = vector.broadcast %cst : f32 to vector<128x128xf32>
    %c0 = arith.constant 0 : index
    %c0_0 = arith.constant 0 : index
    %c0_1 = arith.constant 0 : index
    %1 = vector.load %arg1[%c0, %c0_0, %c0_1] : memref<2x90x64xf32, #tpu.memory_space<vmem>>, vector<2x64x64xf32>
    %2 = vector.shape_cast %1 : vector<2x64x64xf32> to vector<128x64xf32>
    %c0_2 = arith.constant 0 : index
    %c0_3 = arith.constant 0 : index
    %c0_4 = arith.constant 0 : index
    %3 = vector.load %arg2[%c0_2, %c0_3, %c0_4] : memref<9x64x128xf32, #tpu.memory_space<vmem>>, vector<1x64x128xf32>
    %4 = vector.shape_cast %3 : vector<1x64x128xf32> to vector<64x128xf32>
    %cst_5 = arith.constant dense<0.000000e+00> : vector<128x128xf32>
    %5 = tpu.matmul %2, %4, %cst_5 {dimension_numbers = #tpu.dot_dimension_numbers<[1], [0], [0], [1], [0, 0, 1, 1], [], []>} : vector<128x64xf32>, vector<64x128xf32>, vector<128x128xf32> -> vector<128x128xf32>
    %6 = arith.addf %0, %5 : vector<128x128xf32>
    %c0_6 = arith.constant 0 : index
    %c1 = arith.constant 1 : index
    %c0_7 = arith.constant 0 : index
    %7 = vector.load %arg1[%c0_6, %c1, %c0_7] : memref<2x90x64xf32, #tpu.memory_space<vmem>>, vector<2x64x64xf32>
    %8 = vector.shape_cast %7 : vector<2x64x64xf32> to vector<128x64xf32>
    %c1_8 = arith.constant 1 : index
    %c0_9 = arith.constant 0 : index
    %c0_10 = arith.constant 0 : index
    %9 = vector.load %arg2[%c1_8, %c0_9, %c0_10] : memref<9x64x128xf32, #tpu.memory_space<vmem>>, vector<1x64x128xf32>
    %10 = vector.shape_cast %9 : vector<1x64x128xf32> to vector<64x128xf32>
    %cst_11 = arith.constant dense<0.000000e+00> : vector<128x128xf32>
    %11 = tpu.matmul %8, %10, %cst_11 {dimension_numbers = #tpu.dot_dimension_numbers<[1], [0], [0], [1], [0, 0, 1, 1], [], []>} : vector<128x64xf32>, vector<64x128xf32>, vector<128x128xf32> -> vector<128x128xf32>
    %12 = arith.addf %6, %11 : vector<128x128xf32>
    %c0_12 = arith.constant 0 : index
    %c2 = arith.constant 2 : index
    %c0_13 = arith.constant 0 : index
    %13 = vector.load %arg1[%c0_12, %c2, %c0_13] : memref<2x90x64xf32, #tpu.memory_space<vmem>>, vector<2x64x64xf32>
    %14 = vector.shape_cast %13 : vector<2x64x64xf32> to vector<128x64xf32>
    %c2_14 = arith.constant 2 : index
    %c0_15 = arith.constant 0 : index
    %c0_16 = arith.constant 0 : index
    %15 = vector.load %arg2[%c2_14, %c0_15, %c0_16] : memref<9x64x128xf32, #tpu.memory_space<vmem>>, vector<1x64x128xf32>
    %16 = vector.shape_cast %15 : vector<1x64x128xf32> to vector<64x128xf32>
    %cst_17 = arith.constant dense<0.000000e+00> : vector<128x128xf32>
    %17 = tpu.matmul %14, %16, %cst_17 {dimension_numbers = #tpu.dot_dimension_numbers<[1], [0], [0], [1], [0, 0, 1, 1], [], []>} : vector<128x64xf32>, vector<64x128xf32>, vector<128x128xf32> -> vector<128x128xf32>
    %18 = arith.addf %12, %17 : vector<128x128xf32>
    %c0_18 = arith.constant 0 : index
    %c9 = arith.constant 9 : index
    %c0_19 = arith.constant 0 : index
    %19 = vector.load %arg1[%c0_18, %c9, %c0_19] : memref<2x90x64xf32, #tpu.memory_space<vmem>>, vector<2x64x64xf32>
    %20 = vector.shape_cast %19 : vector<2x64x64xf32> to vector<128x64xf32>
    %c3 = arith.constant 3 : index
    %c0_20 = arith.constant 0 : index
    %c0_21 = arith.constant 0 : index
    %21 = vector.load %arg2[%c3, %c0_20, %c0_21] : memref<9x64x128xf32, #tpu.memory_space<vmem>>, vector<1x64x128xf32>
    %22 = vector.shape_cast %21 : vector<1x64x128xf32> to vector<64x128xf32>
    %cst_22 = arith.constant dense<0.000000e+00> : vector<128x128xf32>
    %23 = tpu.matmul %20, %22, %cst_22 {dimension_numbers = #tpu.dot_dimension_numbers<[1], [0], [0], [1], [0, 0, 1, 1], [], []>} : vector<128x64xf32>, vector<64x128xf32>, vector<128x128xf32> -> vector<128x128xf32>
    %24 = arith.addf %18, %23 : vector<128x128xf32>
    %c0_23 = arith.constant 0 : index
    %c10 = arith.constant 10 : index
    %c0_24 = arith.constant 0 : index
    %25 = vector.load %arg1[%c0_23, %c10, %c0_24] : memref<2x90x64xf32, #tpu.memory_space<vmem>>, vector<2x64x64xf32>
    %26 = vector.shape_cast %25 : vector<2x64x64xf32> to vector<128x64xf32>
    %c4 = arith.constant 4 : index
    %c0_25 = arith.constant 0 : index
    %c0_26 = arith.constant 0 : index
    %27 = vector.load %arg2[%c4, %c0_25, %c0_26] : memref<9x64x128xf32, #tpu.memory_space<vmem>>, vector<1x64x128xf32>
    %28 = vector.shape_cast %27 : vector<1x64x128xf32> to vector<64x128xf32>
    %cst_27 = arith.constant dense<0.000000e+00> : vector<128x128xf32>
    %29 = tpu.matmul %26, %28, %cst_27 {dimension_numbers = #tpu.dot_dimension_numbers<[1], [0], [0], [1], [0, 0, 1, 1], [], []>} : vector<128x64xf32>, vector<64x128xf32>, vector<128x128xf32> -> vector<128x128xf32>
    %30 = arith.addf %24, %29 : vector<128x128xf32>
    %c0_28 = arith.constant 0 : index
    %c11 = arith.constant 11 : index
    %c0_29 = arith.constant 0 : index
    %31 = vector.load %arg1[%c0_28, %c11, %c0_29] : memref<2x90x64xf32, #tpu.memory_space<vmem>>, vector<2x64x64xf32>
    %32 = vector.shape_cast %31 : vector<2x64x64xf32> to vector<128x64xf32>
    %c5 = arith.constant 5 : index
    %c0_30 = arith.constant 0 : index
    %c0_31 = arith.constant 0 : index
    %33 = vector.load %arg2[%c5, %c0_30, %c0_31] : memref<9x64x128xf32, #tpu.memory_space<vmem>>, vector<1x64x128xf32>
    %34 = vector.shape_cast %33 : vector<1x64x128xf32> to vector<64x128xf32>
    %cst_32 = arith.constant dense<0.000000e+00> : vector<128x128xf32>
    %35 = tpu.matmul %32, %34, %cst_32 {dimension_numbers = #tpu.dot_dimension_numbers<[1], [0], [0], [1], [0, 0, 1, 1], [], []>} : vector<128x64xf32>, vector<64x128xf32>, vector<128x128xf32> -> vector<128x128xf32>
    %36 = arith.addf %30, %35 : vector<128x128xf32>
    %c0_33 = arith.constant 0 : index
    %c18 = arith.constant 18 : index
    %c0_34 = arith.constant 0 : index
    %37 = vector.load %arg1[%c0_33, %c18, %c0_34] : memref<2x90x64xf32, #tpu.memory_space<vmem>>, vector<2x64x64xf32>
    %38 = vector.shape_cast %37 : vector<2x64x64xf32> to vector<128x64xf32>
    %c6 = arith.constant 6 : index
    %c0_35 = arith.constant 0 : index
    %c0_36 = arith.constant 0 : index
    %39 = vector.load %arg2[%c6, %c0_35, %c0_36] : memref<9x64x128xf32, #tpu.memory_space<vmem>>, vector<1x64x128xf32>
    %40 = vector.shape_cast %39 : vector<1x64x128xf32> to vector<64x128xf32>
    %cst_37 = arith.constant dense<0.000000e+00> : vector<128x128xf32>
    %41 = tpu.matmul %38, %40, %cst_37 {dimension_numbers = #tpu.dot_dimension_numbers<[1], [0], [0], [1], [0, 0, 1, 1], [], []>} : vector<128x64xf32>, vector<64x128xf32>, vector<128x128xf32> -> vector<128x128xf32>
    %42 = arith.addf %36, %41 : vector<128x128xf32>
    %c0_38 = arith.constant 0 : index
    %c19 = arith.constant 19 : index
    %c0_39 = arith.constant 0 : index
    %43 = vector.load %arg1[%c0_38, %c19, %c0_39] : memref<2x90x64xf32, #tpu.memory_space<vmem>>, vector<2x64x64xf32>
    %44 = vector.shape_cast %43 : vector<2x64x64xf32> to vector<128x64xf32>
    %c7 = arith.constant 7 : index
    %c0_40 = arith.constant 0 : index
    %c0_41 = arith.constant 0 : index
    %45 = vector.load %arg2[%c7, %c0_40, %c0_41] : memref<9x64x128xf32, #tpu.memory_space<vmem>>, vector<1x64x128xf32>
    %46 = vector.shape_cast %45 : vector<1x64x128xf32> to vector<64x128xf32>
    %cst_42 = arith.constant dense<0.000000e+00> : vector<128x128xf32>
    %47 = tpu.matmul %44, %46, %cst_42 {dimension_numbers = #tpu.dot_dimension_numbers<[1], [0], [0], [1], [0, 0, 1, 1], [], []>} : vector<128x64xf32>, vector<64x128xf32>, vector<128x128xf32> -> vector<128x128xf32>
    %48 = arith.addf %42, %47 : vector<128x128xf32>
    %c0_43 = arith.constant 0 : index
    %c20 = arith.constant 20 : index
    %c0_44 = arith.constant 0 : index
    %49 = vector.load %arg1[%c0_43, %c20, %c0_44] : memref<2x90x64xf32, #tpu.memory_space<vmem>>, vector<2x64x64xf32>
    %50 = vector.shape_cast %49 : vector<2x64x64xf32> to vector<128x64xf32>
    %c8 = arith.constant 8 : index
    %c0_45 = arith.constant 0 : index
    %c0_46 = arith.constant 0 : index
    %51 = vector.load %arg2[%c8, %c0_45, %c0_46] : memref<9x64x128xf32, #tpu.memory_space<vmem>>, vector<1x64x128xf32>
    %52 = vector.shape_cast %51 : vector<1x64x128xf32> to vector<64x128xf32>
    %cst_47 = arith.constant dense<0.000000e+00> : vector<128x128xf32>
    %53 = tpu.matmul %50, %52, %cst_47 {dimension_numbers = #tpu.dot_dimension_numbers<[1], [0], [0], [1], [0, 0, 1, 1], [], []>} : vector<128x64xf32>, vector<64x128xf32>, vector<128x128xf32> -> vector<128x128xf32>
    %54 = arith.addf %48, %53 : vector<128x128xf32>
    %55 = vector.extract_strided_slice %54 {offsets = [0, 0], sizes = [128, 32], strides = [1, 1]} : vector<128x128xf32> to vector<128x32xf32>
    %56 = vector.extract_strided_slice %54 {offsets = [0, 32], sizes = [128, 32], strides = [1, 1]} : vector<128x128xf32> to vector<128x32xf32>
    %57 = arith.maximumf %55, %56 : vector<128x32xf32>
    %58 = vector.extract_strided_slice %54 {offsets = [0, 64], sizes = [128, 32], strides = [1, 1]} : vector<128x128xf32> to vector<128x32xf32>
    %59 = arith.maximumf %57, %58 : vector<128x32xf32>
    %60 = vector.extract_strided_slice %54 {offsets = [0, 96], sizes = [128, 32], strides = [1, 1]} : vector<128x128xf32> to vector<128x32xf32>
    %61 = arith.maximumf %59, %60 : vector<128x32xf32>
    %c0_48 = arith.constant 0 : index
    %c0_49 = arith.constant 0 : index
    %62 = vector.load %arg3[%c0_48, %c0_49] : memref<1x32xf32, #tpu.memory_space<vmem>>, vector<1x32xf32>
    %63 = vector.broadcast %62 : vector<1x32xf32> to vector<128x32xf32>
    %64 = arith.addf %61, %63 : vector<128x32xf32>
    %cst_50 = arith.constant 0.000000e+00 : f32
    %65 = vector.broadcast %cst_50 : f32 to vector<128x32xf32>
    %66 = arith.maximumf %64, %65 : vector<128x32xf32>
    %67 = vector.shape_cast %66 : vector<128x32xf32> to vector<2x64x32xf32>
    %c0_51 = arith.constant 0 : index
    %c0_52 = arith.constant 0 : index
    %c0_53 = arith.constant 0 : index
    %68 = vector.load %arg4[%c0_51, %c0_52, %c0_53] : memref<2x64x32xf32, #tpu.memory_space<vmem>>, vector<2x64x32xf32>
    tpu.vector_store %arg4[%c0_51, %c0_52, %c0_53], %67 {strides = array<i32>} : memref<2x64x32xf32, #tpu.memory_space<vmem>>, vector<2x64x32xf32>,
    return
  }
  func.func @transform_0(%arg0: i32) -> (i32, i32, i32) {
    %c0_i32 = arith.constant 0 : i32
    %c0_i32_0 = arith.constant 0 : i32
    %c0_i32_1 = arith.constant 0 : i32
    return %arg0, %c0_i32, %c0_i32_0 : i32, i32, i32
  }
  func.func @transform_1(%arg0: i32) -> (i32, i32, i32) {
    %c0_i32 = arith.constant 0 : i32
    %c0_i32_0 = arith.constant 0 : i32
    %c0_i32_1 = arith.constant 0 : i32
    %c0_i32_2 = arith.constant 0 : i32
    return %c0_i32, %c0_i32_0, %c0_i32_1 : i32, i32, i32
  }
  func.func @transform_2(%arg0: i32) -> (i32, i32) {
    %c0_i32 = arith.constant 0 : i32
    %c0_i32_0 = arith.constant 0 : i32
    %c0_i32_1 = arith.constant 0 : i32
    return %c0_i32, %c0_i32_0 : i32, i32
  }
  func.func @transform_3(%arg0: i32) -> (i32, i32, i32) {
    %c0_i32 = arith.constant 0 : i32
    %c0_i32_0 = arith.constant 0 : i32
    %c0_i32_1 = arith.constant 0 : i32
    return %arg0, %c0_i32, %c0_i32_0 : i32, i32, i32
  }
}

module attributes {stable_mosaic.version = 11 : i64} {
  func.func @_linear_kernel(%arg0: i32, %arg1: memref<8x1568xf32, #tpu.memory_space<vmem>>, %arg2: memref<1568x128xf32, #tpu.memory_space<vmem>>, %arg3: memref<1x128xf32, #tpu.memory_space<vmem>>, %arg4: memref<8x128xf32, #tpu.memory_space<vmem>>) attributes {dimension_semantics = [#tpu.dimension_semantics<parallel>], iteration_bounds = array<i64: 1>, scalar_prefetch = 0 : i64, scratch_operands = 0 : i64, tpu.core_type = #tpu.core_type<tc>, window_params = [{transform_indices = @transform_0, window_bounds = array<i64: 8, 1568>}, {pipeline_mode = #tpu.pipeline_mode<synchronous>, transform_indices = @transform_1, window_bounds = array<i64: 1568, 128>}, {pipeline_mode = #tpu.pipeline_mode<synchronous>, transform_indices = @transform_2, window_bounds = array<i64: 1, 128>}, {transform_indices = @transform_3, window_bounds = array<i64: 8, 128>}]} {
    %c0 = arith.constant 0 : index
    %c0_0 = arith.constant 0 : index
    %0 = vector.load %arg1[%c0, %c0_0] : memref<8x1568xf32, #tpu.memory_space<vmem>>, vector<8x1568xf32>
    %c0_1 = arith.constant 0 : index
    %c0_2 = arith.constant 0 : index
    %1 = vector.load %arg2[%c0_1, %c0_2] : memref<1568x128xf32, #tpu.memory_space<vmem>>, vector<1568x128xf32>
    %cst = arith.constant dense<0.000000e+00> : vector<8x128xf32>
    %2 = tpu.matmul %0, %1, %cst {dimension_numbers = #tpu.dot_dimension_numbers<[1], [0], [0], [1], [0, 0, 1, 1], [], []>} : vector<8x1568xf32>, vector<1568x128xf32>, vector<8x128xf32> -> vector<8x128xf32>
    %c0_3 = arith.constant 0 : index
    %c0_4 = arith.constant 0 : index
    %3 = vector.load %arg3[%c0_3, %c0_4] : memref<1x128xf32, #tpu.memory_space<vmem>>, vector<1x128xf32>
    %4 = vector.broadcast %3 : vector<1x128xf32> to vector<8x128xf32>
    %5 = arith.addf %2, %4 : vector<8x128xf32>
    %c0_5 = arith.constant 0 : index
    %c0_6 = arith.constant 0 : index
    %6 = vector.load %arg4[%c0_5, %c0_6] : memref<8x128xf32, #tpu.memory_space<vmem>>, vector<8x128xf32>
    tpu.vector_store %arg4[%c0_5, %c0_6], %5 {strides = array<i32>} : memref<8x128xf32, #tpu.memory_space<vmem>>, vector<8x128xf32>,
    return
  }
  func.func @transform_0(%arg0: i32) -> (i32, i32) {
    %c0_i32 = arith.constant 0 : i32
    %c0_i32_0 = arith.constant 0 : i32
    return %arg0, %c0_i32 : i32, i32
  }
  func.func @transform_1(%arg0: i32) -> (i32, i32) {
    %c0_i32 = arith.constant 0 : i32
    %c0_i32_0 = arith.constant 0 : i32
    %c0_i32_1 = arith.constant 0 : i32
    return %c0_i32, %c0_i32_0 : i32, i32
  }
  func.func @transform_2(%arg0: i32) -> (i32, i32) {
    %c0_i32 = arith.constant 0 : i32
    %c0_i32_0 = arith.constant 0 : i32
    %c0_i32_1 = arith.constant 0 : i32
    return %c0_i32, %c0_i32_0 : i32, i32
  }
  func.func @transform_3(%arg0: i32) -> (i32, i32) {
    %c0_i32 = arith.constant 0 : i32
    %c0_i32_0 = arith.constant 0 : i32
    return %arg0, %c0_i32 : i32, i32
  }
}

</mosaic_0001>

<llo_original>
// kernel: cnn_forward.4
$region0: #{cnn_forward.4}
  #allocation0 [shape = 'u32[]', space=smem, size = 0x4, offset = 0x4, fixed_abs, tag = 'smem constant byte address 0x4 - core index']
  #allocation1 [shape = 'u32[144,128]{1,0:T(1,128)}', space=vmem, size = 0x12000, scoped, tag = 'internal scratch']
  %s0 = inlined_call_operand.vmem [shape: f32[2,90,64], index: 0, kind: input, shape index: {}]
  %s1 = inlined_call_operand.vmem [shape: f32[9,64,128], index: 1, kind: input, shape index: {}]
  %s2 = inlined_call_operand.vmem [shape: f32[1,32], index: 2, kind: input, shape index: {}]
  %s3 = inlined_call_operand.vmem [shape: f32[2,64,32], index: 3, kind: output, shape index: {}]
  %s4 = sld [smem:[#allocation0]]
  $region22: #{cnn_forward.4} parent=0
    _
  %s6 = ssub.s32 1, %s4
  %s7 = scalar_select 0, %s6, %s4
  // Predicated region
  $region2: #{cnn_forward.4} parent=0 // pred_check
    _
  $region3: #{cnn_forward.4} parent=0 // pred_check_branch
    %9 = sbr.rel (0) target = $region5
  $region4: #{cnn_forward.4} parent=0 // pred_region
    _
  $region5: #{cnn_forward.4} parent=0 // pred_fallthru
    _
  // Predicated region
  $region6: #{cnn_forward.4} parent=0 // pred_check
    _
  $region7: #{cnn_forward.4} parent=0 // pred_check_branch
    %11 = sbr.rel (0) target = $region9
  $region8: #{cnn_forward.4} parent=0 // pred_region
    _
  $region9: #{cnn_forward.4} parent=0 // pred_fallthru
    _
  // Predicated region
  $region10: #{cnn_forward.4} parent=0 // pred_check
    _
  $region11: #{cnn_forward.4} parent=0 // pred_check_branch
    %13 = sbr.rel (0) target = $region13
  $region12: #{cnn_forward.4} parent=0 // pred_region
    _
  $region13: #{cnn_forward.4} parent=0 // pred_fallthru
    _
  %v14 = vld [vmem:[%s0] sm:$0xff]
  %v15 = vld [vmem:[%s0 + $0x8] sm:$0xff]
  %v16 = vld [vmem:[%s0 + $0x10] sm:$0xff]
  %v17 = vld [vmem:[%s0 + $0x18] sm:$0xff]
  %v18 = vld [vmem:[%s0 + $0x20] sm:$0xff]
  %v19 = vld [vmem:[%s0 + $0x28] sm:$0xff]
  %v20 = vld [vmem:[%s0 + $0x30] sm:$0xff]
  %v21 = vld [vmem:[%s0 + $0x38] sm:$0xff]
  %v22 = vld [vmem:[%s0 + $0x60] sm:$0xff]
  %v23 = vld [vmem:[%s0 + $0x68] sm:$0xff]
  %v24 = vld [vmem:[%s0 + $0x70] sm:$0xff]
  %v25 = vld [vmem:[%s0 + $0x78] sm:$0xff]
  %v26 = vld [vmem:[%s0 + $0x80] sm:$0xff]
  %v27 = vld [vmem:[%s0 + $0x88] sm:$0xff]
  %v28 = vld [vmem:[%s0 + $0x90] sm:$0xff]
  %v29 = vld [vmem:[%s0 + $0x98] sm:$0xff]
  %v30 = vld [vmem:[%s1] sm:$0xff]
  %v31 = vld [vmem:[%s1 + $0x8] sm:$0xff]
  %v32 = vld [vmem:[%s1 + $0x10] sm:$0xff]
  %v33 = vld [vmem:[%s1 + $0x18] sm:$0xff]
  %v34 = vld [vmem:[%s1 + $0x20] sm:$0xff]
  %v35 = vld [vmem:[%s1 + $0x28] sm:$0xff]
  %v36 = vld [vmem:[%s1 + $0x30] sm:$0xff]
  %v37 = vld [vmem:[%s1 + $0x38] sm:$0xff]
  %v38 = vld [vmem:[%s0 + $0x1] sm:$0xff]
  %v39 = vld [vmem:[%s0 + $0x9] sm:$0xff]
  %v40 = vld [vmem:[%s0 + $0x11] sm:$0xff]
  %v41 = vld [vmem:[%s0 + $0x19] sm:$0xff]
  %v42 = vld [vmem:[%s0 + $0x21] sm:$0xff]
  %v43 = vld [vmem:[%s0 + $0x29] sm:$0xff]
  %v44 = vld [vmem:[%s0 + $0x31] sm:$0xff]
  %v45 = vld [vmem:[%s0 + $0x39] sm:$0xff]
  %v46 = vld [vmem:[%s0 + $0x61] sm:$0xff]
  %v47 = vld [vmem:[%s0 + $0x69] sm:$0xff]
  %v48 = vld [vmem:[%s0 + $0x71] sm:$0xff]
  %v49 = vld [vmem:[%s0 + $0x79] sm:$0xff]
  %v50 = vld [vmem:[%s0 + $0x81] sm:$0xff]
  %v51 = vld [vmem:[%s0 + $0x89] sm:$0xff]
  %v52 = vld [vmem:[%s0 + $0x91] sm:$0xff]
  %v53 = vld [vmem:[%s0 + $0x99] sm:$0xff]
  %s54 = scalar_lea.vmem %s1, 64
  %v55 = vld [vmem:[%s54] sm:$0xff]
  %v56 = vld [vmem:[%s54 + $0x8] sm:$0xff]
  %v57 = vld [vmem:[%s54 + $0x10] sm:$0xff]
  %v58 = vld [vmem:[%s54 + $0x18] sm:$0xff]
  %v59 = vld [vmem:[%s54 + $0x20] sm:$0xff]
  %v60 = vld [vmem:[%s54 + $0x28] sm:$0xff]
  %v61 = vld [vmem:[%s54 + $0x30] sm:$0xff]
  %v62 = vld [vmem:[%s54 + $0x38] sm:$0xff]
  %vm63 = vcmask 523264
  %v65 = vsel %vm63, %v38, 0
  %v68 = vsel %vm63, %v39, 0
  %v71 = vsel %vm63, %v40, 0
  %v74 = vsel %vm63, %v41, 0
  %v77 = vsel %vm63, %v42, 0
  %v80 = vsel %vm63, %v43, 0
  %v83 = vsel %vm63, %v44, 0
  %v86 = vsel %vm63, %v45, 0
  %v89 = vsel %vm63, %v46, 0
  %v92 = vsel %vm63, %v47, 0
  %v95 = vsel %vm63, %v48, 0
  %v98 = vsel %vm63, %v49, 0
  %v101 = vsel %vm63, %v50, 0
  %v104 = vsel %vm63, %v51, 0
  %v107 = vsel %vm63, %v52, 0
  %v110 = vsel %vm63, %v53, 0
  %112 = vmatprep.subr.mxu0 0.0
  %113 = vmatpush1.msra.mxu0 %v55
  %114 = vmatprep.subr.mxu0 0.0
  %115 = vmatpush1.msra.mxu0 %v56
  %116 = vmatprep.subr.mxu0 0.0
  %117 = vmatpush1.msra.mxu0 %v57
  %118 = vmatprep.subr.mxu0 0.0
  %119 = vmatpush1.msra.mxu0 %v58
  %120 = vmatprep.subr.mxu0 0.0
  %121 = vmatpush1.msra.mxu0 %v59
  %122 = vmatprep.subr.mxu0 0.0
  %123 = vmatpush1.msra.mxu0 %v60
  %124 = vmatprep.subr.mxu0 0.0
  %125 = vmatpush1.msra.mxu0 %v61
  %126 = vmatprep.subr.mxu0 0.0
  %127 = vmatpush1.msra.mxu0 %v62
  %128 = vmatprep.subr.mxu0 0.0
  %129 = vmatpush1.msra.mxu0 0.0
  %130 = vmatprep.subr.mxu0 0.0
  %131 = vmatpush1.msra.mxu0 0.0
  %132 = vmatprep.subr.mxu0 0.0
  %133 = vmatpush1.msra.mxu0 0.0
  %134 = vmatprep.subr.mxu0 0.0
  %135 = vmatpush1.msra.mxu0 0.0
  %136 = vmatprep.subr.mxu0 0.0
  %137 = vmatpush1.msra.mxu0 0.0
  %138 = vmatprep.subr.mxu0 0.0
  %139 = vmatpush1.msra.mxu0 0.0
  %140 = vmatprep.subr.mxu0 0.0
  %141 = vmatpush1.msra.mxu0 0.0
  %142 = vmatprep.subr.mxu0 0.0
  %143 = vmatpush1.msra.mxu0 0.0
  %144 = vmatprep.subr.mxu0 0.0
  %145 = vmatpush1.msra.mxu0 0.0
  %146 = vmatprep.subr.mxu0 0.0
  %147 = vmatpush1.msra.mxu0 0.0
  %148 = vmatprep.subr.mxu0 0.0
  %149 = vmatpush1.msra.mxu0 0.0
  %150 = vmatprep.subr.mxu0 0.0
  %151 = vmatpush1.msra.mxu0 0.0
  %152 = vmatprep.subr.mxu0 0.0
  %153 = vmatpush1.msra.mxu0 0.0
  %154 = vmatprep.subr.mxu0 0.0
  %155 = vmatpush1.msra.mxu0 0.0
  %156 = vmatprep.subr.mxu0 0.0
  %157 = vmatpush1.msra.mxu0 0.0
  %158 = vmatprep.subr.mxu0 0.0
  %159 = vmatpush1.msra.mxu0 0.0
  %160 = vmatprep.subr.mxu0 0.0
  %161 = vmatpush1.msra.mxu0 0.0
  %162 = vmatprep.subr.mxu0 0.0
  %163 = vmatpush1.msra.mxu0 0.0
  %164 = vmatprep.subr.mxu0 0.0
  %165 = vmatpush1.msra.mxu0 0.0
  %166 = vmatprep.subr.mxu0 0.0
  %167 = vmatpush1.msra.mxu0 0.0
  %168 = vmatprep.subr.mxu0 0.0
  %169 = vmatpush1.msra.mxu0 0.0
  %170 = vmatprep.subr.mxu0 0.0
  %171 = vmatpush1.msra.mxu0 0.0
  %172 = vmatprep.subr.mxu0 0.0
  %173 = vmatpush1.msra.mxu0 0.0
  %174 = vmatprep.subr.mxu0 0.0
  %175 = vmatpush1.msra.mxu0 0.0
  %176 = vmatprep.mubr.f32.mxu0 0.0
  %177 = vmatmul.mubr.f32.gmra.mrb[0].mxu0 %v65
  %v178 = vpop.f32.mrb[0].mxu0
  %v179 = vadd.f32 0.0, %v178
  %v180 = vpop.f32.mrb[0].mxu0
  %181 = vmatprep.mubr.f32.mxu0 0.0
  %182 = vmatmul.mubr.f32.gmra.mrb[0].mxu0 %v68
  %v183 = vpop.f32.mrb[0].mxu0
  %v184 = vadd.f32 0.0, %v183
  %v185 = vpop.f32.mrb[0].mxu0
  %186 = vmatprep.mubr.f32.mxu0 0.0
  %187 = vmatmul.mubr.f32.gmra.mrb[0].mxu0 %v71
  %v188 = vpop.f32.mrb[0].mxu0
  %v189 = vadd.f32 0.0, %v188
  %v190 = vpop.f32.mrb[0].mxu0
  %191 = vmatprep.mubr.f32.mxu0 0.0
  %192 = vmatmul.mubr.f32.gmra.mrb[0].mxu0 %v74
  %v193 = vpop.f32.mrb[0].mxu0
  %v194 = vadd.f32 0.0, %v193
  %v195 = vpop.f32.mrb[0].mxu0
  %196 = vmatprep.mubr.f32.mxu0 0.0
  %197 = vmatmul.mubr.f32.gmra.mrb[0].mxu0 %v77
  %v198 = vpop.f32.mrb[0].mxu0
  %v199 = vadd.f32 0.0, %v198
  %v200 = vpop.f32.mrb[0].mxu0
  %201 = vmatprep.mubr.f32.mxu0 0.0
  %202 = vmatmul.mubr.f32.gmra.mrb[0].mxu0 %v80
  %v203 = vpop.f32.mrb[0].mxu0
  %v204 = vadd.f32 0.0, %v203
  %v205 = vpop.f32.mrb[0].mxu0
  %206 = vmatprep.mubr.f32.mxu0 0.0
  %207 = vmatmul.mubr.f32.gmra.mrb[0].mxu0 %v83
  %v208 = vpop.f32.mrb[0].mxu0
  %v209 = vadd.f32 0.0, %v208
  %v210 = vpop.f32.mrb[0].mxu0
  %211 = vmatprep.mubr.f32.mxu0 0.0
  %212 = vmatmul.mubr.f32.gmra.mrb[0].mxu0 %v86
  %v213 = vpop.f32.mrb[0].mxu0
  %v214 = vadd.f32 0.0, %v213
  %v215 = vpop.f32.mrb[0].mxu0
  %216 = vmatprep.mubr.f32.mxu0 0.0
  %217 = vmatmul.mubr.f32.gmra.mrb[0].mxu0 %v89
  %v218 = vpop.f32.mrb[0].mxu0
  %v219 = vadd.f32 0.0, %v218
  %v220 = vpop.f32.mrb[0].mxu0
  %221 = vmatprep.mubr.f32.mxu0 0.0
  %222 = vmatmul.mubr.f32.gmra.mrb[0].mxu0 %v92
  %v223 = vpop.f32.mrb[0].mxu0
  %v224 = vadd.f32 0.0, %v223
  %v225 = vpop.f32.mrb[0].mxu0
  %226 = vmatprep.mubr.f32.mxu0 0.0
  %227 = vmatmul.mubr.f32.gmra.mrb[0].mxu0 %v95
  %v228 = vpop.f32.mrb[0].mxu0
  %v229 = vadd.f32 0.0, %v228
  %v230 = vpop.f32.mrb[0].mxu0
  %231 = vmatprep.mubr.f32.mxu0 0.0
  %232 = vmatmul.mubr.f32.gmra.mrb[0].mxu0 %v98
  %v233 = vpop.f32.mrb[0].mxu0
  %v234 = vadd.f32 0.0, %v233
  %v235 = vpop.f32.mrb[0].mxu0
  %236 = vmatprep.mubr.f32.mxu0 0.0
  %237 = vmatmul.mubr.f32.gmra.mrb[0].mxu0 %v101
  %v238 = vpop.f32.mrb[0].mxu0
  %v239 = vadd.f32 0.0, %v238
  %v240 = vpop.f32.mrb[0].mxu0
  %241 = vmatprep.mubr.f32.mxu0 0.0
  %242 = vmatmul.mubr.f32.gmra.mrb[0].mxu0 %v104
  %v243 = vpop.f32.mrb[0].mxu0
  %v244 = vadd.f32 0.0, %v243
  %v245 = vpop.f32.mrb[0].mxu0
  %246 = vmatprep.mubr.f32.mxu0 0.0
  %247 = vmatmul.mubr.f32.gmra.mrb[0].mxu0 %v107
  %v248 = vpop.f32.mrb[0].mxu0
  %v249 = vadd.f32 0.0, %v248
  %v250 = vpop.f32.mrb[0].mxu0
  %251 = vmatprep.mubr.f32.mxu0 0.0
  %252 = vmatmul.mubr.f32.gmra.mrb[0].mxu0 %v110
  %v253 = vpop.f32.mrb[0].mxu0
  %v254 = vadd.f32 0.0, %v253
  %v255 = vpop.f32.mrb[0].mxu0
  %256 = vdwg.mxu0
  %v258 = vsel %vm63, %v14, 0
  %v261 = vsel %vm63, %v15, 0
  %v264 = vsel %vm63, %v16, 0
  %v267 = vsel %vm63, %v17, 0
  %v270 = vsel %vm63, %v18, 0
  %v273 = vsel %vm63, %v19, 0
  %v276 = vsel %vm63, %v20, 0
  %v279 = vsel %vm63, %v21, 0
  %v282 = vsel %vm63, %v22, 0
  %v285 = vsel %vm63, %v23, 0
  %v288 = vsel %vm63, %v24, 0
  %v291 = vsel %vm63, %v25, 0
  %v294 = vsel %vm63, %v26, 0
  %v297 = vsel %vm63, %v27, 0
  %v300 = vsel %vm63, %v28, 0
  %v303 = vsel %vm63, %v29, 0
  %305 = vmatprep.subr.mxu0 0.0
  %306 = vmatpush1.msra.mxu0 %v30
  %307 = vmatprep.subr.mxu0 0.0
  %308 = vmatpush1.msra.mxu0 %v31
  %309 = vmatprep.subr.mxu0 0.0
  %310 = vmatpush1.msra.mxu0 %v32
  %311 = vmatprep.subr.mxu0 0.0
  %312 = vmatpush1.msra.mxu0 %v33
  %313 = vmatprep.subr.mxu0 0.0
  %314 = vmatpush1.msra.mxu0 %v34
  %315 = vmatprep.subr.mxu0 0.0
  %316 = vmatpush1.msra.mxu0 %v35
  %317 = vmatprep.subr.mxu0 0.0
  %318 = vmatpush1.msra.mxu0 %v36
  %319 = vmatprep.subr.mxu0 0.0
  %320 = vmatpush1.msra.mxu0 %v37
  %321 = vmatprep.subr.mxu0 0.0
  %322 = vmatpush1.msra.mxu0 0.0
  %323 = vmatprep.subr.mxu0 0.0
  %324 = vmatpush1.msra.mxu0 0.0
  %325 = vmatprep.subr.mxu0 0.0
  %326 = vmatpush1.msra.mxu0 0.0
  %327 = vmatprep.subr.mxu0 0.0
  %328 = vmatpush1.msra.mxu0 0.0
  %329 = vmatprep.subr.mxu0 0.0
  %330 = vmatpush1.msra.mxu0 0.0
  %331 = vmatprep.subr.mxu0 0.0
  %332 = vmatpush1.msra.mxu0 0.0
  %333 = vmatprep.subr.mxu0 0.0
  %334 = vmatpush1.msra.mxu0 0.0
  %335 = vmatprep.subr.mxu0 0.0
  %336 = vmatpush1.msra.mxu0 0.0
  %337 = vmatprep.subr.mxu0 0.0
  %338 = vmatpush1.msra.mxu0 0.0
  %339 = vmatprep.subr.mxu0 0.0
  %340 = vmatpush1.msra.mxu0 0.0
  %341 = vmatprep.subr.mxu0 0.0
  %342 = vmatpush1.msra.mxu0 0.0
  %343 = vmatprep.subr.mxu0 0.0
  %344 = vmatpush1.msra.mxu0 0.0
  %345 = vmatprep.subr.mxu0 0.0
  %346 = vmatpush1.msra.mxu0 0.0
  %347 = vmatprep.subr.mxu0 0.0
  %348 = vmatpush1.msra.mxu0 0.0
  %349 = vmatprep.subr.mxu0 0.0
  %350 = vmatpush1.msra.mxu0 0.0
  %351 = vmatprep.subr.mxu0 0.0
  %352 = vmatpush1.msra.mxu0 0.0
  %353 = vmatprep.subr.mxu0 0.0
  %354 = vmatpush1.msra.mxu0 0.0
  %355 = vmatprep.subr.mxu0 0.0
  %356 = vmatpush1.msra.mxu0 0.0
  %357 = vmatprep.subr.mxu0 0.0
  %358 = vmatpush1.msra.mxu0 0.0
  %359 = vmatprep.subr.mxu0 0.0
  %360 = vmatpush1.msra.mxu0 0.0
  %361 = vmatprep.subr.mxu0 0.0
  %362 = vmatpush1.msra.mxu0 0.0
  %363 = vmatprep.subr.mxu0 0.0
  %364 = vmatpush1.msra.mxu0 0.0
  %365 = vmatprep.subr.mxu0 0.0
  %366 = vmatpush1.msra.mxu0 0.0
  %367 = vmatprep.subr.mxu0 0.0
  %368 = vmatpush1.msra.mxu0 0.0
  %369 = vmatprep.mubr.f32.mxu0 0.0
  %370 = vmatmul.mubr.f32.gmra.mrb[0].mxu0 %v258
  %v371 = vpop.f32.mrb[0].mxu0
  %v372 = vadd.f32 %v179, %v371
  %v373 = vpop.f32.mrb[0].mxu0
  %374 = vmatprep.mubr.f32.mxu0 0.0
  %375 = vmatmul.mubr.f32.gmra.mrb[0].mxu0 %v261
  %v376 = vpop.f32.mrb[0].mxu0
  %v377 = vadd.f32 %v184, %v376
  %v378 = vpop.f32.mrb[0].mxu0
  %379 = vmatprep.mubr.f32.mxu0 0.0
  %380 = vmatmul.mubr.f32.gmra.mrb[0].mxu0 %v264
  %v381 = vpop.f32.mrb[0].mxu0
  %v382 = vadd.f32 %v189, %v381
  %v383 = vpop.f32.mrb[0].mxu0
  %384 = vmatprep.mubr.f32.mxu0 0.0
  %385 = vmatmul.mubr.f32.gmra.mrb[0].mxu0 %v267
  %v386 = vpop.f32.mrb[0].mxu0
  %v387 = vadd.f32 %v194, %v386
  %v388 = vpop.f32.mrb[0].mxu0
  %389 = vmatprep.mubr.f32.mxu0 0.0
  %390 = vmatmul.mubr.f32.gmra.mrb[0].mxu0 %v270
  %v391 = vpop.f32.mrb[0].mxu0
  %v392 = vadd.f32 %v199, %v391
  %v393 = vpop.f32.mrb[0].mxu0
  %394 = vmatprep.mubr.f32.mxu0 0.0
  %395 = vmatmul.mubr.f32.gmra.mrb[0].mxu0 %v273
  %v396 = vpop.f32.mrb[0].mxu0
  %v397 = vadd.f32 %v204, %v396
  %v398 = vpop.f32.mrb[0].mxu0
  %399 = vmatprep.mubr.f32.mxu0 0.0
  %400 = vmatmul.mubr.f32.gmra.mrb[0].mxu0 %v276
  %v401 = vpop.f32.mrb[0].mxu0
  %v402 = vadd.f32 %v209, %v401
  %v403 = vpop.f32.mrb[0].mxu0
  %404 = vmatprep.mubr.f32.mxu0 0.0
  %405 = vmatmul.mubr.f32.gmra.mrb[0].mxu0 %v279
  %v406 = vpop.f32.mrb[0].mxu0
  %v407 = vadd.f32 %v214, %v406
  %v408 = vpop.f32.mrb[0].mxu0
  %409 = vmatprep.mubr.f32.mxu0 0.0
  %410 = vmatmul.mubr.f32.gmra.mrb[0].mxu0 %v282
  %v411 = vpop.f32.mrb[0].mxu0
  %v412 = vadd.f32 %v219, %v411
  %v413 = vpop.f32.mrb[0].mxu0
  %414 = vmatprep.mubr.f32.mxu0 0.0
  %415 = vmatmul.mubr.f32.gmra.mrb[0].mxu0 %v285
  %v416 = vpop.f32.mrb[0].mxu0
  %v417 = vadd.f32 %v224, %v416
  %v418 = vpop.f32.mrb[0].mxu0
  %419 = vmatprep.mubr.f32.mxu0 0.0
  %420 = vmatmul.mubr.f32.gmra.mrb[0].mxu0 %v288
  %v421 = vpop.f32.mrb[0].mxu0
  %v422 = vadd.f32 %v229, %v421
  %v423 = vpop.f32.mrb[0].mxu0
  %424 = vmatprep.mubr.f32.mxu0 0.0
  %425 = vmatmul.mubr.f32.gmra.mrb[0].mxu0 %v291
  %v426 = vpop.f32.mrb[0].mxu0
  %v427 = vadd.f32 %v234, %v426
  %v428 = vpop.f32.mrb[0].mxu0
  %429 = vmatprep.mubr.f32.mxu0 0.0
  %430 = vmatmul.mubr.f32.gmra.mrb[0].mxu0 %v294
  %v431 = vpop.f32.mrb[0].mxu0
  %v432 = vadd.f32 %v239, %v431
  %v433 = vpop.f32.mrb[0].mxu0
  %434 = vmatprep.mubr.f32.mxu0 0.0
  %435 = vmatmul.mubr.f32.gmra.mrb[0].mxu0 %v297
  %v436 = vpop.f32.mrb[0].mxu0
  %v437 = vadd.f32 %v244, %v436
  %v438 = vpop.f32.mrb[0].mxu0
  %439 = vmatprep.mubr.f32.mxu0 0.0
  %440 = vmatmul.mubr.f32.gmra.mrb[0].mxu0 %v300
  %v441 = vpop.f32.mrb[0].mxu0
  %v442 = vadd.f32 %v249, %v441
  %v443 = vpop.f32.mrb[0].mxu0
  %444 = vmatprep.mubr.f32.mxu0 0.0
  %445 = vmatmul.mubr.f32.gmra.mrb[0].mxu0 %v303
  %v446 = vpop.f32.mrb[0].mxu0
  %v447 = vadd.f32 %v254, %v446
  %v448 = vpop.f32.mrb[0].mxu0
  %449 = vdwg.mxu0
  %v450 = vld [vmem:[%s0 + $0x2] sm:$0xff]
  %v451 = vld [vmem:[%s0 + $0xa] sm:$0xff]
  %v452 = vld [vmem:[%s0 + $0x12] sm:$0xff]
  %v453 = vld [vmem:[%s0 + $0x1a] sm:$0xff]
  %v454 = vld [vmem:[%s0 + $0x22] sm:$0xff]
  %v455 = vld [vmem:[%s0 + $0x2a] sm:$0xff]
  %v456 = vld [vmem:[%s0 + $0x32] sm:$0xff]
  %v457 = vld [vmem:[%s0 + $0x3a] sm:$0xff]
  %v458 = vld [vmem:[%s0 + $0x62] sm:$0xff]
  %v459 = vld [vmem:[%s0 + $0x6a] sm:$0xff]
  %v460 = vld [vmem:[%s0 + $0x72] sm:$0xff]
  %v461 = vld [vmem:[%s0 + $0x7a] sm:$0xff]
  %v462 = vld [vmem:[%s0 + $0x82] sm:$0xff]
  %v463 = vld [vmem:[%s0 + $0x8a] sm:$0xff]
  %v464 = vld [vmem:[%s0 + $0x92] sm:$0xff]
  %v465 = vld [vmem:[%s0 + $0x9a] sm:$0xff]
  %s466 = scalar_lea.vmem %s1, 128
  %v467 = vld [vmem:[%s466] sm:$0xff]
  %v468 = vld [vmem:[%s466 + $0x8] sm:$0xff]
  %v469 = vld [vmem:[%s466 + $0x10] sm:$0xff]
  %v470 = vld [vmem:[%s466 + $0x18] sm:$0xff]
  %v471 = vld [vmem:[%s466 + $0x20] sm:$0xff]
  %v472 = vld [vmem:[%s466 + $0x28] sm:$0xff]
  %v473 = vld [vmem:[%s466 + $0x30] sm:$0xff]
  %v474 = vld [vmem:[%s466 + $0x38] sm:$0xff]
  %v476 = vsel %vm63, %v450, 0
  %v479 = vsel %vm63, %v451, 0
  %v482 = vsel %vm63, %v452, 0
  %v485 = vsel %vm63, %v453, 0
  %v488 = vsel %vm63, %v454, 0
  %v491 = vsel %vm63, %v455, 0
  %v494 = vsel %vm63, %v456, 0
  %v497 = vsel %vm63, %v457, 0
  %v500 = vsel %vm63, %v458, 0
  %v503 = vsel %vm63, %v459, 0
  %v506 = vsel %vm63, %v460, 0
  %v509 = vsel %vm63, %v461, 0
  %v512 = vsel %vm63, %v462, 0
  %v515 = vsel %vm63, %v463, 0
  %v518 = vsel %vm63, %v464, 0
  %v521 = vsel %vm63, %v465, 0
  %523 = vmatprep.subr.mxu0 0.0
  %524 = vmatpush1.msra.mxu0 %v467
  %525 = vmatprep.subr.mxu0 0.0
  %526 = vmatpush1.msra.mxu0 %v468
  %527 = vmatprep.subr.mxu0 0.0
  %528 = vmatpush1.msra.mxu0 %v469
  %529 = vmatprep.subr.mxu0 0.0
  %530 = vmatpush1.msra.mxu0 %v470
  %531 = vmatprep.subr.mxu0 0.0
  %532 = vmatpush1.msra.mxu0 %v471
  %533 = vmatprep.subr.mxu0 0.0
  %534 = vmatpush1.msra.mxu0 %v472
  %535 = vmatprep.subr.mxu0 0.0
  %536 = vmatpush1.msra.mxu0 %v473
  %537 = vmatprep.subr.mxu0 0.0
  %538 = vmatpush1.msra.mxu0 %v474
  %539 = vmatprep.subr.mxu0 0.0
  %540 = vmatpush1.msra.mxu0 0.0
  %541 = vmatprep.subr.mxu0 0.0
  %542 = vmatpush1.msra.mxu0 0.0
  %543 = vmatprep.subr.mxu0 0.0
  %544 = vmatpush1.msra.mxu0 0.0
  %545 = vmatprep.subr.mxu0 0.0
  %546 = vmatpush1.msra.mxu0 0.0
  %547 = vmatprep.subr.mxu0 0.0
  %548 = vmatpush1.msra.mxu0 0.0
  %549 = vmatprep.subr.mxu0 0.0
  %550 = vmatpush1.msra.mxu0 0.0
  %551 = vmatprep.subr.mxu0 0.0
  %552 = vmatpush1.msra.mxu0 0.0
  %553 = vmatprep.subr.mxu0 0.0
  %554 = vmatpush1.msra.mxu0 0.0
  %555 = vmatprep.subr.mxu0 0.0
  %556 = vmatpush1.msra.mxu0 0.0
  %557 = vmatprep.subr.mxu0 0.0
  %558 = vmatpush1.msra.mxu0 0.0
  %559 = vmatprep.subr.mxu0 0.0
  %560 = vmatpush1.msra.mxu0 0.0
  %561 = vmatprep.subr.mxu0 0.0
  %562 = vmatpush1.msra.mxu0 0.0
  %563 = vmatprep.subr.mxu0 0.0
  %564 = vmatpush1.msra.mxu0 0.0
  %565 = vmatprep.subr.mxu0 0.0
  %566 = vmatpush1.msra.mxu0 0.0
  %567 = vmatprep.subr.mxu0 0.0
  %568 = vmatpush1.msra.mxu0 0.0
  %569 = vmatprep.subr.mxu0 0.0
  %570 = vmatpush1.msra.mxu0 0.0
  %571 = vmatprep.subr.mxu0 0.0
  %572 = vmatpush1.msra.mxu0 0.0
  %573 = vmatprep.subr.mxu0 0.0
  %574 = vmatpush1.msra.mxu0 0.0
  %575 = vmatprep.subr.mxu0 0.0
  %576 = vmatpush1.msra.mxu0 0.0
  %577 = vmatprep.subr.mxu0 0.0
  %578 = vmatpush1.msra.mxu0 0.0
  %579 = vmatprep.subr.mxu0 0.0
  %580 = vmatpush1.msra.mxu0 0.0
  %581 = vmatprep.subr.mxu0 0.0
  %582 = vmatpush1.msra.mxu0 0.0
  %583 = vmatprep.subr.mxu0 0.0
  %584 = vmatpush1.msra.mxu0 0.0
  %585 = vmatprep.subr.mxu0 0.0
  %586 = vmatpush1.msra.mxu0 0.0
  %587 = vmatprep.mubr.f32.mxu0 0.0
  %588 = vmatmul.mubr.f32.gmra.mrb[0].mxu0 %v476
  %v589 = vpop.f32.mrb[0].mxu0
  %v590 = vadd.f32 0.0, %v589
  %v591 = vpop.f32.mrb[0].mxu0
  %592 = vmatprep.mubr.f32.mxu0 0.0
  %593 = vmatmul.mubr.f32.gmra.mrb[0].mxu0 %v479
  %v594 = vpop.f32.mrb[0].mxu0
  %v595 = vadd.f32 0.0, %v594
  %v596 = vpop.f32.mrb[0].mxu0
  %597 = vmatprep.mubr.f32.mxu0 0.0
  %598 = vmatmul.mubr.f32.gmra.mrb[0].mxu0 %v482
  %v599 = vpop.f32.mrb[0].mxu0
  %v600 = vadd.f32 0.0, %v599
  %v601 = vpop.f32.mrb[0].mxu0
  %602 = vmatprep.mubr.f32.mxu0 0.0
  %603 = vmatmul.mubr.f32.gmra.mrb[0].mxu0 %v485
  %v604 = vpop.f32.mrb[0].mxu0
  %v605 = vadd.f32 0.0, %v604
  %v606 = vpop.f32.mrb[0].mxu0
  %607 = vmatprep.mubr.f32.mxu0 0.0
  %608 = vmatmul.mubr.f32.gmra.mrb[0].mxu0 %v488
  %v609 = vpop.f32.mrb[0].mxu0
  %v610 = vadd.f32 0.0, %v609
  %v611 = vpop.f32.mrb[0].mxu0
  %612 = vmatprep.mubr.f32.mxu0 0.0
  %613 = vmatmul.mubr.f32.gmra.mrb[0].mxu0 %v491
  %v614 = vpop.f32.mrb[0].mxu0
  %v615 = vadd.f32 0.0, %v614
  %v616 = vpop.f32.mrb[0].mxu0
  %617 = vmatprep.mubr.f32.mxu0 0.0
  %618 = vmatmul.mubr.f32.gmra.mrb[0].mxu0 %v494
  %v619 = vpop.f32.mrb[0].mxu0
  %v620 = vadd.f32 0.0, %v619
  %v621 = vpop.f32.mrb[0].mxu0
  %622 = vmatprep.mubr.f32.mxu0 0.0
  %623 = vmatmul.mubr.f32.gmra.mrb[0].mxu0 %v497
  %v624 = vpop.f32.mrb[0].mxu0
  %v625 = vadd.f32 0.0, %v624
  %v626 = vpop.f32.mrb[0].mxu0
  %627 = vmatprep.mubr.f32.mxu0 0.0
  %628 = vmatmul.mubr.f32.gmra.mrb[0].mxu0 %v500
  %v629 = vpop.f32.mrb[0].mxu0
  %v630 = vadd.f32 0.0, %v629
  %v631 = vpop.f32.mrb[0].mxu0
  %632 = vmatprep.mubr.f32.mxu0 0.0
  %633 = vmatmul.mubr.f32.gmra.mrb[0].mxu0 %v503
  %v634 = vpop.f32.mrb[0].mxu0
  %v635 = vadd.f32 0.0, %v634
  %v636 = vpop.f32.mrb[0].mxu0
  %637 = vmatprep.mubr.f32.mxu0 0.0
  %638 = vmatmul.mubr.f32.gmra.mrb[0].mxu0 %v506
  %v639 = vpop.f32.mrb[0].mxu0
  %v640 = vadd.f32 0.0, %v639
  %v641 = vpop.f32.mrb[0].mxu0
  %642 = vmatprep.mubr.f32.mxu0 0.0
  %643 = vmatmul.mubr.f32.gmra.mrb[0].mxu0 %v509
  %v644 = vpop.f32.mrb[0].mxu0
  %v645 = vadd.f32 0.0, %v644
  %v646 = vpop.f32.mrb[0].mxu0
  %647 = vmatprep.mubr.f32.mxu0 0.0
  %648 = vmatmul.mubr.f32.gmra.mrb[0].mxu0 %v512
  %v649 = vpop.f32.mrb[0].mxu0
  %v650 = vadd.f32 0.0, %v649
  %v651 = vpop.f32.mrb[0].mxu0
  %652 = vmatprep.mubr.f32.mxu0 0.0
  %653 = vmatmul.mubr.f32.gmra.mrb[0].mxu0 %v515
  %v654 = vpop.f32.mrb[0].mxu0
  %v655 = vadd.f32 0.0, %v654
  %v656 = vpop.f32.mrb[0].mxu0
  %657 = vmatprep.mubr.f32.mxu0 0.0
  %658 = vmatmul.mubr.f32.gmra.mrb[0].mxu0 %v518
  %v659 = vpop.f32.mrb[0].mxu0
  %v660 = vadd.f32 0.0, %v659
  %v661 = vpop.f32.mrb[0].mxu0
  %662 = vmatprep.mubr.f32.mxu0 0.0
  %663 = vmatmul.mubr.f32.gmra.mrb[0].mxu0 %v521
  %v664 = vpop.f32.mrb[0].mxu0
  %v665 = vadd.f32 0.0, %v664
  %v666 = vpop.f32.mrb[0].mxu0
  %667 = vdwg.mxu0
  %v668 = vadd.f32 %v372, %v590
  %v669 = vadd.f32 %v377, %v595
  %v670 = vadd.f32 %v382, %v600
  %v671 = vadd.f32 %v387, %v605
  %v672 = vadd.f32 %v392, %v610
  %v673 = vadd.f32 %v397, %v615
  %v674 = vadd.f32 %v402, %v620
  %v675 = vadd.f32 %v407, %v625
  %v676 = vadd.f32 %v412, %v630
  %v677 = vadd.f32 %v417, %v635
  %v678 = vadd.f32 %v422, %v640
  %v679 = vadd.f32 %v427, %v645
  %v680 = vadd.f32 %v432, %v650
  %v681 = vadd.f32 %v437, %v655
  %v682 = vadd.f32 %v442, %v660
  %v683 = vadd.f32 %v447, %v665
  %v684 = vld [vmem:[%s0 + $0x9] sm:$0xff]
  %v685 = vld [vmem:[%s0 + $0x11] sm:$0xff]
  %v686 = vld [vmem:[%s0 + $0x19] sm:$0xff]
  %v687 = vld [vmem:[%s0 + $0x21] sm:$0xff]
  %v688 = vld [vmem:[%s0 + $0x29] sm:$0xff]
  %v689 = vld [vmem:[%s0 + $0x31] sm:$0xff]
  %v690 = vld [vmem:[%s0 + $0x39] sm:$0xff]
  %v691 = vld [vmem:[%s0 + $0x41] sm:$0xff]
  %v692 = vld [vmem:[%s0 + $0x69] sm:$0xff]
  %v693 = vld [vmem:[%s0 + $0x71] sm:$0xff]
  %v694 = vld [vmem:[%s0 + $0x79] sm:$0xff]
  %v695 = vld [vmem:[%s0 + $0x81] sm:$0xff]
  %v696 = vld [vmem:[%s0 + $0x89] sm:$0xff]
  %v697 = vld [vmem:[%s0 + $0x91] sm:$0xff]
  %v698 = vld [vmem:[%s0 + $0x99] sm:$0xff]
  %v699 = vld [vmem:[%s0 + $0xa1] sm:$0xff]
  %s700 = scalar_lea.vmem %s1, 192
  %v701 = vld [vmem:[%s700] sm:$0xff]
  %v702 = vld [vmem:[%s700 + $0x8] sm:$0xff]
  %v703 = vld [vmem:[%s700 + $0x10] sm:$0xff]
  %v704 = vld [vmem:[%s700 + $0x18] sm:$0xff]
  %v705 = vld [vmem:[%s700 + $0x20] sm:$0xff]
  %v706 = vld [vmem:[%s700 + $0x28] sm:$0xff]
  %v707 = vld [vmem:[%s700 + $0x30] sm:$0xff]
  %v708 = vld [vmem:[%s700 + $0x38] sm:$0xff]
  %v710 = vsel %vm63, %v684, 0
  %v713 = vsel %vm63, %v685, 0
  %v716 = vsel %vm63, %v686, 0
  %v719 = vsel %vm63, %v687, 0
  %v722 = vsel %vm63, %v688, 0
  %v725 = vsel %vm63, %v689, 0
  %v728 = vsel %vm63, %v690, 0
  %v731 = vsel %vm63, %v691, 0
  %v734 = vsel %vm63, %v692, 0
  %v737 = vsel %vm63, %v693, 0
  %v740 = vsel %vm63, %v694, 0
  %v743 = vsel %vm63, %v695, 0
  %v746 = vsel %vm63, %v696, 0
  %v749 = vsel %vm63, %v697, 0
  %v752 = vsel %vm63, %v698, 0
  %v755 = vsel %vm63, %v699, 0
  %757 = vmatprep.subr.mxu0 0.0
  %758 = vmatpush1.msra.mxu0 %v701
  %759 = vmatprep.subr.mxu0 0.0
  %760 = vmatpush1.msra.mxu0 %v702
  %761 = vmatprep.subr.mxu0 0.0
  %762 = vmatpush1.msra.mxu0 %v703
  %763 = vmatprep.subr.mxu0 0.0
  %764 = vmatpush1.msra.mxu0 %v704
  %765 = vmatprep.subr.mxu0 0.0
  %766 = vmatpush1.msra.mxu0 %v705
  %767 = vmatprep.subr.mxu0 0.0
  %768 = vmatpush1.msra.mxu0 %v706
  %769 = vmatprep.subr.mxu0 0.0
  %770 = vmatpush1.msra.mxu0 %v707
  %771 = vmatprep.subr.mxu0 0.0
  %772 = vmatpush1.msra.mxu0 %v708
  %773 = vmatprep.subr.mxu0 0.0
  %774 = vmatpush1.msra.mxu0 0.0
  %775 = vmatprep.subr.mxu0 0.0
  %776 = vmatpush1.msra.mxu0 0.0
  %777 = vmatprep.subr.mxu0 0.0
  %778 = vmatpush1.msra.mxu0 0.0
  %779 = vmatprep.subr.mxu0 0.0
  %780 = vmatpush1.msra.mxu0 0.0
  %781 = vmatprep.subr.mxu0 0.0
  %782 = vmatpush1.msra.mxu0 0.0
  %783 = vmatprep.subr.mxu0 0.0
  %784 = vmatpush1.msra.mxu0 0.0
  %785 = vmatprep.subr.mxu0 0.0
  %786 = vmatpush1.msra.mxu0 0.0
  %787 = vmatprep.subr.mxu0 0.0
  %788 = vmatpush1.msra.mxu0 0.0
  %789 = vmatprep.subr.mxu0 0.0
  %790 = vmatpush1.msra.mxu0 0.0
  %791 = vmatprep.subr.mxu0 0.0
  %792 = vmatpush1.msra.mxu0 0.0
  %793 = vmatprep.subr.mxu0 0.0
  %794 = vmatpush1.msra.mxu0 0.0
  %795 = vmatprep.subr.mxu0 0.0
  %796 = vmatpush1.msra.mxu0 0.0
  %797 = vmatprep.subr.mxu0 0.0
  %798 = vmatpush1.msra.mxu0 0.0
  %799 = vmatprep.subr.mxu0 0.0
  %800 = vmatpush1.msra.mxu0 0.0
  %801 = vmatprep.subr.mxu0 0.0
  %802 = vmatpush1.msra.mxu0 0.0
  %803 = vmatprep.subr.mxu0 0.0
  %804 = vmatpush1.msra.mxu0 0.0
  %805 = vmatprep.subr.mxu0 0.0
  %806 = vmatpush1.msra.mxu0 0.0
  %807 = vmatprep.subr.mxu0 0.0
  %808 = vmatpush1.msra.mxu0 0.0
  %809 = vmatprep.subr.mxu0 0.0
  %810 = vmatpush1.msra.mxu0 0.0
  %811 = vmatprep.subr.mxu0 0.0
  %812 = vmatpush1.msra.mxu0 0.0
  %813 = vmatprep.subr.mxu0 0.0
  %814 = vmatpush1.msra.mxu0 0.0
  %815 = vmatprep.subr.mxu0 0.0
  %816 = vmatpush1.msra.mxu0 0.0
  %817 = vmatprep.subr.mxu0 0.0
  %818 = vmatpush1.msra.mxu0 0.0
  %819 = vmatprep.subr.mxu0 0.0
  %820 = vmatpush1.msra.mxu0 0.0
  %821 = vmatprep.mubr.f32.mxu0 0.0
  %822 = vmatmul.mubr.f32.gmra.mrb[0].mxu0 %v710
  %v823 = vpop.f32.mrb[0].mxu0
  %v824 = vadd.f32 0.0, %v823
  %v825 = vpop.f32.mrb[0].mxu0
  %826 = vmatprep.mubr.f32.mxu0 0.0
  %827 = vmatmul.mubr.f32.gmra.mrb[0].mxu0 %v713
  %v828 = vpop.f32.mrb[0].mxu0
  %v829 = vadd.f32 0.0, %v828
  %v830 = vpop.f32.mrb[0].mxu0
  %831 = vmatprep.mubr.f32.mxu0 0.0
  %832 = vmatmul.mubr.f32.gmra.mrb[0].mxu0 %v716
  %v833 = vpop.f32.mrb[0].mxu0
  %v834 = vadd.f32 0.0, %v833
  %v835 = vpop.f32.mrb[0].mxu0
  %836 = vmatprep.mubr.f32.mxu0 0.0
  %837 = vmatmul.mubr.f32.gmra.mrb[0].mxu0 %v719
  %v838 = vpop.f32.mrb[0].mxu0
  %v839 = vadd.f32 0.0, %v838
  %v840 = vpop.f32.mrb[0].mxu0
  %841 = vmatprep.mubr.f32.mxu0 0.0
  %842 = vmatmul.mubr.f32.gmra.mrb[0].mxu0 %v722
  %v843 = vpop.f32.mrb[0].mxu0
  %v844 = vadd.f32 0.0, %v843
  %v845 = vpop.f32.mrb[0].mxu0
  %846 = vmatprep.mubr.f32.mxu0 0.0
  %847 = vmatmul.mubr.f32.gmra.mrb[0].mxu0 %v725
  %v848 = vpop.f32.mrb[0].mxu0
  %v849 = vadd.f32 0.0, %v848
  %v850 = vpop.f32.mrb[0].mxu0
  %851 = vmatprep.mubr.f32.mxu0 0.0
  %852 = vmatmul.mubr.f32.gmra.mrb[0].mxu0 %v728
  %v853 = vpop.f32.mrb[0].mxu0
  %v854 = vadd.f32 0.0, %v853
  %v855 = vpop.f32.mrb[0].mxu0
  %856 = vmatprep.mubr.f32.mxu0 0.0
  %857 = vmatmul.mubr.f32.gmra.mrb[0].mxu0 %v731
  %v858 = vpop.f32.mrb[0].mxu0
  %v859 = vadd.f32 0.0, %v858
  %v860 = vpop.f32.mrb[0].mxu0
  %861 = vmatprep.mubr.f32.mxu0 0.0
  %862 = vmatmul.mubr.f32.gmra.mrb[0].mxu0 %v734
  %v863 = vpop.f32.mrb[0].mxu0
  %v864 = vadd.f32 0.0, %v863
  %v865 = vpop.f32.mrb[0].mxu0
  %866 = vmatprep.mubr.f32.mxu0 0.0
  %867 = vmatmul.mubr.f32.gmra.mrb[0].mxu0 %v737
  %v868 = vpop.f32.mrb[0].mxu0
  %v869 = vadd.f32 0.0, %v868
  %v870 = vpop.f32.mrb[0].mxu0
  %871 = vmatprep.mubr.f32.mxu0 0.0
  %872 = vmatmul.mubr.f32.gmra.mrb[0].mxu0 %v740
  %v873 = vpop.f32.mrb[0].mxu0
  %v874 = vadd.f32 0.0, %v873
  %v875 = vpop.f32.mrb[0].mxu0
  %876 = vmatprep.mubr.f32.mxu0 0.0
  %877 = vmatmul.mubr.f32.gmra.mrb[0].mxu0 %v743
  %v878 = vpop.f32.mrb[0].mxu0
  %v879 = vadd.f32 0.0, %v878
  %v880 = vpop.f32.mrb[0].mxu0
  %881 = vmatprep.mubr.f32.mxu0 0.0
  %882 = vmatmul.mubr.f32.gmra.mrb[0].mxu0 %v746
  %v883 = vpop.f32.mrb[0].mxu0
  %v884 = vadd.f32 0.0, %v883
  %v885 = vpop.f32.mrb[0].mxu0
  %886 = vmatprep.mubr.f32.mxu0 0.0
  %887 = vmatmul.mubr.f32.gmra.mrb[0].mxu0 %v749
  %v888 = vpop.f32.mrb[0].mxu0
  %v889 = vadd.f32 0.0, %v888
  %v890 = vpop.f32.mrb[0].mxu0
  %891 = vmatprep.mubr.f32.mxu0 0.0
  %892 = vmatmul.mubr.f32.gmra.mrb[0].mxu0 %v752
  %v893 = vpop.f32.mrb[0].mxu0
  %v894 = vadd.f32 0.0, %v893
  %v895 = vpop.f32.mrb[0].mxu0
  %896 = vmatprep.mubr.f32.mxu0 0.0
  %897 = vmatmul.mubr.f32.gmra.mrb[0].mxu0 %v755
  %v898 = vpop.f32.mrb[0].mxu0
  %v899 = vadd.f32 0.0, %v898
  %v900 = vpop.f32.mrb[0].mxu0
  %901 = vdwg.mxu0
  %v902 = vadd.f32 %v668, %v824
  %v903 = vadd.f32 %v669, %v829
  %v904 = vadd.f32 %v670, %v834
  %v905 = vadd.f32 %v671, %v839
  %v906 = vadd.f32 %v672, %v844
  %v907 = vadd.f32 %v673, %v849
  %v908 = vadd.f32 %v674, %v854
  %v909 = vadd.f32 %v675, %v859
  %v910 = vadd.f32 %v676, %v864
  %v911 = vadd.f32 %v677, %v869
  %v912 = vadd.f32 %v678, %v874
  %v913 = vadd.f32 %v679, %v879
  %v914 = vadd.f32 %v680, %v884
  %v915 = vadd.f32 %v681, %v889
  %v916 = vadd.f32 %v682, %v894
  %v917 = vadd.f32 %v683, %v899
  %v918 = vld [vmem:[%s0 + $0xa] sm:$0xff]
  %v919 = vld [vmem:[%s0 + $0x12] sm:$0xff]
  %v920 = vld [vmem:[%s0 + $0x1a] sm:$0xff]
  %v921 = vld [vmem:[%s0 + $0x22] sm:$0xff]
  %v922 = vld [vmem:[%s0 + $0x2a] sm:$0xff]
  %v923 = vld [vmem:[%s0 + $0x32] sm:$0xff]
  %v924 = vld [vmem:[%s0 + $0x3a] sm:$0xff]
  %v925 = vld [vmem:[%s0 + $0x42] sm:$0xff]
  %v926 = vld [vmem:[%s0 + $0x6a] sm:$0xff]
  %v927 = vld [vmem:[%s0 + $0x72] sm:$0xff]
  %v928 = vld [vmem:[%s0 + $0x7a] sm:$0xff]
  %v929 = vld [vmem:[%s0 + $0x82] sm:$0xff]
  %v930 = vld [vmem:[%s0 + $0x8a] sm:$0xff]
  %v931 = vld [vmem:[%s0 + $0x92] sm:$0xff]
  %v932 = vld [vmem:[%s0 + $0x9a] sm:$0xff]
  %v933 = vld [vmem:[%s0 + $0xa2] sm:$0xff]
  %s934 = scalar_lea.vmem %s1, 256
  %v935 = vld [vmem:[%s934] sm:$0xff]
  %v936 = vld [vmem:[%s934 + $0x8] sm:$0xff]
  %v937 = vld [vmem:[%s934 + $0x10] sm:$0xff]
  %v938 = vld [vmem:[%s934 + $0x18] sm:$0xff]
  %v939 = vld [vmem:[%s934 + $0x20] sm:$0xff]
  %v940 = vld [vmem:[%s934 + $0x28] sm:$0xff]
  %v941 = vld [vmem:[%s934 + $0x30] sm:$0xff]
  %v942 = vld [vmem:[%s934 + $0x38] sm:$0xff]
  %v944 = vsel %vm63, %v918, 0
  %v947 = vsel %vm63, %v919, 0
  %v950 = vsel %vm63, %v920, 0
  %v953 = vsel %vm63, %v921, 0
  %v956 = vsel %vm63, %v922, 0
  %v959 = vsel %vm63, %v923, 0
  %v962 = vsel %vm63, %v924, 0
  %v965 = vsel %vm63, %v925, 0
  %v968 = vsel %vm63, %v926, 0
  %v971 = vsel %vm63, %v927, 0
  %v974 = vsel %vm63, %v928, 0
  %v977 = vsel %vm63, %v929, 0
  %v980 = vsel %vm63, %v930, 0
  %v983 = vsel %vm63, %v931, 0
  %v986 = vsel %vm63, %v932, 0
  %v989 = vsel %vm63, %v933, 0
  %991 = vmatprep.subr.mxu0 0.0
  %992 = vmatpush1.msra.mxu0 %v935
  %993 = vmatprep.subr.mxu0 0.0
  %994 = vmatpush1.msra.mxu0 %v936
  %995 = vmatprep.subr.mxu0 0.0
  %996 = vmatpush1.msra.mxu0 %v937
  %997 = vmatprep.subr.mxu0 0.0
  %998 = vmatpush1.msra.mxu0 %v938
  %999 = vmatprep.subr.mxu0 0.0
  %1000 = vmatpush1.msra.mxu0 %v939
  %1001 = vmatprep.subr.mxu0 0.0
  %1002 = vmatpush1.msra.mxu0 %v940
  %1003 = vmatprep.subr.mxu0 0.0
  %1004 = vmatpush1.msra.mxu0 %v941
  %1005 = vmatprep.subr.mxu0 0.0
  %1006 = vmatpush1.msra.mxu0 %v942
  %1007 = vmatprep.subr.mxu0 0.0
  %1008 = vmatpush1.msra.mxu0 0.0
  %1009 = vmatprep.subr.mxu0 0.0
  %1010 = vmatpush1.msra.mxu0 0.0
  %1011 = vmatprep.subr.mxu0 0.0
  %1012 = vmatpush1.msra.mxu0 0.0
  %1013 = vmatprep.subr.mxu0 0.0
  %1014 = vmatpush1.msra.mxu0 0.0
  %1015 = vmatprep.subr.mxu0 0.0
  %1016 = vmatpush1.msra.mxu0 0.0
  %1017 = vmatprep.subr.mxu0 0.0
  %1018 = vmatpush1.msra.mxu0 0.0
  %1019 = vmatprep.subr.mxu0 0.0
  %1020 = vmatpush1.msra.mxu0 0.0
  %1021 = vmatprep.subr.mxu0 0.0
  %1022 = vmatpush1.msra.mxu0 0.0
  %1023 = vmatprep.subr.mxu0 0.0
  %1024 = vmatpush1.msra.mxu0 0.0
  %1025 = vmatprep.subr.mxu0 0.0
  %1026 = vmatpush1.msra.mxu0 0.0
  %1027 = vmatprep.subr.mxu0 0.0
  %1028 = vmatpush1.msra.mxu0 0.0
  %1029 = vmatprep.subr.mxu0 0.0
  %1030 = vmatpush1.msra.mxu0 0.0
  %1031 = vmatprep.subr.mxu0 0.0
  %1032 = vmatpush1.msra.mxu0 0.0
  %1033 = vmatprep.subr.mxu0 0.0
  %1034 = vmatpush1.msra.mxu0 0.0
  %1035 = vmatprep.subr.mxu0 0.0
  %1036 = vmatpush1.msra.mxu0 0.0
  %1037 = vmatprep.subr.mxu0 0.0
  %1038 = vmatpush1.msra.mxu0 0.0
  %1039 = vmatprep.subr.mxu0 0.0
  %1040 = vmatpush1.msra.mxu0 0.0
  %1041 = vmatprep.subr.mxu0 0.0
  %1042 = vmatpush1.msra.mxu0 0.0
  %1043 = vmatprep.subr.mxu0 0.0
  %1044 = vmatpush1.msra.mxu0 0.0
  %1045 = vmatprep.subr.mxu0 0.0
  %1046 = vmatpush1.msra.mxu0 0.0
  %1047 = vmatprep.subr.mxu0 0.0
  %1048 = vmatpush1.msra.mxu0 0.0
  %1049 = vmatprep.subr.mxu0 0.0
  %1050 = vmatpush1.msra.mxu0 0.0
  %1051 = vmatprep.subr.mxu0 0.0
  %1052 = vmatpush1.msra.mxu0 0.0
  %1053 = vmatprep.subr.mxu0 0.0
  %1054 = vmatpush1.msra.mxu0 0.0
  %1055 = vmatprep.mubr.f32.mxu0 0.0
  %1056 = vmatmul.mubr.f32.gmra.mrb[0].mxu0 %v944
  %v1057 = vpop.f32.mrb[0].mxu0
  %v1058 = vadd.f32 0.0, %v1057
  %v1059 = vpop.f32.mrb[0].mxu0
  %1060 = vmatprep.mubr.f32.mxu0 0.0
  %1061 = vmatmul.mubr.f32.gmra.mrb[0].mxu0 %v947
  %v1062 = vpop.f32.mrb[0].mxu0
  %v1063 = vadd.f32 0.0, %v1062
  %v1064 = vpop.f32.mrb[0].mxu0
  %1065 = vmatprep.mubr.f32.mxu0 0.0
  %1066 = vmatmul.mubr.f32.gmra.mrb[0].mxu0 %v950
  %v1067 = vpop.f32.mrb[0].mxu0
  %v1068 = vadd.f32 0.0, %v1067
  %v1069 = vpop.f32.mrb[0].mxu0
  %1070 = vmatprep.mubr.f32.mxu0 0.0
  %1071 = vmatmul.mubr.f32.gmra.mrb[0].mxu0 %v953
  %v1072 = vpop.f32.mrb[0].mxu0
  %v1073 = vadd.f32 0.0, %v1072
  %v1074 = vpop.f32.mrb[0].mxu0
  %1075 = vmatprep.mubr.f32.mxu0 0.0
  %1076 = vmatmul.mubr.f32.gmra.mrb[0].mxu0 %v956
  %v1077 = vpop.f32.mrb[0].mxu0
  %v1078 = vadd.f32 0.0, %v1077
  %v1079 = vpop.f32.mrb[0].mxu0
  %1080 = vmatprep.mubr.f32.mxu0 0.0
  %1081 = vmatmul.mubr.f32.gmra.mrb[0].mxu0 %v959
  %v1082 = vpop.f32.mrb[0].mxu0
  %v1083 = vadd.f32 0.0, %v1082
  %v1084 = vpop.f32.mrb[0].mxu0
  %1085 = vmatprep.mubr.f32.mxu0 0.0
  %1086 = vmatmul.mubr.f32.gmra.mrb[0].mxu0 %v962
  %v1087 = vpop.f32.mrb[0].mxu0
  %v1088 = vadd.f32 0.0, %v1087
  %v1089 = vpop.f32.mrb[0].mxu0
  %1090 = vmatprep.mubr.f32.mxu0 0.0
  %1091 = vmatmul.mubr.f32.gmra.mrb[0].mxu0 %v965
  %v1092 = vpop.f32.mrb[0].mxu0
  %v1093 = vadd.f32 0.0, %v1092
  %v1094 = vpop.f32.mrb[0].mxu0
  %1095 = vmatprep.mubr.f32.mxu0 0.0
  %1096 = vmatmul.mubr.f32.gmra.mrb[0].mxu0 %v968
  %v1097 = vpop.f32.mrb[0].mxu0
  %v1098 = vadd.f32 0.0, %v1097
  %v1099 = vpop.f32.mrb[0].mxu0
  %1100 = vmatprep.mubr.f32.mxu0 0.0
  %1101 = vmatmul.mubr.f32.gmra.mrb[0].mxu0 %v971
  %v1102 = vpop.f32.mrb[0].mxu0
  %v1103 = vadd.f32 0.0, %v1102
  %v1104 = vpop.f32.mrb[0].mxu0
  %1105 = vmatprep.mubr.f32.mxu0 0.0
  %1106 = vmatmul.mubr.f32.gmra.mrb[0].mxu0 %v974
  %v1107 = vpop.f32.mrb[0].mxu0
  %v1108 = vadd.f32 0.0, %v1107
  %v1109 = vpop.f32.mrb[0].mxu0
  %1110 = vmatprep.mubr.f32.mxu0 0.0
  %1111 = vmatmul.mubr.f32.gmra.mrb[0].mxu0 %v977
  %v1112 = vpop.f32.mrb[0].mxu0
  %v1113 = vadd.f32 0.0, %v1112
  %v1114 = vpop.f32.mrb[0].mxu0
  %1115 = vmatprep.mubr.f32.mxu0 0.0
  %1116 = vmatmul.mubr.f32.gmra.mrb[0].mxu0 %v980
  %v1117 = vpop.f32.mrb[0].mxu0
  %v1118 = vadd.f32 0.0, %v1117
  %v1119 = vpop.f32.mrb[0].mxu0
  %1120 = vmatprep.mubr.f32.mxu0 0.0
  %1121 = vmatmul.mubr.f32.gmra.mrb[0].mxu0 %v983
  %v1122 = vpop.f32.mrb[0].mxu0
  %v1123 = vadd.f32 0.0, %v1122
  %v1124 = vpop.f32.mrb[0].mxu0
  %1125 = vmatprep.mubr.f32.mxu0 0.0
  %1126 = vmatmul.mubr.f32.gmra.mrb[0].mxu0 %v986
  %v1127 = vpop.f32.mrb[0].mxu0
  %v1128 = vadd.f32 0.0, %v1127
  %v1129 = vpop.f32.mrb[0].mxu0
  %1130 = vmatprep.mubr.f32.mxu0 0.0
  %1131 = vmatmul.mubr.f32.gmra.mrb[0].mxu0 %v989
  %v1132 = vpop.f32.mrb[0].mxu0
  %v1133 = vadd.f32 0.0, %v1132
  %v1134 = vpop.f32.mrb[0].mxu0
  %1135 = vdwg.mxu0
  %v1136 = vadd.f32 %v902, %v1058
  %v1137 = vadd.f32 %v903, %v1063
  %v1138 = vadd.f32 %v904, %v1068
  %v1139 = vadd.f32 %v905, %v1073
  %v1140 = vadd.f32 %v906, %v1078
  %v1141 = vadd.f32 %v907, %v1083
  %v1142 = vadd.f32 %v908, %v1088
  %v1143 = vadd.f32 %v909, %v1093
  %v1144 = vadd.f32 %v910, %v1098
  %v1145 = vadd.f32 %v911, %v1103
  %v1146 = vadd.f32 %v912, %v1108
  %v1147 = vadd.f32 %v913, %v1113
  %v1148 = vadd.f32 %v914, %v1118
  %v1149 = vadd.f32 %v915, %v1123
  %v1150 = vadd.f32 %v916, %v1128
  %v1151 = vadd.f32 %v917, %v1133
  %v1152 = vld [vmem:[%s0 + $0xb] sm:$0xff]
  %v1153 = vld [vmem:[%s0 + $0x13] sm:$0xff]
  %v1154 = vld [vmem:[%s0 + $0x1b] sm:$0xff]
  %v1155 = vld [vmem:[%s0 + $0x23] sm:$0xff]
  %v1156 = vld [vmem:[%s0 + $0x2b] sm:$0xff]
  %v1157 = vld [vmem:[%s0 + $0x33] sm:$0xff]
  %v1158 = vld [vmem:[%s0 + $0x3b] sm:$0xff]
  %v1159 = vld [vmem:[%s0 + $0x43] sm:$0xff]
  %v1160 = vld [vmem:[%s0 + $0x6b] sm:$0xff]
  %v1161 = vld [vmem:[%s0 + $0x73] sm:$0xff]
  %v1162 = vld [vmem:[%s0 + $0x7b] sm:$0xff]
  %v1163 = vld [vmem:[%s0 + $0x83] sm:$0xff]
  %v1164 = vld [vmem:[%s0 + $0x8b] sm:$0xff]
  %v1165 = vld [vmem:[%s0 + $0x93] sm:$0xff]
  %v1166 = vld [vmem:[%s0 + $0x9b] sm:$0xff]
  %v1167 = vld [vmem:[%s0 + $0xa3] sm:$0xff]
  %s1168 = scalar_lea.vmem %s1, 320
  %v1169 = vld [vmem:[%s1168] sm:$0xff]
  %v1170 = vld [vmem:[%s1168 + $0x8] sm:$0xff]
  %v1171 = vld [vmem:[%s1168 + $0x10] sm:$0xff]
  %v1172 = vld [vmem:[%s1168 + $0x18] sm:$0xff]
  %v1173 = vld [vmem:[%s1168 + $0x20] sm:$0xff]
  %v1174 = vld [vmem:[%s1168 + $0x28] sm:$0xff]
  %v1175 = vld [vmem:[%s1168 + $0x30] sm:$0xff]
  %v1176 = vld [vmem:[%s1168 + $0x38] sm:$0xff]
  %v1178 = vsel %vm63, %v1152, 0
  %v1181 = vsel %vm63, %v1153, 0
  %v1184 = vsel %vm63, %v1154, 0
  %v1187 = vsel %vm63, %v1155, 0
  %v1190 = vsel %vm63, %v1156, 0
  %v1193 = vsel %vm63, %v1157, 0
  %v1196 = vsel %vm63, %v1158, 0
  %v1199 = vsel %vm63, %v1159, 0
  %v1202 = vsel %vm63, %v1160, 0
  %v1205 = vsel %vm63, %v1161, 0
  %v1208 = vsel %vm63, %v1162, 0
  %v1211 = vsel %vm63, %v1163, 0
  %v1214 = vsel %vm63, %v1164, 0
  %v1217 = vsel %vm63, %v1165, 0
  %v1220 = vsel %vm63, %v1166, 0
  %v1223 = vsel %vm63, %v1167, 0
  %1225 = vmatprep.subr.mxu0 0.0
  %1226 = vmatpush1.msra.mxu0 %v1169
  %1227 = vmatprep.subr.mxu0 0.0
  %1228 = vmatpush1.msra.mxu0 %v1170
  %1229 = vmatprep.subr.mxu0 0.0
  %1230 = vmatpush1.msra.mxu0 %v1171
  %1231 = vmatprep.subr.mxu0 0.0
  %1232 = vmatpush1.msra.mxu0 %v1172
  %1233 = vmatprep.subr.mxu0 0.0
  %1234 = vmatpush1.msra.mxu0 %v1173
  %1235 = vmatprep.subr.mxu0 0.0
  %1236 = vmatpush1.msra.mxu0 %v1174
  %1237 = vmatprep.subr.mxu0 0.0
  %1238 = vmatpush1.msra.mxu0 %v1175
  %1239 = vmatprep.subr.mxu0 0.0
  %1240 = vmatpush1.msra.mxu0 %v1176
  %1241 = vmatprep.subr.mxu0 0.0
  %1242 = vmatpush1.msra.mxu0 0.0
  %1243 = vmatprep.subr.mxu0 0.0
  %1244 = vmatpush1.msra.mxu0 0.0
  %1245 = vmatprep.subr.mxu0 0.0
  %1246 = vmatpush1.msra.mxu0 0.0
  %1247 = vmatprep.subr.mxu0 0.0
  %1248 = vmatpush1.msra.mxu0 0.0
  %1249 = vmatprep.subr.mxu0 0.0
  %1250 = vmatpush1.msra.mxu0 0.0
  %1251 = vmatprep.subr.mxu0 0.0
  %1252 = vmatpush1.msra.mxu0 0.0
  %1253 = vmatprep.subr.mxu0 0.0
  %1254 = vmatpush1.msra.mxu0 0.0
  %1255 = vmatprep.subr.mxu0 0.0
  %1256 = vmatpush1.msra.mxu0 0.0
  %1257 = vmatprep.subr.mxu0 0.0
  %1258 = vmatpush1.msra.mxu0 0.0
  %1259 = vmatprep.subr.mxu0 0.0
  %1260 = vmatpush1.msra.mxu0 0.0
  %1261 = vmatprep.subr.mxu0 0.0
  %1262 = vmatpush1.msra.mxu0 0.0
  %1263 = vmatprep.subr.mxu0 0.0
  %1264 = vmatpush1.msra.mxu0 0.0
  %1265 = vmatprep.subr.mxu0 0.0
  %1266 = vmatpush1.msra.mxu0 0.0
  %1267 = vmatprep.subr.mxu0 0.0
  %1268 = vmatpush1.msra.mxu0 0.0
  %1269 = vmatprep.subr.mxu0 0.0
  %1270 = vmatpush1.msra.mxu0 0.0
  %1271 = vmatprep.subr.mxu0 0.0
  %1272 = vmatpush1.msra.mxu0 0.0
  %1273 = vmatprep.subr.mxu0 0.0
  %1274 = vmatpush1.msra.mxu0 0.0
  %1275 = vmatprep.subr.mxu0 0.0
  %1276 = vmatpush1.msra.mxu0 0.0
  %1277 = vmatprep.subr.mxu0 0.0
  %1278 = vmatpush1.msra.mxu0 0.0
  %1279 = vmatprep.subr.mxu0 0.0
  %1280 = vmatpush1.msra.mxu0 0.0
  %1281 = vmatprep.subr.mxu0 0.0
  %1282 = vmatpush1.msra.mxu0 0.0
  %1283 = vmatprep.subr.mxu0 0.0
  %1284 = vmatpush1.msra.mxu0 0.0
  %1285 = vmatprep.subr.mxu0 0.0
  %1286 = vmatpush1.msra.mxu0 0.0
  %1287 = vmatprep.subr.mxu0 0.0
  %1288 = vmatpush1.msra.mxu0 0.0
  %1289 = vmatprep.mubr.f32.mxu0 0.0
  %1290 = vmatmul.mubr.f32.gmra.mrb[0].mxu0 %v1178
  %v1291 = vpop.f32.mrb[0].mxu0
  %v1292 = vadd.f32 0.0, %v1291
  %v1293 = vpop.f32.mrb[0].mxu0
  %1294 = vmatprep.mubr.f32.mxu0 0.0
  %1295 = vmatmul.mubr.f32.gmra.mrb[0].mxu0 %v1181
  %v1296 = vpop.f32.mrb[0].mxu0
  %v1297 = vadd.f32 0.0, %v1296
  %v1298 = vpop.f32.mrb[0].mxu0
  %1299 = vmatprep.mubr.f32.mxu0 0.0
  %1300 = vmatmul.mubr.f32.gmra.mrb[0].mxu0 %v1184
  %v1301 = vpop.f32.mrb[0].mxu0
  %v1302 = vadd.f32 0.0, %v1301
  %v1303 = vpop.f32.mrb[0].mxu0
  %1304 = vmatprep.mubr.f32.mxu0 0.0
  %1305 = vmatmul.mubr.f32.gmra.mrb[0].mxu0 %v1187
  %v1306 = vpop.f32.mrb[0].mxu0
  %v1307 = vadd.f32 0.0, %v1306
  %v1308 = vpop.f32.mrb[0].mxu0
  %1309 = vmatprep.mubr.f32.mxu0 0.0
  %1310 = vmatmul.mubr.f32.gmra.mrb[0].mxu0 %v1190
  %v1311 = vpop.f32.mrb[0].mxu0
  %v1312 = vadd.f32 0.0, %v1311
  %v1313 = vpop.f32.mrb[0].mxu0
  %1314 = vmatprep.mubr.f32.mxu0 0.0
  %1315 = vmatmul.mubr.f32.gmra.mrb[0].mxu0 %v1193
  %v1316 = vpop.f32.mrb[0].mxu0
  %v1317 = vadd.f32 0.0, %v1316
  %v1318 = vpop.f32.mrb[0].mxu0
  %1319 = vmatprep.mubr.f32.mxu0 0.0
  %1320 = vmatmul.mubr.f32.gmra.mrb[0].mxu0 %v1196
  %v1321 = vpop.f32.mrb[0].mxu0
  %v1322 = vadd.f32 0.0, %v1321
  %v1323 = vpop.f32.mrb[0].mxu0
  %1324 = vmatprep.mubr.f32.mxu0 0.0
  %1325 = vmatmul.mubr.f32.gmra.mrb[0].mxu0 %v1199
  %v1326 = vpop.f32.mrb[0].mxu0
  %v1327 = vadd.f32 0.0, %v1326
  %v1328 = vpop.f32.mrb[0].mxu0
  %1329 = vmatprep.mubr.f32.mxu0 0.0
  %1330 = vmatmul.mubr.f32.gmra.mrb[0].mxu0 %v1202
  %v1331 = vpop.f32.mrb[0].mxu0
  %v1332 = vadd.f32 0.0, %v1331
  %v1333 = vpop.f32.mrb[0].mxu0
  %1334 = vmatprep.mubr.f32.mxu0 0.0
  %1335 = vmatmul.mubr.f32.gmra.mrb[0].mxu0 %v1205
  %v1336 = vpop.f32.mrb[0].mxu0
  %v1337 = vadd.f32 0.0, %v1336
  %v1338 = vpop.f32.mrb[0].mxu0
  %1339 = vmatprep.mubr.f32.mxu0 0.0
  %1340 = vmatmul.mubr.f32.gmra.mrb[0].mxu0 %v1208
  %v1341 = vpop.f32.mrb[0].mxu0
  %v1342 = vadd.f32 0.0, %v1341
  %v1343 = vpop.f32.mrb[0].mxu0
  %1344 = vmatprep.mubr.f32.mxu0 0.0
  %1345 = vmatmul.mubr.f32.gmra.mrb[0].mxu0 %v1211
  %v1346 = vpop.f32.mrb[0].mxu0
  %v1347 = vadd.f32 0.0, %v1346
  %v1348 = vpop.f32.mrb[0].mxu0
  %1349 = vmatprep.mubr.f32.mxu0 0.0
  %1350 = vmatmul.mubr.f32.gmra.mrb[0].mxu0 %v1214
  %v1351 = vpop.f32.mrb[0].mxu0
  %v1352 = vadd.f32 0.0, %v1351
  %v1353 = vpop.f32.mrb[0].mxu0
  %1354 = vmatprep.mubr.f32.mxu0 0.0
  %1355 = vmatmul.mubr.f32.gmra.mrb[0].mxu0 %v1217
  %v1356 = vpop.f32.mrb[0].mxu0
  %v1357 = vadd.f32 0.0, %v1356
  %v1358 = vpop.f32.mrb[0].mxu0
  %1359 = vmatprep.mubr.f32.mxu0 0.0
  %1360 = vmatmul.mubr.f32.gmra.mrb[0].mxu0 %v1220
  %v1361 = vpop.f32.mrb[0].mxu0
  %v1362 = vadd.f32 0.0, %v1361
  %v1363 = vpop.f32.mrb[0].mxu0
  %1364 = vmatprep.mubr.f32.mxu0 0.0
  %1365 = vmatmul.mubr.f32.gmra.mrb[0].mxu0 %v1223
  %v1366 = vpop.f32.mrb[0].mxu0
  %v1367 = vadd.f32 0.0, %v1366
  %v1368 = vpop.f32.mrb[0].mxu0
  %1369 = vdwg.mxu0
  %v1370 = vadd.f32 %v1136, %v1292
  %v1371 = vadd.f32 %v1137, %v1297
  %v1372 = vadd.f32 %v1138, %v1302
  %v1373 = vadd.f32 %v1139, %v1307
  %v1374 = vadd.f32 %v1140, %v1312
  %v1375 = vadd.f32 %v1141, %v1317
  %v1376 = vadd.f32 %v1142, %v1322
  %v1377 = vadd.f32 %v1143, %v1327
  %v1378 = vadd.f32 %v1144, %v1332
  %v1379 = vadd.f32 %v1145, %v1337
  %v1380 = vadd.f32 %v1146, %v1342
  %v1381 = vadd.f32 %v1147, %v1347
  %v1382 = vadd.f32 %v1148, %v1352
  %v1383 = vadd.f32 %v1149, %v1357
  %v1384 = vadd.f32 %v1150, %v1362
  %v1385 = vadd.f32 %v1151, %v1367
  %v1386 = vld [vmem:[%s0 + $0x12] sm:$0xff]
  %v1387 = vld [vmem:[%s0 + $0x1a] sm:$0xff]
  %v1388 = vld [vmem:[%s0 + $0x22] sm:$0xff]
  %v1389 = vld [vmem:[%s0 + $0x2a] sm:$0xff]
  %v1390 = vld [vmem:[%s0 + $0x32] sm:$0xff]
  %v1391 = vld [vmem:[%s0 + $0x3a] sm:$0xff]
  %v1392 = vld [vmem:[%s0 + $0x42] sm:$0xff]
  %v1393 = vld [vmem:[%s0 + $0x4a] sm:$0xff]
  %v1394 = vld [vmem:[%s0 + $0x72] sm:$0xff]
  %v1395 = vld [vmem:[%s0 + $0x7a] sm:$0xff]
  %v1396 = vld [vmem:[%s0 + $0x82] sm:$0xff]
  %v1397 = vld [vmem:[%s0 + $0x8a] sm:$0xff]
  %v1398 = vld [vmem:[%s0 + $0x92] sm:$0xff]
  %v1399 = vld [vmem:[%s0 + $0x9a] sm:$0xff]
  %v1400 = vld [vmem:[%s0 + $0xa2] sm:$0xff]
  %v1401 = vld [vmem:[%s0 + $0xaa] sm:$0xff]
  %s1402 = scalar_lea.vmem %s1, 384
  %v1403 = vld [vmem:[%s1402] sm:$0xff]
  %v1404 = vld [vmem:[%s1402 + $0x8] sm:$0xff]
  %v1405 = vld [vmem:[%s1402 + $0x10] sm:$0xff]
  %v1406 = vld [vmem:[%s1402 + $0x18] sm:$0xff]
  %v1407 = vld [vmem:[%s1402 + $0x20] sm:$0xff]
  %v1408 = vld [vmem:[%s1402 + $0x28] sm:$0xff]
  %v1409 = vld [vmem:[%s1402 + $0x30] sm:$0xff]
  %v1410 = vld [vmem:[%s1402 + $0x38] sm:$0xff]
  %v1412 = vsel %vm63, %v1386, 0
  %v1415 = vsel %vm63, %v1387, 0
  %v1418 = vsel %vm63, %v1388, 0
  %v1421 = vsel %vm63, %v1389, 0
  %v1424 = vsel %vm63, %v1390, 0
  %v1427 = vsel %vm63, %v1391, 0
  %v1430 = vsel %vm63, %v1392, 0
  %v1433 = vsel %vm63, %v1393, 0
  %v1436 = vsel %vm63, %v1394, 0
  %v1439 = vsel %vm63, %v1395, 0
  %v1442 = vsel %vm63, %v1396, 0
  %v1445 = vsel %vm63, %v1397, 0
  %v1448 = vsel %vm63, %v1398, 0
  %v1451 = vsel %vm63, %v1399, 0
  %v1454 = vsel %vm63, %v1400, 0
  %v1457 = vsel %vm63, %v1401, 0
  %1459 = vmatprep.subr.mxu0 0.0
  %1460 = vmatpush1.msra.mxu0 %v1403
  %1461 = vmatprep.subr.mxu0 0.0
  %1462 = vmatpush1.msra.mxu0 %v1404
  %1463 = vmatprep.subr.mxu0 0.0
  %1464 = vmatpush1.msra.mxu0 %v1405
  %1465 = vmatprep.subr.mxu0 0.0
  %1466 = vmatpush1.msra.mxu0 %v1406
  %1467 = vmatprep.subr.mxu0 0.0
  %1468 = vmatpush1.msra.mxu0 %v1407
  %1469 = vmatprep.subr.mxu0 0.0
  %1470 = vmatpush1.msra.mxu0 %v1408
  %1471 = vmatprep.subr.mxu0 0.0
  %1472 = vmatpush1.msra.mxu0 %v1409
  %1473 = vmatprep.subr.mxu0 0.0
  %1474 = vmatpush1.msra.mxu0 %v1410
  %1475 = vmatprep.subr.mxu0 0.0
  %1476 = vmatpush1.msra.mxu0 0.0
  %1477 = vmatprep.subr.mxu0 0.0
  %1478 = vmatpush1.msra.mxu0 0.0
  %1479 = vmatprep.subr.mxu0 0.0
  %1480 = vmatpush1.msra.mxu0 0.0
  %1481 = vmatprep.subr.mxu0 0.0
  %1482 = vmatpush1.msra.mxu0 0.0
  %1483 = vmatprep.subr.mxu0 0.0
  %1484 = vmatpush1.msra.mxu0 0.0
  %1485 = vmatprep.subr.mxu0 0.0
  %1486 = vmatpush1.msra.mxu0 0.0
  %1487 = vmatprep.subr.mxu0 0.0
  %1488 = vmatpush1.msra.mxu0 0.0
  %1489 = vmatprep.subr.mxu0 0.0
  %1490 = vmatpush1.msra.mxu0 0.0
  %1491 = vmatprep.subr.mxu0 0.0
  %1492 = vmatpush1.msra.mxu0 0.0
  %1493 = vmatprep.subr.mxu0 0.0
  %1494 = vmatpush1.msra.mxu0 0.0
  %1495 = vmatprep.subr.mxu0 0.0
  %1496 = vmatpush1.msra.mxu0 0.0
  %1497 = vmatprep.subr.mxu0 0.0
  %1498 = vmatpush1.msra.mxu0 0.0
  %1499 = vmatprep.subr.mxu0 0.0
  %1500 = vmatpush1.msra.mxu0 0.0
  %1501 = vmatprep.subr.mxu0 0.0
  %1502 = vmatpush1.msra.mxu0 0.0
  %1503 = vmatprep.subr.mxu0 0.0
  %1504 = vmatpush1.msra.mxu0 0.0
  %1505 = vmatprep.subr.mxu0 0.0
  %1506 = vmatpush1.msra.mxu0 0.0
  %1507 = vmatprep.subr.mxu0 0.0
  %1508 = vmatpush1.msra.mxu0 0.0
  %1509 = vmatprep.subr.mxu0 0.0
  %1510 = vmatpush1.msra.mxu0 0.0
  %1511 = vmatprep.subr.mxu0 0.0
  %1512 = vmatpush1.msra.mxu0 0.0
  %1513 = vmatprep.subr.mxu0 0.0
  %1514 = vmatpush1.msra.mxu0 0.0
  %1515 = vmatprep.subr.mxu0 0.0
  %1516 = vmatpush1.msra.mxu0 0.0
  %1517 = vmatprep.subr.mxu0 0.0
  %1518 = vmatpush1.msra.mxu0 0.0
  %1519 = vmatprep.subr.mxu0 0.0
  %1520 = vmatpush1.msra.mxu0 0.0
  %1521 = vmatprep.subr.mxu0 0.0
  %1522 = vmatpush1.msra.mxu0 0.0
  %1523 = vmatprep.mubr.f32.mxu0 0.0
  %1524 = vmatmul.mubr.f32.gmra.mrb[0].mxu0 %v1412
  %v1525 = vpop.f32.mrb[0].mxu0
  %v1526 = vadd.f32 0.0, %v1525
  %v1527 = vpop.f32.mrb[0].mxu0
  %1528 = vmatprep.mubr.f32.mxu0 0.0
  %1529 = vmatmul.mubr.f32.gmra.mrb[0].mxu0 %v1415
  %v1530 = vpop.f32.mrb[0].mxu0
  %v1531 = vadd.f32 0.0, %v1530
  %v1532 = vpop.f32.mrb[0].mxu0
  %1533 = vmatprep.mubr.f32.mxu0 0.0
  %1534 = vmatmul.mubr.f32.gmra.mrb[0].mxu0 %v1418
  %v1535 = vpop.f32.mrb[0].mxu0
  %v1536 = vadd.f32 0.0, %v1535
  %v1537 = vpop.f32.mrb[0].mxu0
  %1538 = vmatprep.mubr.f32.mxu0 0.0
  %1539 = vmatmul.mubr.f32.gmra.mrb[0].mxu0 %v1421
  %v1540 = vpop.f32.mrb[0].mxu0
  %v1541 = vadd.f32 0.0, %v1540
  %v1542 = vpop.f32.mrb[0].mxu0
  %1543 = vmatprep.mubr.f32.mxu0 0.0
  %1544 = vmatmul.mubr.f32.gmra.mrb[0].mxu0 %v1424
  %v1545 = vpop.f32.mrb[0].mxu0
  %v1546 = vadd.f32 0.0, %v1545
  %v1547 = vpop.f32.mrb[0].mxu0
  %1548 = vmatprep.mubr.f32.mxu0 0.0
  %1549 = vmatmul.mubr.f32.gmra.mrb[0].mxu0 %v1427
  %v1550 = vpop.f32.mrb[0].mxu0
  %v1551 = vadd.f32 0.0, %v1550
  %v1552 = vpop.f32.mrb[0].mxu0
  %1553 = vmatprep.mubr.f32.mxu0 0.0
  %1554 = vmatmul.mubr.f32.gmra.mrb[0].mxu0 %v1430
  %v1555 = vpop.f32.mrb[0].mxu0
  %v1556 = vadd.f32 0.0, %v1555
  %v1557 = vpop.f32.mrb[0].mxu0
  %1558 = vmatprep.mubr.f32.mxu0 0.0
  %1559 = vmatmul.mubr.f32.gmra.mrb[0].mxu0 %v1433
  %v1560 = vpop.f32.mrb[0].mxu0
  %v1561 = vadd.f32 0.0, %v1560
  %v1562 = vpop.f32.mrb[0].mxu0
  %1563 = vmatprep.mubr.f32.mxu0 0.0
  %1564 = vmatmul.mubr.f32.gmra.mrb[0].mxu0 %v1436
  %v1565 = vpop.f32.mrb[0].mxu0
  %v1566 = vadd.f32 0.0, %v1565
  %v1567 = vpop.f32.mrb[0].mxu0
  %1568 = vmatprep.mubr.f32.mxu0 0.0
  %1569 = vmatmul.mubr.f32.gmra.mrb[0].mxu0 %v1439
  %v1570 = vpop.f32.mrb[0].mxu0
  %v1571 = vadd.f32 0.0, %v1570
  %v1572 = vpop.f32.mrb[0].mxu0
  %1573 = vmatprep.mubr.f32.mxu0 0.0
  %1574 = vmatmul.mubr.f32.gmra.mrb[0].mxu0 %v1442
  %v1575 = vpop.f32.mrb[0].mxu0
  %v1576 = vadd.f32 0.0, %v1575
  %v1577 = vpop.f32.mrb[0].mxu0
  %1578 = vmatprep.mubr.f32.mxu0 0.0
  %1579 = vmatmul.mubr.f32.gmra.mrb[0].mxu0 %v1445
  %v1580 = vpop.f32.mrb[0].mxu0
  %v1581 = vadd.f32 0.0, %v1580
  %v1582 = vpop.f32.mrb[0].mxu0
  %1583 = vmatprep.mubr.f32.mxu0 0.0
  %1584 = vmatmul.mubr.f32.gmra.mrb[0].mxu0 %v1448
  %v1585 = vpop.f32.mrb[0].mxu0
  %v1586 = vadd.f32 0.0, %v1585
  %v1587 = vpop.f32.mrb[0].mxu0
  %1588 = vmatprep.mubr.f32.mxu0 0.0
  %1589 = vmatmul.mubr.f32.gmra.mrb[0].mxu0 %v1451
  %v1590 = vpop.f32.mrb[0].mxu0
  %v1591 = vadd.f32 0.0, %v1590
  %v1592 = vpop.f32.mrb[0].mxu0
  %1593 = vmatprep.mubr.f32.mxu0 0.0
  %1594 = vmatmul.mubr.f32.gmra.mrb[0].mxu0 %v1454
  %v1595 = vpop.f32.mrb[0].mxu0
  %v1596 = vadd.f32 0.0, %v1595
  %v1597 = vpop.f32.mrb[0].mxu0
  %1598 = vmatprep.mubr.f32.mxu0 0.0
  %1599 = vmatmul.mubr.f32.gmra.mrb[0].mxu0 %v1457
  %v1600 = vpop.f32.mrb[0].mxu0
  %v1601 = vadd.f32 0.0, %v1600
  %v1602 = vpop.f32.mrb[0].mxu0
  %1603 = vdwg.mxu0
  %v1604 = vadd.f32 %v1370, %v1526
  %v1605 = vadd.f32 %v1371, %v1531
  %v1606 = vadd.f32 %v1372, %v1536
  %v1607 = vadd.f32 %v1373, %v1541
  %v1608 = vadd.f32 %v1374, %v1546
  %v1609 = vadd.f32 %v1375, %v1551
  %v1610 = vadd.f32 %v1376, %v1556
  %v1611 = vadd.f32 %v1377, %v1561
  %v1612 = vadd.f32 %v1378, %v1566
  %v1613 = vadd.f32 %v1379, %v1571
  %v1614 = vadd.f32 %v1380, %v1576
  %v1615 = vadd.f32 %v1381, %v1581
  %v1616 = vadd.f32 %v1382, %v1586
  %v1617 = vadd.f32 %v1383, %v1591
  %v1618 = vadd.f32 %v1384, %v1596
  %v1619 = vadd.f32 %v1385, %v1601
  %v1620 = vld [vmem:[%s0 + $0x13] sm:$0xff]
  %v1621 = vld [vmem:[%s0 + $0x1b] sm:$0xff]
  %v1622 = vld [vmem:[%s0 + $0x23] sm:$0xff]
  %v1623 = vld [vmem:[%s0 + $0x2b] sm:$0xff]
  %v1624 = vld [vmem:[%s0 + $0x33] sm:$0xff]
  %v1625 = vld [vmem:[%s0 + $0x3b] sm:$0xff]
  %v1626 = vld [vmem:[%s0 + $0x43] sm:$0xff]
  %v1627 = vld [vmem:[%s0 + $0x4b] sm:$0xff]
  %v1628 = vld [vmem:[%s0 + $0x73] sm:$0xff]
  %v1629 = vld [vmem:[%s0 + $0x7b] sm:$0xff]
  %v1630 = vld [vmem:[%s0 + $0x83] sm:$0xff]
  %v1631 = vld [vmem:[%s0 + $0x8b] sm:$0xff]
  %v1632 = vld [vmem:[%s0 + $0x93] sm:$0xff]
  %v1633 = vld [vmem:[%s0 + $0x9b] sm:$0xff]
  %v1634 = vld [vmem:[%s0 + $0xa3] sm:$0xff]
  %v1635 = vld [vmem:[%s0 + $0xab] sm:$0xff]
  %s1636 = scalar_lea.vmem %s1, 448
  %v1637 = vld [vmem:[%s1636] sm:$0xff]
  %v1638 = vld [vmem:[%s1636 + $0x8] sm:$0xff]
  %v1639 = vld [vmem:[%s1636 + $0x10] sm:$0xff]
  %v1640 = vld [vmem:[%s1636 + $0x18] sm:$0xff]
  %v1641 = vld [vmem:[%s1636 + $0x20] sm:$0xff]
  %v1642 = vld [vmem:[%s1636 + $0x28] sm:$0xff]
  %v1643 = vld [vmem:[%s1636 + $0x30] sm:$0xff]
  %v1644 = vld [vmem:[%s1636 + $0x38] sm:$0xff]
  %v1646 = vsel %vm63, %v1620, 0
  %v1649 = vsel %vm63, %v1621, 0
  %v1652 = vsel %vm63, %v1622, 0
  %v1655 = vsel %vm63, %v1623, 0
  %v1658 = vsel %vm63, %v1624, 0
  %v1661 = vsel %vm63, %v1625, 0
  %v1664 = vsel %vm63, %v1626, 0
  %v1667 = vsel %vm63, %v1627, 0
  %v1670 = vsel %vm63, %v1628, 0
  %v1673 = vsel %vm63, %v1629, 0
  %v1676 = vsel %vm63, %v1630, 0
  %v1679 = vsel %vm63, %v1631, 0
  %v1682 = vsel %vm63, %v1632, 0
  %v1685 = vsel %vm63, %v1633, 0
  %v1688 = vsel %vm63, %v1634, 0
  %v1691 = vsel %vm63, %v1635, 0
  %1693 = vmatprep.subr.mxu0 0.0
  %1694 = vmatpush1.msra.mxu0 %v1637
  %1695 = vmatprep.subr.mxu0 0.0
  %1696 = vmatpush1.msra.mxu0 %v1638
  %1697 = vmatprep.subr.mxu0 0.0
  %1698 = vmatpush1.msra.mxu0 %v1639
  %1699 = vmatprep.subr.mxu0 0.0
  %1700 = vmatpush1.msra.mxu0 %v1640
  %1701 = vmatprep.subr.mxu0 0.0
  %1702 = vmatpush1.msra.mxu0 %v1641
  %1703 = vmatprep.subr.mxu0 0.0
  %1704 = vmatpush1.msra.mxu0 %v1642
  %1705 = vmatprep.subr.mxu0 0.0
  %1706 = vmatpush1.msra.mxu0 %v1643
  %1707 = vmatprep.subr.mxu0 0.0
  %1708 = vmatpush1.msra.mxu0 %v1644
  %1709 = vmatprep.subr.mxu0 0.0
  %1710 = vmatpush1.msra.mxu0 0.0
  %1711 = vmatprep.subr.mxu0 0.0
  %1712 = vmatpush1.msra.mxu0 0.0
  %1713 = vmatprep.subr.mxu0 0.0
  %1714 = vmatpush1.msra.mxu0 0.0
  %1715 = vmatprep.subr.mxu0 0.0
  %1716 = vmatpush1.msra.mxu0 0.0
  %1717 = vmatprep.subr.mxu0 0.0
  %1718 = vmatpush1.msra.mxu0 0.0
  %1719 = vmatprep.subr.mxu0 0.0
  %1720 = vmatpush1.msra.mxu0 0.0
  %1721 = vmatprep.subr.mxu0 0.0
  %1722 = vmatpush1.msra.mxu0 0.0
  %1723 = vmatprep.subr.mxu0 0.0
  %1724 = vmatpush1.msra.mxu0 0.0
  %1725 = vmatprep.subr.mxu0 0.0
  %1726 = vmatpush1.msra.mxu0 0.0
  %1727 = vmatprep.subr.mxu0 0.0
  %1728 = vmatpush1.msra.mxu0 0.0
  %1729 = vmatprep.subr.mxu0 0.0
  %1730 = vmatpush1.msra.mxu0 0.0
  %1731 = vmatprep.subr.mxu0 0.0
  %1732 = vmatpush1.msra.mxu0 0.0
  %1733 = vmatprep.subr.mxu0 0.0
  %1734 = vmatpush1.msra.mxu0 0.0
  %1735 = vmatprep.subr.mxu0 0.0
  %1736 = vmatpush1.msra.mxu0 0.0
  %1737 = vmatprep.subr.mxu0 0.0
  %1738 = vmatpush1.msra.mxu0 0.0
  %1739 = vmatprep.subr.mxu0 0.0
  %1740 = vmatpush1.msra.mxu0 0.0
  %1741 = vmatprep.subr.mxu0 0.0
  %1742 = vmatpush1.msra.mxu0 0.0
  %1743 = vmatprep.subr.mxu0 0.0
  %1744 = vmatpush1.msra.mxu0 0.0
  %1745 = vmatprep.subr.mxu0 0.0
  %1746 = vmatpush1.msra.mxu0 0.0
  %1747 = vmatprep.subr.mxu0 0.0
  %1748 = vmatpush1.msra.mxu0 0.0
  %1749 = vmatprep.subr.mxu0 0.0
  %1750 = vmatpush1.msra.mxu0 0.0
  %1751 = vmatprep.subr.mxu0 0.0
  %1752 = vmatpush1.msra.mxu0 0.0
  %1753 = vmatprep.subr.mxu0 0.0
  %1754 = vmatpush1.msra.mxu0 0.0
  %1755 = vmatprep.subr.mxu0 0.0
  %1756 = vmatpush1.msra.mxu0 0.0
  %1757 = vmatprep.mubr.f32.mxu0 0.0
  %1758 = vmatmul.mubr.f32.gmra.mrb[0].mxu0 %v1646
  %v1759 = vpop.f32.mrb[0].mxu0
  %v1760 = vadd.f32 0.0, %v1759
  %v1761 = vpop.f32.mrb[0].mxu0
  %1762 = vmatprep.mubr.f32.mxu0 0.0
  %1763 = vmatmul.mubr.f32.gmra.mrb[0].mxu0 %v1649
  %v1764 = vpop.f32.mrb[0].mxu0
  %v1765 = vadd.f32 0.0, %v1764
  %v1766 = vpop.f32.mrb[0].mxu0
  %1767 = vmatprep.mubr.f32.mxu0 0.0
  %1768 = vmatmul.mubr.f32.gmra.mrb[0].mxu0 %v1652
  %v1769 = vpop.f32.mrb[0].mxu0
  %v1770 = vadd.f32 0.0, %v1769
  %v1771 = vpop.f32.mrb[0].mxu0
  %1772 = vmatprep.mubr.f32.mxu0 0.0
  %1773 = vmatmul.mubr.f32.gmra.mrb[0].mxu0 %v1655
  %v1774 = vpop.f32.mrb[0].mxu0
  %v1775 = vadd.f32 0.0, %v1774
  %v1776 = vpop.f32.mrb[0].mxu0
  %1777 = vmatprep.mubr.f32.mxu0 0.0
  %1778 = vmatmul.mubr.f32.gmra.mrb[0].mxu0 %v1658
  %v1779 = vpop.f32.mrb[0].mxu0
  %v1780 = vadd.f32 0.0, %v1779
  %v1781 = vpop.f32.mrb[0].mxu0
  %1782 = vmatprep.mubr.f32.mxu0 0.0
  %1783 = vmatmul.mubr.f32.gmra.mrb[0].mxu0 %v1661
  %v1784 = vpop.f32.mrb[0].mxu0
  %v1785 = vadd.f32 0.0, %v1784
  %v1786 = vpop.f32.mrb[0].mxu0
  %1787 = vmatprep.mubr.f32.mxu0 0.0
  %1788 = vmatmul.mubr.f32.gmra.mrb[0].mxu0 %v1664
  %v1789 = vpop.f32.mrb[0].mxu0
  %v1790 = vadd.f32 0.0, %v1789
  %v1791 = vpop.f32.mrb[0].mxu0
  %1792 = vmatprep.mubr.f32.mxu0 0.0
  %1793 = vmatmul.mubr.f32.gmra.mrb[0].mxu0 %v1667
  %v1794 = vpop.f32.mrb[0].mxu0
  %v1795 = vadd.f32 0.0, %v1794
  %v1796 = vpop.f32.mrb[0].mxu0
  %1797 = vmatprep.mubr.f32.mxu0 0.0
  %1798 = vmatmul.mubr.f32.gmra.mrb[0].mxu0 %v1670
  %v1799 = vpop.f32.mrb[0].mxu0
  %v1800 = vadd.f32 0.0, %v1799
  %v1801 = vpop.f32.mrb[0].mxu0
  %1802 = vmatprep.mubr.f32.mxu0 0.0
  %1803 = vmatmul.mubr.f32.gmra.mrb[0].mxu0 %v1673
  %v1804 = vpop.f32.mrb[0].mxu0
  %v1805 = vadd.f32 0.0, %v1804
  %v1806 = vpop.f32.mrb[0].mxu0
  %1807 = vmatprep.mubr.f32.mxu0 0.0
  %1808 = vmatmul.mubr.f32.gmra.mrb[0].mxu0 %v1676
  %v1809 = vpop.f32.mrb[0].mxu0
  %v1810 = vadd.f32 0.0, %v1809
  %v1811 = vpop.f32.mrb[0].mxu0
  %1812 = vmatprep.mubr.f32.mxu0 0.0
  %1813 = vmatmul.mubr.f32.gmra.mrb[0].mxu0 %v1679
  %v1814 = vpop.f32.mrb[0].mxu0
  %v1815 = vadd.f32 0.0, %v1814
  %v1816 = vpop.f32.mrb[0].mxu0
  %1817 = vmatprep.mubr.f32.mxu0 0.0
  %1818 = vmatmul.mubr.f32.gmra.mrb[0].mxu0 %v1682
  %v1819 = vpop.f32.mrb[0].mxu0
  %v1820 = vadd.f32 0.0, %v1819
  %v1821 = vpop.f32.mrb[0].mxu0
  %1822 = vmatprep.mubr.f32.mxu0 0.0
  %1823 = vmatmul.mubr.f32.gmra.mrb[0].mxu0 %v1685
  %v1824 = vpop.f32.mrb[0].mxu0
  %v1825 = vadd.f32 0.0, %v1824
  %v1826 = vpop.f32.mrb[0].mxu0
  %1827 = vmatprep.mubr.f32.mxu0 0.0
  %1828 = vmatmul.mubr.f32.gmra.mrb[0].mxu0 %v1688
  %v1829 = vpop.f32.mrb[0].mxu0
  %v1830 = vadd.f32 0.0, %v1829
  %v1831 = vpop.f32.mrb[0].mxu0
  %1832 = vmatprep.mubr.f32.mxu0 0.0
  %1833 = vmatmul.mubr.f32.gmra.mrb[0].mxu0 %v1691
  %v1834 = vpop.f32.mrb[0].mxu0
  %v1835 = vadd.f32 0.0, %v1834
  %v1836 = vpop.f32.mrb[0].mxu0
  %1837 = vdwg.mxu0
  %v1838 = vadd.f32 %v1604, %v1760
  %v1839 = vadd.f32 %v1605, %v1765
  %v1840 = vadd.f32 %v1606, %v1770
  %v1841 = vadd.f32 %v1607, %v1775
  %v1842 = vadd.f32 %v1608, %v1780
  %v1843 = vadd.f32 %v1609, %v1785
  %v1844 = vadd.f32 %v1610, %v1790
  %v1845 = vadd.f32 %v1611, %v1795
  %v1846 = vadd.f32 %v1612, %v1800
  %v1847 = vadd.f32 %v1613, %v1805
  %v1848 = vadd.f32 %v1614, %v1810
  %v1849 = vadd.f32 %v1615, %v1815
  %v1850 = vadd.f32 %v1616, %v1820
  %v1851 = vadd.f32 %v1617, %v1825
  %v1852 = vadd.f32 %v1618, %v1830
  %v1853 = vadd.f32 %v1619, %v1835
  %v1854 = vld [vmem:[%s0 + $0x14] sm:$0xff]
  %v1855 = vld [vmem:[%s0 + $0x1c] sm:$0xff]
  %v1856 = vld [vmem:[%s0 + $0x24] sm:$0xff]
  %v1857 = vld [vmem:[%s0 + $0x2c] sm:$0xff]
  %v1858 = vld [vmem:[%s0 + $0x34] sm:$0xff]
  %v1859 = vld [vmem:[%s0 + $0x3c] sm:$0xff]
  %v1860 = vld [vmem:[%s0 + $0x44] sm:$0xff]
  %v1861 = vld [vmem:[%s0 + $0x4c] sm:$0xff]
  %v1862 = vld [vmem:[%s0 + $0x74] sm:$0xff]
  %v1863 = vld [vmem:[%s0 + $0x7c] sm:$0xff]
  %v1864 = vld [vmem:[%s0 + $0x84] sm:$0xff]
  %v1865 = vld [vmem:[%s0 + $0x8c] sm:$0xff]
  %v1866 = vld [vmem:[%s0 + $0x94] sm:$0xff]
  %v1867 = vld [vmem:[%s0 + $0x9c] sm:$0xff]
  %v1868 = vld [vmem:[%s0 + $0xa4] sm:$0xff]
  %v1869 = vld [vmem:[%s0 + $0xac] sm:$0xff]
  %s1870 = scalar_lea.vmem %s1, 512
  %v1871 = vld [vmem:[%s1870] sm:$0xff]
  %v1872 = vld [vmem:[%s1870 + $0x8] sm:$0xff]
  %v1873 = vld [vmem:[%s1870 + $0x10] sm:$0xff]
  %v1874 = vld [vmem:[%s1870 + $0x18] sm:$0xff]
  %v1875 = vld [vmem:[%s1870 + $0x20] sm:$0xff]
  %v1876 = vld [vmem:[%s1870 + $0x28] sm:$0xff]
  %v1877 = vld [vmem:[%s1870 + $0x30] sm:$0xff]
  %v1878 = vld [vmem:[%s1870 + $0x38] sm:$0xff]
  %v1880 = vsel %vm63, %v1854, 0
  %v1883 = vsel %vm63, %v1855, 0
  %v1886 = vsel %vm63, %v1856, 0
  %v1889 = vsel %vm63, %v1857, 0
  %v1892 = vsel %vm63, %v1858, 0
  %v1895 = vsel %vm63, %v1859, 0
  %v1898 = vsel %vm63, %v1860, 0
  %v1901 = vsel %vm63, %v1861, 0
  %v1904 = vsel %vm63, %v1862, 0
  %v1907 = vsel %vm63, %v1863, 0
  %v1910 = vsel %vm63, %v1864, 0
  %v1913 = vsel %vm63, %v1865, 0
  %v1916 = vsel %vm63, %v1866, 0
  %v1919 = vsel %vm63, %v1867, 0
  %v1922 = vsel %vm63, %v1868, 0
  %v1925 = vsel %vm63, %v1869, 0
  %1927 = vmatprep.subr.mxu0 0.0
  %1928 = vmatpush1.msra.mxu0 %v1871
  %1929 = vmatprep.subr.mxu0 0.0
  %1930 = vmatpush1.msra.mxu0 %v1872
  %1931 = vmatprep.subr.mxu0 0.0
  %1932 = vmatpush1.msra.mxu0 %v1873
  %1933 = vmatprep.subr.mxu0 0.0
  %1934 = vmatpush1.msra.mxu0 %v1874
  %1935 = vmatprep.subr.mxu0 0.0
  %1936 = vmatpush1.msra.mxu0 %v1875
  %1937 = vmatprep.subr.mxu0 0.0
  %1938 = vmatpush1.msra.mxu0 %v1876
  %1939 = vmatprep.subr.mxu0 0.0
  %1940 = vmatpush1.msra.mxu0 %v1877
  %1941 = vmatprep.subr.mxu0 0.0
  %1942 = vmatpush1.msra.mxu0 %v1878
  %1943 = vmatprep.subr.mxu0 0.0
  %1944 = vmatpush1.msra.mxu0 0.0
  %1945 = vmatprep.subr.mxu0 0.0
  %1946 = vmatpush1.msra.mxu0 0.0
  %1947 = vmatprep.subr.mxu0 0.0
  %1948 = vmatpush1.msra.mxu0 0.0
  %1949 = vmatprep.subr.mxu0 0.0
  %1950 = vmatpush1.msra.mxu0 0.0
  %1951 = vmatprep.subr.mxu0 0.0
  %1952 = vmatpush1.msra.mxu0 0.0
  %1953 = vmatprep.subr.mxu0 0.0
  %1954 = vmatpush1.msra.mxu0 0.0
  %1955 = vmatprep.subr.mxu0 0.0
  %1956 = vmatpush1.msra.mxu0 0.0
  %1957 = vmatprep.subr.mxu0 0.0
  %1958 = vmatpush1.msra.mxu0 0.0
  %1959 = vmatprep.subr.mxu0 0.0
  %1960 = vmatpush1.msra.mxu0 0.0
  %1961 = vmatprep.subr.mxu0 0.0
  %1962 = vmatpush1.msra.mxu0 0.0
  %1963 = vmatprep.subr.mxu0 0.0
  %1964 = vmatpush1.msra.mxu0 0.0
  %1965 = vmatprep.subr.mxu0 0.0
  %1966 = vmatpush1.msra.mxu0 0.0
  %1967 = vmatprep.subr.mxu0 0.0
  %1968 = vmatpush1.msra.mxu0 0.0
  %1969 = vmatprep.subr.mxu0 0.0
  %1970 = vmatpush1.msra.mxu0 0.0
  %1971 = vmatprep.subr.mxu0 0.0
  %1972 = vmatpush1.msra.mxu0 0.0
  %1973 = vmatprep.subr.mxu0 0.0
  %1974 = vmatpush1.msra.mxu0 0.0
  %1975 = vmatprep.subr.mxu0 0.0
  %1976 = vmatpush1.msra.mxu0 0.0
  %1977 = vmatprep.subr.mxu0 0.0
  %1978 = vmatpush1.msra.mxu0 0.0
  %1979 = vmatprep.subr.mxu0 0.0
  %1980 = vmatpush1.msra.mxu0 0.0
  %1981 = vmatprep.subr.mxu0 0.0
  %1982 = vmatpush1.msra.mxu0 0.0
  %1983 = vmatprep.subr.mxu0 0.0
  %1984 = vmatpush1.msra.mxu0 0.0
  %1985 = vmatprep.subr.mxu0 0.0
  %1986 = vmatpush1.msra.mxu0 0.0
  %1987 = vmatprep.subr.mxu0 0.0
  %1988 = vmatpush1.msra.mxu0 0.0
  %1989 = vmatprep.subr.mxu0 0.0
  %1990 = vmatpush1.msra.mxu0 0.0
  %1991 = vmatprep.mubr.f32.mxu0 0.0
  %1992 = vmatmul.mubr.f32.gmra.mrb[0].mxu0 %v1880
  %v1993 = vpop.f32.mrb[0].mxu0
  %v1994 = vadd.f32 0.0, %v1993
  %v1995 = vpop.f32.mrb[0].mxu0
  %1996 = vmatprep.mubr.f32.mxu0 0.0
  %1997 = vmatmul.mubr.f32.gmra.mrb[0].mxu0 %v1883
  %v1998 = vpop.f32.mrb[0].mxu0
  %v1999 = vadd.f32 0.0, %v1998
  %v2000 = vpop.f32.mrb[0].mxu0
  %2001 = vmatprep.mubr.f32.mxu0 0.0
  %2002 = vmatmul.mubr.f32.gmra.mrb[0].mxu0 %v1886
  %v2003 = vpop.f32.mrb[0].mxu0
  %v2004 = vadd.f32 0.0, %v2003
  %v2005 = vpop.f32.mrb[0].mxu0
  %2006 = vmatprep.mubr.f32.mxu0 0.0
  %2007 = vmatmul.mubr.f32.gmra.mrb[0].mxu0 %v1889
  %v2008 = vpop.f32.mrb[0].mxu0
  %v2009 = vadd.f32 0.0, %v2008
  %v2010 = vpop.f32.mrb[0].mxu0
  %2011 = vmatprep.mubr.f32.mxu0 0.0
  %2012 = vmatmul.mubr.f32.gmra.mrb[0].mxu0 %v1892
  %v2013 = vpop.f32.mrb[0].mxu0
  %v2014 = vadd.f32 0.0, %v2013
  %v2015 = vpop.f32.mrb[0].mxu0
  %2016 = vmatprep.mubr.f32.mxu0 0.0
  %2017 = vmatmul.mubr.f32.gmra.mrb[0].mxu0 %v1895
  %v2018 = vpop.f32.mrb[0].mxu0
  %v2019 = vadd.f32 0.0, %v2018
  %v2020 = vpop.f32.mrb[0].mxu0
  %2021 = vmatprep.mubr.f32.mxu0 0.0
  %2022 = vmatmul.mubr.f32.gmra.mrb[0].mxu0 %v1898
  %v2023 = vpop.f32.mrb[0].mxu0
  %v2024 = vadd.f32 0.0, %v2023
  %v2025 = vpop.f32.mrb[0].mxu0
  %2026 = vmatprep.mubr.f32.mxu0 0.0
  %2027 = vmatmul.mubr.f32.gmra.mrb[0].mxu0 %v1901
  %v2028 = vpop.f32.mrb[0].mxu0
  %v2029 = vadd.f32 0.0, %v2028
  %v2030 = vpop.f32.mrb[0].mxu0
  %2031 = vmatprep.mubr.f32.mxu0 0.0
  %2032 = vmatmul.mubr.f32.gmra.mrb[0].mxu0 %v1904
  %v2033 = vpop.f32.mrb[0].mxu0
  %v2034 = vadd.f32 0.0, %v2033
  %v2035 = vpop.f32.mrb[0].mxu0
  %2036 = vmatprep.mubr.f32.mxu0 0.0
  %2037 = vmatmul.mubr.f32.gmra.mrb[0].mxu0 %v1907
  %v2038 = vpop.f32.mrb[0].mxu0
  %v2039 = vadd.f32 0.0, %v2038
  %v2040 = vpop.f32.mrb[0].mxu0
  %2041 = vmatprep.mubr.f32.mxu0 0.0
  %2042 = vmatmul.mubr.f32.gmra.mrb[0].mxu0 %v1910
  %v2043 = vpop.f32.mrb[0].mxu0
  %v2044 = vadd.f32 0.0, %v2043
  %v2045 = vpop.f32.mrb[0].mxu0
  %2046 = vmatprep.mubr.f32.mxu0 0.0
  %2047 = vmatmul.mubr.f32.gmra.mrb[0].mxu0 %v1913
  %v2048 = vpop.f32.mrb[0].mxu0
  %v2049 = vadd.f32 0.0, %v2048
  %v2050 = vpop.f32.mrb[0].mxu0
  %2051 = vmatprep.mubr.f32.mxu0 0.0
  %2052 = vmatmul.mubr.f32.gmra.mrb[0].mxu0 %v1916
  %v2053 = vpop.f32.mrb[0].mxu0
  %v2054 = vadd.f32 0.0, %v2053
  %v2055 = vpop.f32.mrb[0].mxu0
  %2056 = vmatprep.mubr.f32.mxu0 0.0
  %2057 = vmatmul.mubr.f32.gmra.mrb[0].mxu0 %v1919
  %v2058 = vpop.f32.mrb[0].mxu0
  %v2059 = vadd.f32 0.0, %v2058
  %v2060 = vpop.f32.mrb[0].mxu0
  %2061 = vmatprep.mubr.f32.mxu0 0.0
  %2062 = vmatmul.mubr.f32.gmra.mrb[0].mxu0 %v1922
  %v2063 = vpop.f32.mrb[0].mxu0
  %v2064 = vadd.f32 0.0, %v2063
  %v2065 = vpop.f32.mrb[0].mxu0
  %2066 = vmatprep.mubr.f32.mxu0 0.0
  %2067 = vmatmul.mubr.f32.gmra.mrb[0].mxu0 %v1925
  %v2068 = vpop.f32.mrb[0].mxu0
  %v2069 = vadd.f32 0.0, %v2068
  %v2070 = vpop.f32.mrb[0].mxu0
  %2071 = vdwg.mxu0
  %v2072 = vadd.f32 %v1838, %v1994
  %v2073 = vadd.f32 %v1839, %v1999
  %v2074 = vadd.f32 %v1840, %v2004
  %v2075 = vadd.f32 %v1841, %v2009
  %v2076 = vadd.f32 %v1842, %v2014
  %v2077 = vadd.f32 %v1843, %v2019
  %v2078 = vadd.f32 %v1844, %v2024
  %v2079 = vadd.f32 %v1845, %v2029
  %v2080 = vadd.f32 %v1846, %v2034
  %v2081 = vadd.f32 %v1847, %v2039
  %v2082 = vadd.f32 %v1848, %v2044
  %v2083 = vadd.f32 %v1849, %v2049
  %v2084 = vadd.f32 %v1850, %v2054
  %v2085 = vadd.f32 %v1851, %v2059
  %v2086 = vadd.f32 %v1852, %v2064
  %v2087 = vadd.f32 %v1853, %v2069
  %2104 = vrot.lane.b32.xlu0 %v2072, 96
  %v2105 = vpop.permute.xlu0 %2104
  %2106 = vrot.lane.b32.xlu0 %v2073, 96
  %v2107 = vpop.permute.xlu0 %2106
  %2108 = vrot.lane.b32.xlu0 %v2074, 96
  %v2109 = vpop.permute.xlu0 %2108
  %2110 = vrot.lane.b32.xlu0 %v2075, 96
  %v2111 = vpop.permute.xlu0 %2110
  %2112 = vrot.lane.b32.xlu0 %v2076, 96
  %v2113 = vpop.permute.xlu0 %2112
  %2114 = vrot.lane.b32.xlu0 %v2077, 96
  %v2115 = vpop.permute.xlu0 %2114
  %2116 = vrot.lane.b32.xlu0 %v2078, 96
  %v2117 = vpop.permute.xlu0 %2116
  %2118 = vrot.lane.b32.xlu0 %v2079, 96
  %v2119 = vpop.permute.xlu0 %2118
  %2120 = vrot.lane.b32.xlu0 %v2080, 96
  %v2121 = vpop.permute.xlu0 %2120
  %2122 = vrot.lane.b32.xlu0 %v2081, 96
  %v2123 = vpop.permute.xlu0 %2122
  %2124 = vrot.lane.b32.xlu0 %v2082, 96
  %v2125 = vpop.permute.xlu0 %2124
  %2126 = vrot.lane.b32.xlu0 %v2083, 96
  %v2127 = vpop.permute.xlu0 %2126
  %2128 = vrot.lane.b32.xlu0 %v2084, 96
  %v2129 = vpop.permute.xlu0 %2128
  %2130 = vrot.lane.b32.xlu0 %v2085, 96
  %v2131 = vpop.permute.xlu0 %2130
  %2132 = vrot.lane.b32.xlu0 %v2086, 96
  %v2133 = vpop.permute.xlu0 %2132
  %2134 = vrot.lane.b32.xlu0 %v2087, 96
  %v2135 = vpop.permute.xlu0 %2134
  %v2152 = vmax.f32 %v2072, %v2105
  %v2153 = vmax.f32 %v2073, %v2107
  %v2154 = vmax.f32 %v2074, %v2109
  %v2155 = vmax.f32 %v2075, %v2111
  %v2156 = vmax.f32 %v2076, %v2113
  %v2157 = vmax.f32 %v2077, %v2115
  %v2158 = vmax.f32 %v2078, %v2117
  %v2159 = vmax.f32 %v2079, %v2119
  %v2160 = vmax.f32 %v2080, %v2121
  %v2161 = vmax.f32 %v2081, %v2123
  %v2162 = vmax.f32 %v2082, %v2125
  %v2163 = vmax.f32 %v2083, %v2127
  %v2164 = vmax.f32 %v2084, %v2129
  %v2165 = vmax.f32 %v2085, %v2131
  %v2166 = vmax.f32 %v2086, %v2133
  %v2167 = vmax.f32 %v2087, %v2135
  %2168 = vrot.lane.b32.xlu0 %v2072, 64
  %v2169 = vpop.permute.xlu0 %2168
  %2170 = vrot.lane.b32.xlu0 %v2073, 64
  %v2171 = vpop.permute.xlu0 %2170
  %2172 = vrot.lane.b32.xlu0 %v2074, 64
  %v2173 = vpop.permute.xlu0 %2172
  %2174 = vrot.lane.b32.xlu0 %v2075, 64
  %v2175 = vpop.permute.xlu0 %2174
  %2176 = vrot.lane.b32.xlu0 %v2076, 64
  %v2177 = vpop.permute.xlu0 %2176
  %2178 = vrot.lane.b32.xlu0 %v2077, 64
  %v2179 = vpop.permute.xlu0 %2178
  %2180 = vrot.lane.b32.xlu0 %v2078, 64
  %v2181 = vpop.permute.xlu0 %2180
  %2182 = vrot.lane.b32.xlu0 %v2079, 64
  %v2183 = vpop.permute.xlu0 %2182
  %2184 = vrot.lane.b32.xlu0 %v2080, 64
  %v2185 = vpop.permute.xlu0 %2184
  %2186 = vrot.lane.b32.xlu0 %v2081, 64
  %v2187 = vpop.permute.xlu0 %2186
  %2188 = vrot.lane.b32.xlu0 %v2082, 64
  %v2189 = vpop.permute.xlu0 %2188
  %2190 = vrot.lane.b32.xlu0 %v2083, 64
  %v2191 = vpop.permute.xlu0 %2190
  %2192 = vrot.lane.b32.xlu0 %v2084, 64
  %v2193 = vpop.permute.xlu0 %2192
  %2194 = vrot.lane.b32.xlu0 %v2085, 64
  %v2195 = vpop.permute.xlu0 %2194
  %2196 = vrot.lane.b32.xlu0 %v2086, 64
  %v2197 = vpop.permute.xlu0 %2196
  %2198 = vrot.lane.b32.xlu0 %v2087, 64
  %v2199 = vpop.permute.xlu0 %2198
  %v2216 = vmax.f32 %v2152, %v2169
  %v2217 = vmax.f32 %v2153, %v2171
  %v2218 = vmax.f32 %v2154, %v2173
  %v2219 = vmax.f32 %v2155, %v2175
  %v2220 = vmax.f32 %v2156, %v2177
  %v2221 = vmax.f32 %v2157, %v2179
  %v2222 = vmax.f32 %v2158, %v2181
  %v2223 = vmax.f32 %v2159, %v2183
  %v2224 = vmax.f32 %v2160, %v2185
  %v2225 = vmax.f32 %v2161, %v2187
  %v2226 = vmax.f32 %v2162, %v2189
  %v2227 = vmax.f32 %v2163, %v2191
  %v2228 = vmax.f32 %v2164, %v2193
  %v2229 = vmax.f32 %v2165, %v2195
  %v2230 = vmax.f32 %v2166, %v2197
  %v2231 = vmax.f32 %v2167, %v2199
  %2232 = vrot.lane.b32.xlu0 %v2072, 32
  %v2233 = vpop.permute.xlu0 %2232
  %2234 = vrot.lane.b32.xlu0 %v2073, 32
  %v2235 = vpop.permute.xlu0 %2234
  %2236 = vrot.lane.b32.xlu0 %v2074, 32
  %v2237 = vpop.permute.xlu0 %2236
  %2238 = vrot.lane.b32.xlu0 %v2075, 32
  %v2239 = vpop.permute.xlu0 %2238
  %2240 = vrot.lane.b32.xlu0 %v2076, 32
  %v2241 = vpop.permute.xlu0 %2240
  %2242 = vrot.lane.b32.xlu0 %v2077, 32
  %v2243 = vpop.permute.xlu0 %2242
  %2244 = vrot.lane.b32.xlu0 %v2078, 32
  %v2245 = vpop.permute.xlu0 %2244
  %2246 = vrot.lane.b32.xlu0 %v2079, 32
  %v2247 = vpop.permute.xlu0 %2246
  %2248 = vrot.lane.b32.xlu0 %v2080, 32
  %v2249 = vpop.permute.xlu0 %2248
  %2250 = vrot.lane.b32.xlu0 %v2081, 32
  %v2251 = vpop.permute.xlu0 %2250
  %2252 = vrot.lane.b32.xlu0 %v2082, 32
  %v2253 = vpop.permute.xlu0 %2252
  %2254 = vrot.lane.b32.xlu0 %v2083, 32
  %v2255 = vpop.permute.xlu0 %2254
  %2256 = vrot.lane.b32.xlu0 %v2084, 32
  %v2257 = vpop.permute.xlu0 %2256
  %2258 = vrot.lane.b32.xlu0 %v2085, 32
  %v2259 = vpop.permute.xlu0 %2258
  %2260 = vrot.lane.b32.xlu0 %v2086, 32
  %v2261 = vpop.permute.xlu0 %2260
  %2262 = vrot.lane.b32.xlu0 %v2087, 32
  %v2263 = vpop.permute.xlu0 %2262
  %v2280 = vmax.f32 %v2216, %v2233
  %v2281 = vmax.f32 %v2217, %v2235
  %v2282 = vmax.f32 %v2218, %v2237
  %v2283 = vmax.f32 %v2219, %v2239
  %v2284 = vmax.f32 %v2220, %v2241
  %v2285 = vmax.f32 %v2221, %v2243
  %v2286 = vmax.f32 %v2222, %v2245
  %v2287 = vmax.f32 %v2223, %v2247
  %v2288 = vmax.f32 %v2224, %v2249
  %v2289 = vmax.f32 %v2225, %v2251
  %v2290 = vmax.f32 %v2226, %v2253
  %v2291 = vmax.f32 %v2227, %v2255
  %v2292 = vmax.f32 %v2228, %v2257
  %v2293 = vmax.f32 %v2229, %v2259
  %v2294 = vmax.f32 %v2230, %v2261
  %v2295 = vmax.f32 %v2231, %v2263
  %v2296 = vld [vmem:[%s2] sm:$0x1]
  %v2298 = vlaneseq
  %v2299 = vshrl.u32 %v2298, 7
  %v2300 = vsub.s32 0, %v2299
  %v2301 = vrot.slane %v2296, %v2300
  %v2303 = vadd.f32 %v2280, %v2301
  %v2304 = vadd.f32 %v2281, %v2301
  %v2305 = vadd.f32 %v2282, %v2301
  %v2306 = vadd.f32 %v2283, %v2301
  %v2307 = vadd.f32 %v2284, %v2301
  %v2308 = vadd.f32 %v2285, %v2301
  %v2309 = vadd.f32 %v2286, %v2301
  %v2310 = vadd.f32 %v2287, %v2301
  %v2311 = vadd.f32 %v2288, %v2301
  %v2312 = vadd.f32 %v2289, %v2301
  %v2313 = vadd.f32 %v2290, %v2301
  %v2314 = vadd.f32 %v2291, %v2301
  %v2315 = vadd.f32 %v2292, %v2301
  %v2316 = vadd.f32 %v2293, %v2301
  %v2317 = vadd.f32 %v2294, %v2301
  %v2318 = vadd.f32 %v2295, %v2301
  %v2319 = vmax.f32 %v2303, 0.0
  %v2320 = vmax.f32 %v2304, 0.0
  %v2321 = vmax.f32 %v2305, 0.0
  %v2322 = vmax.f32 %v2306, 0.0
  %v2323 = vmax.f32 %v2307, 0.0
  %v2324 = vmax.f32 %v2308, 0.0
  %v2325 = vmax.f32 %v2309, 0.0
  %v2326 = vmax.f32 %v2310, 0.0
  %v2327 = vmax.f32 %v2311, 0.0
  %v2328 = vmax.f32 %v2312, 0.0
  %v2329 = vmax.f32 %v2313, 0.0
  %v2330 = vmax.f32 %v2314, 0.0
  %v2331 = vmax.f32 %v2315, 0.0
  %v2332 = vmax.f32 %v2316, 0.0
  %v2333 = vmax.f32 %v2317, 0.0
  %v2334 = vmax.f32 %v2318, 0.0
  %vm2335 = vcmask 261120
  %2336 = vst.msk [vmem:[%s3] sm:$0xff] %vm2335, %v2319
  %2337 = vst.msk [vmem:[%s3 + $0x8] sm:$0xff] %vm2335, %v2320
  %2338 = vst.msk [vmem:[%s3 + $0x10] sm:$0xff] %vm2335, %v2321
  %2339 = vst.msk [vmem:[%s3 + $0x18] sm:$0xff] %vm2335, %v2322
  %2340 = vst.msk [vmem:[%s3 + $0x20] sm:$0xff] %vm2335, %v2323
  %2341 = vst.msk [vmem:[%s3 + $0x28] sm:$0xff] %vm2335, %v2324
  %2342 = vst.msk [vmem:[%s3 + $0x30] sm:$0xff] %vm2335, %v2325
  %2343 = vst.msk [vmem:[%s3 + $0x38] sm:$0xff] %vm2335, %v2326
  %2344 = vst.msk [vmem:[%s3 + $0x40] sm:$0xff] %vm2335, %v2327
  %2345 = vst.msk [vmem:[%s3 + $0x48] sm:$0xff] %vm2335, %v2328
  %2346 = vst.msk [vmem:[%s3 + $0x50] sm:$0xff] %vm2335, %v2329
  %2347 = vst.msk [vmem:[%s3 + $0x58] sm:$0xff] %vm2335, %v2330
  %2348 = vst.msk [vmem:[%s3 + $0x60] sm:$0xff] %vm2335, %v2331
  %2349 = vst.msk [vmem:[%s3 + $0x68] sm:$0xff] %vm2335, %v2332
  %2350 = vst.msk [vmem:[%s3 + $0x70] sm:$0xff] %vm2335, %v2333
  %2351 = vst.msk [vmem:[%s3 + $0x78] sm:$0xff] %vm2335, %v2334
  // Predicated region
  $region14: #{cnn_forward.4} parent=0 // pred_check
    _
  $region15: #{cnn_forward.4} parent=0 // pred_check_branch
    %2353 = sbr.rel (0) target = $region17
  $region16: #{cnn_forward.4} parent=0 // pred_region
    _
  $region17: #{cnn_forward.4} parent=0 // pred_fallthru
    _
  // Predicated region
  $region18: #{cnn_forward.4} parent=0 // pred_check
    _
  $region19: #{cnn_forward.4} parent=0 // pred_check_branch
    %2355 = sbr.rel (0) target = $region21
  $region20: #{cnn_forward.4} parent=0 // pred_region
    _
  $region21: #{cnn_forward.4} parent=0 // pred_fallthru
    _

// kernel: cnn_forward.5
$region0: #{cnn_forward.5}
  #allocation0 [shape = 'u32[]', space=smem, size = 0x4, offset = 0x4, fixed_abs, tag = 'smem constant byte address 0x4 - core index']
  #allocation1 [shape = 'u32[144,128]{1,0:T(1,128)}', space=vmem, size = 0x12000, scoped, tag = 'internal scratch']
  %s0 = inlined_call_operand.vmem [shape: f32[8,1568], index: 0, kind: input, shape index: {}]
  %s1 = inlined_call_operand.vmem [shape: f32[1568,128], index: 1, kind: input, shape index: {}]
  %s2 = inlined_call_operand.vmem [shape: f32[1,128], index: 2, kind: input, shape index: {}]
  %s3 = inlined_call_operand.vmem [shape: f32[8,128], index: 3, kind: output, shape index: {}]
  %s4 = sld [smem:[#allocation0]]
  $region22: #{cnn_forward.5} parent=0
    _
  %s6 = ssub.s32 1, %s4
  %s7 = scalar_select 0, %s6, %s4
  // Predicated region
  $region2: #{cnn_forward.5} parent=0 // pred_check
    _
  $region3: #{cnn_forward.5} parent=0 // pred_check_branch
    %9 = sbr.rel (0) target = $region5
  $region4: #{cnn_forward.5} parent=0 // pred_region
    _
  $region5: #{cnn_forward.5} parent=0 // pred_fallthru
    _
  // Predicated region
  $region6: #{cnn_forward.5} parent=0 // pred_check
    _
  $region7: #{cnn_forward.5} parent=0 // pred_check_branch
    %11 = sbr.rel (0) target = $region9
  $region8: #{cnn_forward.5} parent=0 // pred_region
    _
  $region9: #{cnn_forward.5} parent=0 // pred_fallthru
    _
  // Predicated region
  $region10: #{cnn_forward.5} parent=0 // pred_check
    _
  $region11: #{cnn_forward.5} parent=0 // pred_check_branch
    %13 = sbr.rel (0) target = $region13
  $region12: #{cnn_forward.5} parent=0 // pred_region
    _
  $region13: #{cnn_forward.5} parent=0 // pred_fallthru
    _
  %v14 = vld [vmem:[%s0] sm:$0xff]
  %v15 = vld [vmem:[%s0 + $0x8] sm:$0xff]
  %v16 = vld [vmem:[%s0 + $0x10] sm:$0xff]
  %v17 = vld [vmem:[%s0 + $0x18] sm:$0xff]
  %v18 = vld [vmem:[%s0 + $0x20] sm:$0xff]
  %v19 = vld [vmem:[%s0 + $0x28] sm:$0xff]
  %v20 = vld [vmem:[%s0 + $0x30] sm:$0xff]
  %v21 = vld [vmem:[%s0 + $0x38] sm:$0xff]
  %v22 = vld [vmem:[%s0 + $0x40] sm:$0xff]
  %v23 = vld [vmem:[%s0 + $0x48] sm:$0xff]
  %v24 = vld [vmem:[%s0 + $0x50] sm:$0xff]
  %v25 = vld [vmem:[%s0 + $0x58] sm:$0xff]
  %v26 = vld [vmem:[%s0 + $0x60] sm:$0xff]
  %v27 = vld [vmem:[%s1] sm:$0xff]
  %v28 = vld [vmem:[%s1 + $0x8] sm:$0xff]
  %v29 = vld [vmem:[%s1 + $0x10] sm:$0xff]
  %v30 = vld [vmem:[%s1 + $0x18] sm:$0xff]
  %v31 = vld [vmem:[%s1 + $0x20] sm:$0xff]
  %v32 = vld [vmem:[%s1 + $0x28] sm:$0xff]
  %v33 = vld [vmem:[%s1 + $0x30] sm:$0xff]
  %v34 = vld [vmem:[%s1 + $0x38] sm:$0xff]
  %v35 = vld [vmem:[%s1 + $0x40] sm:$0xff]
  %v36 = vld [vmem:[%s1 + $0x48] sm:$0xff]
  %v37 = vld [vmem:[%s1 + $0x50] sm:$0xff]
  %v38 = vld [vmem:[%s1 + $0x58] sm:$0xff]
  %v39 = vld [vmem:[%s1 + $0x60] sm:$0xff]
  %v40 = vld [vmem:[%s1 + $0x68] sm:$0xff]
  %v41 = vld [vmem:[%s1 + $0x70] sm:$0xff]
  %v42 = vld [vmem:[%s1 + $0x78] sm:$0xff]
  %v43 = vld [vmem:[%s1 + $0x80] sm:$0xff]
  %v44 = vld [vmem:[%s1 + $0x88] sm:$0xff]
  %v45 = vld [vmem:[%s1 + $0x90] sm:$0xff]
  %v46 = vld [vmem:[%s1 + $0x98] sm:$0xff]
  %v47 = vld [vmem:[%s1 + $0xa0] sm:$0xff]
  %v48 = vld [vmem:[%s1 + $0xa8] sm:$0xff]
  %v49 = vld [vmem:[%s1 + $0xb0] sm:$0xff]
  %v50 = vld [vmem:[%s1 + $0xb8] sm:$0xff]
  %v51 = vld [vmem:[%s1 + $0xc0] sm:$0xff]
  %v52 = vld [vmem:[%s1 + $0xc8] sm:$0xff]
  %v53 = vld [vmem:[%s1 + $0xd0] sm:$0xff]
  %v54 = vld [vmem:[%s1 + $0xd8] sm:$0xff]
  %v55 = vld [vmem:[%s1 + $0xe0] sm:$0xff]
  %v56 = vld [vmem:[%s1 + $0xe8] sm:$0xff]
  %v57 = vld [vmem:[%s1 + $0xf0] sm:$0xff]
  %v58 = vld [vmem:[%s1 + $0xf8] sm:$0xff]
  %v59 = vld [vmem:[%s1 + $0x100] sm:$0xff]
  %v60 = vld [vmem:[%s1 + $0x108] sm:$0xff]
  %v61 = vld [vmem:[%s1 + $0x110] sm:$0xff]
  %v62 = vld [vmem:[%s1 + $0x118] sm:$0xff]
  %v63 = vld [vmem:[%s1 + $0x120] sm:$0xff]
  %v64 = vld [vmem:[%s1 + $0x128] sm:$0xff]
  %v65 = vld [vmem:[%s1 + $0x130] sm:$0xff]
  %v66 = vld [vmem:[%s1 + $0x138] sm:$0xff]
  %v67 = vld [vmem:[%s1 + $0x140] sm:$0xff]
  %v68 = vld [vmem:[%s1 + $0x148] sm:$0xff]
  %v69 = vld [vmem:[%s1 + $0x150] sm:$0xff]
  %v70 = vld [vmem:[%s1 + $0x158] sm:$0xff]
  %v71 = vld [vmem:[%s1 + $0x160] sm:$0xff]
  %v72 = vld [vmem:[%s1 + $0x168] sm:$0xff]
  %v73 = vld [vmem:[%s1 + $0x170] sm:$0xff]
  %v74 = vld [vmem:[%s1 + $0x178] sm:$0xff]
  %v75 = vld [vmem:[%s1 + $0x180] sm:$0xff]
  %v76 = vld [vmem:[%s1 + $0x188] sm:$0xff]
  %v77 = vld [vmem:[%s1 + $0x190] sm:$0xff]
  %v78 = vld [vmem:[%s1 + $0x198] sm:$0xff]
  %v79 = vld [vmem:[%s1 + $0x1a0] sm:$0xff]
  %v80 = vld [vmem:[%s1 + $0x1a8] sm:$0xff]
  %v81 = vld [vmem:[%s1 + $0x1b0] sm:$0xff]
  %v82 = vld [vmem:[%s1 + $0x1b8] sm:$0xff]
  %v83 = vld [vmem:[%s1 + $0x1c0] sm:$0xff]
  %v84 = vld [vmem:[%s1 + $0x1c8] sm:$0xff]
  %v85 = vld [vmem:[%s1 + $0x1d0] sm:$0xff]
  %v86 = vld [vmem:[%s1 + $0x1d8] sm:$0xff]
  %v87 = vld [vmem:[%s1 + $0x1e0] sm:$0xff]
  %v88 = vld [vmem:[%s1 + $0x1e8] sm:$0xff]
  %v89 = vld [vmem:[%s1 + $0x1f0] sm:$0xff]
  %v90 = vld [vmem:[%s1 + $0x1f8] sm:$0xff]
  %v91 = vld [vmem:[%s1 + $0x200] sm:$0xff]
  %v92 = vld [vmem:[%s1 + $0x208] sm:$0xff]
  %v93 = vld [vmem:[%s1 + $0x210] sm:$0xff]
  %v94 = vld [vmem:[%s1 + $0x218] sm:$0xff]
  %v95 = vld [vmem:[%s1 + $0x220] sm:$0xff]
  %v96 = vld [vmem:[%s1 + $0x228] sm:$0xff]
  %v97 = vld [vmem:[%s1 + $0x230] sm:$0xff]
  %v98 = vld [vmem:[%s1 + $0x238] sm:$0xff]
  %v99 = vld [vmem:[%s1 + $0x240] sm:$0xff]
  %v100 = vld [vmem:[%s1 + $0x248] sm:$0xff]
  %v101 = vld [vmem:[%s1 + $0x250] sm:$0xff]
  %v102 = vld [vmem:[%s1 + $0x258] sm:$0xff]
  %v103 = vld [vmem:[%s1 + $0x260] sm:$0xff]
  %v104 = vld [vmem:[%s1 + $0x268] sm:$0xff]
  %v105 = vld [vmem:[%s1 + $0x270] sm:$0xff]
  %v106 = vld [vmem:[%s1 + $0x278] sm:$0xff]
  %v107 = vld [vmem:[%s1 + $0x280] sm:$0xff]
  %v108 = vld [vmem:[%s1 + $0x288] sm:$0xff]
  %v109 = vld [vmem:[%s1 + $0x290] sm:$0xff]
  %v110 = vld [vmem:[%s1 + $0x298] sm:$0xff]
  %v111 = vld [vmem:[%s1 + $0x2a0] sm:$0xff]
  %v112 = vld [vmem:[%s1 + $0x2a8] sm:$0xff]
  %v113 = vld [vmem:[%s1 + $0x2b0] sm:$0xff]
  %v114 = vld [vmem:[%s1 + $0x2b8] sm:$0xff]
  %v115 = vld [vmem:[%s1 + $0x2c0] sm:$0xff]
  %v116 = vld [vmem:[%s1 + $0x2c8] sm:$0xff]
  %v117 = vld [vmem:[%s1 + $0x2d0] sm:$0xff]
  %v118 = vld [vmem:[%s1 + $0x2d8] sm:$0xff]
  %v119 = vld [vmem:[%s1 + $0x2e0] sm:$0xff]
  %v120 = vld [vmem:[%s1 + $0x2e8] sm:$0xff]
  %v121 = vld [vmem:[%s1 + $0x2f0] sm:$0xff]
  %v122 = vld [vmem:[%s1 + $0x2f8] sm:$0xff]
  %v123 = vld [vmem:[%s1 + $0x300] sm:$0xff]
  %v124 = vld [vmem:[%s1 + $0x308] sm:$0xff]
  %v125 = vld [vmem:[%s1 + $0x310] sm:$0xff]
  %v126 = vld [vmem:[%s1 + $0x318] sm:$0xff]
  %v127 = vld [vmem:[%s1 + $0x320] sm:$0xff]
  %v128 = vld [vmem:[%s1 + $0x328] sm:$0xff]
  %v129 = vld [vmem:[%s1 + $0x330] sm:$0xff]
  %v130 = vld [vmem:[%s1 + $0x338] sm:$0xff]
  %v131 = vld [vmem:[%s1 + $0x340] sm:$0xff]
  %v132 = vld [vmem:[%s1 + $0x348] sm:$0xff]
  %v133 = vld [vmem:[%s1 + $0x350] sm:$0xff]
  %v134 = vld [vmem:[%s1 + $0x358] sm:$0xff]
  %v135 = vld [vmem:[%s1 + $0x360] sm:$0xff]
  %v136 = vld [vmem:[%s1 + $0x368] sm:$0xff]
  %v137 = vld [vmem:[%s1 + $0x370] sm:$0xff]
  %v138 = vld [vmem:[%s1 + $0x378] sm:$0xff]
  %v139 = vld [vmem:[%s1 + $0x380] sm:$0xff]
  %v140 = vld [vmem:[%s1 + $0x388] sm:$0xff]
  %v141 = vld [vmem:[%s1 + $0x390] sm:$0xff]
  %v142 = vld [vmem:[%s1 + $0x398] sm:$0xff]
  %v143 = vld [vmem:[%s1 + $0x3a0] sm:$0xff]
  %v144 = vld [vmem:[%s1 + $0x3a8] sm:$0xff]
  %v145 = vld [vmem:[%s1 + $0x3b0] sm:$0xff]
  %v146 = vld [vmem:[%s1 + $0x3b8] sm:$0xff]
  %v147 = vld [vmem:[%s1 + $0x3c0] sm:$0xff]
  %v148 = vld [vmem:[%s1 + $0x3c8] sm:$0xff]
  %v149 = vld [vmem:[%s1 + $0x3d0] sm:$0xff]
  %v150 = vld [vmem:[%s1 + $0x3d8] sm:$0xff]
  %v151 = vld [vmem:[%s1 + $0x3e0] sm:$0xff]
  %v152 = vld [vmem:[%s1 + $0x3e8] sm:$0xff]
  %v153 = vld [vmem:[%s1 + $0x3f0] sm:$0xff]
  %v154 = vld [vmem:[%s1 + $0x3f8] sm:$0xff]
  %v155 = vld [vmem:[%s1 + $0x400] sm:$0xff]
  %v156 = vld [vmem:[%s1 + $0x408] sm:$0xff]
  %v157 = vld [vmem:[%s1 + $0x410] sm:$0xff]
  %v158 = vld [vmem:[%s1 + $0x418] sm:$0xff]
  %v159 = vld [vmem:[%s1 + $0x420] sm:$0xff]
  %v160 = vld [vmem:[%s1 + $0x428] sm:$0xff]
  %v161 = vld [vmem:[%s1 + $0x430] sm:$0xff]
  %v162 = vld [vmem:[%s1 + $0x438] sm:$0xff]
  %v163 = vld [vmem:[%s1 + $0x440] sm:$0xff]
  %v164 = vld [vmem:[%s1 + $0x448] sm:$0xff]
  %v165 = vld [vmem:[%s1 + $0x450] sm:$0xff]
  %v166 = vld [vmem:[%s1 + $0x458] sm:$0xff]
  %v167 = vld [vmem:[%s1 + $0x460] sm:$0xff]
  %v168 = vld [vmem:[%s1 + $0x468] sm:$0xff]
  %v169 = vld [vmem:[%s1 + $0x470] sm:$0xff]
  %v170 = vld [vmem:[%s1 + $0x478] sm:$0xff]
  %v171 = vld [vmem:[%s1 + $0x480] sm:$0xff]
  %v172 = vld [vmem:[%s1 + $0x488] sm:$0xff]
  %v173 = vld [vmem:[%s1 + $0x490] sm:$0xff]
  %v174 = vld [vmem:[%s1 + $0x498] sm:$0xff]
  %v175 = vld [vmem:[%s1 + $0x4a0] sm:$0xff]
  %v176 = vld [vmem:[%s1 + $0x4a8] sm:$0xff]
  %v177 = vld [vmem:[%s1 + $0x4b0] sm:$0xff]
  %v178 = vld [vmem:[%s1 + $0x4b8] sm:$0xff]
  %v179 = vld [vmem:[%s1 + $0x4c0] sm:$0xff]
  %v180 = vld [vmem:[%s1 + $0x4c8] sm:$0xff]
  %v181 = vld [vmem:[%s1 + $0x4d0] sm:$0xff]
  %v182 = vld [vmem:[%s1 + $0x4d8] sm:$0xff]
  %v183 = vld [vmem:[%s1 + $0x4e0] sm:$0xff]
  %v184 = vld [vmem:[%s1 + $0x4e8] sm:$0xff]
  %v185 = vld [vmem:[%s1 + $0x4f0] sm:$0xff]
  %v186 = vld [vmem:[%s1 + $0x4f8] sm:$0xff]
  %v187 = vld [vmem:[%s1 + $0x500] sm:$0xff]
  %v188 = vld [vmem:[%s1 + $0x508] sm:$0xff]
  %v189 = vld [vmem:[%s1 + $0x510] sm:$0xff]
  %v190 = vld [vmem:[%s1 + $0x518] sm:$0xff]
  %v191 = vld [vmem:[%s1 + $0x520] sm:$0xff]
  %v192 = vld [vmem:[%s1 + $0x528] sm:$0xff]
  %v193 = vld [vmem:[%s1 + $0x530] sm:$0xff]
  %v194 = vld [vmem:[%s1 + $0x538] sm:$0xff]
  %v195 = vld [vmem:[%s1 + $0x540] sm:$0xff]
  %v196 = vld [vmem:[%s1 + $0x548] sm:$0xff]
  %v197 = vld [vmem:[%s1 + $0x550] sm:$0xff]
  %v198 = vld [vmem:[%s1 + $0x558] sm:$0xff]
  %v199 = vld [vmem:[%s1 + $0x560] sm:$0xff]
  %v200 = vld [vmem:[%s1 + $0x568] sm:$0xff]
  %v201 = vld [vmem:[%s1 + $0x570] sm:$0xff]
  %v202 = vld [vmem:[%s1 + $0x578] sm:$0xff]
  %v203 = vld [vmem:[%s1 + $0x580] sm:$0xff]
  %v204 = vld [vmem:[%s1 + $0x588] sm:$0xff]
  %v205 = vld [vmem:[%s1 + $0x590] sm:$0xff]
  %v206 = vld [vmem:[%s1 + $0x598] sm:$0xff]
  %v207 = vld [vmem:[%s1 + $0x5a0] sm:$0xff]
  %v208 = vld [vmem:[%s1 + $0x5a8] sm:$0xff]
  %v209 = vld [vmem:[%s1 + $0x5b0] sm:$0xff]
  %v210 = vld [vmem:[%s1 + $0x5b8] sm:$0xff]
  %v211 = vld [vmem:[%s1 + $0x5c0] sm:$0xff]
  %v212 = vld [vmem:[%s1 + $0x5c8] sm:$0xff]
  %v213 = vld [vmem:[%s1 + $0x5d0] sm:$0xff]
  %v214 = vld [vmem:[%s1 + $0x5d8] sm:$0xff]
  %v215 = vld [vmem:[%s1 + $0x5e0] sm:$0xff]
  %v216 = vld [vmem:[%s1 + $0x5e8] sm:$0xff]
  %v217 = vld [vmem:[%s1 + $0x5f0] sm:$0xff]
  %v218 = vld [vmem:[%s1 + $0x5f8] sm:$0xff]
  %v219 = vld [vmem:[%s1 + $0x600] sm:$0xff]
  %v220 = vld [vmem:[%s1 + $0x608] sm:$0xff]
  %v221 = vld [vmem:[%s1 + $0x610] sm:$0xff]
  %v222 = vld [vmem:[%s1 + $0x618] sm:$0xff]
  %v223 = vld [vmem:[%s2] sm:$0x1]
  %v225 = vlaneseq
  %v226 = vshrl.u32 %v225, 7
  %v227 = vsub.s32 0, %v226
  %v228 = vrot.slane %v223, %v227
  %vm230 = vcmask 261120
  %v232 = vsel %vm230, %v26, 0
  %234 = vmatprep.subr.mxu0 0.0
  %235 = vmatpush1.msra.mxu0 %v27
  %236 = vmatprep.subr.mxu0 0.0
  %237 = vmatpush1.msra.mxu0 %v28
  %238 = vmatprep.subr.mxu0 0.0
  %239 = vmatpush1.msra.mxu0 %v29
  %240 = vmatprep.subr.mxu0 0.0
  %241 = vmatpush1.msra.mxu0 %v30
  %242 = vmatprep.subr.mxu0 0.0
  %243 = vmatpush1.msra.mxu0 %v31
  %244 = vmatprep.subr.mxu0 0.0
  %245 = vmatpush1.msra.mxu0 %v32
  %246 = vmatprep.subr.mxu0 0.0
  %247 = vmatpush1.msra.mxu0 %v33
  %248 = vmatprep.subr.mxu0 0.0
  %249 = vmatpush1.msra.mxu0 %v34
  %250 = vmatprep.subr.mxu0 0.0
  %251 = vmatpush1.msra.mxu0 %v35
  %252 = vmatprep.subr.mxu0 0.0
  %253 = vmatpush1.msra.mxu0 %v36
  %254 = vmatprep.subr.mxu0 0.0
  %255 = vmatpush1.msra.mxu0 %v37
  %256 = vmatprep.subr.mxu0 0.0
  %257 = vmatpush1.msra.mxu0 %v38
  %258 = vmatprep.subr.mxu0 0.0
  %259 = vmatpush1.msra.mxu0 %v39
  %260 = vmatprep.subr.mxu0 0.0
  %261 = vmatpush1.msra.mxu0 %v40
  %262 = vmatprep.subr.mxu0 0.0
  %263 = vmatpush1.msra.mxu0 %v41
  %264 = vmatprep.subr.mxu0 0.0
  %265 = vmatpush1.msra.mxu0 %v42
  %266 = vmatprep.subr.mxu0 0.0
  %267 = vmatpush1.msra.mxu0 %v43
  %268 = vmatprep.subr.mxu0 0.0
  %269 = vmatpush1.msra.mxu0 %v44
  %270 = vmatprep.subr.mxu0 0.0
  %271 = vmatpush1.msra.mxu0 %v45
  %272 = vmatprep.subr.mxu0 0.0
  %273 = vmatpush1.msra.mxu0 %v46
  %274 = vmatprep.subr.mxu0 0.0
  %275 = vmatpush1.msra.mxu0 %v47
  %276 = vmatprep.subr.mxu0 0.0
  %277 = vmatpush1.msra.mxu0 %v48
  %278 = vmatprep.subr.mxu0 0.0
  %279 = vmatpush1.msra.mxu0 %v49
  %280 = vmatprep.subr.mxu0 0.0
  %281 = vmatpush1.msra.mxu0 %v50
  %282 = vmatprep.subr.mxu0 0.0
  %283 = vmatpush1.msra.mxu0 %v51
  %284 = vmatprep.subr.mxu0 0.0
  %285 = vmatpush1.msra.mxu0 %v52
  %286 = vmatprep.subr.mxu0 0.0
  %287 = vmatpush1.msra.mxu0 %v53
  %288 = vmatprep.subr.mxu0 0.0
  %289 = vmatpush1.msra.mxu0 %v54
  %290 = vmatprep.subr.mxu0 0.0
  %291 = vmatpush1.msra.mxu0 %v55
  %292 = vmatprep.subr.mxu0 0.0
  %293 = vmatpush1.msra.mxu0 %v56
  %294 = vmatprep.subr.mxu0 0.0
  %295 = vmatpush1.msra.mxu0 %v57
  %296 = vmatprep.subr.mxu0 0.0
  %297 = vmatpush1.msra.mxu0 %v58
  %298 = vmatprep.mubr.f32.mxu0 %v15
  %299 = vmatmul.mubr.f32.gmra.mrb[0].mxu0 %v14
  %v300 = vpop.f32.mrb[0].mxu0
  %v301 = vadd.f32 %v228, %v300
  %v302 = vpop.f32.mrb[0].mxu0
  %303 = vdwg.mxu0
  %304 = vmatprep.subr.mxu0 0.0
  %305 = vmatpush1.msra.mxu0 %v59
  %306 = vmatprep.subr.mxu0 0.0
  %307 = vmatpush1.msra.mxu0 %v60
  %308 = vmatprep.subr.mxu0 0.0
  %309 = vmatpush1.msra.mxu0 %v61
  %310 = vmatprep.subr.mxu0 0.0
  %311 = vmatpush1.msra.mxu0 %v62
  %312 = vmatprep.subr.mxu0 0.0
  %313 = vmatpush1.msra.mxu0 %v63
  %314 = vmatprep.subr.mxu0 0.0
  %315 = vmatpush1.msra.mxu0 %v64
  %316 = vmatprep.subr.mxu0 0.0
  %317 = vmatpush1.msra.mxu0 %v65
  %318 = vmatprep.subr.mxu0 0.0
  %319 = vmatpush1.msra.mxu0 %v66
  %320 = vmatprep.subr.mxu0 0.0
  %321 = vmatpush1.msra.mxu0 %v67
  %322 = vmatprep.subr.mxu0 0.0
  %323 = vmatpush1.msra.mxu0 %v68
  %324 = vmatprep.subr.mxu0 0.0
  %325 = vmatpush1.msra.mxu0 %v69
  %326 = vmatprep.subr.mxu0 0.0
  %327 = vmatpush1.msra.mxu0 %v70
  %328 = vmatprep.subr.mxu0 0.0
  %329 = vmatpush1.msra.mxu0 %v71
  %330 = vmatprep.subr.mxu0 0.0
  %331 = vmatpush1.msra.mxu0 %v72
  %332 = vmatprep.subr.mxu0 0.0
  %333 = vmatpush1.msra.mxu0 %v73
  %334 = vmatprep.subr.mxu0 0.0
  %335 = vmatpush1.msra.mxu0 %v74
  %336 = vmatprep.subr.mxu0 0.0
  %337 = vmatpush1.msra.mxu0 %v75
  %338 = vmatprep.subr.mxu0 0.0
  %339 = vmatpush1.msra.mxu0 %v76
  %340 = vmatprep.subr.mxu0 0.0
  %341 = vmatpush1.msra.mxu0 %v77
  %342 = vmatprep.subr.mxu0 0.0
  %343 = vmatpush1.msra.mxu0 %v78
  %344 = vmatprep.subr.mxu0 0.0
  %345 = vmatpush1.msra.mxu0 %v79
  %346 = vmatprep.subr.mxu0 0.0
  %347 = vmatpush1.msra.mxu0 %v80
  %348 = vmatprep.subr.mxu0 0.0
  %349 = vmatpush1.msra.mxu0 %v81
  %350 = vmatprep.subr.mxu0 0.0
  %351 = vmatpush1.msra.mxu0 %v82
  %352 = vmatprep.subr.mxu0 0.0
  %353 = vmatpush1.msra.mxu0 %v83
  %354 = vmatprep.subr.mxu0 0.0
  %355 = vmatpush1.msra.mxu0 %v84
  %356 = vmatprep.subr.mxu0 0.0
  %357 = vmatpush1.msra.mxu0 %v85
  %358 = vmatprep.subr.mxu0 0.0
  %359 = vmatpush1.msra.mxu0 %v86
  %360 = vmatprep.subr.mxu0 0.0
  %361 = vmatpush1.msra.mxu0 %v87
  %362 = vmatprep.subr.mxu0 0.0
  %363 = vmatpush1.msra.mxu0 %v88
  %364 = vmatprep.subr.mxu0 0.0
  %365 = vmatpush1.msra.mxu0 %v89
  %366 = vmatprep.subr.mxu0 0.0
  %367 = vmatpush1.msra.mxu0 %v90
  %368 = vmatprep.mubr.f32.mxu0 %v17
  %369 = vmatmul.mubr.f32.gmra.mrb[0].mxu0 %v16
  %v370 = vpop.f32.mrb[0].mxu0
  %v371 = vadd.f32 %v301, %v370
  %v372 = vpop.f32.mrb[0].mxu0
  %373 = vdwg.mxu0
  %374 = vmatprep.subr.mxu0 0.0
  %375 = vmatpush1.msra.mxu0 %v91
  %376 = vmatprep.subr.mxu0 0.0
  %377 = vmatpush1.msra.mxu0 %v92
  %378 = vmatprep.subr.mxu0 0.0
  %379 = vmatpush1.msra.mxu0 %v93
  %380 = vmatprep.subr.mxu0 0.0
  %381 = vmatpush1.msra.mxu0 %v94
  %382 = vmatprep.subr.mxu0 0.0
  %383 = vmatpush1.msra.mxu0 %v95
  %384 = vmatprep.subr.mxu0 0.0
  %385 = vmatpush1.msra.mxu0 %v96
  %386 = vmatprep.subr.mxu0 0.0
  %387 = vmatpush1.msra.mxu0 %v97
  %388 = vmatprep.subr.mxu0 0.0
  %389 = vmatpush1.msra.mxu0 %v98
  %390 = vmatprep.subr.mxu0 0.0
  %391 = vmatpush1.msra.mxu0 %v99
  %392 = vmatprep.subr.mxu0 0.0
  %393 = vmatpush1.msra.mxu0 %v100
  %394 = vmatprep.subr.mxu0 0.0
  %395 = vmatpush1.msra.mxu0 %v101
  %396 = vmatprep.subr.mxu0 0.0
  %397 = vmatpush1.msra.mxu0 %v102
  %398 = vmatprep.subr.mxu0 0.0
  %399 = vmatpush1.msra.mxu0 %v103
  %400 = vmatprep.subr.mxu0 0.0
  %401 = vmatpush1.msra.mxu0 %v104
  %402 = vmatprep.subr.mxu0 0.0
  %403 = vmatpush1.msra.mxu0 %v105
  %404 = vmatprep.subr.mxu0 0.0
  %405 = vmatpush1.msra.mxu0 %v106
  %406 = vmatprep.subr.mxu0 0.0
  %407 = vmatpush1.msra.mxu0 %v107
  %408 = vmatprep.subr.mxu0 0.0
  %409 = vmatpush1.msra.mxu0 %v108
  %410 = vmatprep.subr.mxu0 0.0
  %411 = vmatpush1.msra.mxu0 %v109
  %412 = vmatprep.subr.mxu0 0.0
  %413 = vmatpush1.msra.mxu0 %v110
  %414 = vmatprep.subr.mxu0 0.0
  %415 = vmatpush1.msra.mxu0 %v111
  %416 = vmatprep.subr.mxu0 0.0
  %417 = vmatpush1.msra.mxu0 %v112
  %418 = vmatprep.subr.mxu0 0.0
  %419 = vmatpush1.msra.mxu0 %v113
  %420 = vmatprep.subr.mxu0 0.0
  %421 = vmatpush1.msra.mxu0 %v114
  %422 = vmatprep.subr.mxu0 0.0
  %423 = vmatpush1.msra.mxu0 %v115
  %424 = vmatprep.subr.mxu0 0.0
  %425 = vmatpush1.msra.mxu0 %v116
  %426 = vmatprep.subr.mxu0 0.0
  %427 = vmatpush1.msra.mxu0 %v117
  %428 = vmatprep.subr.mxu0 0.0
  %429 = vmatpush1.msra.mxu0 %v118
  %430 = vmatprep.subr.mxu0 0.0
  %431 = vmatpush1.msra.mxu0 %v119
  %432 = vmatprep.subr.mxu0 0.0
  %433 = vmatpush1.msra.mxu0 %v120
  %434 = vmatprep.subr.mxu0 0.0
  %435 = vmatpush1.msra.mxu0 %v121
  %436 = vmatprep.subr.mxu0 0.0
  %437 = vmatpush1.msra.mxu0 %v122
  %438 = vmatprep.mubr.f32.mxu0 %v19
  %439 = vmatmul.mubr.f32.gmra.mrb[0].mxu0 %v18
  %v440 = vpop.f32.mrb[0].mxu0
  %v441 = vadd.f32 %v371, %v440
  %v442 = vpop.f32.mrb[0].mxu0
  %443 = vdwg.mxu0
  %444 = vmatprep.subr.mxu0 0.0
  %445 = vmatpush1.msra.mxu0 %v123
  %446 = vmatprep.subr.mxu0 0.0
  %447 = vmatpush1.msra.mxu0 %v124
  %448 = vmatprep.subr.mxu0 0.0
  %449 = vmatpush1.msra.mxu0 %v125
  %450 = vmatprep.subr.mxu0 0.0
  %451 = vmatpush1.msra.mxu0 %v126
  %452 = vmatprep.subr.mxu0 0.0
  %453 = vmatpush1.msra.mxu0 %v127
  %454 = vmatprep.subr.mxu0 0.0
  %455 = vmatpush1.msra.mxu0 %v128
  %456 = vmatprep.subr.mxu0 0.0
  %457 = vmatpush1.msra.mxu0 %v129
  %458 = vmatprep.subr.mxu0 0.0
  %459 = vmatpush1.msra.mxu0 %v130
  %460 = vmatprep.subr.mxu0 0.0
  %461 = vmatpush1.msra.mxu0 %v131
  %462 = vmatprep.subr.mxu0 0.0
  %463 = vmatpush1.msra.mxu0 %v132
  %464 = vmatprep.subr.mxu0 0.0
  %465 = vmatpush1.msra.mxu0 %v133
  %466 = vmatprep.subr.mxu0 0.0
  %467 = vmatpush1.msra.mxu0 %v134
  %468 = vmatprep.subr.mxu0 0.0
  %469 = vmatpush1.msra.mxu0 %v135
  %470 = vmatprep.subr.mxu0 0.0
  %471 = vmatpush1.msra.mxu0 %v136
  %472 = vmatprep.subr.mxu0 0.0
  %473 = vmatpush1.msra.mxu0 %v137
  %474 = vmatprep.subr.mxu0 0.0
  %475 = vmatpush1.msra.mxu0 %v138
  %476 = vmatprep.subr.mxu0 0.0
  %477 = vmatpush1.msra.mxu0 %v139
  %478 = vmatprep.subr.mxu0 0.0
  %479 = vmatpush1.msra.mxu0 %v140
  %480 = vmatprep.subr.mxu0 0.0
  %481 = vmatpush1.msra.mxu0 %v141
  %482 = vmatprep.subr.mxu0 0.0
  %483 = vmatpush1.msra.mxu0 %v142
  %484 = vmatprep.subr.mxu0 0.0
  %485 = vmatpush1.msra.mxu0 %v143
  %486 = vmatprep.subr.mxu0 0.0
  %487 = vmatpush1.msra.mxu0 %v144
  %488 = vmatprep.subr.mxu0 0.0
  %489 = vmatpush1.msra.mxu0 %v145
  %490 = vmatprep.subr.mxu0 0.0
  %491 = vmatpush1.msra.mxu0 %v146
  %492 = vmatprep.subr.mxu0 0.0
  %493 = vmatpush1.msra.mxu0 %v147
  %494 = vmatprep.subr.mxu0 0.0
  %495 = vmatpush1.msra.mxu0 %v148
  %496 = vmatprep.subr.mxu0 0.0
  %497 = vmatpush1.msra.mxu0 %v149
  %498 = vmatprep.subr.mxu0 0.0
  %499 = vmatpush1.msra.mxu0 %v150
  %500 = vmatprep.subr.mxu0 0.0
  %501 = vmatpush1.msra.mxu0 %v151
  %502 = vmatprep.subr.mxu0 0.0
  %503 = vmatpush1.msra.mxu0 %v152
  %504 = vmatprep.subr.mxu0 0.0
  %505 = vmatpush1.msra.mxu0 %v153
  %506 = vmatprep.subr.mxu0 0.0
  %507 = vmatpush1.msra.mxu0 %v154
  %508 = vmatprep.mubr.f32.mxu0 %v21
  %509 = vmatmul.mubr.f32.gmra.mrb[0].mxu0 %v20
  %v510 = vpop.f32.mrb[0].mxu0
  %v511 = vadd.f32 %v441, %v510
  %v512 = vpop.f32.mrb[0].mxu0
  %513 = vdwg.mxu0
  %514 = vmatprep.subr.mxu0 0.0
  %515 = vmatpush1.msra.mxu0 %v155
  %516 = vmatprep.subr.mxu0 0.0
  %517 = vmatpush1.msra.mxu0 %v156
  %518 = vmatprep.subr.mxu0 0.0
  %519 = vmatpush1.msra.mxu0 %v157
  %520 = vmatprep.subr.mxu0 0.0
  %521 = vmatpush1.msra.mxu0 %v158
  %522 = vmatprep.subr.mxu0 0.0
  %523 = vmatpush1.msra.mxu0 %v159
  %524 = vmatprep.subr.mxu0 0.0
  %525 = vmatpush1.msra.mxu0 %v160
  %526 = vmatprep.subr.mxu0 0.0
  %527 = vmatpush1.msra.mxu0 %v161
  %528 = vmatprep.subr.mxu0 0.0
  %529 = vmatpush1.msra.mxu0 %v162
  %530 = vmatprep.subr.mxu0 0.0
  %531 = vmatpush1.msra.mxu0 %v163
  %532 = vmatprep.subr.mxu0 0.0
  %533 = vmatpush1.msra.mxu0 %v164
  %534 = vmatprep.subr.mxu0 0.0
  %535 = vmatpush1.msra.mxu0 %v165
  %536 = vmatprep.subr.mxu0 0.0
  %537 = vmatpush1.msra.mxu0 %v166
  %538 = vmatprep.subr.mxu0 0.0
  %539 = vmatpush1.msra.mxu0 %v167
  %540 = vmatprep.subr.mxu0 0.0
  %541 = vmatpush1.msra.mxu0 %v168
  %542 = vmatprep.subr.mxu0 0.0
  %543 = vmatpush1.msra.mxu0 %v169
  %544 = vmatprep.subr.mxu0 0.0
  %545 = vmatpush1.msra.mxu0 %v170
  %546 = vmatprep.subr.mxu0 0.0
  %547 = vmatpush1.msra.mxu0 %v171
  %548 = vmatprep.subr.mxu0 0.0
  %549 = vmatpush1.msra.mxu0 %v172
  %550 = vmatprep.subr.mxu0 0.0
  %551 = vmatpush1.msra.mxu0 %v173
  %552 = vmatprep.subr.mxu0 0.0
  %553 = vmatpush1.msra.mxu0 %v174
  %554 = vmatprep.subr.mxu0 0.0
  %555 = vmatpush1.msra.mxu0 %v175
  %556 = vmatprep.subr.mxu0 0.0
  %557 = vmatpush1.msra.mxu0 %v176
  %558 = vmatprep.subr.mxu0 0.0
  %559 = vmatpush1.msra.mxu0 %v177
  %560 = vmatprep.subr.mxu0 0.0
  %561 = vmatpush1.msra.mxu0 %v178
  %562 = vmatprep.subr.mxu0 0.0
  %563 = vmatpush1.msra.mxu0 %v179
  %564 = vmatprep.subr.mxu0 0.0
  %565 = vmatpush1.msra.mxu0 %v180
  %566 = vmatprep.subr.mxu0 0.0
  %567 = vmatpush1.msra.mxu0 %v181
  %568 = vmatprep.subr.mxu0 0.0
  %569 = vmatpush1.msra.mxu0 %v182
  %570 = vmatprep.subr.mxu0 0.0
  %571 = vmatpush1.msra.mxu0 %v183
  %572 = vmatprep.subr.mxu0 0.0
  %573 = vmatpush1.msra.mxu0 %v184
  %574 = vmatprep.subr.mxu0 0.0
  %575 = vmatpush1.msra.mxu0 %v185
  %576 = vmatprep.subr.mxu0 0.0
  %577 = vmatpush1.msra.mxu0 %v186
  %578 = vmatprep.mubr.f32.mxu0 %v23
  %579 = vmatmul.mubr.f32.gmra.mrb[0].mxu0 %v22
  %v580 = vpop.f32.mrb[0].mxu0
  %v581 = vadd.f32 %v511, %v580
  %v582 = vpop.f32.mrb[0].mxu0
  %583 = vdwg.mxu0
  %584 = vmatprep.subr.mxu0 0.0
  %585 = vmatpush1.msra.mxu0 %v187
  %586 = vmatprep.subr.mxu0 0.0
  %587 = vmatpush1.msra.mxu0 %v188
  %588 = vmatprep.subr.mxu0 0.0
  %589 = vmatpush1.msra.mxu0 %v189
  %590 = vmatprep.subr.mxu0 0.0
  %591 = vmatpush1.msra.mxu0 %v190
  %592 = vmatprep.subr.mxu0 0.0
  %593 = vmatpush1.msra.mxu0 %v191
  %594 = vmatprep.subr.mxu0 0.0
  %595 = vmatpush1.msra.mxu0 %v192
  %596 = vmatprep.subr.mxu0 0.0
  %597 = vmatpush1.msra.mxu0 %v193
  %598 = vmatprep.subr.mxu0 0.0
  %599 = vmatpush1.msra.mxu0 %v194
  %600 = vmatprep.subr.mxu0 0.0
  %601 = vmatpush1.msra.mxu0 %v195
  %602 = vmatprep.subr.mxu0 0.0
  %603 = vmatpush1.msra.mxu0 %v196
  %604 = vmatprep.subr.mxu0 0.0
  %605 = vmatpush1.msra.mxu0 %v197
  %606 = vmatprep.subr.mxu0 0.0
  %607 = vmatpush1.msra.mxu0 %v198
  %608 = vmatprep.subr.mxu0 0.0
  %609 = vmatpush1.msra.mxu0 %v199
  %610 = vmatprep.subr.mxu0 0.0
  %611 = vmatpush1.msra.mxu0 %v200
  %612 = vmatprep.subr.mxu0 0.0
  %613 = vmatpush1.msra.mxu0 %v201
  %614 = vmatprep.subr.mxu0 0.0
  %615 = vmatpush1.msra.mxu0 %v202
  %616 = vmatprep.subr.mxu0 0.0
  %617 = vmatpush1.msra.mxu0 %v203
  %618 = vmatprep.subr.mxu0 0.0
  %619 = vmatpush1.msra.mxu0 %v204
  %620 = vmatprep.subr.mxu0 0.0
  %621 = vmatpush1.msra.mxu0 %v205
  %622 = vmatprep.subr.mxu0 0.0
  %623 = vmatpush1.msra.mxu0 %v206
  %624 = vmatprep.subr.mxu0 0.0
  %625 = vmatpush1.msra.mxu0 %v207
  %626 = vmatprep.subr.mxu0 0.0
  %627 = vmatpush1.msra.mxu0 %v208
  %628 = vmatprep.subr.mxu0 0.0
  %629 = vmatpush1.msra.mxu0 %v209
  %630 = vmatprep.subr.mxu0 0.0
  %631 = vmatpush1.msra.mxu0 %v210
  %632 = vmatprep.subr.mxu0 0.0
  %633 = vmatpush1.msra.mxu0 %v211
  %634 = vmatprep.subr.mxu0 0.0
  %635 = vmatpush1.msra.mxu0 %v212
  %636 = vmatprep.subr.mxu0 0.0
  %637 = vmatpush1.msra.mxu0 %v213
  %638 = vmatprep.subr.mxu0 0.0
  %639 = vmatpush1.msra.mxu0 %v214
  %640 = vmatprep.subr.mxu0 0.0
  %641 = vmatpush1.msra.mxu0 %v215
  %642 = vmatprep.subr.mxu0 0.0
  %643 = vmatpush1.msra.mxu0 %v216
  %644 = vmatprep.subr.mxu0 0.0
  %645 = vmatpush1.msra.mxu0 %v217
  %646 = vmatprep.subr.mxu0 0.0
  %647 = vmatpush1.msra.mxu0 %v218
  %648 = vmatprep.mubr.f32.mxu0 %v25
  %649 = vmatmul.mubr.f32.gmra.mrb[0].mxu0 %v24
  %v650 = vpop.f32.mrb[0].mxu0
  %v651 = vadd.f32 %v581, %v650
  %v652 = vpop.f32.mrb[0].mxu0
  %653 = vdwg.mxu0
  %654 = vmatprep.subr.mxu0 0.0
  %655 = vmatpush1.msra.mxu0 %v219
  %656 = vmatprep.subr.mxu0 0.0
  %657 = vmatpush1.msra.mxu0 %v220
  %658 = vmatprep.subr.mxu0 0.0
  %659 = vmatpush1.msra.mxu0 %v221
  %660 = vmatprep.subr.mxu0 0.0
  %661 = vmatpush1.msra.mxu0 %v222
  %662 = vmatprep.subr.mxu0 0.0
  %663 = vmatpush1.msra.mxu0 0.0
  %664 = vmatprep.subr.mxu0 0.0
  %665 = vmatpush1.msra.mxu0 0.0
  %666 = vmatprep.subr.mxu0 0.0
  %667 = vmatpush1.msra.mxu0 0.0
  %668 = vmatprep.subr.mxu0 0.0
  %669 = vmatpush1.msra.mxu0 0.0
  %670 = vmatprep.subr.mxu0 0.0
  %671 = vmatpush1.msra.mxu0 0.0
  %672 = vmatprep.subr.mxu0 0.0
  %673 = vmatpush1.msra.mxu0 0.0
  %674 = vmatprep.subr.mxu0 0.0
  %675 = vmatpush1.msra.mxu0 0.0
  %676 = vmatprep.subr.mxu0 0.0
  %677 = vmatpush1.msra.mxu0 0.0
  %678 = vmatprep.subr.mxu0 0.0
  %679 = vmatpush1.msra.mxu0 0.0
  %680 = vmatprep.subr.mxu0 0.0
  %681 = vmatpush1.msra.mxu0 0.0
  %682 = vmatprep.subr.mxu0 0.0
  %683 = vmatpush1.msra.mxu0 0.0
  %684 = vmatprep.subr.mxu0 0.0
  %685 = vmatpush1.msra.mxu0 0.0
  %686 = vmatprep.subr.mxu0 0.0
  %687 = vmatpush1.msra.mxu0 0.0
  %688 = vmatprep.subr.mxu0 0.0
  %689 = vmatpush1.msra.mxu0 0.0
  %690 = vmatprep.subr.mxu0 0.0
  %691 = vmatpush1.msra.mxu0 0.0
  %692 = vmatprep.subr.mxu0 0.0
  %693 = vmatpush1.msra.mxu0 0.0
  %694 = vmatprep.subr.mxu0 0.0
  %695 = vmatpush1.msra.mxu0 0.0
  %696 = vmatprep.subr.mxu0 0.0
  %697 = vmatpush1.msra.mxu0 0.0
  %698 = vmatprep.subr.mxu0 0.0
  %699 = vmatpush1.msra.mxu0 0.0
  %700 = vmatprep.subr.mxu0 0.0
  %701 = vmatpush1.msra.mxu0 0.0
  %702 = vmatprep.subr.mxu0 0.0
  %703 = vmatpush1.msra.mxu0 0.0
  %704 = vmatprep.subr.mxu0 0.0
  %705 = vmatpush1.msra.mxu0 0.0
  %706 = vmatprep.subr.mxu0 0.0
  %707 = vmatpush1.msra.mxu0 0.0
  %708 = vmatprep.subr.mxu0 0.0
  %709 = vmatpush1.msra.mxu0 0.0
  %710 = vmatprep.subr.mxu0 0.0
  %711 = vmatpush1.msra.mxu0 0.0
  %712 = vmatprep.subr.mxu0 0.0
  %713 = vmatpush1.msra.mxu0 0.0
  %714 = vmatprep.subr.mxu0 0.0
  %715 = vmatpush1.msra.mxu0 0.0
  %716 = vmatprep.subr.mxu0 0.0
  %717 = vmatpush1.msra.mxu0 0.0
  %718 = vmatprep.mubr.f32.mxu0 0.0
  %719 = vmatmul.mubr.f32.gmra.mrb[0].mxu0 %v232
  %v720 = vpop.f32.mrb[0].mxu0
  %v721 = vadd.f32 %v651, %v720
  %v722 = vpop.f32.mrb[0].mxu0
  %723 = vdwg.mxu0
  %724 = vst [vmem:[%s3] sm:$0xff] %v721
  // Predicated region
  $region14: #{cnn_forward.5} parent=0 // pred_check
    _
  $region15: #{cnn_forward.5} parent=0 // pred_check_branch
    %726 = sbr.rel (0) target = $region17
  $region16: #{cnn_forward.5} parent=0 // pred_region
    _
  $region17: #{cnn_forward.5} parent=0 // pred_fallthru
    _
  // Predicated region
  $region18: #{cnn_forward.5} parent=0 // pred_check
    _
  $region19: #{cnn_forward.5} parent=0 // pred_check_branch
    %728 = sbr.rel (0) target = $region21
  $region20: #{cnn_forward.5} parent=0 // pred_region
    _
  $region21: #{cnn_forward.5} parent=0 // pred_fallthru
    _

// kernel: cnn_forward.3
$region0: #{cnn_forward.3}
  #allocation0 [shape = 'u32[]', space=smem, size = 0x4, offset = 0x4, fixed_abs, tag = 'smem constant byte address 0x4 - core index']
  #allocation1 [shape = 'u32[144,128]{1,0:T(1,128)}', space=vmem, size = 0x12000, scoped, tag = 'internal scratch']
  %s0 = inlined_call_operand.vmem [shape: f32[2,272,4], index: 0, kind: input, shape index: {}]
  %s1 = inlined_call_operand.vmem [shape: f32[9,4,64], index: 1, kind: input, shape index: {}]
  %s2 = inlined_call_operand.vmem [shape: f32[1,16], index: 2, kind: input, shape index: {}]
  %s3 = inlined_call_operand.vmem [shape: f32[2,224,16], index: 3, kind: output, shape index: {}]
  %s4 = sld [smem:[#allocation0]]
  $region22: #{cnn_forward.3} parent=0
    _
  %s6 = ssub.s32 1, %s4
  %s7 = scalar_select 0, %s6, %s4
  // Predicated region
  $region2: #{cnn_forward.3} parent=0 // pred_check
    _
  $region3: #{cnn_forward.3} parent=0 // pred_check_branch
    %9 = sbr.rel (0) target = $region5
  $region4: #{cnn_forward.3} parent=0 // pred_region
    _
  $region5: #{cnn_forward.3} parent=0 // pred_fallthru
    _
  // Predicated region
  $region6: #{cnn_forward.3} parent=0 // pred_check
    _
  $region7: #{cnn_forward.3} parent=0 // pred_check_branch
    %11 = sbr.rel (0) target = $region9
  $region8: #{cnn_forward.3} parent=0 // pred_region
    _
  $region9: #{cnn_forward.3} parent=0 // pred_fallthru
    _
  // Predicated region
  $region10: #{cnn_forward.3} parent=0 // pred_check
    _
  $region11: #{cnn_forward.3} parent=0 // pred_check_branch
    %13 = sbr.rel (0) target = $region13
  $region12: #{cnn_forward.3} parent=0 // pred_region
    _
  $region13: #{cnn_forward.3} parent=0 // pred_fallthru
    _
  %v14 = vld [vmem:[%s0] sm:$0xff]
  %v15 = vld [vmem:[%s0 + $0x8] sm:$0xff]
  %v16 = vld [vmem:[%s0 + $0x10] sm:$0xff]
  %v17 = vld [vmem:[%s0 + $0x18] sm:$0xff]
  %v18 = vld [vmem:[%s0 + $0x20] sm:$0xff]
  %v19 = vld [vmem:[%s0 + $0x28] sm:$0xff]
  %v20 = vld [vmem:[%s0 + $0x30] sm:$0xff]
  %v21 = vld [vmem:[%s0 + $0x38] sm:$0xff]
  %v22 = vld [vmem:[%s0 + $0x40] sm:$0xff]
  %v23 = vld [vmem:[%s0 + $0x48] sm:$0xff]
  %v24 = vld [vmem:[%s0 + $0x50] sm:$0xff]
  %v25 = vld [vmem:[%s0 + $0x58] sm:$0xff]
  %v26 = vld [vmem:[%s0 + $0x60] sm:$0xff]
  %v27 = vld [vmem:[%s0 + $0x68] sm:$0xff]
  %v28 = vld [vmem:[%s0 + $0x70] sm:$0xff]
  %v29 = vld [vmem:[%s0 + $0x78] sm:$0xff]
  %v30 = vld [vmem:[%s0 + $0x80] sm:$0xff]
  %v31 = vld [vmem:[%s0 + $0x88] sm:$0xff]
  %v32 = vld [vmem:[%s0 + $0x90] sm:$0xff]
  %v33 = vld [vmem:[%s0 + $0x98] sm:$0xff]
  %v34 = vld [vmem:[%s0 + $0xa0] sm:$0xff]
  %v35 = vld [vmem:[%s0 + $0xa8] sm:$0xff]
  %v36 = vld [vmem:[%s0 + $0xb0] sm:$0xff]
  %v37 = vld [vmem:[%s0 + $0xb8] sm:$0xff]
  %v38 = vld [vmem:[%s0 + $0xc0] sm:$0xff]
  %v39 = vld [vmem:[%s0 + $0xc8] sm:$0xff]
  %v40 = vld [vmem:[%s0 + $0xd0] sm:$0xff]
  %v41 = vld [vmem:[%s0 + $0xd8] sm:$0xff]
  %v42 = vld [vmem:[%s0 + $0x110] sm:$0xff]
  %v43 = vld [vmem:[%s0 + $0x118] sm:$0xff]
  %v44 = vld [vmem:[%s0 + $0x120] sm:$0xff]
  %v45 = vld [vmem:[%s0 + $0x128] sm:$0xff]
  %v46 = vld [vmem:[%s0 + $0x130] sm:$0xff]
  %v47 = vld [vmem:[%s0 + $0x138] sm:$0xff]
  %v48 = vld [vmem:[%s0 + $0x140] sm:$0xff]
  %v49 = vld [vmem:[%s0 + $0x148] sm:$0xff]
  %v50 = vld [vmem:[%s0 + $0x150] sm:$0xff]
  %v51 = vld [vmem:[%s0 + $0x158] sm:$0xff]
  %v52 = vld [vmem:[%s0 + $0x160] sm:$0xff]
  %v53 = vld [vmem:[%s0 + $0x168] sm:$0xff]
  %v54 = vld [vmem:[%s0 + $0x170] sm:$0xff]
  %v55 = vld [vmem:[%s0 + $0x178] sm:$0xff]
  %v56 = vld [vmem:[%s0 + $0x180] sm:$0xff]
  %v57 = vld [vmem:[%s0 + $0x188] sm:$0xff]
  %v58 = vld [vmem:[%s0 + $0x190] sm:$0xff]
  %v59 = vld [vmem:[%s0 + $0x198] sm:$0xff]
  %v60 = vld [vmem:[%s0 + $0x1a0] sm:$0xff]
  %v61 = vld [vmem:[%s0 + $0x1a8] sm:$0xff]
  %v62 = vld [vmem:[%s0 + $0x1b0] sm:$0xff]
  %v63 = vld [vmem:[%s0 + $0x1b8] sm:$0xff]
  %v64 = vld [vmem:[%s0 + $0x1c0] sm:$0xff]
  %v65 = vld [vmem:[%s0 + $0x1c8] sm:$0xff]
  %v66 = vld [vmem:[%s0 + $0x1d0] sm:$0xff]
  %v67 = vld [vmem:[%s0 + $0x1d8] sm:$0xff]
  %v68 = vld [vmem:[%s0 + $0x1e0] sm:$0xff]
  %v69 = vld [vmem:[%s0 + $0x1e8] sm:$0xff]
  %v70 = vld [vmem:[%s1] sm:$0xf]
  %v71 = vld [vmem:[%s0 + $0x1] sm:$0xff]
  %v72 = vld [vmem:[%s0 + $0x9] sm:$0xff]
  %v73 = vld [vmem:[%s0 + $0x11] sm:$0xff]
  %v74 = vld [vmem:[%s0 + $0x19] sm:$0xff]
  %v75 = vld [vmem:[%s0 + $0x21] sm:$0xff]
  %v76 = vld [vmem:[%s0 + $0x29] sm:$0xff]
  %v77 = vld [vmem:[%s0 + $0x31] sm:$0xff]
  %v78 = vld [vmem:[%s0 + $0x39] sm:$0xff]
  %v79 = vld [vmem:[%s0 + $0x41] sm:$0xff]
  %v80 = vld [vmem:[%s0 + $0x49] sm:$0xff]
  %v81 = vld [vmem:[%s0 + $0x51] sm:$0xff]
  %v82 = vld [vmem:[%s0 + $0x59] sm:$0xff]
  %v83 = vld [vmem:[%s0 + $0x61] sm:$0xff]
  %v84 = vld [vmem:[%s0 + $0x69] sm:$0xff]
  %v85 = vld [vmem:[%s0 + $0x71] sm:$0xff]
  %v86 = vld [vmem:[%s0 + $0x79] sm:$0xff]
  %v87 = vld [vmem:[%s0 + $0x81] sm:$0xff]
  %v88 = vld [vmem:[%s0 + $0x89] sm:$0xff]
  %v89 = vld [vmem:[%s0 + $0x91] sm:$0xff]
  %v90 = vld [vmem:[%s0 + $0x99] sm:$0xff]
  %v91 = vld [vmem:[%s0 + $0xa1] sm:$0xff]
  %v92 = vld [vmem:[%s0 + $0xa9] sm:$0xff]
  %v93 = vld [vmem:[%s0 + $0xb1] sm:$0xff]
  %v94 = vld [vmem:[%s0 + $0xb9] sm:$0xff]
  %v95 = vld [vmem:[%s0 + $0xc1] sm:$0xff]
  %v96 = vld [vmem:[%s0 + $0xc9] sm:$0xff]
  %v97 = vld [vmem:[%s0 + $0xd1] sm:$0xff]
  %v98 = vld [vmem:[%s0 + $0xd9] sm:$0xff]
  %v99 = vld [vmem:[%s0 + $0x111] sm:$0xff]
  %v100 = vld [vmem:[%s0 + $0x119] sm:$0xff]
  %v101 = vld [vmem:[%s0 + $0x121] sm:$0xff]
  %v102 = vld [vmem:[%s0 + $0x129] sm:$0xff]
  %v103 = vld [vmem:[%s0 + $0x131] sm:$0xff]
  %v104 = vld [vmem:[%s0 + $0x139] sm:$0xff]
  %v105 = vld [vmem:[%s0 + $0x141] sm:$0xff]
  %v106 = vld [vmem:[%s0 + $0x149] sm:$0xff]
  %v107 = vld [vmem:[%s0 + $0x151] sm:$0xff]
  %v108 = vld [vmem:[%s0 + $0x159] sm:$0xff]
  %v109 = vld [vmem:[%s0 + $0x161] sm:$0xff]
  %v110 = vld [vmem:[%s0 + $0x169] sm:$0xff]
  %v111 = vld [vmem:[%s0 + $0x171] sm:$0xff]
  %v112 = vld [vmem:[%s0 + $0x179] sm:$0xff]
  %v113 = vld [vmem:[%s0 + $0x181] sm:$0xff]
  %v114 = vld [vmem:[%s0 + $0x189] sm:$0xff]
  %v115 = vld [vmem:[%s0 + $0x191] sm:$0xff]
  %v116 = vld [vmem:[%s0 + $0x199] sm:$0xff]
  %v117 = vld [vmem:[%s0 + $0x1a1] sm:$0xff]
  %v118 = vld [vmem:[%s0 + $0x1a9] sm:$0xff]
  %v119 = vld [vmem:[%s0 + $0x1b1] sm:$0xff]
  %v120 = vld [vmem:[%s0 + $0x1b9] sm:$0xff]
  %v121 = vld [vmem:[%s0 + $0x1c1] sm:$0xff]
  %v122 = vld [vmem:[%s0 + $0x1c9] sm:$0xff]
  %v123 = vld [vmem:[%s0 + $0x1d1] sm:$0xff]
  %v124 = vld [vmem:[%s0 + $0x1d9] sm:$0xff]
  %v125 = vld [vmem:[%s0 + $0x1e1] sm:$0xff]
  %v126 = vld [vmem:[%s0 + $0x1e9] sm:$0xff]
  %s127 = scalar_lea.vmem %s1, 4
  %v128 = vld [vmem:[%s127] sm:$0xf]
  %vm129 = vcmask 31744
  %v131 = vsel %vm129, %v71, 0
  %v134 = vsel %vm129, %v72, 0
  %v137 = vsel %vm129, %v73, 0
  %v140 = vsel %vm129, %v74, 0
  %v143 = vsel %vm129, %v75, 0
  %v146 = vsel %vm129, %v76, 0
  %v149 = vsel %vm129, %v77, 0
  %v152 = vsel %vm129, %v78, 0
  %v155 = vsel %vm129, %v79, 0
  %v158 = vsel %vm129, %v80, 0
  %v161 = vsel %vm129, %v81, 0
  %v164 = vsel %vm129, %v82, 0
  %v167 = vsel %vm129, %v83, 0
  %v170 = vsel %vm129, %v84, 0
  %v173 = vsel %vm129, %v85, 0
  %v176 = vsel %vm129, %v86, 0
  %v179 = vsel %vm129, %v87, 0
  %v182 = vsel %vm129, %v88, 0
  %v185 = vsel %vm129, %v89, 0
  %v188 = vsel %vm129, %v90, 0
  %v191 = vsel %vm129, %v91, 0
  %v194 = vsel %vm129, %v92, 0
  %v197 = vsel %vm129, %v93, 0
  %v200 = vsel %vm129, %v94, 0
  %v203 = vsel %vm129, %v95, 0
  %v206 = vsel %vm129, %v96, 0
  %v209 = vsel %vm129, %v97, 0
  %v212 = vsel %vm129, %v98, 0
  %v215 = vsel %vm129, %v99, 0
  %v218 = vsel %vm129, %v100, 0
  %v221 = vsel %vm129, %v101, 0
  %v224 = vsel %vm129, %v102, 0
  %v227 = vsel %vm129, %v103, 0
  %v230 = vsel %vm129, %v104, 0
  %v233 = vsel %vm129, %v105, 0
  %v236 = vsel %vm129, %v106, 0
  %v239 = vsel %vm129, %v107, 0
  %v242 = vsel %vm129, %v108, 0
  %v245 = vsel %vm129, %v109, 0
  %v248 = vsel %vm129, %v110, 0
  %v251 = vsel %vm129, %v111, 0
  %v254 = vsel %vm129, %v112, 0
  %v257 = vsel %vm129, %v113, 0
  %v260 = vsel %vm129, %v114, 0
  %v263 = vsel %vm129, %v115, 0
  %v266 = vsel %vm129, %v116, 0
  %v269 = vsel %vm129, %v117, 0
  %v272 = vsel %vm129, %v118, 0
  %v275 = vsel %vm129, %v119, 0
  %v278 = vsel %vm129, %v120, 0
  %v281 = vsel %vm129, %v121, 0
  %v284 = vsel %vm129, %v122, 0
  %v287 = vsel %vm129, %v123, 0
  %v290 = vsel %vm129, %v124, 0
  %v293 = vsel %vm129, %v125, 0
  %v296 = vsel %vm129, %v126, 0
  %vm298 = vcmask 1043456
  %v300 = vsel %vm298, %v128, 0
  %302 = vmatprep.subr.mxu0 0.0
  %303 = vmatpush1.msra.mxu0 %v300
  %304 = vmatprep.subr.mxu0 0.0
  %305 = vmatpush1.msra.mxu0 0.0
  %306 = vmatprep.subr.mxu0 0.0
  %307 = vmatpush1.msra.mxu0 0.0
  %308 = vmatprep.subr.mxu0 0.0
  %309 = vmatpush1.msra.mxu0 0.0
  %310 = vmatprep.subr.mxu0 0.0
  %311 = vmatpush1.msra.mxu0 0.0
  %312 = vmatprep.subr.mxu0 0.0
  %313 = vmatpush1.msra.mxu0 0.0
  %314 = vmatprep.subr.mxu0 0.0
  %315 = vmatpush1.msra.mxu0 0.0
  %316 = vmatprep.subr.mxu0 0.0
  %317 = vmatpush1.msra.mxu0 0.0
  %318 = vmatprep.subr.mxu0 0.0
  %319 = vmatpush1.msra.mxu0 0.0
  %320 = vmatprep.subr.mxu0 0.0
  %321 = vmatpush1.msra.mxu0 0.0
  %322 = vmatprep.subr.mxu0 0.0
  %323 = vmatpush1.msra.mxu0 0.0
  %324 = vmatprep.subr.mxu0 0.0
  %325 = vmatpush1.msra.mxu0 0.0
  %326 = vmatprep.subr.mxu0 0.0
  %327 = vmatpush1.msra.mxu0 0.0
  %328 = vmatprep.subr.mxu0 0.0
  %329 = vmatpush1.msra.mxu0 0.0
  %330 = vmatprep.subr.mxu0 0.0
  %331 = vmatpush1.msra.mxu0 0.0
  %332 = vmatprep.subr.mxu0 0.0
  %333 = vmatpush1.msra.mxu0 0.0
  %334 = vmatprep.subr.mxu0 0.0
  %335 = vmatpush1.msra.mxu0 0.0
  %336 = vmatprep.subr.mxu0 0.0
  %337 = vmatpush1.msra.mxu0 0.0
  %338 = vmatprep.subr.mxu0 0.0
  %339 = vmatpush1.msra.mxu0 0.0
  %340 = vmatprep.subr.mxu0 0.0
  %341 = vmatpush1.msra.mxu0 0.0
  %342 = vmatprep.subr.mxu0 0.0
  %343 = vmatpush1.msra.mxu0 0.0
  %344 = vmatprep.subr.mxu0 0.0
  %345 = vmatpush1.msra.mxu0 0.0
  %346 = vmatprep.subr.mxu0 0.0
  %347 = vmatpush1.msra.mxu0 0.0
  %348 = vmatprep.subr.mxu0 0.0
  %349 = vmatpush1.msra.mxu0 0.0
  %350 = vmatprep.subr.mxu0 0.0
  %351 = vmatpush1.msra.mxu0 0.0
  %352 = vmatprep.subr.mxu0 0.0
  %353 = vmatpush1.msra.mxu0 0.0
  %354 = vmatprep.subr.mxu0 0.0
  %355 = vmatpush1.msra.mxu0 0.0
  %356 = vmatprep.subr.mxu0 0.0
  %357 = vmatpush1.msra.mxu0 0.0
  %358 = vmatprep.subr.mxu0 0.0
  %359 = vmatpush1.msra.mxu0 0.0
  %360 = vmatprep.subr.mxu0 0.0
  %361 = vmatpush1.msra.mxu0 0.0
  %362 = vmatprep.subr.mxu0 0.0
  %363 = vmatpush1.msra.mxu0 0.0
  %364 = vmatprep.subr.mxu0 0.0
  %365 = vmatpush1.msra.mxu0 0.0
  %366 = vmatprep.mubr.f32.mxu0 0.0
  %367 = vmatmul.mubr.f32.gmra.mrb[0].mxu0 %v131
  %v368 = vpop.f32.mrb[0].mxu0
  %v369 = vadd.f32 0.0, %v368
  %v370 = vpop.f32.mrb[0].mxu0
  %371 = vmatprep.mubr.f32.mxu0 0.0
  %372 = vmatmul.mubr.f32.gmra.mrb[0].mxu0 %v134
  %v373 = vpop.f32.mrb[0].mxu0
  %v374 = vadd.f32 0.0, %v373
  %v375 = vpop.f32.mrb[0].mxu0
  %376 = vmatprep.mubr.f32.mxu0 0.0
  %377 = vmatmul.mubr.f32.gmra.mrb[0].mxu0 %v137
  %v378 = vpop.f32.mrb[0].mxu0
  %v379 = vadd.f32 0.0, %v378
  %v380 = vpop.f32.mrb[0].mxu0
  %381 = vmatprep.mubr.f32.mxu0 0.0
  %382 = vmatmul.mubr.f32.gmra.mrb[0].mxu0 %v140
  %v383 = vpop.f32.mrb[0].mxu0
  %v384 = vadd.f32 0.0, %v383
  %v385 = vpop.f32.mrb[0].mxu0
  %386 = vmatprep.mubr.f32.mxu0 0.0
  %387 = vmatmul.mubr.f32.gmra.mrb[0].mxu0 %v143
  %v388 = vpop.f32.mrb[0].mxu0
  %v389 = vadd.f32 0.0, %v388
  %v390 = vpop.f32.mrb[0].mxu0
  %391 = vmatprep.mubr.f32.mxu0 0.0
  %392 = vmatmul.mubr.f32.gmra.mrb[0].mxu0 %v146
  %v393 = vpop.f32.mrb[0].mxu0
  %v394 = vadd.f32 0.0, %v393
  %v395 = vpop.f32.mrb[0].mxu0
  %396 = vmatprep.mubr.f32.mxu0 0.0
  %397 = vmatmul.mubr.f32.gmra.mrb[0].mxu0 %v149
  %v398 = vpop.f32.mrb[0].mxu0
  %v399 = vadd.f32 0.0, %v398
  %v400 = vpop.f32.mrb[0].mxu0
  %401 = vmatprep.mubr.f32.mxu0 0.0
  %402 = vmatmul.mubr.f32.gmra.mrb[0].mxu0 %v152
  %v403 = vpop.f32.mrb[0].mxu0
  %v404 = vadd.f32 0.0, %v403
  %v405 = vpop.f32.mrb[0].mxu0
  %406 = vmatprep.mubr.f32.mxu0 0.0
  %407 = vmatmul.mubr.f32.gmra.mrb[0].mxu0 %v155
  %v408 = vpop.f32.mrb[0].mxu0
  %v409 = vadd.f32 0.0, %v408
  %v410 = vpop.f32.mrb[0].mxu0
  %411 = vmatprep.mubr.f32.mxu0 0.0
  %412 = vmatmul.mubr.f32.gmra.mrb[0].mxu0 %v158
  %v413 = vpop.f32.mrb[0].mxu0
  %v414 = vadd.f32 0.0, %v413
  %v415 = vpop.f32.mrb[0].mxu0
  %416 = vmatprep.mubr.f32.mxu0 0.0
  %417 = vmatmul.mubr.f32.gmra.mrb[0].mxu0 %v161
  %v418 = vpop.f32.mrb[0].mxu0
  %v419 = vadd.f32 0.0, %v418
  %v420 = vpop.f32.mrb[0].mxu0
  %421 = vmatprep.mubr.f32.mxu0 0.0
  %422 = vmatmul.mubr.f32.gmra.mrb[0].mxu0 %v164
  %v423 = vpop.f32.mrb[0].mxu0
  %v424 = vadd.f32 0.0, %v423
  %v425 = vpop.f32.mrb[0].mxu0
  %426 = vmatprep.mubr.f32.mxu0 0.0
  %427 = vmatmul.mubr.f32.gmra.mrb[0].mxu0 %v167
  %v428 = vpop.f32.mrb[0].mxu0
  %v429 = vadd.f32 0.0, %v428
  %v430 = vpop.f32.mrb[0].mxu0
  %431 = vmatprep.mubr.f32.mxu0 0.0
  %432 = vmatmul.mubr.f32.gmra.mrb[0].mxu0 %v170
  %v433 = vpop.f32.mrb[0].mxu0
  %v434 = vadd.f32 0.0, %v433
  %v435 = vpop.f32.mrb[0].mxu0
  %436 = vmatprep.mubr.f32.mxu0 0.0
  %437 = vmatmul.mubr.f32.gmra.mrb[0].mxu0 %v173
  %v438 = vpop.f32.mrb[0].mxu0
  %v439 = vadd.f32 0.0, %v438
  %v440 = vpop.f32.mrb[0].mxu0
  %441 = vmatprep.mubr.f32.mxu0 0.0
  %442 = vmatmul.mubr.f32.gmra.mrb[0].mxu0 %v176
  %v443 = vpop.f32.mrb[0].mxu0
  %v444 = vadd.f32 0.0, %v443
  %v445 = vpop.f32.mrb[0].mxu0
  %446 = vmatprep.mubr.f32.mxu0 0.0
  %447 = vmatmul.mubr.f32.gmra.mrb[0].mxu0 %v179
  %v448 = vpop.f32.mrb[0].mxu0
  %v449 = vadd.f32 0.0, %v448
  %v450 = vpop.f32.mrb[0].mxu0
  %451 = vmatprep.mubr.f32.mxu0 0.0
  %452 = vmatmul.mubr.f32.gmra.mrb[0].mxu0 %v182
  %v453 = vpop.f32.mrb[0].mxu0
  %v454 = vadd.f32 0.0, %v453
  %v455 = vpop.f32.mrb[0].mxu0
  %456 = vmatprep.mubr.f32.mxu0 0.0
  %457 = vmatmul.mubr.f32.gmra.mrb[0].mxu0 %v185
  %v458 = vpop.f32.mrb[0].mxu0
  %v459 = vadd.f32 0.0, %v458
  %v460 = vpop.f32.mrb[0].mxu0
  %461 = vmatprep.mubr.f32.mxu0 0.0
  %462 = vmatmul.mubr.f32.gmra.mrb[0].mxu0 %v188
  %v463 = vpop.f32.mrb[0].mxu0
  %v464 = vadd.f32 0.0, %v463
  %v465 = vpop.f32.mrb[0].mxu0
  %466 = vmatprep.mubr.f32.mxu0 0.0
  %467 = vmatmul.mubr.f32.gmra.mrb[0].mxu0 %v191
  %v468 = vpop.f32.mrb[0].mxu0
  %v469 = vadd.f32 0.0, %v468
  %v470 = vpop.f32.mrb[0].mxu0
  %471 = vmatprep.mubr.f32.mxu0 0.0
  %472 = vmatmul.mubr.f32.gmra.mrb[0].mxu0 %v194
  %v473 = vpop.f32.mrb[0].mxu0
  %v474 = vadd.f32 0.0, %v473
  %v475 = vpop.f32.mrb[0].mxu0
  %476 = vmatprep.mubr.f32.mxu0 0.0
  %477 = vmatmul.mubr.f32.gmra.mrb[0].mxu0 %v197
  %v478 = vpop.f32.mrb[0].mxu0
  %v479 = vadd.f32 0.0, %v478
  %v480 = vpop.f32.mrb[0].mxu0
  %481 = vmatprep.mubr.f32.mxu0 0.0
  %482 = vmatmul.mubr.f32.gmra.mrb[0].mxu0 %v200
  %v483 = vpop.f32.mrb[0].mxu0
  %v484 = vadd.f32 0.0, %v483
  %v485 = vpop.f32.mrb[0].mxu0
  %486 = vmatprep.mubr.f32.mxu0 0.0
  %487 = vmatmul.mubr.f32.gmra.mrb[0].mxu0 %v203
  %v488 = vpop.f32.mrb[0].mxu0
  %v489 = vadd.f32 0.0, %v488
  %v490 = vpop.f32.mrb[0].mxu0
  %491 = vmatprep.mubr.f32.mxu0 0.0
  %492 = vmatmul.mubr.f32.gmra.mrb[0].mxu0 %v206
  %v493 = vpop.f32.mrb[0].mxu0
  %v494 = vadd.f32 0.0, %v493
  %v495 = vpop.f32.mrb[0].mxu0
  %496 = vmatprep.mubr.f32.mxu0 0.0
  %497 = vmatmul.mubr.f32.gmra.mrb[0].mxu0 %v209
  %v498 = vpop.f32.mrb[0].mxu0
  %v499 = vadd.f32 0.0, %v498
  %v500 = vpop.f32.mrb[0].mxu0
  %501 = vmatprep.mubr.f32.mxu0 0.0
  %502 = vmatmul.mubr.f32.gmra.mrb[0].mxu0 %v212
  %v503 = vpop.f32.mrb[0].mxu0
  %v504 = vadd.f32 0.0, %v503
  %v505 = vpop.f32.mrb[0].mxu0
  %506 = vmatprep.mubr.f32.mxu0 0.0
  %507 = vmatmul.mubr.f32.gmra.mrb[0].mxu0 %v215
  %v508 = vpop.f32.mrb[0].mxu0
  %v509 = vadd.f32 0.0, %v508
  %v510 = vpop.f32.mrb[0].mxu0
  %511 = vmatprep.mubr.f32.mxu0 0.0
  %512 = vmatmul.mubr.f32.gmra.mrb[0].mxu0 %v218
  %v513 = vpop.f32.mrb[0].mxu0
  %v514 = vadd.f32 0.0, %v513
  %v515 = vpop.f32.mrb[0].mxu0
  %516 = vmatprep.mubr.f32.mxu0 0.0
  %517 = vmatmul.mubr.f32.gmra.mrb[0].mxu0 %v221
  %v518 = vpop.f32.mrb[0].mxu0
  %v519 = vadd.f32 0.0, %v518
  %v520 = vpop.f32.mrb[0].mxu0
  %521 = vmatprep.mubr.f32.mxu0 0.0
  %522 = vmatmul.mubr.f32.gmra.mrb[0].mxu0 %v224
  %v523 = vpop.f32.mrb[0].mxu0
  %v524 = vadd.f32 0.0, %v523
  %v525 = vpop.f32.mrb[0].mxu0
  %526 = vmatprep.mubr.f32.mxu0 0.0
  %527 = vmatmul.mubr.f32.gmra.mrb[0].mxu0 %v227
  %v528 = vpop.f32.mrb[0].mxu0
  %v529 = vadd.f32 0.0, %v528
  %v530 = vpop.f32.mrb[0].mxu0
  %531 = vmatprep.mubr.f32.mxu0 0.0
  %532 = vmatmul.mubr.f32.gmra.mrb[0].mxu0 %v230
  %v533 = vpop.f32.mrb[0].mxu0
  %v534 = vadd.f32 0.0, %v533
  %v535 = vpop.f32.mrb[0].mxu0
  %536 = vmatprep.mubr.f32.mxu0 0.0
  %537 = vmatmul.mubr.f32.gmra.mrb[0].mxu0 %v233
  %v538 = vpop.f32.mrb[0].mxu0
  %v539 = vadd.f32 0.0, %v538
  %v540 = vpop.f32.mrb[0].mxu0
  %541 = vmatprep.mubr.f32.mxu0 0.0
  %542 = vmatmul.mubr.f32.gmra.mrb[0].mxu0 %v236
  %v543 = vpop.f32.mrb[0].mxu0
  %v544 = vadd.f32 0.0, %v543
  %v545 = vpop.f32.mrb[0].mxu0
  %546 = vmatprep.mubr.f32.mxu0 0.0
  %547 = vmatmul.mubr.f32.gmra.mrb[0].mxu0 %v239
  %v548 = vpop.f32.mrb[0].mxu0
  %v549 = vadd.f32 0.0, %v548
  %v550 = vpop.f32.mrb[0].mxu0
  %551 = vmatprep.mubr.f32.mxu0 0.0
  %552 = vmatmul.mubr.f32.gmra.mrb[0].mxu0 %v242
  %v553 = vpop.f32.mrb[0].mxu0
  %v554 = vadd.f32 0.0, %v553
  %v555 = vpop.f32.mrb[0].mxu0
  %556 = vmatprep.mubr.f32.mxu0 0.0
  %557 = vmatmul.mubr.f32.gmra.mrb[0].mxu0 %v245
  %v558 = vpop.f32.mrb[0].mxu0
  %v559 = vadd.f32 0.0, %v558
  %v560 = vpop.f32.mrb[0].mxu0
  %561 = vmatprep.mubr.f32.mxu0 0.0
  %562 = vmatmul.mubr.f32.gmra.mrb[0].mxu0 %v248
  %v563 = vpop.f32.mrb[0].mxu0
  %v564 = vadd.f32 0.0, %v563
  %v565 = vpop.f32.mrb[0].mxu0
  %566 = vmatprep.mubr.f32.mxu0 0.0
  %567 = vmatmul.mubr.f32.gmra.mrb[0].mxu0 %v251
  %v568 = vpop.f32.mrb[0].mxu0
  %v569 = vadd.f32 0.0, %v568
  %v570 = vpop.f32.mrb[0].mxu0
  %571 = vmatprep.mubr.f32.mxu0 0.0
  %572 = vmatmul.mubr.f32.gmra.mrb[0].mxu0 %v254
  %v573 = vpop.f32.mrb[0].mxu0
  %v574 = vadd.f32 0.0, %v573
  %v575 = vpop.f32.mrb[0].mxu0
  %576 = vmatprep.mubr.f32.mxu0 0.0
  %577 = vmatmul.mubr.f32.gmra.mrb[0].mxu0 %v257
  %v578 = vpop.f32.mrb[0].mxu0
  %v579 = vadd.f32 0.0, %v578
  %v580 = vpop.f32.mrb[0].mxu0
  %581 = vmatprep.mubr.f32.mxu0 0.0
  %582 = vmatmul.mubr.f32.gmra.mrb[0].mxu0 %v260
  %v583 = vpop.f32.mrb[0].mxu0
  %v584 = vadd.f32 0.0, %v583
  %v585 = vpop.f32.mrb[0].mxu0
  %586 = vmatprep.mubr.f32.mxu0 0.0
  %587 = vmatmul.mubr.f32.gmra.mrb[0].mxu0 %v263
  %v588 = vpop.f32.mrb[0].mxu0
  %v589 = vadd.f32 0.0, %v588
  %v590 = vpop.f32.mrb[0].mxu0
  %591 = vmatprep.mubr.f32.mxu0 0.0
  %592 = vmatmul.mubr.f32.gmra.mrb[0].mxu0 %v266
  %v593 = vpop.f32.mrb[0].mxu0
  %v594 = vadd.f32 0.0, %v593
  %v595 = vpop.f32.mrb[0].mxu0
  %596 = vmatprep.mubr.f32.mxu0 0.0
  %597 = vmatmul.mubr.f32.gmra.mrb[0].mxu0 %v269
  %v598 = vpop.f32.mrb[0].mxu0
  %v599 = vadd.f32 0.0, %v598
  %v600 = vpop.f32.mrb[0].mxu0
  %601 = vmatprep.mubr.f32.mxu0 0.0
  %602 = vmatmul.mubr.f32.gmra.mrb[0].mxu0 %v272
  %v603 = vpop.f32.mrb[0].mxu0
  %v604 = vadd.f32 0.0, %v603
  %v605 = vpop.f32.mrb[0].mxu0
  %606 = vmatprep.mubr.f32.mxu0 0.0
  %607 = vmatmul.mubr.f32.gmra.mrb[0].mxu0 %v275
  %v608 = vpop.f32.mrb[0].mxu0
  %v609 = vadd.f32 0.0, %v608
  %v610 = vpop.f32.mrb[0].mxu0
  %611 = vmatprep.mubr.f32.mxu0 0.0
  %612 = vmatmul.mubr.f32.gmra.mrb[0].mxu0 %v278
  %v613 = vpop.f32.mrb[0].mxu0
  %v614 = vadd.f32 0.0, %v613
  %v615 = vpop.f32.mrb[0].mxu0
  %616 = vmatprep.mubr.f32.mxu0 0.0
  %617 = vmatmul.mubr.f32.gmra.mrb[0].mxu0 %v281
  %v618 = vpop.f32.mrb[0].mxu0
  %v619 = vadd.f32 0.0, %v618
  %v620 = vpop.f32.mrb[0].mxu0
  %621 = vmatprep.mubr.f32.mxu0 0.0
  %622 = vmatmul.mubr.f32.gmra.mrb[0].mxu0 %v284
  %v623 = vpop.f32.mrb[0].mxu0
  %v624 = vadd.f32 0.0, %v623
  %v625 = vpop.f32.mrb[0].mxu0
  %626 = vmatprep.mubr.f32.mxu0 0.0
  %627 = vmatmul.mubr.f32.gmra.mrb[0].mxu0 %v287
  %v628 = vpop.f32.mrb[0].mxu0
  %v629 = vadd.f32 0.0, %v628
  %v630 = vpop.f32.mrb[0].mxu0
  %631 = vmatprep.mubr.f32.mxu0 0.0
  %632 = vmatmul.mubr.f32.gmra.mrb[0].mxu0 %v290
  %v633 = vpop.f32.mrb[0].mxu0
  %v634 = vadd.f32 0.0, %v633
  %v635 = vpop.f32.mrb[0].mxu0
  %636 = vmatprep.mubr.f32.mxu0 0.0
  %637 = vmatmul.mubr.f32.gmra.mrb[0].mxu0 %v293
  %v638 = vpop.f32.mrb[0].mxu0
  %v639 = vadd.f32 0.0, %v638
  %v640 = vpop.f32.mrb[0].mxu0
  %641 = vmatprep.mubr.f32.mxu0 0.0
  %642 = vmatmul.mubr.f32.gmra.mrb[0].mxu0 %v296
  %v643 = vpop.f32.mrb[0].mxu0
  %v644 = vadd.f32 0.0, %v643
  %v645 = vpop.f32.mrb[0].mxu0
  %646 = vdwg.mxu0
  %v648 = vsel %vm129, %v14, 0
  %v651 = vsel %vm129, %v15, 0
  %v654 = vsel %vm129, %v16, 0
  %v657 = vsel %vm129, %v17, 0
  %v660 = vsel %vm129, %v18, 0
  %v663 = vsel %vm129, %v19, 0
  %v666 = vsel %vm129, %v20, 0
  %v669 = vsel %vm129, %v21, 0
  %v672 = vsel %vm129, %v22, 0
  %v675 = vsel %vm129, %v23, 0
  %v678 = vsel %vm129, %v24, 0
  %v681 = vsel %vm129, %v25, 0
  %v684 = vsel %vm129, %v26, 0
  %v687 = vsel %vm129, %v27, 0
  %v690 = vsel %vm129, %v28, 0
  %v693 = vsel %vm129, %v29, 0
  %v696 = vsel %vm129, %v30, 0
  %v699 = vsel %vm129, %v31, 0
  %v702 = vsel %vm129, %v32, 0
  %v705 = vsel %vm129, %v33, 0
  %v708 = vsel %vm129, %v34, 0
  %v711 = vsel %vm129, %v35, 0
  %v714 = vsel %vm129, %v36, 0
  %v717 = vsel %vm129, %v37, 0
  %v720 = vsel %vm129, %v38, 0
  %v723 = vsel %vm129, %v39, 0
  %v726 = vsel %vm129, %v40, 0
  %v729 = vsel %vm129, %v41, 0
  %v732 = vsel %vm129, %v42, 0
  %v735 = vsel %vm129, %v43, 0
  %v738 = vsel %vm129, %v44, 0
  %v741 = vsel %vm129, %v45, 0
  %v744 = vsel %vm129, %v46, 0
  %v747 = vsel %vm129, %v47, 0
  %v750 = vsel %vm129, %v48, 0
  %v753 = vsel %vm129, %v49, 0
  %v756 = vsel %vm129, %v50, 0
  %v759 = vsel %vm129, %v51, 0
  %v762 = vsel %vm129, %v52, 0
  %v765 = vsel %vm129, %v53, 0
  %v768 = vsel %vm129, %v54, 0
  %v771 = vsel %vm129, %v55, 0
  %v774 = vsel %vm129, %v56, 0
  %v777 = vsel %vm129, %v57, 0
  %v780 = vsel %vm129, %v58, 0
  %v783 = vsel %vm129, %v59, 0
  %v786 = vsel %vm129, %v60, 0
  %v789 = vsel %vm129, %v61, 0
  %v792 = vsel %vm129, %v62, 0
  %v795 = vsel %vm129, %v63, 0
  %v798 = vsel %vm129, %v64, 0
  %v801 = vsel %vm129, %v65, 0
  %v804 = vsel %vm129, %v66, 0
  %v807 = vsel %vm129, %v67, 0
  %v810 = vsel %vm129, %v68, 0
  %v813 = vsel %vm129, %v69, 0
  %v816 = vsel %vm298, %v70, 0
  %818 = vmatprep.subr.mxu0 0.0
  %819 = vmatpush1.msra.mxu0 %v816
  %820 = vmatprep.subr.mxu0 0.0
  %821 = vmatpush1.msra.mxu0 0.0
  %822 = vmatprep.subr.mxu0 0.0
  %823 = vmatpush1.msra.mxu0 0.0
  %824 = vmatprep.subr.mxu0 0.0
  %825 = vmatpush1.msra.mxu0 0.0
  %826 = vmatprep.subr.mxu0 0.0
  %827 = vmatpush1.msra.mxu0 0.0
  %828 = vmatprep.subr.mxu0 0.0
  %829 = vmatpush1.msra.mxu0 0.0
  %830 = vmatprep.subr.mxu0 0.0
  %831 = vmatpush1.msra.mxu0 0.0
  %832 = vmatprep.subr.mxu0 0.0
  %833 = vmatpush1.msra.mxu0 0.0
  %834 = vmatprep.subr.mxu0 0.0
  %835 = vmatpush1.msra.mxu0 0.0
  %836 = vmatprep.subr.mxu0 0.0
  %837 = vmatpush1.msra.mxu0 0.0
  %838 = vmatprep.subr.mxu0 0.0
  %839 = vmatpush1.msra.mxu0 0.0
  %840 = vmatprep.subr.mxu0 0.0
  %841 = vmatpush1.msra.mxu0 0.0
  %842 = vmatprep.subr.mxu0 0.0
  %843 = vmatpush1.msra.mxu0 0.0
  %844 = vmatprep.subr.mxu0 0.0
  %845 = vmatpush1.msra.mxu0 0.0
  %846 = vmatprep.subr.mxu0 0.0
  %847 = vmatpush1.msra.mxu0 0.0
  %848 = vmatprep.subr.mxu0 0.0
  %849 = vmatpush1.msra.mxu0 0.0
  %850 = vmatprep.subr.mxu0 0.0
  %851 = vmatpush1.msra.mxu0 0.0
  %852 = vmatprep.subr.mxu0 0.0
  %853 = vmatpush1.msra.mxu0 0.0
  %854 = vmatprep.subr.mxu0 0.0
  %855 = vmatpush1.msra.mxu0 0.0
  %856 = vmatprep.subr.mxu0 0.0
  %857 = vmatpush1.msra.mxu0 0.0
  %858 = vmatprep.subr.mxu0 0.0
  %859 = vmatpush1.msra.mxu0 0.0
  %860 = vmatprep.subr.mxu0 0.0
  %861 = vmatpush1.msra.mxu0 0.0
  %862 = vmatprep.subr.mxu0 0.0
  %863 = vmatpush1.msra.mxu0 0.0
  %864 = vmatprep.subr.mxu0 0.0
  %865 = vmatpush1.msra.mxu0 0.0
  %866 = vmatprep.subr.mxu0 0.0
  %867 = vmatpush1.msra.mxu0 0.0
  %868 = vmatprep.subr.mxu0 0.0
  %869 = vmatpush1.msra.mxu0 0.0
  %870 = vmatprep.subr.mxu0 0.0
  %871 = vmatpush1.msra.mxu0 0.0
  %872 = vmatprep.subr.mxu0 0.0
  %873 = vmatpush1.msra.mxu0 0.0
  %874 = vmatprep.subr.mxu0 0.0
  %875 = vmatpush1.msra.mxu0 0.0
  %876 = vmatprep.subr.mxu0 0.0
  %877 = vmatpush1.msra.mxu0 0.0
  %878 = vmatprep.subr.mxu0 0.0
  %879 = vmatpush1.msra.mxu0 0.0
  %880 = vmatprep.subr.mxu0 0.0
  %881 = vmatpush1.msra.mxu0 0.0
  %882 = vmatprep.mubr.f32.mxu0 0.0
  %883 = vmatmul.mubr.f32.gmra.mrb[0].mxu0 %v648
  %v884 = vpop.f32.mrb[0].mxu0
  %v885 = vadd.f32 %v369, %v884
  %v886 = vpop.f32.mrb[0].mxu0
  %887 = vmatprep.mubr.f32.mxu0 0.0
  %888 = vmatmul.mubr.f32.gmra.mrb[0].mxu0 %v651
  %v889 = vpop.f32.mrb[0].mxu0
  %v890 = vadd.f32 %v374, %v889
  %v891 = vpop.f32.mrb[0].mxu0
  %892 = vmatprep.mubr.f32.mxu0 0.0
  %893 = vmatmul.mubr.f32.gmra.mrb[0].mxu0 %v654
  %v894 = vpop.f32.mrb[0].mxu0
  %v895 = vadd.f32 %v379, %v894
  %v896 = vpop.f32.mrb[0].mxu0
  %897 = vmatprep.mubr.f32.mxu0 0.0
  %898 = vmatmul.mubr.f32.gmra.mrb[0].mxu0 %v657
  %v899 = vpop.f32.mrb[0].mxu0
  %v900 = vadd.f32 %v384, %v899
  %v901 = vpop.f32.mrb[0].mxu0
  %902 = vmatprep.mubr.f32.mxu0 0.0
  %903 = vmatmul.mubr.f32.gmra.mrb[0].mxu0 %v660
  %v904 = vpop.f32.mrb[0].mxu0
  %v905 = vadd.f32 %v389, %v904
  %v906 = vpop.f32.mrb[0].mxu0
  %907 = vmatprep.mubr.f32.mxu0 0.0
  %908 = vmatmul.mubr.f32.gmra.mrb[0].mxu0 %v663
  %v909 = vpop.f32.mrb[0].mxu0
  %v910 = vadd.f32 %v394, %v909
  %v911 = vpop.f32.mrb[0].mxu0
  %912 = vmatprep.mubr.f32.mxu0 0.0
  %913 = vmatmul.mubr.f32.gmra.mrb[0].mxu0 %v666
  %v914 = vpop.f32.mrb[0].mxu0
  %v915 = vadd.f32 %v399, %v914
  %v916 = vpop.f32.mrb[0].mxu0
  %917 = vmatprep.mubr.f32.mxu0 0.0
  %918 = vmatmul.mubr.f32.gmra.mrb[0].mxu0 %v669
  %v919 = vpop.f32.mrb[0].mxu0
  %v920 = vadd.f32 %v404, %v919
  %v921 = vpop.f32.mrb[0].mxu0
  %922 = vmatprep.mubr.f32.mxu0 0.0
  %923 = vmatmul.mubr.f32.gmra.mrb[0].mxu0 %v672
  %v924 = vpop.f32.mrb[0].mxu0
  %v925 = vadd.f32 %v409, %v924
  %v926 = vpop.f32.mrb[0].mxu0
  %927 = vmatprep.mubr.f32.mxu0 0.0
  %928 = vmatmul.mubr.f32.gmra.mrb[0].mxu0 %v675
  %v929 = vpop.f32.mrb[0].mxu0
  %v930 = vadd.f32 %v414, %v929
  %v931 = vpop.f32.mrb[0].mxu0
  %932 = vmatprep.mubr.f32.mxu0 0.0
  %933 = vmatmul.mubr.f32.gmra.mrb[0].mxu0 %v678
  %v934 = vpop.f32.mrb[0].mxu0
  %v935 = vadd.f32 %v419, %v934
  %v936 = vpop.f32.mrb[0].mxu0
  %937 = vmatprep.mubr.f32.mxu0 0.0
  %938 = vmatmul.mubr.f32.gmra.mrb[0].mxu0 %v681
  %v939 = vpop.f32.mrb[0].mxu0
  %v940 = vadd.f32 %v424, %v939
  %v941 = vpop.f32.mrb[0].mxu0
  %942 = vmatprep.mubr.f32.mxu0 0.0
  %943 = vmatmul.mubr.f32.gmra.mrb[0].mxu0 %v684
  %v944 = vpop.f32.mrb[0].mxu0
  %v945 = vadd.f32 %v429, %v944
  %v946 = vpop.f32.mrb[0].mxu0
  %947 = vmatprep.mubr.f32.mxu0 0.0
  %948 = vmatmul.mubr.f32.gmra.mrb[0].mxu0 %v687
  %v949 = vpop.f32.mrb[0].mxu0
  %v950 = vadd.f32 %v434, %v949
  %v951 = vpop.f32.mrb[0].mxu0
  %952 = vmatprep.mubr.f32.mxu0 0.0
  %953 = vmatmul.mubr.f32.gmra.mrb[0].mxu0 %v690
  %v954 = vpop.f32.mrb[0].mxu0
  %v955 = vadd.f32 %v439, %v954
  %v956 = vpop.f32.mrb[0].mxu0
  %957 = vmatprep.mubr.f32.mxu0 0.0
  %958 = vmatmul.mubr.f32.gmra.mrb[0].mxu0 %v693
  %v959 = vpop.f32.mrb[0].mxu0
  %v960 = vadd.f32 %v444, %v959
  %v961 = vpop.f32.mrb[0].mxu0
  %962 = vmatprep.mubr.f32.mxu0 0.0
  %963 = vmatmul.mubr.f32.gmra.mrb[0].mxu0 %v696
  %v964 = vpop.f32.mrb[0].mxu0
  %v965 = vadd.f32 %v449, %v964
  %v966 = vpop.f32.mrb[0].mxu0
  %967 = vmatprep.mubr.f32.mxu0 0.0
  %968 = vmatmul.mubr.f32.gmra.mrb[0].mxu0 %v699
  %v969 = vpop.f32.mrb[0].mxu0
  %v970 = vadd.f32 %v454, %v969
  %v971 = vpop.f32.mrb[0].mxu0
  %972 = vmatprep.mubr.f32.mxu0 0.0
  %973 = vmatmul.mubr.f32.gmra.mrb[0].mxu0 %v702
  %v974 = vpop.f32.mrb[0].mxu0
  %v975 = vadd.f32 %v459, %v974
  %v976 = vpop.f32.mrb[0].mxu0
  %977 = vmatprep.mubr.f32.mxu0 0.0
  %978 = vmatmul.mubr.f32.gmra.mrb[0].mxu0 %v705
  %v979 = vpop.f32.mrb[0].mxu0
  %v980 = vadd.f32 %v464, %v979
  %v981 = vpop.f32.mrb[0].mxu0
  %982 = vmatprep.mubr.f32.mxu0 0.0
  %983 = vmatmul.mubr.f32.gmra.mrb[0].mxu0 %v708
  %v984 = vpop.f32.mrb[0].mxu0
  %v985 = vadd.f32 %v469, %v984
  %v986 = vpop.f32.mrb[0].mxu0
  %987 = vmatprep.mubr.f32.mxu0 0.0
  %988 = vmatmul.mubr.f32.gmra.mrb[0].mxu0 %v711
  %v989 = vpop.f32.mrb[0].mxu0
  %v990 = vadd.f32 %v474, %v989
  %v991 = vpop.f32.mrb[0].mxu0
  %992 = vmatprep.mubr.f32.mxu0 0.0
  %993 = vmatmul.mubr.f32.gmra.mrb[0].mxu0 %v714
  %v994 = vpop.f32.mrb[0].mxu0
  %v995 = vadd.f32 %v479, %v994
  %v996 = vpop.f32.mrb[0].mxu0
  %997 = vmatprep.mubr.f32.mxu0 0.0
  %998 = vmatmul.mubr.f32.gmra.mrb[0].mxu0 %v717
  %v999 = vpop.f32.mrb[0].mxu0
  %v1000 = vadd.f32 %v484, %v999
  %v1001 = vpop.f32.mrb[0].mxu0
  %1002 = vmatprep.mubr.f32.mxu0 0.0
  %1003 = vmatmul.mubr.f32.gmra.mrb[0].mxu0 %v720
  %v1004 = vpop.f32.mrb[0].mxu0
  %v1005 = vadd.f32 %v489, %v1004
  %v1006 = vpop.f32.mrb[0].mxu0
  %1007 = vmatprep.mubr.f32.mxu0 0.0
  %1008 = vmatmul.mubr.f32.gmra.mrb[0].mxu0 %v723
  %v1009 = vpop.f32.mrb[0].mxu0
  %v1010 = vadd.f32 %v494, %v1009
  %v1011 = vpop.f32.mrb[0].mxu0
  %1012 = vmatprep.mubr.f32.mxu0 0.0
  %1013 = vmatmul.mubr.f32.gmra.mrb[0].mxu0 %v726
  %v1014 = vpop.f32.mrb[0].mxu0
  %v1015 = vadd.f32 %v499, %v1014
  %v1016 = vpop.f32.mrb[0].mxu0
  %1017 = vmatprep.mubr.f32.mxu0 0.0
  %1018 = vmatmul.mubr.f32.gmra.mrb[0].mxu0 %v729
  %v1019 = vpop.f32.mrb[0].mxu0
  %v1020 = vadd.f32 %v504, %v1019
  %v1021 = vpop.f32.mrb[0].mxu0
  %1022 = vmatprep.mubr.f32.mxu0 0.0
  %1023 = vmatmul.mubr.f32.gmra.mrb[0].mxu0 %v732
  %v1024 = vpop.f32.mrb[0].mxu0
  %v1025 = vadd.f32 %v509, %v1024
  %v1026 = vpop.f32.mrb[0].mxu0
  %1027 = vmatprep.mubr.f32.mxu0 0.0
  %1028 = vmatmul.mubr.f32.gmra.mrb[0].mxu0 %v735
  %v1029 = vpop.f32.mrb[0].mxu0
  %v1030 = vadd.f32 %v514, %v1029
  %v1031 = vpop.f32.mrb[0].mxu0
  %1032 = vmatprep.mubr.f32.mxu0 0.0
  %1033 = vmatmul.mubr.f32.gmra.mrb[0].mxu0 %v738
  %v1034 = vpop.f32.mrb[0].mxu0
  %v1035 = vadd.f32 %v519, %v1034
  %v1036 = vpop.f32.mrb[0].mxu0
  %1037 = vmatprep.mubr.f32.mxu0 0.0
  %1038 = vmatmul.mubr.f32.gmra.mrb[0].mxu0 %v741
  %v1039 = vpop.f32.mrb[0].mxu0
  %v1040 = vadd.f32 %v524, %v1039
  %v1041 = vpop.f32.mrb[0].mxu0
  %1042 = vmatprep.mubr.f32.mxu0 0.0
  %1043 = vmatmul.mubr.f32.gmra.mrb[0].mxu0 %v744
  %v1044 = vpop.f32.mrb[0].mxu0
  %v1045 = vadd.f32 %v529, %v1044
  %v1046 = vpop.f32.mrb[0].mxu0
  %1047 = vmatprep.mubr.f32.mxu0 0.0
  %1048 = vmatmul.mubr.f32.gmra.mrb[0].mxu0 %v747
  %v1049 = vpop.f32.mrb[0].mxu0
  %v1050 = vadd.f32 %v534, %v1049
  %v1051 = vpop.f32.mrb[0].mxu0
  %1052 = vmatprep.mubr.f32.mxu0 0.0
  %1053 = vmatmul.mubr.f32.gmra.mrb[0].mxu0 %v750
  %v1054 = vpop.f32.mrb[0].mxu0
  %v1055 = vadd.f32 %v539, %v1054
  %v1056 = vpop.f32.mrb[0].mxu0
  %1057 = vmatprep.mubr.f32.mxu0 0.0
  %1058 = vmatmul.mubr.f32.gmra.mrb[0].mxu0 %v753
  %v1059 = vpop.f32.mrb[0].mxu0
  %v1060 = vadd.f32 %v544, %v1059
  %v1061 = vpop.f32.mrb[0].mxu0
  %1062 = vmatprep.mubr.f32.mxu0 0.0
  %1063 = vmatmul.mubr.f32.gmra.mrb[0].mxu0 %v756
  %v1064 = vpop.f32.mrb[0].mxu0
  %v1065 = vadd.f32 %v549, %v1064
  %v1066 = vpop.f32.mrb[0].mxu0
  %1067 = vmatprep.mubr.f32.mxu0 0.0
  %1068 = vmatmul.mubr.f32.gmra.mrb[0].mxu0 %v759
  %v1069 = vpop.f32.mrb[0].mxu0
  %v1070 = vadd.f32 %v554, %v1069
  %v1071 = vpop.f32.mrb[0].mxu0
  %1072 = vmatprep.mubr.f32.mxu0 0.0
  %1073 = vmatmul.mubr.f32.gmra.mrb[0].mxu0 %v762
  %v1074 = vpop.f32.mrb[0].mxu0
  %v1075 = vadd.f32 %v559, %v1074
  %v1076 = vpop.f32.mrb[0].mxu0
  %1077 = vmatprep.mubr.f32.mxu0 0.0
  %1078 = vmatmul.mubr.f32.gmra.mrb[0].mxu0 %v765
  %v1079 = vpop.f32.mrb[0].mxu0
  %v1080 = vadd.f32 %v564, %v1079
  %v1081 = vpop.f32.mrb[0].mxu0
  %1082 = vmatprep.mubr.f32.mxu0 0.0
  %1083 = vmatmul.mubr.f32.gmra.mrb[0].mxu0 %v768
  %v1084 = vpop.f32.mrb[0].mxu0
  %v1085 = vadd.f32 %v569, %v1084
  %v1086 = vpop.f32.mrb[0].mxu0
  %1087 = vmatprep.mubr.f32.mxu0 0.0
  %1088 = vmatmul.mubr.f32.gmra.mrb[0].mxu0 %v771
  %v1089 = vpop.f32.mrb[0].mxu0
  %v1090 = vadd.f32 %v574, %v1089
  %v1091 = vpop.f32.mrb[0].mxu0
  %1092 = vmatprep.mubr.f32.mxu0 0.0
  %1093 = vmatmul.mubr.f32.gmra.mrb[0].mxu0 %v774
  %v1094 = vpop.f32.mrb[0].mxu0
  %v1095 = vadd.f32 %v579, %v1094
  %v1096 = vpop.f32.mrb[0].mxu0
  %1097 = vmatprep.mubr.f32.mxu0 0.0
  %1098 = vmatmul.mubr.f32.gmra.mrb[0].mxu0 %v777
  %v1099 = vpop.f32.mrb[0].mxu0
  %v1100 = vadd.f32 %v584, %v1099
  %v1101 = vpop.f32.mrb[0].mxu0
  %1102 = vmatprep.mubr.f32.mxu0 0.0
  %1103 = vmatmul.mubr.f32.gmra.mrb[0].mxu0 %v780
  %v1104 = vpop.f32.mrb[0].mxu0
  %v1105 = vadd.f32 %v589, %v1104
  %v1106 = vpop.f32.mrb[0].mxu0
  %1107 = vmatprep.mubr.f32.mxu0 0.0
  %1108 = vmatmul.mubr.f32.gmra.mrb[0].mxu0 %v783
  %v1109 = vpop.f32.mrb[0].mxu0
  %v1110 = vadd.f32 %v594, %v1109
  %v1111 = vpop.f32.mrb[0].mxu0
  %1112 = vmatprep.mubr.f32.mxu0 0.0
  %1113 = vmatmul.mubr.f32.gmra.mrb[0].mxu0 %v786
  %v1114 = vpop.f32.mrb[0].mxu0
  %v1115 = vadd.f32 %v599, %v1114
  %v1116 = vpop.f32.mrb[0].mxu0
  %1117 = vmatprep.mubr.f32.mxu0 0.0
  %1118 = vmatmul.mubr.f32.gmra.mrb[0].mxu0 %v789
  %v1119 = vpop.f32.mrb[0].mxu0
  %v1120 = vadd.f32 %v604, %v1119
  %v1121 = vpop.f32.mrb[0].mxu0
  %1122 = vmatprep.mubr.f32.mxu0 0.0
  %1123 = vmatmul.mubr.f32.gmra.mrb[0].mxu0 %v792
  %v1124 = vpop.f32.mrb[0].mxu0
  %v1125 = vadd.f32 %v609, %v1124
  %v1126 = vpop.f32.mrb[0].mxu0
  %1127 = vmatprep.mubr.f32.mxu0 0.0
  %1128 = vmatmul.mubr.f32.gmra.mrb[0].mxu0 %v795
  %v1129 = vpop.f32.mrb[0].mxu0
  %v1130 = vadd.f32 %v614, %v1129
  %v1131 = vpop.f32.mrb[0].mxu0
  %1132 = vmatprep.mubr.f32.mxu0 0.0
  %1133 = vmatmul.mubr.f32.gmra.mrb[0].mxu0 %v798
  %v1134 = vpop.f32.mrb[0].mxu0
  %v1135 = vadd.f32 %v619, %v1134
  %v1136 = vpop.f32.mrb[0].mxu0
  %1137 = vmatprep.mubr.f32.mxu0 0.0
  %1138 = vmatmul.mubr.f32.gmra.mrb[0].mxu0 %v801
  %v1139 = vpop.f32.mrb[0].mxu0
  %v1140 = vadd.f32 %v624, %v1139
  %v1141 = vpop.f32.mrb[0].mxu0
  %1142 = vmatprep.mubr.f32.mxu0 0.0
  %1143 = vmatmul.mubr.f32.gmra.mrb[0].mxu0 %v804
  %v1144 = vpop.f32.mrb[0].mxu0
  %v1145 = vadd.f32 %v629, %v1144
  %v1146 = vpop.f32.mrb[0].mxu0
  %1147 = vmatprep.mubr.f32.mxu0 0.0
  %1148 = vmatmul.mubr.f32.gmra.mrb[0].mxu0 %v807
  %v1149 = vpop.f32.mrb[0].mxu0
  %v1150 = vadd.f32 %v634, %v1149
  %v1151 = vpop.f32.mrb[0].mxu0
  %1152 = vmatprep.mubr.f32.mxu0 0.0
  %1153 = vmatmul.mubr.f32.gmra.mrb[0].mxu0 %v810
  %v1154 = vpop.f32.mrb[0].mxu0
  %v1155 = vadd.f32 %v639, %v1154
  %v1156 = vpop.f32.mrb[0].mxu0
  %1157 = vmatprep.mubr.f32.mxu0 0.0
  %1158 = vmatmul.mubr.f32.gmra.mrb[0].mxu0 %v813
  %v1159 = vpop.f32.mrb[0].mxu0
  %v1160 = vadd.f32 %v644, %v1159
  %v1161 = vpop.f32.mrb[0].mxu0
  %1162 = vdwg.mxu0
  %v1163 = vld [vmem:[%s0 + $0x2] sm:$0xff]
  %v1164 = vld [vmem:[%s0 + $0xa] sm:$0xff]
  %v1165 = vld [vmem:[%s0 + $0x12] sm:$0xff]
  %v1166 = vld [vmem:[%s0 + $0x1a] sm:$0xff]
  %v1167 = vld [vmem:[%s0 + $0x22] sm:$0xff]
  %v1168 = vld [vmem:[%s0 + $0x2a] sm:$0xff]
  %v1169 = vld [vmem:[%s0 + $0x32] sm:$0xff]
  %v1170 = vld [vmem:[%s0 + $0x3a] sm:$0xff]
  %v1171 = vld [vmem:[%s0 + $0x42] sm:$0xff]
  %v1172 = vld [vmem:[%s0 + $0x4a] sm:$0xff]
  %v1173 = vld [vmem:[%s0 + $0x52] sm:$0xff]
  %v1174 = vld [vmem:[%s0 + $0x5a] sm:$0xff]
  %v1175 = vld [vmem:[%s0 + $0x62] sm:$0xff]
  %v1176 = vld [vmem:[%s0 + $0x6a] sm:$0xff]
  %v1177 = vld [vmem:[%s0 + $0x72] sm:$0xff]
  %v1178 = vld [vmem:[%s0 + $0x7a] sm:$0xff]
  %v1179 = vld [vmem:[%s0 + $0x82] sm:$0xff]
  %v1180 = vld [vmem:[%s0 + $0x8a] sm:$0xff]
  %v1181 = vld [vmem:[%s0 + $0x92] sm:$0xff]
  %v1182 = vld [vmem:[%s0 + $0x9a] sm:$0xff]
  %v1183 = vld [vmem:[%s0 + $0xa2] sm:$0xff]
  %v1184 = vld [vmem:[%s0 + $0xaa] sm:$0xff]
  %v1185 = vld [vmem:[%s0 + $0xb2] sm:$0xff]
  %v1186 = vld [vmem:[%s0 + $0xba] sm:$0xff]
  %v1187 = vld [vmem:[%s0 + $0xc2] sm:$0xff]
  %v1188 = vld [vmem:[%s0 + $0xca] sm:$0xff]
  %v1189 = vld [vmem:[%s0 + $0xd2] sm:$0xff]
  %v1190 = vld [vmem:[%s0 + $0xda] sm:$0xff]
  %v1191 = vld [vmem:[%s0 + $0x112] sm:$0xff]
  %v1192 = vld [vmem:[%s0 + $0x11a] sm:$0xff]
  %v1193 = vld [vmem:[%s0 + $0x122] sm:$0xff]
  %v1194 = vld [vmem:[%s0 + $0x12a] sm:$0xff]
  %v1195 = vld [vmem:[%s0 + $0x132] sm:$0xff]
  %v1196 = vld [vmem:[%s0 + $0x13a] sm:$0xff]
  %v1197 = vld [vmem:[%s0 + $0x142] sm:$0xff]
  %v1198 = vld [vmem:[%s0 + $0x14a] sm:$0xff]
  %v1199 = vld [vmem:[%s0 + $0x152] sm:$0xff]
  %v1200 = vld [vmem:[%s0 + $0x15a] sm:$0xff]
  %v1201 = vld [vmem:[%s0 + $0x162] sm:$0xff]
  %v1202 = vld [vmem:[%s0 + $0x16a] sm:$0xff]
  %v1203 = vld [vmem:[%s0 + $0x172] sm:$0xff]
  %v1204 = vld [vmem:[%s0 + $0x17a] sm:$0xff]
  %v1205 = vld [vmem:[%s0 + $0x182] sm:$0xff]
  %v1206 = vld [vmem:[%s0 + $0x18a] sm:$0xff]
  %v1207 = vld [vmem:[%s0 + $0x192] sm:$0xff]
  %v1208 = vld [vmem:[%s0 + $0x19a] sm:$0xff]
  %v1209 = vld [vmem:[%s0 + $0x1a2] sm:$0xff]
  %v1210 = vld [vmem:[%s0 + $0x1aa] sm:$0xff]
  %v1211 = vld [vmem:[%s0 + $0x1b2] sm:$0xff]
  %v1212 = vld [vmem:[%s0 + $0x1ba] sm:$0xff]
  %v1213 = vld [vmem:[%s0 + $0x1c2] sm:$0xff]
  %v1214 = vld [vmem:[%s0 + $0x1ca] sm:$0xff]
  %v1215 = vld [vmem:[%s0 + $0x1d2] sm:$0xff]
  %v1216 = vld [vmem:[%s0 + $0x1da] sm:$0xff]
  %v1217 = vld [vmem:[%s0 + $0x1e2] sm:$0xff]
  %v1218 = vld [vmem:[%s0 + $0x1ea] sm:$0xff]
  %s1219 = scalar_lea.vmem %s1, 8
  %v1220 = vld [vmem:[%s1219] sm:$0xf]
  %v1222 = vsel %vm129, %v1163, 0
  %v1225 = vsel %vm129, %v1164, 0
  %v1228 = vsel %vm129, %v1165, 0
  %v1231 = vsel %vm129, %v1166, 0
  %v1234 = vsel %vm129, %v1167, 0
  %v1237 = vsel %vm129, %v1168, 0
  %v1240 = vsel %vm129, %v1169, 0
  %v1243 = vsel %vm129, %v1170, 0
  %v1246 = vsel %vm129, %v1171, 0
  %v1249 = vsel %vm129, %v1172, 0
  %v1252 = vsel %vm129, %v1173, 0
  %v1255 = vsel %vm129, %v1174, 0
  %v1258 = vsel %vm129, %v1175, 0
  %v1261 = vsel %vm129, %v1176, 0
  %v1264 = vsel %vm129, %v1177, 0
  %v1267 = vsel %vm129, %v1178, 0
  %v1270 = vsel %vm129, %v1179, 0
  %v1273 = vsel %vm129, %v1180, 0
  %v1276 = vsel %vm129, %v1181, 0
  %v1279 = vsel %vm129, %v1182, 0
  %v1282 = vsel %vm129, %v1183, 0
  %v1285 = vsel %vm129, %v1184, 0
  %v1288 = vsel %vm129, %v1185, 0
  %v1291 = vsel %vm129, %v1186, 0
  %v1294 = vsel %vm129, %v1187, 0
  %v1297 = vsel %vm129, %v1188, 0
  %v1300 = vsel %vm129, %v1189, 0
  %v1303 = vsel %vm129, %v1190, 0
  %v1306 = vsel %vm129, %v1191, 0
  %v1309 = vsel %vm129, %v1192, 0
  %v1312 = vsel %vm129, %v1193, 0
  %v1315 = vsel %vm129, %v1194, 0
  %v1318 = vsel %vm129, %v1195, 0
  %v1321 = vsel %vm129, %v1196, 0
  %v1324 = vsel %vm129, %v1197, 0
  %v1327 = vsel %vm129, %v1198, 0
  %v1330 = vsel %vm129, %v1199, 0
  %v1333 = vsel %vm129, %v1200, 0
  %v1336 = vsel %vm129, %v1201, 0
  %v1339 = vsel %vm129, %v1202, 0
  %v1342 = vsel %vm129, %v1203, 0
  %v1345 = vsel %vm129, %v1204, 0
  %v1348 = vsel %vm129, %v1205, 0
  %v1351 = vsel %vm129, %v1206, 0
  %v1354 = vsel %vm129, %v1207, 0
  %v1357 = vsel %vm129, %v1208, 0
  %v1360 = vsel %vm129, %v1209, 0
  %v1363 = vsel %vm129, %v1210, 0
  %v1366 = vsel %vm129, %v1211, 0
  %v1369 = vsel %vm129, %v1212, 0
  %v1372 = vsel %vm129, %v1213, 0
  %v1375 = vsel %vm129, %v1214, 0
  %v1378 = vsel %vm129, %v1215, 0
  %v1381 = vsel %vm129, %v1216, 0
  %v1384 = vsel %vm129, %v1217, 0
  %v1387 = vsel %vm129, %v1218, 0
  %v1390 = vsel %vm298, %v1220, 0
  %1392 = vmatprep.subr.mxu0 0.0
  %1393 = vmatpush1.msra.mxu0 %v1390
  %1394 = vmatprep.subr.mxu0 0.0
  %1395 = vmatpush1.msra.mxu0 0.0
  %1396 = vmatprep.subr.mxu0 0.0
  %1397 = vmatpush1.msra.mxu0 0.0
  %1398 = vmatprep.subr.mxu0 0.0
  %1399 = vmatpush1.msra.mxu0 0.0
  %1400 = vmatprep.subr.mxu0 0.0
  %1401 = vmatpush1.msra.mxu0 0.0
  %1402 = vmatprep.subr.mxu0 0.0
  %1403 = vmatpush1.msra.mxu0 0.0
  %1404 = vmatprep.subr.mxu0 0.0
  %1405 = vmatpush1.msra.mxu0 0.0
  %1406 = vmatprep.subr.mxu0 0.0
  %1407 = vmatpush1.msra.mxu0 0.0
  %1408 = vmatprep.subr.mxu0 0.0
  %1409 = vmatpush1.msra.mxu0 0.0
  %1410 = vmatprep.subr.mxu0 0.0
  %1411 = vmatpush1.msra.mxu0 0.0
  %1412 = vmatprep.subr.mxu0 0.0
  %1413 = vmatpush1.msra.mxu0 0.0
  %1414 = vmatprep.subr.mxu0 0.0
  %1415 = vmatpush1.msra.mxu0 0.0
  %1416 = vmatprep.subr.mxu0 0.0
  %1417 = vmatpush1.msra.mxu0 0.0
  %1418 = vmatprep.subr.mxu0 0.0
  %1419 = vmatpush1.msra.mxu0 0.0
  %1420 = vmatprep.subr.mxu0 0.0
  %1421 = vmatpush1.msra.mxu0 0.0
  %1422 = vmatprep.subr.mxu0 0.0
  %1423 = vmatpush1.msra.mxu0 0.0
  %1424 = vmatprep.subr.mxu0 0.0
  %1425 = vmatpush1.msra.mxu0 0.0
  %1426 = vmatprep.subr.mxu0 0.0
  %1427 = vmatpush1.msra.mxu0 0.0
  %1428 = vmatprep.subr.mxu0 0.0
  %1429 = vmatpush1.msra.mxu0 0.0
  %1430 = vmatprep.subr.mxu0 0.0
  %1431 = vmatpush1.msra.mxu0 0.0
  %1432 = vmatprep.subr.mxu0 0.0
  %1433 = vmatpush1.msra.mxu0 0.0
  %1434 = vmatprep.subr.mxu0 0.0
  %1435 = vmatpush1.msra.mxu0 0.0
  %1436 = vmatprep.subr.mxu0 0.0
  %1437 = vmatpush1.msra.mxu0 0.0
  %1438 = vmatprep.subr.mxu0 0.0
  %1439 = vmatpush1.msra.mxu0 0.0
  %1440 = vmatprep.subr.mxu0 0.0
  %1441 = vmatpush1.msra.mxu0 0.0
  %1442 = vmatprep.subr.mxu0 0.0
  %1443 = vmatpush1.msra.mxu0 0.0
  %1444 = vmatprep.subr.mxu0 0.0
  %1445 = vmatpush1.msra.mxu0 0.0
  %1446 = vmatprep.subr.mxu0 0.0
  %1447 = vmatpush1.msra.mxu0 0.0
  %1448 = vmatprep.subr.mxu0 0.0
  %1449 = vmatpush1.msra.mxu0 0.0
  %1450 = vmatprep.subr.mxu0 0.0
  %1451 = vmatpush1.msra.mxu0 0.0
  %1452 = vmatprep.subr.mxu0 0.0
  %1453 = vmatpush1.msra.mxu0 0.0
  %1454 = vmatprep.subr.mxu0 0.0
  %1455 = vmatpush1.msra.mxu0 0.0
  %1456 = vmatprep.mubr.f32.mxu0 0.0
  %1457 = vmatmul.mubr.f32.gmra.mrb[0].mxu0 %v1222
  %v1458 = vpop.f32.mrb[0].mxu0
  %v1459 = vadd.f32 0.0, %v1458
  %v1460 = vpop.f32.mrb[0].mxu0
  %1461 = vmatprep.mubr.f32.mxu0 0.0
  %1462 = vmatmul.mubr.f32.gmra.mrb[0].mxu0 %v1225
  %v1463 = vpop.f32.mrb[0].mxu0
  %v1464 = vadd.f32 0.0, %v1463
  %v1465 = vpop.f32.mrb[0].mxu0
  %1466 = vmatprep.mubr.f32.mxu0 0.0
  %1467 = vmatmul.mubr.f32.gmra.mrb[0].mxu0 %v1228
  %v1468 = vpop.f32.mrb[0].mxu0
  %v1469 = vadd.f32 0.0, %v1468
  %v1470 = vpop.f32.mrb[0].mxu0
  %1471 = vmatprep.mubr.f32.mxu0 0.0
  %1472 = vmatmul.mubr.f32.gmra.mrb[0].mxu0 %v1231
  %v1473 = vpop.f32.mrb[0].mxu0
  %v1474 = vadd.f32 0.0, %v1473
  %v1475 = vpop.f32.mrb[0].mxu0
  %1476 = vmatprep.mubr.f32.mxu0 0.0
  %1477 = vmatmul.mubr.f32.gmra.mrb[0].mxu0 %v1234
  %v1478 = vpop.f32.mrb[0].mxu0
  %v1479 = vadd.f32 0.0, %v1478
  %v1480 = vpop.f32.mrb[0].mxu0
  %1481 = vmatprep.mubr.f32.mxu0 0.0
  %1482 = vmatmul.mubr.f32.gmra.mrb[0].mxu0 %v1237
  %v1483 = vpop.f32.mrb[0].mxu0
  %v1484 = vadd.f32 0.0, %v1483
  %v1485 = vpop.f32.mrb[0].mxu0
  %1486 = vmatprep.mubr.f32.mxu0 0.0
  %1487 = vmatmul.mubr.f32.gmra.mrb[0].mxu0 %v1240
  %v1488 = vpop.f32.mrb[0].mxu0
  %v1489 = vadd.f32 0.0, %v1488
  %v1490 = vpop.f32.mrb[0].mxu0
  %1491 = vmatprep.mubr.f32.mxu0 0.0
  %1492 = vmatmul.mubr.f32.gmra.mrb[0].mxu0 %v1243
  %v1493 = vpop.f32.mrb[0].mxu0
  %v1494 = vadd.f32 0.0, %v1493
  %v1495 = vpop.f32.mrb[0].mxu0
  %1496 = vmatprep.mubr.f32.mxu0 0.0
  %1497 = vmatmul.mubr.f32.gmra.mrb[0].mxu0 %v1246
  %v1498 = vpop.f32.mrb[0].mxu0
  %v1499 = vadd.f32 0.0, %v1498
  %v1500 = vpop.f32.mrb[0].mxu0
  %1501 = vmatprep.mubr.f32.mxu0 0.0
  %1502 = vmatmul.mubr.f32.gmra.mrb[0].mxu0 %v1249
  %v1503 = vpop.f32.mrb[0].mxu0
  %v1504 = vadd.f32 0.0, %v1503
  %v1505 = vpop.f32.mrb[0].mxu0
  %1506 = vmatprep.mubr.f32.mxu0 0.0
  %1507 = vmatmul.mubr.f32.gmra.mrb[0].mxu0 %v1252
  %v1508 = vpop.f32.mrb[0].mxu0
  %v1509 = vadd.f32 0.0, %v1508
  %v1510 = vpop.f32.mrb[0].mxu0
  %1511 = vmatprep.mubr.f32.mxu0 0.0
  %1512 = vmatmul.mubr.f32.gmra.mrb[0].mxu0 %v1255
  %v1513 = vpop.f32.mrb[0].mxu0
  %v1514 = vadd.f32 0.0, %v1513
  %v1515 = vpop.f32.mrb[0].mxu0
  %1516 = vmatprep.mubr.f32.mxu0 0.0
  %1517 = vmatmul.mubr.f32.gmra.mrb[0].mxu0 %v1258
  %v1518 = vpop.f32.mrb[0].mxu0
  %v1519 = vadd.f32 0.0, %v1518
  %v1520 = vpop.f32.mrb[0].mxu0
  %1521 = vmatprep.mubr.f32.mxu0 0.0
  %1522 = vmatmul.mubr.f32.gmra.mrb[0].mxu0 %v1261
  %v1523 = vpop.f32.mrb[0].mxu0
  %v1524 = vadd.f32 0.0, %v1523
  %v1525 = vpop.f32.mrb[0].mxu0
  %1526 = vmatprep.mubr.f32.mxu0 0.0
  %1527 = vmatmul.mubr.f32.gmra.mrb[0].mxu0 %v1264
  %v1528 = vpop.f32.mrb[0].mxu0
  %v1529 = vadd.f32 0.0, %v1528
  %v1530 = vpop.f32.mrb[0].mxu0
  %1531 = vmatprep.mubr.f32.mxu0 0.0
  %1532 = vmatmul.mubr.f32.gmra.mrb[0].mxu0 %v1267
  %v1533 = vpop.f32.mrb[0].mxu0
  %v1534 = vadd.f32 0.0, %v1533
  %v1535 = vpop.f32.mrb[0].mxu0
  %1536 = vmatprep.mubr.f32.mxu0 0.0
  %1537 = vmatmul.mubr.f32.gmra.mrb[0].mxu0 %v1270
  %v1538 = vpop.f32.mrb[0].mxu0
  %v1539 = vadd.f32 0.0, %v1538
  %v1540 = vpop.f32.mrb[0].mxu0
  %1541 = vmatprep.mubr.f32.mxu0 0.0
  %1542 = vmatmul.mubr.f32.gmra.mrb[0].mxu0 %v1273
  %v1543 = vpop.f32.mrb[0].mxu0
  %v1544 = vadd.f32 0.0, %v1543
  %v1545 = vpop.f32.mrb[0].mxu0
  %1546 = vmatprep.mubr.f32.mxu0 0.0
  %1547 = vmatmul.mubr.f32.gmra.mrb[0].mxu0 %v1276
  %v1548 = vpop.f32.mrb[0].mxu0
  %v1549 = vadd.f32 0.0, %v1548
  %v1550 = vpop.f32.mrb[0].mxu0
  %1551 = vmatprep.mubr.f32.mxu0 0.0
  %1552 = vmatmul.mubr.f32.gmra.mrb[0].mxu0 %v1279
  %v1553 = vpop.f32.mrb[0].mxu0
  %v1554 = vadd.f32 0.0, %v1553
  %v1555 = vpop.f32.mrb[0].mxu0
  %1556 = vmatprep.mubr.f32.mxu0 0.0
  %1557 = vmatmul.mubr.f32.gmra.mrb[0].mxu0 %v1282
  %v1558 = vpop.f32.mrb[0].mxu0
  %v1559 = vadd.f32 0.0, %v1558
  %v1560 = vpop.f32.mrb[0].mxu0
  %1561 = vmatprep.mubr.f32.mxu0 0.0
  %1562 = vmatmul.mubr.f32.gmra.mrb[0].mxu0 %v1285
  %v1563 = vpop.f32.mrb[0].mxu0
  %v1564 = vadd.f32 0.0, %v1563
  %v1565 = vpop.f32.mrb[0].mxu0
  %1566 = vmatprep.mubr.f32.mxu0 0.0
  %1567 = vmatmul.mubr.f32.gmra.mrb[0].mxu0 %v1288
  %v1568 = vpop.f32.mrb[0].mxu0
  %v1569 = vadd.f32 0.0, %v1568
  %v1570 = vpop.f32.mrb[0].mxu0
  %1571 = vmatprep.mubr.f32.mxu0 0.0
  %1572 = vmatmul.mubr.f32.gmra.mrb[0].mxu0 %v1291
  %v1573 = vpop.f32.mrb[0].mxu0
  %v1574 = vadd.f32 0.0, %v1573
  %v1575 = vpop.f32.mrb[0].mxu0
  %1576 = vmatprep.mubr.f32.mxu0 0.0
  %1577 = vmatmul.mubr.f32.gmra.mrb[0].mxu0 %v1294
  %v1578 = vpop.f32.mrb[0].mxu0
  %v1579 = vadd.f32 0.0, %v1578
  %v1580 = vpop.f32.mrb[0].mxu0
  %1581 = vmatprep.mubr.f32.mxu0 0.0
  %1582 = vmatmul.mubr.f32.gmra.mrb[0].mxu0 %v1297
  %v1583 = vpop.f32.mrb[0].mxu0
  %v1584 = vadd.f32 0.0, %v1583
  %v1585 = vpop.f32.mrb[0].mxu0
  %1586 = vmatprep.mubr.f32.mxu0 0.0
  %1587 = vmatmul.mubr.f32.gmra.mrb[0].mxu0 %v1300
  %v1588 = vpop.f32.mrb[0].mxu0
  %v1589 = vadd.f32 0.0, %v1588
  %v1590 = vpop.f32.mrb[0].mxu0
  %1591 = vmatprep.mubr.f32.mxu0 0.0
  %1592 = vmatmul.mubr.f32.gmra.mrb[0].mxu0 %v1303
  %v1593 = vpop.f32.mrb[0].mxu0
  %v1594 = vadd.f32 0.0, %v1593
  %v1595 = vpop.f32.mrb[0].mxu0
  %1596 = vmatprep.mubr.f32.mxu0 0.0
  %1597 = vmatmul.mubr.f32.gmra.mrb[0].mxu0 %v1306
  %v1598 = vpop.f32.mrb[0].mxu0
  %v1599 = vadd.f32 0.0, %v1598
  %v1600 = vpop.f32.mrb[0].mxu0
  %1601 = vmatprep.mubr.f32.mxu0 0.0
  %1602 = vmatmul.mubr.f32.gmra.mrb[0].mxu0 %v1309
  %v1603 = vpop.f32.mrb[0].mxu0
  %v1604 = vadd.f32 0.0, %v1603
  %v1605 = vpop.f32.mrb[0].mxu0
  %1606 = vmatprep.mubr.f32.mxu0 0.0
  %1607 = vmatmul.mubr.f32.gmra.mrb[0].mxu0 %v1312
  %v1608 = vpop.f32.mrb[0].mxu0
  %v1609 = vadd.f32 0.0, %v1608
  %v1610 = vpop.f32.mrb[0].mxu0
  %1611 = vmatprep.mubr.f32.mxu0 0.0
  %1612 = vmatmul.mubr.f32.gmra.mrb[0].mxu0 %v1315
  %v1613 = vpop.f32.mrb[0].mxu0
  %v1614 = vadd.f32 0.0, %v1613
  %v1615 = vpop.f32.mrb[0].mxu0
  %1616 = vmatprep.mubr.f32.mxu0 0.0
  %1617 = vmatmul.mubr.f32.gmra.mrb[0].mxu0 %v1318
  %v1618 = vpop.f32.mrb[0].mxu0
  %v1619 = vadd.f32 0.0, %v1618
  %v1620 = vpop.f32.mrb[0].mxu0
  %1621 = vmatprep.mubr.f32.mxu0 0.0
  %1622 = vmatmul.mubr.f32.gmra.mrb[0].mxu0 %v1321
  %v1623 = vpop.f32.mrb[0].mxu0
  %v1624 = vadd.f32 0.0, %v1623
  %v1625 = vpop.f32.mrb[0].mxu0
  %1626 = vmatprep.mubr.f32.mxu0 0.0
  %1627 = vmatmul.mubr.f32.gmra.mrb[0].mxu0 %v1324
  %v1628 = vpop.f32.mrb[0].mxu0
  %v1629 = vadd.f32 0.0, %v1628
  %v1630 = vpop.f32.mrb[0].mxu0
  %1631 = vmatprep.mubr.f32.mxu0 0.0
  %1632 = vmatmul.mubr.f32.gmra.mrb[0].mxu0 %v1327
  %v1633 = vpop.f32.mrb[0].mxu0
  %v1634 = vadd.f32 0.0, %v1633
  %v1635 = vpop.f32.mrb[0].mxu0
  %1636 = vmatprep.mubr.f32.mxu0 0.0
  %1637 = vmatmul.mubr.f32.gmra.mrb[0].mxu0 %v1330
  %v1638 = vpop.f32.mrb[0].mxu0
  %v1639 = vadd.f32 0.0, %v1638
  %v1640 = vpop.f32.mrb[0].mxu0
  %1641 = vmatprep.mubr.f32.mxu0 0.0
  %1642 = vmatmul.mubr.f32.gmra.mrb[0].mxu0 %v1333
  %v1643 = vpop.f32.mrb[0].mxu0
  %v1644 = vadd.f32 0.0, %v1643
  %v1645 = vpop.f32.mrb[0].mxu0
  %1646 = vmatprep.mubr.f32.mxu0 0.0
  %1647 = vmatmul.mubr.f32.gmra.mrb[0].mxu0 %v1336
  %v1648 = vpop.f32.mrb[0].mxu0
  %v1649 = vadd.f32 0.0, %v1648
  %v1650 = vpop.f32.mrb[0].mxu0
  %1651 = vmatprep.mubr.f32.mxu0 0.0
  %1652 = vmatmul.mubr.f32.gmra.mrb[0].mxu0 %v1339
  %v1653 = vpop.f32.mrb[0].mxu0
  %v1654 = vadd.f32 0.0, %v1653
  %v1655 = vpop.f32.mrb[0].mxu0
  %1656 = vmatprep.mubr.f32.mxu0 0.0
  %1657 = vmatmul.mubr.f32.gmra.mrb[0].mxu0 %v1342
  %v1658 = vpop.f32.mrb[0].mxu0
  %v1659 = vadd.f32 0.0, %v1658
  %v1660 = vpop.f32.mrb[0].mxu0
  %1661 = vmatprep.mubr.f32.mxu0 0.0
  %1662 = vmatmul.mubr.f32.gmra.mrb[0].mxu0 %v1345
  %v1663 = vpop.f32.mrb[0].mxu0
  %v1664 = vadd.f32 0.0, %v1663
  %v1665 = vpop.f32.mrb[0].mxu0
  %1666 = vmatprep.mubr.f32.mxu0 0.0
  %1667 = vmatmul.mubr.f32.gmra.mrb[0].mxu0 %v1348
  %v1668 = vpop.f32.mrb[0].mxu0
  %v1669 = vadd.f32 0.0, %v1668
  %v1670 = vpop.f32.mrb[0].mxu0
  %1671 = vmatprep.mubr.f32.mxu0 0.0
  %1672 = vmatmul.mubr.f32.gmra.mrb[0].mxu0 %v1351
  %v1673 = vpop.f32.mrb[0].mxu0
  %v1674 = vadd.f32 0.0, %v1673
  %v1675 = vpop.f32.mrb[0].mxu0
  %1676 = vmatprep.mubr.f32.mxu0 0.0
  %1677 = vmatmul.mubr.f32.gmra.mrb[0].mxu0 %v1354
  %v1678 = vpop.f32.mrb[0].mxu0
  %v1679 = vadd.f32 0.0, %v1678
  %v1680 = vpop.f32.mrb[0].mxu0
  %1681 = vmatprep.mubr.f32.mxu0 0.0
  %1682 = vmatmul.mubr.f32.gmra.mrb[0].mxu0 %v1357
  %v1683 = vpop.f32.mrb[0].mxu0
  %v1684 = vadd.f32 0.0, %v1683
  %v1685 = vpop.f32.mrb[0].mxu0
  %1686 = vmatprep.mubr.f32.mxu0 0.0
  %1687 = vmatmul.mubr.f32.gmra.mrb[0].mxu0 %v1360
  %v1688 = vpop.f32.mrb[0].mxu0
  %v1689 = vadd.f32 0.0, %v1688
  %v1690 = vpop.f32.mrb[0].mxu0
  %1691 = vmatprep.mubr.f32.mxu0 0.0
  %1692 = vmatmul.mubr.f32.gmra.mrb[0].mxu0 %v1363
  %v1693 = vpop.f32.mrb[0].mxu0
  %v1694 = vadd.f32 0.0, %v1693
  %v1695 = vpop.f32.mrb[0].mxu0
  %1696 = vmatprep.mubr.f32.mxu0 0.0
  %1697 = vmatmul.mubr.f32.gmra.mrb[0].mxu0 %v1366
  %v1698 = vpop.f32.mrb[0].mxu0
  %v1699 = vadd.f32 0.0, %v1698
  %v1700 = vpop.f32.mrb[0].mxu0
  %1701 = vmatprep.mubr.f32.mxu0 0.0
  %1702 = vmatmul.mubr.f32.gmra.mrb[0].mxu0 %v1369
  %v1703 = vpop.f32.mrb[0].mxu0
  %v1704 = vadd.f32 0.0, %v1703
  %v1705 = vpop.f32.mrb[0].mxu0
  %1706 = vmatprep.mubr.f32.mxu0 0.0
  %1707 = vmatmul.mubr.f32.gmra.mrb[0].mxu0 %v1372
  %v1708 = vpop.f32.mrb[0].mxu0
  %v1709 = vadd.f32 0.0, %v1708
  %v1710 = vpop.f32.mrb[0].mxu0
  %1711 = vmatprep.mubr.f32.mxu0 0.0
  %1712 = vmatmul.mubr.f32.gmra.mrb[0].mxu0 %v1375
  %v1713 = vpop.f32.mrb[0].mxu0
  %v1714 = vadd.f32 0.0, %v1713
  %v1715 = vpop.f32.mrb[0].mxu0
  %1716 = vmatprep.mubr.f32.mxu0 0.0
  %1717 = vmatmul.mubr.f32.gmra.mrb[0].mxu0 %v1378
  %v1718 = vpop.f32.mrb[0].mxu0
  %v1719 = vadd.f32 0.0, %v1718
  %v1720 = vpop.f32.mrb[0].mxu0
  %1721 = vmatprep.mubr.f32.mxu0 0.0
  %1722 = vmatmul.mubr.f32.gmra.mrb[0].mxu0 %v1381
  %v1723 = vpop.f32.mrb[0].mxu0
  %v1724 = vadd.f32 0.0, %v1723
  %v1725 = vpop.f32.mrb[0].mxu0
  %1726 = vmatprep.mubr.f32.mxu0 0.0
  %1727 = vmatmul.mubr.f32.gmra.mrb[0].mxu0 %v1384
  %v1728 = vpop.f32.mrb[0].mxu0
  %v1729 = vadd.f32 0.0, %v1728
  %v1730 = vpop.f32.mrb[0].mxu0
  %1731 = vmatprep.mubr.f32.mxu0 0.0
  %1732 = vmatmul.mubr.f32.gmra.mrb[0].mxu0 %v1387
  %v1733 = vpop.f32.mrb[0].mxu0
  %v1734 = vadd.f32 0.0, %v1733
  %v1735 = vpop.f32.mrb[0].mxu0
  %1736 = vdwg.mxu0
  %v1737 = vadd.f32 %v885, %v1459
  %v1738 = vadd.f32 %v890, %v1464
  %v1739 = vadd.f32 %v895, %v1469
  %v1740 = vadd.f32 %v900, %v1474
  %v1741 = vadd.f32 %v905, %v1479
  %v1742 = vadd.f32 %v910, %v1484
  %v1743 = vadd.f32 %v915, %v1489
  %v1744 = vadd.f32 %v920, %v1494
  %v1745 = vadd.f32 %v925, %v1499
  %v1746 = vadd.f32 %v930, %v1504
  %v1747 = vadd.f32 %v935, %v1509
  %v1748 = vadd.f32 %v940, %v1514
  %v1749 = vadd.f32 %v945, %v1519
  %v1750 = vadd.f32 %v950, %v1524
  %v1751 = vadd.f32 %v955, %v1529
  %v1752 = vadd.f32 %v960, %v1534
  %v1753 = vadd.f32 %v965, %v1539
  %v1754 = vadd.f32 %v970, %v1544
  %v1755 = vadd.f32 %v975, %v1549
  %v1756 = vadd.f32 %v980, %v1554
  %v1757 = vadd.f32 %v985, %v1559
  %v1758 = vadd.f32 %v990, %v1564
  %v1759 = vadd.f32 %v995, %v1569
  %v1760 = vadd.f32 %v1000, %v1574
  %v1761 = vadd.f32 %v1005, %v1579
  %v1762 = vadd.f32 %v1010, %v1584
  %v1763 = vadd.f32 %v1015, %v1589
  %v1764 = vadd.f32 %v1020, %v1594
  %v1765 = vadd.f32 %v1025, %v1599
  %v1766 = vadd.f32 %v1030, %v1604
  %v1767 = vadd.f32 %v1035, %v1609
  %v1768 = vadd.f32 %v1040, %v1614
  %v1769 = vadd.f32 %v1045, %v1619
  %v1770 = vadd.f32 %v1050, %v1624
  %v1771 = vadd.f32 %v1055, %v1629
  %v1772 = vadd.f32 %v1060, %v1634
  %v1773 = vadd.f32 %v1065, %v1639
  %v1774 = vadd.f32 %v1070, %v1644
  %v1775 = vadd.f32 %v1075, %v1649
  %v1776 = vadd.f32 %v1080, %v1654
  %v1777 = vadd.f32 %v1085, %v1659
  %v1778 = vadd.f32 %v1090, %v1664
  %v1779 = vadd.f32 %v1095, %v1669
  %v1780 = vadd.f32 %v1100, %v1674
  %v1781 = vadd.f32 %v1105, %v1679
  %v1782 = vadd.f32 %v1110, %v1684
  %v1783 = vadd.f32 %v1115, %v1689
  %v1784 = vadd.f32 %v1120, %v1694
  %v1785 = vadd.f32 %v1125, %v1699
  %v1786 = vadd.f32 %v1130, %v1704
  %v1787 = vadd.f32 %v1135, %v1709
  %v1788 = vadd.f32 %v1140, %v1714
  %v1789 = vadd.f32 %v1145, %v1719
  %v1790 = vadd.f32 %v1150, %v1724
  %v1791 = vadd.f32 %v1155, %v1729
  %v1792 = vadd.f32 %v1160, %v1734
  %v1793 = vld [vmem:[%s0 + $0x10] sm:$0xff]
  %v1794 = vld [vmem:[%s0 + $0x18] sm:$0xff]
  %v1795 = vld [vmem:[%s0 + $0x20] sm:$0xff]
  %v1796 = vld [vmem:[%s0 + $0x28] sm:$0xff]
  %v1797 = vld [vmem:[%s0 + $0x30] sm:$0xff]
  %v1798 = vld [vmem:[%s0 + $0x38] sm:$0xff]
  %v1799 = vld [vmem:[%s0 + $0x40] sm:$0xff]
  %v1800 = vld [vmem:[%s0 + $0x48] sm:$0xff]
  %v1801 = vld [vmem:[%s0 + $0x50] sm:$0xff]
  %v1802 = vld [vmem:[%s0 + $0x58] sm:$0xff]
  %v1803 = vld [vmem:[%s0 + $0x60] sm:$0xff]
  %v1804 = vld [vmem:[%s0 + $0x68] sm:$0xff]
  %v1805 = vld [vmem:[%s0 + $0x70] sm:$0xff]
  %v1806 = vld [vmem:[%s0 + $0x78] sm:$0xff]
  %v1807 = vld [vmem:[%s0 + $0x80] sm:$0xff]
  %v1808 = vld [vmem:[%s0 + $0x88] sm:$0xff]
  %v1809 = vld [vmem:[%s0 + $0x90] sm:$0xff]
  %v1810 = vld [vmem:[%s0 + $0x98] sm:$0xff]
  %v1811 = vld [vmem:[%s0 + $0xa0] sm:$0xff]
  %v1812 = vld [vmem:[%s0 + $0xa8] sm:$0xff]
  %v1813 = vld [vmem:[%s0 + $0xb0] sm:$0xff]
  %v1814 = vld [vmem:[%s0 + $0xb8] sm:$0xff]
  %v1815 = vld [vmem:[%s0 + $0xc0] sm:$0xff]
  %v1816 = vld [vmem:[%s0 + $0xc8] sm:$0xff]
  %v1817 = vld [vmem:[%s0 + $0xd0] sm:$0xff]
  %v1818 = vld [vmem:[%s0 + $0xd8] sm:$0xff]
  %v1819 = vld [vmem:[%s0 + $0xe0] sm:$0xff]
  %v1820 = vld [vmem:[%s0 + $0xe8] sm:$0xff]
  %v1821 = vld [vmem:[%s0 + $0x120] sm:$0xff]
  %v1822 = vld [vmem:[%s0 + $0x128] sm:$0xff]
  %v1823 = vld [vmem:[%s0 + $0x130] sm:$0xff]
  %v1824 = vld [vmem:[%s0 + $0x138] sm:$0xff]
  %v1825 = vld [vmem:[%s0 + $0x140] sm:$0xff]
  %v1826 = vld [vmem:[%s0 + $0x148] sm:$0xff]
  %v1827 = vld [vmem:[%s0 + $0x150] sm:$0xff]
  %v1828 = vld [vmem:[%s0 + $0x158] sm:$0xff]
  %v1829 = vld [vmem:[%s0 + $0x160] sm:$0xff]
  %v1830 = vld [vmem:[%s0 + $0x168] sm:$0xff]
  %v1831 = vld [vmem:[%s0 + $0x170] sm:$0xff]
  %v1832 = vld [vmem:[%s0 + $0x178] sm:$0xff]
  %v1833 = vld [vmem:[%s0 + $0x180] sm:$0xff]
  %v1834 = vld [vmem:[%s0 + $0x188] sm:$0xff]
  %v1835 = vld [vmem:[%s0 + $0x190] sm:$0xff]
  %v1836 = vld [vmem:[%s0 + $0x198] sm:$0xff]
  %v1837 = vld [vmem:[%s0 + $0x1a0] sm:$0xff]
  %v1838 = vld [vmem:[%s0 + $0x1a8] sm:$0xff]
  %v1839 = vld [vmem:[%s0 + $0x1b0] sm:$0xff]
  %v1840 = vld [vmem:[%s0 + $0x1b8] sm:$0xff]
  %v1841 = vld [vmem:[%s0 + $0x1c0] sm:$0xff]
  %v1842 = vld [vmem:[%s0 + $0x1c8] sm:$0xff]
  %v1843 = vld [vmem:[%s0 + $0x1d0] sm:$0xff]
  %v1844 = vld [vmem:[%s0 + $0x1d8] sm:$0xff]
  %v1845 = vld [vmem:[%s0 + $0x1e0] sm:$0xff]
  %v1846 = vld [vmem:[%s0 + $0x1e8] sm:$0xff]
  %v1847 = vld [vmem:[%s0 + $0x1f0] sm:$0xff]
  %v1848 = vld [vmem:[%s0 + $0x1f8] sm:$0xff]
  %s1849 = scalar_lea.vmem %s1, 12
  %v1850 = vld [vmem:[%s1849] sm:$0xf]
  %v1852 = vsel %vm129, %v1793, 0
  %v1855 = vsel %vm129, %v1794, 0
  %v1858 = vsel %vm129, %v1795, 0
  %v1861 = vsel %vm129, %v1796, 0
  %v1864 = vsel %vm129, %v1797, 0
  %v1867 = vsel %vm129, %v1798, 0
  %v1870 = vsel %vm129, %v1799, 0
  %v1873 = vsel %vm129, %v1800, 0
  %v1876 = vsel %vm129, %v1801, 0
  %v1879 = vsel %vm129, %v1802, 0
  %v1882 = vsel %vm129, %v1803, 0
  %v1885 = vsel %vm129, %v1804, 0
  %v1888 = vsel %vm129, %v1805, 0
  %v1891 = vsel %vm129, %v1806, 0
  %v1894 = vsel %vm129, %v1807, 0
  %v1897 = vsel %vm129, %v1808, 0
  %v1900 = vsel %vm129, %v1809, 0
  %v1903 = vsel %vm129, %v1810, 0
  %v1906 = vsel %vm129, %v1811, 0
  %v1909 = vsel %vm129, %v1812, 0
  %v1912 = vsel %vm129, %v1813, 0
  %v1915 = vsel %vm129, %v1814, 0
  %v1918 = vsel %vm129, %v1815, 0
  %v1921 = vsel %vm129, %v1816, 0
  %v1924 = vsel %vm129, %v1817, 0
  %v1927 = vsel %vm129, %v1818, 0
  %v1930 = vsel %vm129, %v1819, 0
  %v1933 = vsel %vm129, %v1820, 0
  %v1936 = vsel %vm129, %v1821, 0
  %v1939 = vsel %vm129, %v1822, 0
  %v1942 = vsel %vm129, %v1823, 0
  %v1945 = vsel %vm129, %v1824, 0
  %v1948 = vsel %vm129, %v1825, 0
  %v1951 = vsel %vm129, %v1826, 0
  %v1954 = vsel %vm129, %v1827, 0
  %v1957 = vsel %vm129, %v1828, 0
  %v1960 = vsel %vm129, %v1829, 0
  %v1963 = vsel %vm129, %v1830, 0
  %v1966 = vsel %vm129, %v1831, 0
  %v1969 = vsel %vm129, %v1832, 0
  %v1972 = vsel %vm129, %v1833, 0
  %v1975 = vsel %vm129, %v1834, 0
  %v1978 = vsel %vm129, %v1835, 0
  %v1981 = vsel %vm129, %v1836, 0
  %v1984 = vsel %vm129, %v1837, 0
  %v1987 = vsel %vm129, %v1838, 0
  %v1990 = vsel %vm129, %v1839, 0
  %v1993 = vsel %vm129, %v1840, 0
  %v1996 = vsel %vm129, %v1841, 0
  %v1999 = vsel %vm129, %v1842, 0
  %v2002 = vsel %vm129, %v1843, 0
  %v2005 = vsel %vm129, %v1844, 0
  %v2008 = vsel %vm129, %v1845, 0
  %v2011 = vsel %vm129, %v1846, 0
  %v2014 = vsel %vm129, %v1847, 0
  %v2017 = vsel %vm129, %v1848, 0
  %v2020 = vsel %vm298, %v1850, 0
  %2022 = vmatprep.subr.mxu0 0.0
  %2023 = vmatpush1.msra.mxu0 %v2020
  %2024 = vmatprep.subr.mxu0 0.0
  %2025 = vmatpush1.msra.mxu0 0.0
  %2026 = vmatprep.subr.mxu0 0.0
  %2027 = vmatpush1.msra.mxu0 0.0
  %2028 = vmatprep.subr.mxu0 0.0
  %2029 = vmatpush1.msra.mxu0 0.0
  %2030 = vmatprep.subr.mxu0 0.0
  %2031 = vmatpush1.msra.mxu0 0.0
  %2032 = vmatprep.subr.mxu0 0.0
  %2033 = vmatpush1.msra.mxu0 0.0
  %2034 = vmatprep.subr.mxu0 0.0
  %2035 = vmatpush1.msra.mxu0 0.0
  %2036 = vmatprep.subr.mxu0 0.0
  %2037 = vmatpush1.msra.mxu0 0.0
  %2038 = vmatprep.subr.mxu0 0.0
  %2039 = vmatpush1.msra.mxu0 0.0
  %2040 = vmatprep.subr.mxu0 0.0
  %2041 = vmatpush1.msra.mxu0 0.0
  %2042 = vmatprep.subr.mxu0 0.0
  %2043 = vmatpush1.msra.mxu0 0.0
  %2044 = vmatprep.subr.mxu0 0.0
  %2045 = vmatpush1.msra.mxu0 0.0
  %2046 = vmatprep.subr.mxu0 0.0
  %2047 = vmatpush1.msra.mxu0 0.0
  %2048 = vmatprep.subr.mxu0 0.0
  %2049 = vmatpush1.msra.mxu0 0.0
  %2050 = vmatprep.subr.mxu0 0.0
  %2051 = vmatpush1.msra.mxu0 0.0
  %2052 = vmatprep.subr.mxu0 0.0
  %2053 = vmatpush1.msra.mxu0 0.0
  %2054 = vmatprep.subr.mxu0 0.0
  %2055 = vmatpush1.msra.mxu0 0.0
  %2056 = vmatprep.subr.mxu0 0.0
  %2057 = vmatpush1.msra.mxu0 0.0
  %2058 = vmatprep.subr.mxu0 0.0
  %2059 = vmatpush1.msra.mxu0 0.0
  %2060 = vmatprep.subr.mxu0 0.0
  %2061 = vmatpush1.msra.mxu0 0.0
  %2062 = vmatprep.subr.mxu0 0.0
  %2063 = vmatpush1.msra.mxu0 0.0
  %2064 = vmatprep.subr.mxu0 0.0
  %2065 = vmatpush1.msra.mxu0 0.0
  %2066 = vmatprep.subr.mxu0 0.0
  %2067 = vmatpush1.msra.mxu0 0.0
  %2068 = vmatprep.subr.mxu0 0.0
  %2069 = vmatpush1.msra.mxu0 0.0
  %2070 = vmatprep.subr.mxu0 0.0
  %2071 = vmatpush1.msra.mxu0 0.0
  %2072 = vmatprep.subr.mxu0 0.0
  %2073 = vmatpush1.msra.mxu0 0.0
  %2074 = vmatprep.subr.mxu0 0.0
  %2075 = vmatpush1.msra.mxu0 0.0
  %2076 = vmatprep.subr.mxu0 0.0
  %2077 = vmatpush1.msra.mxu0 0.0
  %2078 = vmatprep.subr.mxu0 0.0
  %2079 = vmatpush1.msra.mxu0 0.0
  %2080 = vmatprep.subr.mxu0 0.0
  %2081 = vmatpush1.msra.mxu0 0.0
  %2082 = vmatprep.subr.mxu0 0.0
  %2083 = vmatpush1.msra.mxu0 0.0
  %2084 = vmatprep.subr.mxu0 0.0
  %2085 = vmatpush1.msra.mxu0 0.0
  %2086 = vmatprep.mubr.f32.mxu0 0.0
  %2087 = vmatmul.mubr.f32.gmra.mrb[0].mxu0 %v1852
  %v2088 = vpop.f32.mrb[0].mxu0
  %v2089 = vadd.f32 0.0, %v2088
  %v2090 = vpop.f32.mrb[0].mxu0
  %2091 = vmatprep.mubr.f32.mxu0 0.0
  %2092 = vmatmul.mubr.f32.gmra.mrb[0].mxu0 %v1855
  %v2093 = vpop.f32.mrb[0].mxu0
  %v2094 = vadd.f32 0.0, %v2093
  %v2095 = vpop.f32.mrb[0].mxu0
  %2096 = vmatprep.mubr.f32.mxu0 0.0
  %2097 = vmatmul.mubr.f32.gmra.mrb[0].mxu0 %v1858
  %v2098 = vpop.f32.mrb[0].mxu0
  %v2099 = vadd.f32 0.0, %v2098
  %v2100 = vpop.f32.mrb[0].mxu0
  %2101 = vmatprep.mubr.f32.mxu0 0.0
  %2102 = vmatmul.mubr.f32.gmra.mrb[0].mxu0 %v1861
  %v2103 = vpop.f32.mrb[0].mxu0
  %v2104 = vadd.f32 0.0, %v2103
  %v2105 = vpop.f32.mrb[0].mxu0
  %2106 = vmatprep.mubr.f32.mxu0 0.0
  %2107 = vmatmul.mubr.f32.gmra.mrb[0].mxu0 %v1864
  %v2108 = vpop.f32.mrb[0].mxu0
  %v2109 = vadd.f32 0.0, %v2108
  %v2110 = vpop.f32.mrb[0].mxu0
  %2111 = vmatprep.mubr.f32.mxu0 0.0
  %2112 = vmatmul.mubr.f32.gmra.mrb[0].mxu0 %v1867
  %v2113 = vpop.f32.mrb[0].mxu0
  %v2114 = vadd.f32 0.0, %v2113
  %v2115 = vpop.f32.mrb[0].mxu0
  %2116 = vmatprep.mubr.f32.mxu0 0.0
  %2117 = vmatmul.mubr.f32.gmra.mrb[0].mxu0 %v1870
  %v2118 = vpop.f32.mrb[0].mxu0
  %v2119 = vadd.f32 0.0, %v2118
  %v2120 = vpop.f32.mrb[0].mxu0
  %2121 = vmatprep.mubr.f32.mxu0 0.0
  %2122 = vmatmul.mubr.f32.gmra.mrb[0].mxu0 %v1873
  %v2123 = vpop.f32.mrb[0].mxu0
  %v2124 = vadd.f32 0.0, %v2123
  %v2125 = vpop.f32.mrb[0].mxu0
  %2126 = vmatprep.mubr.f32.mxu0 0.0
  %2127 = vmatmul.mubr.f32.gmra.mrb[0].mxu0 %v1876
  %v2128 = vpop.f32.mrb[0].mxu0
  %v2129 = vadd.f32 0.0, %v2128
  %v2130 = vpop.f32.mrb[0].mxu0
  %2131 = vmatprep.mubr.f32.mxu0 0.0
  %2132 = vmatmul.mubr.f32.gmra.mrb[0].mxu0 %v1879
  %v2133 = vpop.f32.mrb[0].mxu0
  %v2134 = vadd.f32 0.0, %v2133
  %v2135 = vpop.f32.mrb[0].mxu0
  %2136 = vmatprep.mubr.f32.mxu0 0.0
  %2137 = vmatmul.mubr.f32.gmra.mrb[0].mxu0 %v1882
  %v2138 = vpop.f32.mrb[0].mxu0
  %v2139 = vadd.f32 0.0, %v2138
  %v2140 = vpop.f32.mrb[0].mxu0
  %2141 = vmatprep.mubr.f32.mxu0 0.0
  %2142 = vmatmul.mubr.f32.gmra.mrb[0].mxu0 %v1885
  %v2143 = vpop.f32.mrb[0].mxu0
  %v2144 = vadd.f32 0.0, %v2143
  %v2145 = vpop.f32.mrb[0].mxu0
  %2146 = vmatprep.mubr.f32.mxu0 0.0
  %2147 = vmatmul.mubr.f32.gmra.mrb[0].mxu0 %v1888
  %v2148 = vpop.f32.mrb[0].mxu0
  %v2149 = vadd.f32 0.0, %v2148
  %v2150 = vpop.f32.mrb[0].mxu0
  %2151 = vmatprep.mubr.f32.mxu0 0.0
  %2152 = vmatmul.mubr.f32.gmra.mrb[0].mxu0 %v1891
  %v2153 = vpop.f32.mrb[0].mxu0
  %v2154 = vadd.f32 0.0, %v2153
  %v2155 = vpop.f32.mrb[0].mxu0
  %2156 = vmatprep.mubr.f32.mxu0 0.0
  %2157 = vmatmul.mubr.f32.gmra.mrb[0].mxu0 %v1894
  %v2158 = vpop.f32.mrb[0].mxu0
  %v2159 = vadd.f32 0.0, %v2158
  %v2160 = vpop.f32.mrb[0].mxu0
  %2161 = vmatprep.mubr.f32.mxu0 0.0
  %2162 = vmatmul.mubr.f32.gmra.mrb[0].mxu0 %v1897
  %v2163 = vpop.f32.mrb[0].mxu0
  %v2164 = vadd.f32 0.0, %v2163
  %v2165 = vpop.f32.mrb[0].mxu0
  %2166 = vmatprep.mubr.f32.mxu0 0.0
  %2167 = vmatmul.mubr.f32.gmra.mrb[0].mxu0 %v1900
  %v2168 = vpop.f32.mrb[0].mxu0
  %v2169 = vadd.f32 0.0, %v2168
  %v2170 = vpop.f32.mrb[0].mxu0
  %2171 = vmatprep.mubr.f32.mxu0 0.0
  %2172 = vmatmul.mubr.f32.gmra.mrb[0].mxu0 %v1903
  %v2173 = vpop.f32.mrb[0].mxu0
  %v2174 = vadd.f32 0.0, %v2173
  %v2175 = vpop.f32.mrb[0].mxu0
  %2176 = vmatprep.mubr.f32.mxu0 0.0
  %2177 = vmatmul.mubr.f32.gmra.mrb[0].mxu0 %v1906
  %v2178 = vpop.f32.mrb[0].mxu0
  %v2179 = vadd.f32 0.0, %v2178
  %v2180 = vpop.f32.mrb[0].mxu0
  %2181 = vmatprep.mubr.f32.mxu0 0.0
  %2182 = vmatmul.mubr.f32.gmra.mrb[0].mxu0 %v1909
  %v2183 = vpop.f32.mrb[0].mxu0
  %v2184 = vadd.f32 0.0, %v2183
  %v2185 = vpop.f32.mrb[0].mxu0
  %2186 = vmatprep.mubr.f32.mxu0 0.0
  %2187 = vmatmul.mubr.f32.gmra.mrb[0].mxu0 %v1912
  %v2188 = vpop.f32.mrb[0].mxu0
  %v2189 = vadd.f32 0.0, %v2188
  %v2190 = vpop.f32.mrb[0].mxu0
  %2191 = vmatprep.mubr.f32.mxu0 0.0
  %2192 = vmatmul.mubr.f32.gmra.mrb[0].mxu0 %v1915
  %v2193 = vpop.f32.mrb[0].mxu0
  %v2194 = vadd.f32 0.0, %v2193
  %v2195 = vpop.f32.mrb[0].mxu0
  %2196 = vmatprep.mubr.f32.mxu0 0.0
  %2197 = vmatmul.mubr.f32.gmra.mrb[0].mxu0 %v1918
  %v2198 = vpop.f32.mrb[0].mxu0
  %v2199 = vadd.f32 0.0, %v2198
  %v2200 = vpop.f32.mrb[0].mxu0
  %2201 = vmatprep.mubr.f32.mxu0 0.0
  %2202 = vmatmul.mubr.f32.gmra.mrb[0].mxu0 %v1921
  %v2203 = vpop.f32.mrb[0].mxu0
  %v2204 = vadd.f32 0.0, %v2203
  %v2205 = vpop.f32.mrb[0].mxu0
  %2206 = vmatprep.mubr.f32.mxu0 0.0
  %2207 = vmatmul.mubr.f32.gmra.mrb[0].mxu0 %v1924
  %v2208 = vpop.f32.mrb[0].mxu0
  %v2209 = vadd.f32 0.0, %v2208
  %v2210 = vpop.f32.mrb[0].mxu0
  %2211 = vmatprep.mubr.f32.mxu0 0.0
  %2212 = vmatmul.mubr.f32.gmra.mrb[0].mxu0 %v1927
  %v2213 = vpop.f32.mrb[0].mxu0
  %v2214 = vadd.f32 0.0, %v2213
  %v2215 = vpop.f32.mrb[0].mxu0
  %2216 = vmatprep.mubr.f32.mxu0 0.0
  %2217 = vmatmul.mubr.f32.gmra.mrb[0].mxu0 %v1930
  %v2218 = vpop.f32.mrb[0].mxu0
  %v2219 = vadd.f32 0.0, %v2218
  %v2220 = vpop.f32.mrb[0].mxu0
  %2221 = vmatprep.mubr.f32.mxu0 0.0
  %2222 = vmatmul.mubr.f32.gmra.mrb[0].mxu0 %v1933
  %v2223 = vpop.f32.mrb[0].mxu0
  %v2224 = vadd.f32 0.0, %v2223
  %v2225 = vpop.f32.mrb[0].mxu0
  %2226 = vmatprep.mubr.f32.mxu0 0.0
  %2227 = vmatmul.mubr.f32.gmra.mrb[0].mxu0 %v1936
  %v2228 = vpop.f32.mrb[0].mxu0
  %v2229 = vadd.f32 0.0, %v2228
  %v2230 = vpop.f32.mrb[0].mxu0
  %2231 = vmatprep.mubr.f32.mxu0 0.0
  %2232 = vmatmul.mubr.f32.gmra.mrb[0].mxu0 %v1939
  %v2233 = vpop.f32.mrb[0].mxu0
  %v2234 = vadd.f32 0.0, %v2233
  %v2235 = vpop.f32.mrb[0].mxu0
  %2236 = vmatprep.mubr.f32.mxu0 0.0
  %2237 = vmatmul.mubr.f32.gmra.mrb[0].mxu0 %v1942
  %v2238 = vpop.f32.mrb[0].mxu0
  %v2239 = vadd.f32 0.0, %v2238
  %v2240 = vpop.f32.mrb[0].mxu0
  %2241 = vmatprep.mubr.f32.mxu0 0.0
  %2242 = vmatmul.mubr.f32.gmra.mrb[0].mxu0 %v1945
  %v2243 = vpop.f32.mrb[0].mxu0
  %v2244 = vadd.f32 0.0, %v2243
  %v2245 = vpop.f32.mrb[0].mxu0
  %2246 = vmatprep.mubr.f32.mxu0 0.0
  %2247 = vmatmul.mubr.f32.gmra.mrb[0].mxu0 %v1948
  %v2248 = vpop.f32.mrb[0].mxu0
  %v2249 = vadd.f32 0.0, %v2248
  %v2250 = vpop.f32.mrb[0].mxu0
  %2251 = vmatprep.mubr.f32.mxu0 0.0
  %2252 = vmatmul.mubr.f32.gmra.mrb[0].mxu0 %v1951
  %v2253 = vpop.f32.mrb[0].mxu0
  %v2254 = vadd.f32 0.0, %v2253
  %v2255 = vpop.f32.mrb[0].mxu0
  %2256 = vmatprep.mubr.f32.mxu0 0.0
  %2257 = vmatmul.mubr.f32.gmra.mrb[0].mxu0 %v1954
  %v2258 = vpop.f32.mrb[0].mxu0
  %v2259 = vadd.f32 0.0, %v2258
  %v2260 = vpop.f32.mrb[0].mxu0
  %2261 = vmatprep.mubr.f32.mxu0 0.0
  %2262 = vmatmul.mubr.f32.gmra.mrb[0].mxu0 %v1957
  %v2263 = vpop.f32.mrb[0].mxu0
  %v2264 = vadd.f32 0.0, %v2263
  %v2265 = vpop.f32.mrb[0].mxu0
  %2266 = vmatprep.mubr.f32.mxu0 0.0
  %2267 = vmatmul.mubr.f32.gmra.mrb[0].mxu0 %v1960
  %v2268 = vpop.f32.mrb[0].mxu0
  %v2269 = vadd.f32 0.0, %v2268
  %v2270 = vpop.f32.mrb[0].mxu0
  %2271 = vmatprep.mubr.f32.mxu0 0.0
  %2272 = vmatmul.mubr.f32.gmra.mrb[0].mxu0 %v1963
  %v2273 = vpop.f32.mrb[0].mxu0
  %v2274 = vadd.f32 0.0, %v2273
  %v2275 = vpop.f32.mrb[0].mxu0
  %2276 = vmatprep.mubr.f32.mxu0 0.0
  %2277 = vmatmul.mubr.f32.gmra.mrb[0].mxu0 %v1966
  %v2278 = vpop.f32.mrb[0].mxu0
  %v2279 = vadd.f32 0.0, %v2278
  %v2280 = vpop.f32.mrb[0].mxu0
  %2281 = vmatprep.mubr.f32.mxu0 0.0
  %2282 = vmatmul.mubr.f32.gmra.mrb[0].mxu0 %v1969
  %v2283 = vpop.f32.mrb[0].mxu0
  %v2284 = vadd.f32 0.0, %v2283
  %v2285 = vpop.f32.mrb[0].mxu0
  %2286 = vmatprep.mubr.f32.mxu0 0.0
  %2287 = vmatmul.mubr.f32.gmra.mrb[0].mxu0 %v1972
  %v2288 = vpop.f32.mrb[0].mxu0
  %v2289 = vadd.f32 0.0, %v2288
  %v2290 = vpop.f32.mrb[0].mxu0
  %2291 = vmatprep.mubr.f32.mxu0 0.0
  %2292 = vmatmul.mubr.f32.gmra.mrb[0].mxu0 %v1975
  %v2293 = vpop.f32.mrb[0].mxu0
  %v2294 = vadd.f32 0.0, %v2293
  %v2295 = vpop.f32.mrb[0].mxu0
  %2296 = vmatprep.mubr.f32.mxu0 0.0
  %2297 = vmatmul.mubr.f32.gmra.mrb[0].mxu0 %v1978
  %v2298 = vpop.f32.mrb[0].mxu0
  %v2299 = vadd.f32 0.0, %v2298
  %v2300 = vpop.f32.mrb[0].mxu0
  %2301 = vmatprep.mubr.f32.mxu0 0.0
  %2302 = vmatmul.mubr.f32.gmra.mrb[0].mxu0 %v1981
  %v2303 = vpop.f32.mrb[0].mxu0
  %v2304 = vadd.f32 0.0, %v2303
  %v2305 = vpop.f32.mrb[0].mxu0
  %2306 = vmatprep.mubr.f32.mxu0 0.0
  %2307 = vmatmul.mubr.f32.gmra.mrb[0].mxu0 %v1984
  %v2308 = vpop.f32.mrb[0].mxu0
  %v2309 = vadd.f32 0.0, %v2308
  %v2310 = vpop.f32.mrb[0].mxu0
  %2311 = vmatprep.mubr.f32.mxu0 0.0
  %2312 = vmatmul.mubr.f32.gmra.mrb[0].mxu0 %v1987
  %v2313 = vpop.f32.mrb[0].mxu0
  %v2314 = vadd.f32 0.0, %v2313
  %v2315 = vpop.f32.mrb[0].mxu0
  %2316 = vmatprep.mubr.f32.mxu0 0.0
  %2317 = vmatmul.mubr.f32.gmra.mrb[0].mxu0 %v1990
  %v2318 = vpop.f32.mrb[0].mxu0
  %v2319 = vadd.f32 0.0, %v2318
  %v2320 = vpop.f32.mrb[0].mxu0
  %2321 = vmatprep.mubr.f32.mxu0 0.0
  %2322 = vmatmul.mubr.f32.gmra.mrb[0].mxu0 %v1993
  %v2323 = vpop.f32.mrb[0].mxu0
  %v2324 = vadd.f32 0.0, %v2323
  %v2325 = vpop.f32.mrb[0].mxu0
  %2326 = vmatprep.mubr.f32.mxu0 0.0
  %2327 = vmatmul.mubr.f32.gmra.mrb[0].mxu0 %v1996
  %v2328 = vpop.f32.mrb[0].mxu0
  %v2329 = vadd.f32 0.0, %v2328
  %v2330 = vpop.f32.mrb[0].mxu0
  %2331 = vmatprep.mubr.f32.mxu0 0.0
  %2332 = vmatmul.mubr.f32.gmra.mrb[0].mxu0 %v1999
  %v2333 = vpop.f32.mrb[0].mxu0
  %v2334 = vadd.f32 0.0, %v2333
  %v2335 = vpop.f32.mrb[0].mxu0
  %2336 = vmatprep.mubr.f32.mxu0 0.0
  %2337 = vmatmul.mubr.f32.gmra.mrb[0].mxu0 %v2002
  %v2338 = vpop.f32.mrb[0].mxu0
  %v2339 = vadd.f32 0.0, %v2338
  %v2340 = vpop.f32.mrb[0].mxu0
  %2341 = vmatprep.mubr.f32.mxu0 0.0
  %2342 = vmatmul.mubr.f32.gmra.mrb[0].mxu0 %v2005
  %v2343 = vpop.f32.mrb[0].mxu0
  %v2344 = vadd.f32 0.0, %v2343
  %v2345 = vpop.f32.mrb[0].mxu0
  %2346 = vmatprep.mubr.f32.mxu0 0.0
  %2347 = vmatmul.mubr.f32.gmra.mrb[0].mxu0 %v2008
  %v2348 = vpop.f32.mrb[0].mxu0
  %v2349 = vadd.f32 0.0, %v2348
  %v2350 = vpop.f32.mrb[0].mxu0
  %2351 = vmatprep.mubr.f32.mxu0 0.0
  %2352 = vmatmul.mubr.f32.gmra.mrb[0].mxu0 %v2011
  %v2353 = vpop.f32.mrb[0].mxu0
  %v2354 = vadd.f32 0.0, %v2353
  %v2355 = vpop.f32.mrb[0].mxu0
  %2356 = vmatprep.mubr.f32.mxu0 0.0
  %2357 = vmatmul.mubr.f32.gmra.mrb[0].mxu0 %v2014
  %v2358 = vpop.f32.mrb[0].mxu0
  %v2359 = vadd.f32 0.0, %v2358
  %v2360 = vpop.f32.mrb[0].mxu0
  %2361 = vmatprep.mubr.f32.mxu0 0.0
  %2362 = vmatmul.mubr.f32.gmra.mrb[0].mxu0 %v2017
  %v2363 = vpop.f32.mrb[0].mxu0
  %v2364 = vadd.f32 0.0, %v2363
  %v2365 = vpop.f32.mrb[0].mxu0
  %2366 = vdwg.mxu0
  %v2367 = vadd.f32 %v1737, %v2089
  %v2368 = vadd.f32 %v1738, %v2094
  %v2369 = vadd.f32 %v1739, %v2099
  %v2370 = vadd.f32 %v1740, %v2104
  %v2371 = vadd.f32 %v1741, %v2109
  %v2372 = vadd.f32 %v1742, %v2114
  %v2373 = vadd.f32 %v1743, %v2119
  %v2374 = vadd.f32 %v1744, %v2124
  %v2375 = vadd.f32 %v1745, %v2129
  %v2376 = vadd.f32 %v1746, %v2134
  %v2377 = vadd.f32 %v1747, %v2139
  %v2378 = vadd.f32 %v1748, %v2144
  %v2379 = vadd.f32 %v1749, %v2149
  %v2380 = vadd.f32 %v1750, %v2154
  %v2381 = vadd.f32 %v1751, %v2159
  %v2382 = vadd.f32 %v1752, %v2164
  %v2383 = vadd.f32 %v1753, %v2169
  %v2384 = vadd.f32 %v1754, %v2174
  %v2385 = vadd.f32 %v1755, %v2179
  %v2386 = vadd.f32 %v1756, %v2184
  %v2387 = vadd.f32 %v1757, %v2189
  %v2388 = vadd.f32 %v1758, %v2194
  %v2389 = vadd.f32 %v1759, %v2199
  %v2390 = vadd.f32 %v1760, %v2204
  %v2391 = vadd.f32 %v1761, %v2209
  %v2392 = vadd.f32 %v1762, %v2214
  %v2393 = vadd.f32 %v1763, %v2219
  %v2394 = vadd.f32 %v1764, %v2224
  %v2395 = vadd.f32 %v1765, %v2229
  %v2396 = vadd.f32 %v1766, %v2234
  %v2397 = vadd.f32 %v1767, %v2239
  %v2398 = vadd.f32 %v1768, %v2244
  %v2399 = vadd.f32 %v1769, %v2249
  %v2400 = vadd.f32 %v1770, %v2254
  %v2401 = vadd.f32 %v1771, %v2259
  %v2402 = vadd.f32 %v1772, %v2264
  %v2403 = vadd.f32 %v1773, %v2269
  %v2404 = vadd.f32 %v1774, %v2274
  %v2405 = vadd.f32 %v1775, %v2279
  %v2406 = vadd.f32 %v1776, %v2284
  %v2407 = vadd.f32 %v1777, %v2289
  %v2408 = vadd.f32 %v1778, %v2294
  %v2409 = vadd.f32 %v1779, %v2299
  %v2410 = vadd.f32 %v1780, %v2304
  %v2411 = vadd.f32 %v1781, %v2309
  %v2412 = vadd.f32 %v1782, %v2314
  %v2413 = vadd.f32 %v1783, %v2319
  %v2414 = vadd.f32 %v1784, %v2324
  %v2415 = vadd.f32 %v1785, %v2329
  %v2416 = vadd.f32 %v1786, %v2334
  %v2417 = vadd.f32 %v1787, %v2339
  %v2418 = vadd.f32 %v1788, %v2344
  %v2419 = vadd.f32 %v1789, %v2349
  %v2420 = vadd.f32 %v1790, %v2354
  %v2421 = vadd.f32 %v1791, %v2359
  %v2422 = vadd.f32 %v1792, %v2364
  %v2423 = vld [vmem:[%s0 + $0x11] sm:$0xff]
  %v2424 = vld [vmem:[%s0 + $0x19] sm:$0xff]
  %v2425 = vld [vmem:[%s0 + $0x21] sm:$0xff]
  %v2426 = vld [vmem:[%s0 + $0x29] sm:$0xff]
  %v2427 = vld [vmem:[%s0 + $0x31] sm:$0xff]
  %v2428 = vld [vmem:[%s0 + $0x39] sm:$0xff]
  %v2429 = vld [vmem:[%s0 + $0x41] sm:$0xff]
  %v2430 = vld [vmem:[%s0 + $0x49] sm:$0xff]
  %v2431 = vld [vmem:[%s0 + $0x51] sm:$0xff]
  %v2432 = vld [vmem:[%s0 + $0x59] sm:$0xff]
  %v2433 = vld [vmem:[%s0 + $0x61] sm:$0xff]
  %v2434 = vld [vmem:[%s0 + $0x69] sm:$0xff]
  %v2435 = vld [vmem:[%s0 + $0x71] sm:$0xff]
  %v2436 = vld [vmem:[%s0 + $0x79] sm:$0xff]
  %v2437 = vld [vmem:[%s0 + $0x81] sm:$0xff]
  %v2438 = vld [vmem:[%s0 + $0x89] sm:$0xff]
  %v2439 = vld [vmem:[%s0 + $0x91] sm:$0xff]
  %v2440 = vld [vmem:[%s0 + $0x99] sm:$0xff]
  %v2441 = vld [vmem:[%s0 + $0xa1] sm:$0xff]
  %v2442 = vld [vmem:[%s0 + $0xa9] sm:$0xff]
  %v2443 = vld [vmem:[%s0 + $0xb1] sm:$0xff]
  %v2444 = vld [vmem:[%s0 + $0xb9] sm:$0xff]
  %v2445 = vld [vmem:[%s0 + $0xc1] sm:$0xff]
  %v2446 = vld [vmem:[%s0 + $0xc9] sm:$0xff]
  %v2447 = vld [vmem:[%s0 + $0xd1] sm:$0xff]
  %v2448 = vld [vmem:[%s0 + $0xd9] sm:$0xff]
  %v2449 = vld [vmem:[%s0 + $0xe1] sm:$0xff]
  %v2450 = vld [vmem:[%s0 + $0xe9] sm:$0xff]
  %v2451 = vld [vmem:[%s0 + $0x121] sm:$0xff]
  %v2452 = vld [vmem:[%s0 + $0x129] sm:$0xff]
  %v2453 = vld [vmem:[%s0 + $0x131] sm:$0xff]
  %v2454 = vld [vmem:[%s0 + $0x139] sm:$0xff]
  %v2455 = vld [vmem:[%s0 + $0x141] sm:$0xff]
  %v2456 = vld [vmem:[%s0 + $0x149] sm:$0xff]
  %v2457 = vld [vmem:[%s0 + $0x151] sm:$0xff]
  %v2458 = vld [vmem:[%s0 + $0x159] sm:$0xff]
  %v2459 = vld [vmem:[%s0 + $0x161] sm:$0xff]
  %v2460 = vld [vmem:[%s0 + $0x169] sm:$0xff]
  %v2461 = vld [vmem:[%s0 + $0x171] sm:$0xff]
  %v2462 = vld [vmem:[%s0 + $0x179] sm:$0xff]
  %v2463 = vld [vmem:[%s0 + $0x181] sm:$0xff]
  %v2464 = vld [vmem:[%s0 + $0x189] sm:$0xff]
  %v2465 = vld [vmem:[%s0 + $0x191] sm:$0xff]
  %v2466 = vld [vmem:[%s0 + $0x199] sm:$0xff]
  %v2467 = vld [vmem:[%s0 + $0x1a1] sm:$0xff]
  %v2468 = vld [vmem:[%s0 + $0x1a9] sm:$0xff]
  %v2469 = vld [vmem:[%s0 + $0x1b1] sm:$0xff]
  %v2470 = vld [vmem:[%s0 + $0x1b9] sm:$0xff]
  %v2471 = vld [vmem:[%s0 + $0x1c1] sm:$0xff]
  %v2472 = vld [vmem:[%s0 + $0x1c9] sm:$0xff]
  %v2473 = vld [vmem:[%s0 + $0x1d1] sm:$0xff]
  %v2474 = vld [vmem:[%s0 + $0x1d9] sm:$0xff]
  %v2475 = vld [vmem:[%s0 + $0x1e1] sm:$0xff]
  %v2476 = vld [vmem:[%s0 + $0x1e9] sm:$0xff]
  %v2477 = vld [vmem:[%s0 + $0x1f1] sm:$0xff]
  %v2478 = vld [vmem:[%s0 + $0x1f9] sm:$0xff]
  %s2479 = scalar_lea.vmem %s1, 16
  %v2480 = vld [vmem:[%s2479] sm:$0xf]
  %v2482 = vsel %vm129, %v2423, 0
  %v2485 = vsel %vm129, %v2424, 0
  %v2488 = vsel %vm129, %v2425, 0
  %v2491 = vsel %vm129, %v2426, 0
  %v2494 = vsel %vm129, %v2427, 0
  %v2497 = vsel %vm129, %v2428, 0
  %v2500 = vsel %vm129, %v2429, 0
  %v2503 = vsel %vm129, %v2430, 0
  %v2506 = vsel %vm129, %v2431, 0
  %v2509 = vsel %vm129, %v2432, 0
  %v2512 = vsel %vm129, %v2433, 0
  %v2515 = vsel %vm129, %v2434, 0
  %v2518 = vsel %vm129, %v2435, 0
  %v2521 = vsel %vm129, %v2436, 0
  %v2524 = vsel %vm129, %v2437, 0
  %v2527 = vsel %vm129, %v2438, 0
  %v2530 = vsel %vm129, %v2439, 0
  %v2533 = vsel %vm129, %v2440, 0
  %v2536 = vsel %vm129, %v2441, 0
  %v2539 = vsel %vm129, %v2442, 0
  %v2542 = vsel %vm129, %v2443, 0
  %v2545 = vsel %vm129, %v2444, 0
  %v2548 = vsel %vm129, %v2445, 0
  %v2551 = vsel %vm129, %v2446, 0
  %v2554 = vsel %vm129, %v2447, 0
  %v2557 = vsel %vm129, %v2448, 0
  %v2560 = vsel %vm129, %v2449, 0
  %v2563 = vsel %vm129, %v2450, 0
  %v2566 = vsel %vm129, %v2451, 0
  %v2569 = vsel %vm129, %v2452, 0
  %v2572 = vsel %vm129, %v2453, 0
  %v2575 = vsel %vm129, %v2454, 0
  %v2578 = vsel %vm129, %v2455, 0
  %v2581 = vsel %vm129, %v2456, 0
  %v2584 = vsel %vm129, %v2457, 0
  %v2587 = vsel %vm129, %v2458, 0
  %v2590 = vsel %vm129, %v2459, 0
  %v2593 = vsel %vm129, %v2460, 0
  %v2596 = vsel %vm129, %v2461, 0
  %v2599 = vsel %vm129, %v2462, 0
  %v2602 = vsel %vm129, %v2463, 0
  %v2605 = vsel %vm129, %v2464, 0
  %v2608 = vsel %vm129, %v2465, 0
  %v2611 = vsel %vm129, %v2466, 0
  %v2614 = vsel %vm129, %v2467, 0
  %v2617 = vsel %vm129, %v2468, 0
  %v2620 = vsel %vm129, %v2469, 0
  %v2623 = vsel %vm129, %v2470, 0
  %v2626 = vsel %vm129, %v2471, 0
  %v2629 = vsel %vm129, %v2472, 0
  %v2632 = vsel %vm129, %v2473, 0
  %v2635 = vsel %vm129, %v2474, 0
  %v2638 = vsel %vm129, %v2475, 0
  %v2641 = vsel %vm129, %v2476, 0
  %v2644 = vsel %vm129, %v2477, 0
  %v2647 = vsel %vm129, %v2478, 0
  %v2650 = vsel %vm298, %v2480, 0
  %2652 = vmatprep.subr.mxu0 0.0
  %2653 = vmatpush1.msra.mxu0 %v2650
  %2654 = vmatprep.subr.mxu0 0.0
  %2655 = vmatpush1.msra.mxu0 0.0
  %2656 = vmatprep.subr.mxu0 0.0
  %2657 = vmatpush1.msra.mxu0 0.0
  %2658 = vmatprep.subr.mxu0 0.0
  %2659 = vmatpush1.msra.mxu0 0.0
  %2660 = vmatprep.subr.mxu0 0.0
  %2661 = vmatpush1.msra.mxu0 0.0
  %2662 = vmatprep.subr.mxu0 0.0
  %2663 = vmatpush1.msra.mxu0 0.0
  %2664 = vmatprep.subr.mxu0 0.0
  %2665 = vmatpush1.msra.mxu0 0.0
  %2666 = vmatprep.subr.mxu0 0.0
  %2667 = vmatpush1.msra.mxu0 0.0
  %2668 = vmatprep.subr.mxu0 0.0
  %2669 = vmatpush1.msra.mxu0 0.0
  %2670 = vmatprep.subr.mxu0 0.0
  %2671 = vmatpush1.msra.mxu0 0.0
  %2672 = vmatprep.subr.mxu0 0.0
  %2673 = vmatpush1.msra.mxu0 0.0
  %2674 = vmatprep.subr.mxu0 0.0
  %2675 = vmatpush1.msra.mxu0 0.0
  %2676 = vmatprep.subr.mxu0 0.0
  %2677 = vmatpush1.msra.mxu0 0.0
  %2678 = vmatprep.subr.mxu0 0.0
  %2679 = vmatpush1.msra.mxu0 0.0
  %2680 = vmatprep.subr.mxu0 0.0
  %2681 = vmatpush1.msra.mxu0 0.0
  %2682 = vmatprep.subr.mxu0 0.0
  %2683 = vmatpush1.msra.mxu0 0.0
  %2684 = vmatprep.subr.mxu0 0.0
  %2685 = vmatpush1.msra.mxu0 0.0
  %2686 = vmatprep.subr.mxu0 0.0
  %2687 = vmatpush1.msra.mxu0 0.0
  %2688 = vmatprep.subr.mxu0 0.0
  %2689 = vmatpush1.msra.mxu0 0.0
  %2690 = vmatprep.subr.mxu0 0.0
  %2691 = vmatpush1.msra.mxu0 0.0
  %2692 = vmatprep.subr.mxu0 0.0
  %2693 = vmatpush1.msra.mxu0 0.0
  %2694 = vmatprep.subr.mxu0 0.0
  %2695 = vmatpush1.msra.mxu0 0.0
  %2696 = vmatprep.subr.mxu0 0.0
  %2697 = vmatpush1.msra.mxu0 0.0
  %2698 = vmatprep.subr.mxu0 0.0
  %2699 = vmatpush1.msra.mxu0 0.0
  %2700 = vmatprep.subr.mxu0 0.0
  %2701 = vmatpush1.msra.mxu0 0.0
  %2702 = vmatprep.subr.mxu0 0.0
  %2703 = vmatpush1.msra.mxu0 0.0
  %2704 = vmatprep.subr.mxu0 0.0
  %2705 = vmatpush1.msra.mxu0 0.0
  %2706 = vmatprep.subr.mxu0 0.0
  %2707 = vmatpush1.msra.mxu0 0.0
  %2708 = vmatprep.subr.mxu0 0.0
  %2709 = vmatpush1.msra.mxu0 0.0
  %2710 = vmatprep.subr.mxu0 0.0
  %2711 = vmatpush1.msra.mxu0 0.0
  %2712 = vmatprep.subr.mxu0 0.0
  %2713 = vmatpush1.msra.mxu0 0.0
  %2714 = vmatprep.subr.mxu0 0.0
  %2715 = vmatpush1.msra.mxu0 0.0
  %2716 = vmatprep.mubr.f32.mxu0 0.0
  %2717 = vmatmul.mubr.f32.gmra.mrb[0].mxu0 %v2482
  %v2718 = vpop.f32.mrb[0].mxu0
  %v2719 = vadd.f32 0.0, %v2718
  %v2720 = vpop.f32.mrb[0].mxu0
  %2721 = vmatprep.mubr.f32.mxu0 0.0
  %2722 = vmatmul.mubr.f32.gmra.mrb[0].mxu0 %v2485
  %v2723 = vpop.f32.mrb[0].mxu0
  %v2724 = vadd.f32 0.0, %v2723
  %v2725 = vpop.f32.mrb[0].mxu0
  %2726 = vmatprep.mubr.f32.mxu0 0.0
  %2727 = vmatmul.mubr.f32.gmra.mrb[0].mxu0 %v2488
  %v2728 = vpop.f32.mrb[0].mxu0
  %v2729 = vadd.f32 0.0, %v2728
  %v2730 = vpop.f32.mrb[0].mxu0
  %2731 = vmatprep.mubr.f32.mxu0 0.0
  %2732 = vmatmul.mubr.f32.gmra.mrb[0].mxu0 %v2491
  %v2733 = vpop.f32.mrb[0].mxu0
  %v2734 = vadd.f32 0.0, %v2733
  %v2735 = vpop.f32.mrb[0].mxu0
  %2736 = vmatprep.mubr.f32.mxu0 0.0
  %2737 = vmatmul.mubr.f32.gmra.mrb[0].mxu0 %v2494
  %v2738 = vpop.f32.mrb[0].mxu0
  %v2739 = vadd.f32 0.0, %v2738
  %v2740 = vpop.f32.mrb[0].mxu0
  %2741 = vmatprep.mubr.f32.mxu0 0.0
  %2742 = vmatmul.mubr.f32.gmra.mrb[0].mxu0 %v2497
  %v2743 = vpop.f32.mrb[0].mxu0
  %v2744 = vadd.f32 0.0, %v2743
  %v2745 = vpop.f32.mrb[0].mxu0
  %2746 = vmatprep.mubr.f32.mxu0 0.0
  %2747 = vmatmul.mubr.f32.gmra.mrb[0].mxu0 %v2500
  %v2748 = vpop.f32.mrb[0].mxu0
  %v2749 = vadd.f32 0.0, %v2748
  %v2750 = vpop.f32.mrb[0].mxu0
  %2751 = vmatprep.mubr.f32.mxu0 0.0
  %2752 = vmatmul.mubr.f32.gmra.mrb[0].mxu0 %v2503
  %v2753 = vpop.f32.mrb[0].mxu0
  %v2754 = vadd.f32 0.0, %v2753
  %v2755 = vpop.f32.mrb[0].mxu0
  %2756 = vmatprep.mubr.f32.mxu0 0.0
  %2757 = vmatmul.mubr.f32.gmra.mrb[0].mxu0 %v2506
  %v2758 = vpop.f32.mrb[0].mxu0
  %v2759 = vadd.f32 0.0, %v2758
  %v2760 = vpop.f32.mrb[0].mxu0
  %2761 = vmatprep.mubr.f32.mxu0 0.0
  %2762 = vmatmul.mubr.f32.gmra.mrb[0].mxu0 %v2509
  %v2763 = vpop.f32.mrb[0].mxu0
  %v2764 = vadd.f32 0.0, %v2763
  %v2765 = vpop.f32.mrb[0].mxu0
  %2766 = vmatprep.mubr.f32.mxu0 0.0
  %2767 = vmatmul.mubr.f32.gmra.mrb[0].mxu0 %v2512
  %v2768 = vpop.f32.mrb[0].mxu0
  %v2769 = vadd.f32 0.0, %v2768
  %v2770 = vpop.f32.mrb[0].mxu0
  %2771 = vmatprep.mubr.f32.mxu0 0.0
  %2772 = vmatmul.mubr.f32.gmra.mrb[0].mxu0 %v2515
  %v2773 = vpop.f32.mrb[0].mxu0
  %v2774 = vadd.f32 0.0, %v2773
  %v2775 = vpop.f32.mrb[0].mxu0
  %2776 = vmatprep.mubr.f32.mxu0 0.0
  %2777 = vmatmul.mubr.f32.gmra.mrb[0].mxu0 %v2518
  %v2778 = vpop.f32.mrb[0].mxu0
  %v2779 = vadd.f32 0.0, %v2778
  %v2780 = vpop.f32.mrb[0].mxu0
  %2781 = vmatprep.mubr.f32.mxu0 0.0
  %2782 = vmatmul.mubr.f32.gmra.mrb[0].mxu0 %v2521
  %v2783 = vpop.f32.mrb[0].mxu0
  %v2784 = vadd.f32 0.0, %v2783
  %v2785 = vpop.f32.mrb[0].mxu0
  %2786 = vmatprep.mubr.f32.mxu0 0.0
  %2787 = vmatmul.mubr.f32.gmra.mrb[0].mxu0 %v2524
  %v2788 = vpop.f32.mrb[0].mxu0
  %v2789 = vadd.f32 0.0, %v2788
  %v2790 = vpop.f32.mrb[0].mxu0
  %2791 = vmatprep.mubr.f32.mxu0 0.0
  %2792 = vmatmul.mubr.f32.gmra.mrb[0].mxu0 %v2527
  %v2793 = vpop.f32.mrb[0].mxu0
  %v2794 = vadd.f32 0.0, %v2793
  %v2795 = vpop.f32.mrb[0].mxu0
  %2796 = vmatprep.mubr.f32.mxu0 0.0
  %2797 = vmatmul.mubr.f32.gmra.mrb[0].mxu0 %v2530
  %v2798 = vpop.f32.mrb[0].mxu0
  %v2799 = vadd.f32 0.0, %v2798
  %v2800 = vpop.f32.mrb[0].mxu0
  %2801 = vmatprep.mubr.f32.mxu0 0.0
  %2802 = vmatmul.mubr.f32.gmra.mrb[0].mxu0 %v2533
  %v2803 = vpop.f32.mrb[0].mxu0
  %v2804 = vadd.f32 0.0, %v2803
  %v2805 = vpop.f32.mrb[0].mxu0
  %2806 = vmatprep.mubr.f32.mxu0 0.0
  %2807 = vmatmul.mubr.f32.gmra.mrb[0].mxu0 %v2536
  %v2808 = vpop.f32.mrb[0].mxu0
  %v2809 = vadd.f32 0.0, %v2808
  %v2810 = vpop.f32.mrb[0].mxu0
  %2811 = vmatprep.mubr.f32.mxu0 0.0
  %2812 = vmatmul.mubr.f32.gmra.mrb[0].mxu0 %v2539
  %v2813 = vpop.f32.mrb[0].mxu0
  %v2814 = vadd.f32 0.0, %v2813
  %v2815 = vpop.f32.mrb[0].mxu0
  %2816 = vmatprep.mubr.f32.mxu0 0.0
  %2817 = vmatmul.mubr.f32.gmra.mrb[0].mxu0 %v2542
  %v2818 = vpop.f32.mrb[0].mxu0
  %v2819 = vadd.f32 0.0, %v2818
  %v2820 = vpop.f32.mrb[0].mxu0
  %2821 = vmatprep.mubr.f32.mxu0 0.0
  %2822 = vmatmul.mubr.f32.gmra.mrb[0].mxu0 %v2545
  %v2823 = vpop.f32.mrb[0].mxu0
  %v2824 = vadd.f32 0.0, %v2823
  %v2825 = vpop.f32.mrb[0].mxu0
  %2826 = vmatprep.mubr.f32.mxu0 0.0
  %2827 = vmatmul.mubr.f32.gmra.mrb[0].mxu0 %v2548
  %v2828 = vpop.f32.mrb[0].mxu0
  %v2829 = vadd.f32 0.0, %v2828
  %v2830 = vpop.f32.mrb[0].mxu0
  %2831 = vmatprep.mubr.f32.mxu0 0.0
  %2832 = vmatmul.mubr.f32.gmra.mrb[0].mxu0 %v2551
  %v2833 = vpop.f32.mrb[0].mxu0
  %v2834 = vadd.f32 0.0, %v2833
  %v2835 = vpop.f32.mrb[0].mxu0
  %2836 = vmatprep.mubr.f32.mxu0 0.0
  %2837 = vmatmul.mubr.f32.gmra.mrb[0].mxu0 %v2554
  %v2838 = vpop.f32.mrb[0].mxu0
  %v2839 = vadd.f32 0.0, %v2838
  %v2840 = vpop.f32.mrb[0].mxu0
  %2841 = vmatprep.mubr.f32.mxu0 0.0
  %2842 = vmatmul.mubr.f32.gmra.mrb[0].mxu0 %v2557
  %v2843 = vpop.f32.mrb[0].mxu0
  %v2844 = vadd.f32 0.0, %v2843
  %v2845 = vpop.f32.mrb[0].mxu0
  %2846 = vmatprep.mubr.f32.mxu0 0.0
  %2847 = vmatmul.mubr.f32.gmra.mrb[0].mxu0 %v2560
  %v2848 = vpop.f32.mrb[0].mxu0
  %v2849 = vadd.f32 0.0, %v2848
  %v2850 = vpop.f32.mrb[0].mxu0
  %2851 = vmatprep.mubr.f32.mxu0 0.0
  %2852 = vmatmul.mubr.f32.gmra.mrb[0].mxu0 %v2563
  %v2853 = vpop.f32.mrb[0].mxu0
  %v2854 = vadd.f32 0.0, %v2853
  %v2855 = vpop.f32.mrb[0].mxu0
  %2856 = vmatprep.mubr.f32.mxu0 0.0
  %2857 = vmatmul.mubr.f32.gmra.mrb[0].mxu0 %v2566
  %v2858 = vpop.f32.mrb[0].mxu0
  %v2859 = vadd.f32 0.0, %v2858
  %v2860 = vpop.f32.mrb[0].mxu0
  %2861 = vmatprep.mubr.f32.mxu0 0.0
  %2862 = vmatmul.mubr.f32.gmra.mrb[0].mxu0 %v2569
  %v2863 = vpop.f32.mrb[0].mxu0
  %v2864 = vadd.f32 0.0, %v2863
  %v2865 = vpop.f32.mrb[0].mxu0
  %2866 = vmatprep.mubr.f32.mxu0 0.0
  %2867 = vmatmul.mubr.f32.gmra.mrb[0].mxu0 %v2572
  %v2868 = vpop.f32.mrb[0].mxu0
  %v2869 = vadd.f32 0.0, %v2868
  %v2870 = vpop.f32.mrb[0].mxu0
  %2871 = vmatprep.mubr.f32.mxu0 0.0
  %2872 = vmatmul.mubr.f32.gmra.mrb[0].mxu0 %v2575
  %v2873 = vpop.f32.mrb[0].mxu0
  %v2874 = vadd.f32 0.0, %v2873
  %v2875 = vpop.f32.mrb[0].mxu0
  %2876 = vmatprep.mubr.f32.mxu0 0.0
  %2877 = vmatmul.mubr.f32.gmra.mrb[0].mxu0 %v2578
  %v2878 = vpop.f32.mrb[0].mxu0
  %v2879 = vadd.f32 0.0, %v2878
  %v2880 = vpop.f32.mrb[0].mxu0
  %2881 = vmatprep.mubr.f32.mxu0 0.0
  %2882 = vmatmul.mubr.f32.gmra.mrb[0].mxu0 %v2581
  %v2883 = vpop.f32.mrb[0].mxu0
  %v2884 = vadd.f32 0.0, %v2883
  %v2885 = vpop.f32.mrb[0].mxu0
  %2886 = vmatprep.mubr.f32.mxu0 0.0
  %2887 = vmatmul.mubr.f32.gmra.mrb[0].mxu0 %v2584
  %v2888 = vpop.f32.mrb[0].mxu0
  %v2889 = vadd.f32 0.0, %v2888
  %v2890 = vpop.f32.mrb[0].mxu0
  %2891 = vmatprep.mubr.f32.mxu0 0.0
  %2892 = vmatmul.mubr.f32.gmra.mrb[0].mxu0 %v2587
  %v2893 = vpop.f32.mrb[0].mxu0
  %v2894 = vadd.f32 0.0, %v2893
  %v2895 = vpop.f32.mrb[0].mxu0
  %2896 = vmatprep.mubr.f32.mxu0 0.0
  %2897 = vmatmul.mubr.f32.gmra.mrb[0].mxu0 %v2590
  %v2898 = vpop.f32.mrb[0].mxu0
  %v2899 = vadd.f32 0.0, %v2898
  %v2900 = vpop.f32.mrb[0].mxu0
  %2901 = vmatprep.mubr.f32.mxu0 0.0
  %2902 = vmatmul.mubr.f32.gmra.mrb[0].mxu0 %v2593
  %v2903 = vpop.f32.mrb[0].mxu0
  %v2904 = vadd.f32 0.0, %v2903
  %v2905 = vpop.f32.mrb[0].mxu0
  %2906 = vmatprep.mubr.f32.mxu0 0.0
  %2907 = vmatmul.mubr.f32.gmra.mrb[0].mxu0 %v2596
  %v2908 = vpop.f32.mrb[0].mxu0
  %v2909 = vadd.f32 0.0, %v2908
  %v2910 = vpop.f32.mrb[0].mxu0
  %2911 = vmatprep.mubr.f32.mxu0 0.0
  %2912 = vmatmul.mubr.f32.gmra.mrb[0].mxu0 %v2599
  %v2913 = vpop.f32.mrb[0].mxu0
  %v2914 = vadd.f32 0.0, %v2913
  %v2915 = vpop.f32.mrb[0].mxu0
  %2916 = vmatprep.mubr.f32.mxu0 0.0
  %2917 = vmatmul.mubr.f32.gmra.mrb[0].mxu0 %v2602
  %v2918 = vpop.f32.mrb[0].mxu0
  %v2919 = vadd.f32 0.0, %v2918
  %v2920 = vpop.f32.mrb[0].mxu0
  %2921 = vmatprep.mubr.f32.mxu0 0.0
  %2922 = vmatmul.mubr.f32.gmra.mrb[0].mxu0 %v2605
  %v2923 = vpop.f32.mrb[0].mxu0
  %v2924 = vadd.f32 0.0, %v2923
  %v2925 = vpop.f32.mrb[0].mxu0
  %2926 = vmatprep.mubr.f32.mxu0 0.0
  %2927 = vmatmul.mubr.f32.gmra.mrb[0].mxu0 %v2608
  %v2928 = vpop.f32.mrb[0].mxu0
  %v2929 = vadd.f32 0.0, %v2928
  %v2930 = vpop.f32.mrb[0].mxu0
  %2931 = vmatprep.mubr.f32.mxu0 0.0
  %2932 = vmatmul.mubr.f32.gmra.mrb[0].mxu0 %v2611
  %v2933 = vpop.f32.mrb[0].mxu0
  %v2934 = vadd.f32 0.0, %v2933
  %v2935 = vpop.f32.mrb[0].mxu0
  %2936 = vmatprep.mubr.f32.mxu0 0.0
  %2937 = vmatmul.mubr.f32.gmra.mrb[0].mxu0 %v2614
  %v2938 = vpop.f32.mrb[0].mxu0
  %v2939 = vadd.f32 0.0, %v2938
  %v2940 = vpop.f32.mrb[0].mxu0
  %2941 = vmatprep.mubr.f32.mxu0 0.0
  %2942 = vmatmul.mubr.f32.gmra.mrb[0].mxu0 %v2617
  %v2943 = vpop.f32.mrb[0].mxu0
  %v2944 = vadd.f32 0.0, %v2943
  %v2945 = vpop.f32.mrb[0].mxu0
  %2946 = vmatprep.mubr.f32.mxu0 0.0
  %2947 = vmatmul.mubr.f32.gmra.mrb[0].mxu0 %v2620
  %v2948 = vpop.f32.mrb[0].mxu0
  %v2949 = vadd.f32 0.0, %v2948
  %v2950 = vpop.f32.mrb[0].mxu0
  %2951 = vmatprep.mubr.f32.mxu0 0.0
  %2952 = vmatmul.mubr.f32.gmra.mrb[0].mxu0 %v2623
  %v2953 = vpop.f32.mrb[0].mxu0
  %v2954 = vadd.f32 0.0, %v2953
  %v2955 = vpop.f32.mrb[0].mxu0
  %2956 = vmatprep.mubr.f32.mxu0 0.0
  %2957 = vmatmul.mubr.f32.gmra.mrb[0].mxu0 %v2626
  %v2958 = vpop.f32.mrb[0].mxu0
  %v2959 = vadd.f32 0.0, %v2958
  %v2960 = vpop.f32.mrb[0].mxu0
  %2961 = vmatprep.mubr.f32.mxu0 0.0
  %2962 = vmatmul.mubr.f32.gmra.mrb[0].mxu0 %v2629
  %v2963 = vpop.f32.mrb[0].mxu0
  %v2964 = vadd.f32 0.0, %v2963
  %v2965 = vpop.f32.mrb[0].mxu0
  %2966 = vmatprep.mubr.f32.mxu0 0.0
  %2967 = vmatmul.mubr.f32.gmra.mrb[0].mxu0 %v2632
  %v2968 = vpop.f32.mrb[0].mxu0
  %v2969 = vadd.f32 0.0, %v2968
  %v2970 = vpop.f32.mrb[0].mxu0
  %2971 = vmatprep.mubr.f32.mxu0 0.0
  %2972 = vmatmul.mubr.f32.gmra.mrb[0].mxu0 %v2635
  %v2973 = vpop.f32.mrb[0].mxu0
  %v2974 = vadd.f32 0.0, %v2973
  %v2975 = vpop.f32.mrb[0].mxu0
  %2976 = vmatprep.mubr.f32.mxu0 0.0
  %2977 = vmatmul.mubr.f32.gmra.mrb[0].mxu0 %v2638
  %v2978 = vpop.f32.mrb[0].mxu0
  %v2979 = vadd.f32 0.0, %v2978
  %v2980 = vpop.f32.mrb[0].mxu0
  %2981 = vmatprep.mubr.f32.mxu0 0.0
  %2982 = vmatmul.mubr.f32.gmra.mrb[0].mxu0 %v2641
  %v2983 = vpop.f32.mrb[0].mxu0
  %v2984 = vadd.f32 0.0, %v2983
  %v2985 = vpop.f32.mrb[0].mxu0
  %2986 = vmatprep.mubr.f32.mxu0 0.0
  %2987 = vmatmul.mubr.f32.gmra.mrb[0].mxu0 %v2644
  %v2988 = vpop.f32.mrb[0].mxu0
  %v2989 = vadd.f32 0.0, %v2988
  %v2990 = vpop.f32.mrb[0].mxu0
  %2991 = vmatprep.mubr.f32.mxu0 0.0
  %2992 = vmatmul.mubr.f32.gmra.mrb[0].mxu0 %v2647
  %v2993 = vpop.f32.mrb[0].mxu0
  %v2994 = vadd.f32 0.0, %v2993
  %v2995 = vpop.f32.mrb[0].mxu0
  %2996 = vdwg.mxu0
  %v2997 = vadd.f32 %v2367, %v2719
  %v2998 = vadd.f32 %v2368, %v2724
  %v2999 = vadd.f32 %v2369, %v2729
  %v3000 = vadd.f32 %v2370, %v2734
  %v3001 = vadd.f32 %v2371, %v2739
  %v3002 = vadd.f32 %v2372, %v2744
  %v3003 = vadd.f32 %v2373, %v2749
  %v3004 = vadd.f32 %v2374, %v2754
  %v3005 = vadd.f32 %v2375, %v2759
  %v3006 = vadd.f32 %v2376, %v2764
  %v3007 = vadd.f32 %v2377, %v2769
  %v3008 = vadd.f32 %v2378, %v2774
  %v3009 = vadd.f32 %v2379, %v2779
  %v3010 = vadd.f32 %v2380, %v2784
  %v3011 = vadd.f32 %v2381, %v2789
  %v3012 = vadd.f32 %v2382, %v2794
  %v3013 = vadd.f32 %v2383, %v2799
  %v3014 = vadd.f32 %v2384, %v2804
  %v3015 = vadd.f32 %v2385, %v2809
  %v3016 = vadd.f32 %v2386, %v2814
  %v3017 = vadd.f32 %v2387, %v2819
  %v3018 = vadd.f32 %v2388, %v2824
  %v3019 = vadd.f32 %v2389, %v2829
  %v3020 = vadd.f32 %v2390, %v2834
  %v3021 = vadd.f32 %v2391, %v2839
  %v3022 = vadd.f32 %v2392, %v2844
  %v3023 = vadd.f32 %v2393, %v2849
  %v3024 = vadd.f32 %v2394, %v2854
  %v3025 = vadd.f32 %v2395, %v2859
  %v3026 = vadd.f32 %v2396, %v2864
  %v3027 = vadd.f32 %v2397, %v2869
  %v3028 = vadd.f32 %v2398, %v2874
  %v3029 = vadd.f32 %v2399, %v2879
  %v3030 = vadd.f32 %v2400, %v2884
  %v3031 = vadd.f32 %v2401, %v2889
  %v3032 = vadd.f32 %v2402, %v2894
  %v3033 = vadd.f32 %v2403, %v2899
  %v3034 = vadd.f32 %v2404, %v2904
  %v3035 = vadd.f32 %v2405, %v2909
  %v3036 = vadd.f32 %v2406, %v2914
  %v3037 = vadd.f32 %v2407, %v2919
  %v3038 = vadd.f32 %v2408, %v2924
  %v3039 = vadd.f32 %v2409, %v2929
  %v3040 = vadd.f32 %v2410, %v2934
  %v3041 = vadd.f32 %v2411, %v2939
  %v3042 = vadd.f32 %v2412, %v2944
  %v3043 = vadd.f32 %v2413, %v2949
  %v3044 = vadd.f32 %v2414, %v2954
  %v3045 = vadd.f32 %v2415, %v2959
  %v3046 = vadd.f32 %v2416, %v2964
  %v3047 = vadd.f32 %v2417, %v2969
  %v3048 = vadd.f32 %v2418, %v2974
  %v3049 = vadd.f32 %v2419, %v2979
  %v3050 = vadd.f32 %v2420, %v2984
  %v3051 = vadd.f32 %v2421, %v2989
  %v3052 = vadd.f32 %v2422, %v2994
  %v3053 = vld [vmem:[%s0 + $0x12] sm:$0xff]
  %v3054 = vld [vmem:[%s0 + $0x1a] sm:$0xff]
  %v3055 = vld [vmem:[%s0 + $0x22] sm:$0xff]
  %v3056 = vld [vmem:[%s0 + $0x2a] sm:$0xff]
  %v3057 = vld [vmem:[%s0 + $0x32] sm:$0xff]
  %v3058 = vld [vmem:[%s0 + $0x3a] sm:$0xff]
  %v3059 = vld [vmem:[%s0 + $0x42] sm:$0xff]
  %v3060 = vld [vmem:[%s0 + $0x4a] sm:$0xff]
  %v3061 = vld [vmem:[%s0 + $0x52] sm:$0xff]
  %v3062 = vld [vmem:[%s0 + $0x5a] sm:$0xff]
  %v3063 = vld [vmem:[%s0 + $0x62] sm:$0xff]
  %v3064 = vld [vmem:[%s0 + $0x6a] sm:$0xff]
  %v3065 = vld [vmem:[%s0 + $0x72] sm:$0xff]
  %v3066 = vld [vmem:[%s0 + $0x7a] sm:$0xff]
  %v3067 = vld [vmem:[%s0 + $0x82] sm:$0xff]
  %v3068 = vld [vmem:[%s0 + $0x8a] sm:$0xff]
  %v3069 = vld [vmem:[%s0 + $0x92] sm:$0xff]
  %v3070 = vld [vmem:[%s0 + $0x9a] sm:$0xff]
  %v3071 = vld [vmem:[%s0 + $0xa2] sm:$0xff]
  %v3072 = vld [vmem:[%s0 + $0xaa] sm:$0xff]
  %v3073 = vld [vmem:[%s0 + $0xb2] sm:$0xff]
  %v3074 = vld [vmem:[%s0 + $0xba] sm:$0xff]
  %v3075 = vld [vmem:[%s0 + $0xc2] sm:$0xff]
  %v3076 = vld [vmem:[%s0 + $0xca] sm:$0xff]
  %v3077 = vld [vmem:[%s0 + $0xd2] sm:$0xff]
  %v3078 = vld [vmem:[%s0 + $0xda] sm:$0xff]
  %v3079 = vld [vmem:[%s0 + $0xe2] sm:$0xff]
  %v3080 = vld [vmem:[%s0 + $0xea] sm:$0xff]
  %v3081 = vld [vmem:[%s0 + $0x122] sm:$0xff]
  %v3082 = vld [vmem:[%s0 + $0x12a] sm:$0xff]
  %v3083 = vld [vmem:[%s0 + $0x132] sm:$0xff]
  %v3084 = vld [vmem:[%s0 + $0x13a] sm:$0xff]
  %v3085 = vld [vmem:[%s0 + $0x142] sm:$0xff]
  %v3086 = vld [vmem:[%s0 + $0x14a] sm:$0xff]
  %v3087 = vld [vmem:[%s0 + $0x152] sm:$0xff]
  %v3088 = vld [vmem:[%s0 + $0x15a] sm:$0xff]
  %v3089 = vld [vmem:[%s0 + $0x162] sm:$0xff]
  %v3090 = vld [vmem:[%s0 + $0x16a] sm:$0xff]
  %v3091 = vld [vmem:[%s0 + $0x172] sm:$0xff]
  %v3092 = vld [vmem:[%s0 + $0x17a] sm:$0xff]
  %v3093 = vld [vmem:[%s0 + $0x182] sm:$0xff]
  %v3094 = vld [vmem:[%s0 + $0x18a] sm:$0xff]
  %v3095 = vld [vmem:[%s0 + $0x192] sm:$0xff]
  %v3096 = vld [vmem:[%s0 + $0x19a] sm:$0xff]
  %v3097 = vld [vmem:[%s0 + $0x1a2] sm:$0xff]
  %v3098 = vld [vmem:[%s0 + $0x1aa] sm:$0xff]
  %v3099 = vld [vmem:[%s0 + $0x1b2] sm:$0xff]
  %v3100 = vld [vmem:[%s0 + $0x1ba] sm:$0xff]
  %v3101 = vld [vmem:[%s0 + $0x1c2] sm:$0xff]
  %v3102 = vld [vmem:[%s0 + $0x1ca] sm:$0xff]
  %v3103 = vld [vmem:[%s0 + $0x1d2] sm:$0xff]
  %v3104 = vld [vmem:[%s0 + $0x1da] sm:$0xff]
  %v3105 = vld [vmem:[%s0 + $0x1e2] sm:$0xff]
  %v3106 = vld [vmem:[%s0 + $0x1ea] sm:$0xff]
  %v3107 = vld [vmem:[%s0 + $0x1f2] sm:$0xff]
  %v3108 = vld [vmem:[%s0 + $0x1fa] sm:$0xff]
  %s3109 = scalar_lea.vmem %s1, 20
  %v3110 = vld [vmem:[%s3109] sm:$0xf]
  %v3112 = vsel %vm129, %v3053, 0
  %v3115 = vsel %vm129, %v3054, 0
  %v3118 = vsel %vm129, %v3055, 0
  %v3121 = vsel %vm129, %v3056, 0
  %v3124 = vsel %vm129, %v3057, 0
  %v3127 = vsel %vm129, %v3058, 0
  %v3130 = vsel %vm129, %v3059, 0
  %v3133 = vsel %vm129, %v3060, 0
  %v3136 = vsel %vm129, %v3061, 0
  %v3139 = vsel %vm129, %v3062, 0
  %v3142 = vsel %vm129, %v3063, 0
  %v3145 = vsel %vm129, %v3064, 0
  %v3148 = vsel %vm129, %v3065, 0
  %v3151 = vsel %vm129, %v3066, 0
  %v3154 = vsel %vm129, %v3067, 0
  %v3157 = vsel %vm129, %v3068, 0
  %v3160 = vsel %vm129, %v3069, 0
  %v3163 = vsel %vm129, %v3070, 0
  %v3166 = vsel %vm129, %v3071, 0
  %v3169 = vsel %vm129, %v3072, 0
  %v3172 = vsel %vm129, %v3073, 0
  %v3175 = vsel %vm129, %v3074, 0
  %v3178 = vsel %vm129, %v3075, 0
  %v3181 = vsel %vm129, %v3076, 0
  %v3184 = vsel %vm129, %v3077, 0
  %v3187 = vsel %vm129, %v3078, 0
  %v3190 = vsel %vm129, %v3079, 0
  %v3193 = vsel %vm129, %v3080, 0
  %v3196 = vsel %vm129, %v3081, 0
  %v3199 = vsel %vm129, %v3082, 0
  %v3202 = vsel %vm129, %v3083, 0
  %v3205 = vsel %vm129, %v3084, 0
  %v3208 = vsel %vm129, %v3085, 0
  %v3211 = vsel %vm129, %v3086, 0
  %v3214 = vsel %vm129, %v3087, 0
  %v3217 = vsel %vm129, %v3088, 0
  %v3220 = vsel %vm129, %v3089, 0
  %v3223 = vsel %vm129, %v3090, 0
  %v3226 = vsel %vm129, %v3091, 0
  %v3229 = vsel %vm129, %v3092, 0
  %v3232 = vsel %vm129, %v3093, 0
  %v3235 = vsel %vm129, %v3094, 0
  %v3238 = vsel %vm129, %v3095, 0
  %v3241 = vsel %vm129, %v3096, 0
  %v3244 = vsel %vm129, %v3097, 0
  %v3247 = vsel %vm129, %v3098, 0
  %v3250 = vsel %vm129, %v3099, 0
  %v3253 = vsel %vm129, %v3100, 0
  %v3256 = vsel %vm129, %v3101, 0
  %v3259 = vsel %vm129, %v3102, 0
  %v3262 = vsel %vm129, %v3103, 0
  %v3265 = vsel %vm129, %v3104, 0
  %v3268 = vsel %vm129, %v3105, 0
  %v3271 = vsel %vm129, %v3106, 0
  %v3274 = vsel %vm129, %v3107, 0
  %v3277 = vsel %vm129, %v3108, 0
  %v3280 = vsel %vm298, %v3110, 0
  %3282 = vmatprep.subr.mxu0 0.0
  %3283 = vmatpush1.msra.mxu0 %v3280
  %3284 = vmatprep.subr.mxu0 0.0
  %3285 = vmatpush1.msra.mxu0 0.0
  %3286 = vmatprep.subr.mxu0 0.0
  %3287 = vmatpush1.msra.mxu0 0.0
  %3288 = vmatprep.subr.mxu0 0.0
  %3289 = vmatpush1.msra.mxu0 0.0
  %3290 = vmatprep.subr.mxu0 0.0
  %3291 = vmatpush1.msra.mxu0 0.0
  %3292 = vmatprep.subr.mxu0 0.0
  %3293 = vmatpush1.msra.mxu0 0.0
  %3294 = vmatprep.subr.mxu0 0.0
  %3295 = vmatpush1.msra.mxu0 0.0
  %3296 = vmatprep.subr.mxu0 0.0
  %3297 = vmatpush1.msra.mxu0 0.0
  %3298 = vmatprep.subr.mxu0 0.0
  %3299 = vmatpush1.msra.mxu0 0.0
  %3300 = vmatprep.subr.mxu0 0.0
  %3301 = vmatpush1.msra.mxu0 0.0
  %3302 = vmatprep.subr.mxu0 0.0
  %3303 = vmatpush1.msra.mxu0 0.0
  %3304 = vmatprep.subr.mxu0 0.0
  %3305 = vmatpush1.msra.mxu0 0.0
  %3306 = vmatprep.subr.mxu0 0.0
  %3307 = vmatpush1.msra.mxu0 0.0
  %3308 = vmatprep.subr.mxu0 0.0
  %3309 = vmatpush1.msra.mxu0 0.0
  %3310 = vmatprep.subr.mxu0 0.0
  %3311 = vmatpush1.msra.mxu0 0.0
  %3312 = vmatprep.subr.mxu0 0.0
  %3313 = vmatpush1.msra.mxu0 0.0
  %3314 = vmatprep.subr.mxu0 0.0
  %3315 = vmatpush1.msra.mxu0 0.0
  %3316 = vmatprep.subr.mxu0 0.0
  %3317 = vmatpush1.msra.mxu0 0.0
  %3318 = vmatprep.subr.mxu0 0.0
  %3319 = vmatpush1.msra.mxu0 0.0
  %3320 = vmatprep.subr.mxu0 0.0
  %3321 = vmatpush1.msra.mxu0 0.0
  %3322 = vmatprep.subr.mxu0 0.0
  %3323 = vmatpush1.msra.mxu0 0.0
  %3324 = vmatprep.subr.mxu0 0.0
  %3325 = vmatpush1.msra.mxu0 0.0
  %3326 = vmatprep.subr.mxu0 0.0
  %3327 = vmatpush1.msra.mxu0 0.0
  %3328 = vmatprep.subr.mxu0 0.0
  %3329 = vmatpush1.msra.mxu0 0.0
  %3330 = vmatprep.subr.mxu0 0.0
  %3331 = vmatpush1.msra.mxu0 0.0
  %3332 = vmatprep.subr.mxu0 0.0
  %3333 = vmatpush1.msra.mxu0 0.0
  %3334 = vmatprep.subr.mxu0 0.0
  %3335 = vmatpush1.msra.mxu0 0.0
  %3336 = vmatprep.subr.mxu0 0.0
  %3337 = vmatpush1.msra.mxu0 0.0
  %3338 = vmatprep.subr.mxu0 0.0
  %3339 = vmatpush1.msra.mxu0 0.0
  %3340 = vmatprep.subr.mxu0 0.0
  %3341 = vmatpush1.msra.mxu0 0.0
  %3342 = vmatprep.subr.mxu0 0.0
  %3343 = vmatpush1.msra.mxu0 0.0
  %3344 = vmatprep.subr.mxu0 0.0
  %3345 = vmatpush1.msra.mxu0 0.0
  %3346 = vmatprep.mubr.f32.mxu0 0.0
  %3347 = vmatmul.mubr.f32.gmra.mrb[0].mxu0 %v3112
  %v3348 = vpop.f32.mrb[0].mxu0
  %v3349 = vadd.f32 0.0, %v3348
  %v3350 = vpop.f32.mrb[0].mxu0
  %3351 = vmatprep.mubr.f32.mxu0 0.0
  %3352 = vmatmul.mubr.f32.gmra.mrb[0].mxu0 %v3115
  %v3353 = vpop.f32.mrb[0].mxu0
  %v3354 = vadd.f32 0.0, %v3353
  %v3355 = vpop.f32.mrb[0].mxu0
  %3356 = vmatprep.mubr.f32.mxu0 0.0
  %3357 = vmatmul.mubr.f32.gmra.mrb[0].mxu0 %v3118
  %v3358 = vpop.f32.mrb[0].mxu0
  %v3359 = vadd.f32 0.0, %v3358
  %v3360 = vpop.f32.mrb[0].mxu0
  %3361 = vmatprep.mubr.f32.mxu0 0.0
  %3362 = vmatmul.mubr.f32.gmra.mrb[0].mxu0 %v3121
  %v3363 = vpop.f32.mrb[0].mxu0
  %v3364 = vadd.f32 0.0, %v3363
  %v3365 = vpop.f32.mrb[0].mxu0
  %3366 = vmatprep.mubr.f32.mxu0 0.0
  %3367 = vmatmul.mubr.f32.gmra.mrb[0].mxu0 %v3124
  %v3368 = vpop.f32.mrb[0].mxu0
  %v3369 = vadd.f32 0.0, %v3368
  %v3370 = vpop.f32.mrb[0].mxu0
  %3371 = vmatprep.mubr.f32.mxu0 0.0
  %3372 = vmatmul.mubr.f32.gmra.mrb[0].mxu0 %v3127
  %v3373 = vpop.f32.mrb[0].mxu0
  %v3374 = vadd.f32 0.0, %v3373
  %v3375 = vpop.f32.mrb[0].mxu0
  %3376 = vmatprep.mubr.f32.mxu0 0.0
  %3377 = vmatmul.mubr.f32.gmra.mrb[0].mxu0 %v3130
  %v3378 = vpop.f32.mrb[0].mxu0
  %v3379 = vadd.f32 0.0, %v3378
  %v3380 = vpop.f32.mrb[0].mxu0
  %3381 = vmatprep.mubr.f32.mxu0 0.0
  %3382 = vmatmul.mubr.f32.gmra.mrb[0].mxu0 %v3133
  %v3383 = vpop.f32.mrb[0].mxu0
  %v3384 = vadd.f32 0.0, %v3383
  %v3385 = vpop.f32.mrb[0].mxu0
  %3386 = vmatprep.mubr.f32.mxu0 0.0
  %3387 = vmatmul.mubr.f32.gmra.mrb[0].mxu0 %v3136
  %v3388 = vpop.f32.mrb[0].mxu0
  %v3389 = vadd.f32 0.0, %v3388
  %v3390 = vpop.f32.mrb[0].mxu0
  %3391 = vmatprep.mubr.f32.mxu0 0.0
  %3392 = vmatmul.mubr.f32.gmra.mrb[0].mxu0 %v3139
  %v3393 = vpop.f32.mrb[0].mxu0
  %v3394 = vadd.f32 0.0, %v3393
  %v3395 = vpop.f32.mrb[0].mxu0
  %3396 = vmatprep.mubr.f32.mxu0 0.0
  %3397 = vmatmul.mubr.f32.gmra.mrb[0].mxu0 %v3142
  %v3398 = vpop.f32.mrb[0].mxu0
  %v3399 = vadd.f32 0.0, %v3398
  %v3400 = vpop.f32.mrb[0].mxu0
  %3401 = vmatprep.mubr.f32.mxu0 0.0
  %3402 = vmatmul.mubr.f32.gmra.mrb[0].mxu0 %v3145
  %v3403 = vpop.f32.mrb[0].mxu0
  %v3404 = vadd.f32 0.0, %v3403
  %v3405 = vpop.f32.mrb[0].mxu0
  %3406 = vmatprep.mubr.f32.mxu0 0.0
  %3407 = vmatmul.mubr.f32.gmra.mrb[0].mxu0 %v3148
  %v3408 = vpop.f32.mrb[0].mxu0
  %v3409 = vadd.f32 0.0, %v3408
  %v3410 = vpop.f32.mrb[0].mxu0
  %3411 = vmatprep.mubr.f32.mxu0 0.0
  %3412 = vmatmul.mubr.f32.gmra.mrb[0].mxu0 %v3151
  %v3413 = vpop.f32.mrb[0].mxu0
  %v3414 = vadd.f32 0.0, %v3413
  %v3415 = vpop.f32.mrb[0].mxu0
  %3416 = vmatprep.mubr.f32.mxu0 0.0
  %3417 = vmatmul.mubr.f32.gmra.mrb[0].mxu0 %v3154
  %v3418 = vpop.f32.mrb[0].mxu0
  %v3419 = vadd.f32 0.0, %v3418
  %v3420 = vpop.f32.mrb[0].mxu0
  %3421 = vmatprep.mubr.f32.mxu0 0.0
  %3422 = vmatmul.mubr.f32.gmra.mrb[0].mxu0 %v3157
  %v3423 = vpop.f32.mrb[0].mxu0
  %v3424 = vadd.f32 0.0, %v3423
  %v3425 = vpop.f32.mrb[0].mxu0
  %3426 = vmatprep.mubr.f32.mxu0 0.0
  %3427 = vmatmul.mubr.f32.gmra.mrb[0].mxu0 %v3160
  %v3428 = vpop.f32.mrb[0].mxu0
  %v3429 = vadd.f32 0.0, %v3428
  %v3430 = vpop.f32.mrb[0].mxu0
  %3431 = vmatprep.mubr.f32.mxu0 0.0
  %3432 = vmatmul.mubr.f32.gmra.mrb[0].mxu0 %v3163
  %v3433 = vpop.f32.mrb[0].mxu0
  %v3434 = vadd.f32 0.0, %v3433
  %v3435 = vpop.f32.mrb[0].mxu0
  %3436 = vmatprep.mubr.f32.mxu0 0.0
  %3437 = vmatmul.mubr.f32.gmra.mrb[0].mxu0 %v3166
  %v3438 = vpop.f32.mrb[0].mxu0
  %v3439 = vadd.f32 0.0, %v3438
  %v3440 = vpop.f32.mrb[0].mxu0
  %3441 = vmatprep.mubr.f32.mxu0 0.0
  %3442 = vmatmul.mubr.f32.gmra.mrb[0].mxu0 %v3169
  %v3443 = vpop.f32.mrb[0].mxu0
  %v3444 = vadd.f32 0.0, %v3443
  %v3445 = vpop.f32.mrb[0].mxu0
  %3446 = vmatprep.mubr.f32.mxu0 0.0
  %3447 = vmatmul.mubr.f32.gmra.mrb[0].mxu0 %v3172
  %v3448 = vpop.f32.mrb[0].mxu0
  %v3449 = vadd.f32 0.0, %v3448
  %v3450 = vpop.f32.mrb[0].mxu0
  %3451 = vmatprep.mubr.f32.mxu0 0.0
  %3452 = vmatmul.mubr.f32.gmra.mrb[0].mxu0 %v3175
  %v3453 = vpop.f32.mrb[0].mxu0
  %v3454 = vadd.f32 0.0, %v3453
  %v3455 = vpop.f32.mrb[0].mxu0
  %3456 = vmatprep.mubr.f32.mxu0 0.0
  %3457 = vmatmul.mubr.f32.gmra.mrb[0].mxu0 %v3178
  %v3458 = vpop.f32.mrb[0].mxu0
  %v3459 = vadd.f32 0.0, %v3458
  %v3460 = vpop.f32.mrb[0].mxu0
  %3461 = vmatprep.mubr.f32.mxu0 0.0
  %3462 = vmatmul.mubr.f32.gmra.mrb[0].mxu0 %v3181
  %v3463 = vpop.f32.mrb[0].mxu0
  %v3464 = vadd.f32 0.0, %v3463
  %v3465 = vpop.f32.mrb[0].mxu0
  %3466 = vmatprep.mubr.f32.mxu0 0.0
  %3467 = vmatmul.mubr.f32.gmra.mrb[0].mxu0 %v3184
  %v3468 = vpop.f32.mrb[0].mxu0
  %v3469 = vadd.f32 0.0, %v3468
  %v3470 = vpop.f32.mrb[0].mxu0
  %3471 = vmatprep.mubr.f32.mxu0 0.0
  %3472 = vmatmul.mubr.f32.gmra.mrb[0].mxu0 %v3187
  %v3473 = vpop.f32.mrb[0].mxu0
  %v3474 = vadd.f32 0.0, %v3473
  %v3475 = vpop.f32.mrb[0].mxu0
  %3476 = vmatprep.mubr.f32.mxu0 0.0
  %3477 = vmatmul.mubr.f32.gmra.mrb[0].mxu0 %v3190
  %v3478 = vpop.f32.mrb[0].mxu0
  %v3479 = vadd.f32 0.0, %v3478
  %v3480 = vpop.f32.mrb[0].mxu0
  %3481 = vmatprep.mubr.f32.mxu0 0.0
  %3482 = vmatmul.mubr.f32.gmra.mrb[0].mxu0 %v3193
  %v3483 = vpop.f32.mrb[0].mxu0
  %v3484 = vadd.f32 0.0, %v3483
  %v3485 = vpop.f32.mrb[0].mxu0
  %3486 = vmatprep.mubr.f32.mxu0 0.0
  %3487 = vmatmul.mubr.f32.gmra.mrb[0].mxu0 %v3196
  %v3488 = vpop.f32.mrb[0].mxu0
  %v3489 = vadd.f32 0.0, %v3488
  %v3490 = vpop.f32.mrb[0].mxu0
  %3491 = vmatprep.mubr.f32.mxu0 0.0
  %3492 = vmatmul.mubr.f32.gmra.mrb[0].mxu0 %v3199
  %v3493 = vpop.f32.mrb[0].mxu0
  %v3494 = vadd.f32 0.0, %v3493
  %v3495 = vpop.f32.mrb[0].mxu0
  %3496 = vmatprep.mubr.f32.mxu0 0.0
  %3497 = vmatmul.mubr.f32.gmra.mrb[0].mxu0 %v3202
  %v3498 = vpop.f32.mrb[0].mxu0
  %v3499 = vadd.f32 0.0, %v3498
  %v3500 = vpop.f32.mrb[0].mxu0
  %3501 = vmatprep.mubr.f32.mxu0 0.0
  %3502 = vmatmul.mubr.f32.gmra.mrb[0].mxu0 %v3205
  %v3503 = vpop.f32.mrb[0].mxu0
  %v3504 = vadd.f32 0.0, %v3503
  %v3505 = vpop.f32.mrb[0].mxu0
  %3506 = vmatprep.mubr.f32.mxu0 0.0
  %3507 = vmatmul.mubr.f32.gmra.mrb[0].mxu0 %v3208
  %v3508 = vpop.f32.mrb[0].mxu0
  %v3509 = vadd.f32 0.0, %v3508
  %v3510 = vpop.f32.mrb[0].mxu0
  %3511 = vmatprep.mubr.f32.mxu0 0.0
  %3512 = vmatmul.mubr.f32.gmra.mrb[0].mxu0 %v3211
  %v3513 = vpop.f32.mrb[0].mxu0
  %v3514 = vadd.f32 0.0, %v3513
  %v3515 = vpop.f32.mrb[0].mxu0
  %3516 = vmatprep.mubr.f32.mxu0 0.0
  %3517 = vmatmul.mubr.f32.gmra.mrb[0].mxu0 %v3214
  %v3518 = vpop.f32.mrb[0].mxu0
  %v3519 = vadd.f32 0.0, %v3518
  %v3520 = vpop.f32.mrb[0].mxu0
  %3521 = vmatprep.mubr.f32.mxu0 0.0
  %3522 = vmatmul.mubr.f32.gmra.mrb[0].mxu0 %v3217
  %v3523 = vpop.f32.mrb[0].mxu0
  %v3524 = vadd.f32 0.0, %v3523
  %v3525 = vpop.f32.mrb[0].mxu0
  %3526 = vmatprep.mubr.f32.mxu0 0.0
  %3527 = vmatmul.mubr.f32.gmra.mrb[0].mxu0 %v3220
  %v3528 = vpop.f32.mrb[0].mxu0
  %v3529 = vadd.f32 0.0, %v3528
  %v3530 = vpop.f32.mrb[0].mxu0
  %3531 = vmatprep.mubr.f32.mxu0 0.0
  %3532 = vmatmul.mubr.f32.gmra.mrb[0].mxu0 %v3223
  %v3533 = vpop.f32.mrb[0].mxu0
  %v3534 = vadd.f32 0.0, %v3533
  %v3535 = vpop.f32.mrb[0].mxu0
  %3536 = vmatprep.mubr.f32.mxu0 0.0
  %3537 = vmatmul.mubr.f32.gmra.mrb[0].mxu0 %v3226
  %v3538 = vpop.f32.mrb[0].mxu0
  %v3539 = vadd.f32 0.0, %v3538
  %v3540 = vpop.f32.mrb[0].mxu0
  %3541 = vmatprep.mubr.f32.mxu0 0.0
  %3542 = vmatmul.mubr.f32.gmra.mrb[0].mxu0 %v3229
  %v3543 = vpop.f32.mrb[0].mxu0
  %v3544 = vadd.f32 0.0, %v3543
  %v3545 = vpop.f32.mrb[0].mxu0
  %3546 = vmatprep.mubr.f32.mxu0 0.0
  %3547 = vmatmul.mubr.f32.gmra.mrb[0].mxu0 %v3232
  %v3548 = vpop.f32.mrb[0].mxu0
  %v3549 = vadd.f32 0.0, %v3548
  %v3550 = vpop.f32.mrb[0].mxu0
  %3551 = vmatprep.mubr.f32.mxu0 0.0
  %3552 = vmatmul.mubr.f32.gmra.mrb[0].mxu0 %v3235
  %v3553 = vpop.f32.mrb[0].mxu0
  %v3554 = vadd.f32 0.0, %v3553
  %v3555 = vpop.f32.mrb[0].mxu0
  %3556 = vmatprep.mubr.f32.mxu0 0.0
  %3557 = vmatmul.mubr.f32.gmra.mrb[0].mxu0 %v3238
  %v3558 = vpop.f32.mrb[0].mxu0
  %v3559 = vadd.f32 0.0, %v3558
  %v3560 = vpop.f32.mrb[0].mxu0
  %3561 = vmatprep.mubr.f32.mxu0 0.0
  %3562 = vmatmul.mubr.f32.gmra.mrb[0].mxu0 %v3241
  %v3563 = vpop.f32.mrb[0].mxu0
  %v3564 = vadd.f32 0.0, %v3563
  %v3565 = vpop.f32.mrb[0].mxu0
  %3566 = vmatprep.mubr.f32.mxu0 0.0
  %3567 = vmatmul.mubr.f32.gmra.mrb[0].mxu0 %v3244
  %v3568 = vpop.f32.mrb[0].mxu0
  %v3569 = vadd.f32 0.0, %v3568
  %v3570 = vpop.f32.mrb[0].mxu0
  %3571 = vmatprep.mubr.f32.mxu0 0.0
  %3572 = vmatmul.mubr.f32.gmra.mrb[0].mxu0 %v3247
  %v3573 = vpop.f32.mrb[0].mxu0
  %v3574 = vadd.f32 0.0, %v3573
  %v3575 = vpop.f32.mrb[0].mxu0
  %3576 = vmatprep.mubr.f32.mxu0 0.0
  %3577 = vmatmul.mubr.f32.gmra.mrb[0].mxu0 %v3250
  %v3578 = vpop.f32.mrb[0].mxu0
  %v3579 = vadd.f32 0.0, %v3578
  %v3580 = vpop.f32.mrb[0].mxu0
  %3581 = vmatprep.mubr.f32.mxu0 0.0
  %3582 = vmatmul.mubr.f32.gmra.mrb[0].mxu0 %v3253
  %v3583 = vpop.f32.mrb[0].mxu0
  %v3584 = vadd.f32 0.0, %v3583
  %v3585 = vpop.f32.mrb[0].mxu0
  %3586 = vmatprep.mubr.f32.mxu0 0.0
  %3587 = vmatmul.mubr.f32.gmra.mrb[0].mxu0 %v3256
  %v3588 = vpop.f32.mrb[0].mxu0
  %v3589 = vadd.f32 0.0, %v3588
  %v3590 = vpop.f32.mrb[0].mxu0
  %3591 = vmatprep.mubr.f32.mxu0 0.0
  %3592 = vmatmul.mubr.f32.gmra.mrb[0].mxu0 %v3259
  %v3593 = vpop.f32.mrb[0].mxu0
  %v3594 = vadd.f32 0.0, %v3593
  %v3595 = vpop.f32.mrb[0].mxu0
  %3596 = vmatprep.mubr.f32.mxu0 0.0
  %3597 = vmatmul.mubr.f32.gmra.mrb[0].mxu0 %v3262
  %v3598 = vpop.f32.mrb[0].mxu0
  %v3599 = vadd.f32 0.0, %v3598
  %v3600 = vpop.f32.mrb[0].mxu0
  %3601 = vmatprep.mubr.f32.mxu0 0.0
  %3602 = vmatmul.mubr.f32.gmra.mrb[0].mxu0 %v3265
  %v3603 = vpop.f32.mrb[0].mxu0
  %v3604 = vadd.f32 0.0, %v3603
  %v3605 = vpop.f32.mrb[0].mxu0
  %3606 = vmatprep.mubr.f32.mxu0 0.0
  %3607 = vmatmul.mubr.f32.gmra.mrb[0].mxu0 %v3268
  %v3608 = vpop.f32.mrb[0].mxu0
  %v3609 = vadd.f32 0.0, %v3608
  %v3610 = vpop.f32.mrb[0].mxu0
  %3611 = vmatprep.mubr.f32.mxu0 0.0
  %3612 = vmatmul.mubr.f32.gmra.mrb[0].mxu0 %v3271
  %v3613 = vpop.f32.mrb[0].mxu0
  %v3614 = vadd.f32 0.0, %v3613
  %v3615 = vpop.f32.mrb[0].mxu0
  %3616 = vmatprep.mubr.f32.mxu0 0.0
  %3617 = vmatmul.mubr.f32.gmra.mrb[0].mxu0 %v3274
  %v3618 = vpop.f32.mrb[0].mxu0
  %v3619 = vadd.f32 0.0, %v3618
  %v3620 = vpop.f32.mrb[0].mxu0
  %3621 = vmatprep.mubr.f32.mxu0 0.0
  %3622 = vmatmul.mubr.f32.gmra.mrb[0].mxu0 %v3277
  %v3623 = vpop.f32.mrb[0].mxu0
  %v3624 = vadd.f32 0.0, %v3623
  %v3625 = vpop.f32.mrb[0].mxu0
  %3626 = vdwg.mxu0
  %v3627 = vadd.f32 %v2997, %v3349
  %v3628 = vadd.f32 %v2998, %v3354
  %v3629 = vadd.f32 %v2999, %v3359
  %v3630 = vadd.f32 %v3000, %v3364
  %v3631 = vadd.f32 %v3001, %v3369
  %v3632 = vadd.f32 %v3002, %v3374
  %v3633 = vadd.f32 %v3003, %v3379
  %v3634 = vadd.f32 %v3004, %v3384
  %v3635 = vadd.f32 %v3005, %v3389
  %v3636 = vadd.f32 %v3006, %v3394
  %v3637 = vadd.f32 %v3007, %v3399
  %v3638 = vadd.f32 %v3008, %v3404
  %v3639 = vadd.f32 %v3009, %v3409
  %v3640 = vadd.f32 %v3010, %v3414
  %v3641 = vadd.f32 %v3011, %v3419
  %v3642 = vadd.f32 %v3012, %v3424
  %v3643 = vadd.f32 %v3013, %v3429
  %v3644 = vadd.f32 %v3014, %v3434
  %v3645 = vadd.f32 %v3015, %v3439
  %v3646 = vadd.f32 %v3016, %v3444
  %v3647 = vadd.f32 %v3017, %v3449
  %v3648 = vadd.f32 %v3018, %v3454
  %v3649 = vadd.f32 %v3019, %v3459
  %v3650 = vadd.f32 %v3020, %v3464
  %v3651 = vadd.f32 %v3021, %v3469
  %v3652 = vadd.f32 %v3022, %v3474
  %v3653 = vadd.f32 %v3023, %v3479
  %v3654 = vadd.f32 %v3024, %v3484
  %v3655 = vadd.f32 %v3025, %v3489
  %v3656 = vadd.f32 %v3026, %v3494
  %v3657 = vadd.f32 %v3027, %v3499
  %v3658 = vadd.f32 %v3028, %v3504
  %v3659 = vadd.f32 %v3029, %v3509
  %v3660 = vadd.f32 %v3030, %v3514
  %v3661 = vadd.f32 %v3031, %v3519
  %v3662 = vadd.f32 %v3032, %v3524
  %v3663 = vadd.f32 %v3033, %v3529
  %v3664 = vadd.f32 %v3034, %v3534
  %v3665 = vadd.f32 %v3035, %v3539
  %v3666 = vadd.f32 %v3036, %v3544
  %v3667 = vadd.f32 %v3037, %v3549
  %v3668 = vadd.f32 %v3038, %v3554
  %v3669 = vadd.f32 %v3039, %v3559
  %v3670 = vadd.f32 %v3040, %v3564
  %v3671 = vadd.f32 %v3041, %v3569
  %v3672 = vadd.f32 %v3042, %v3574
  %v3673 = vadd.f32 %v3043, %v3579
  %v3674 = vadd.f32 %v3044, %v3584
  %v3675 = vadd.f32 %v3045, %v3589
  %v3676 = vadd.f32 %v3046, %v3594
  %v3677 = vadd.f32 %v3047, %v3599
  %v3678 = vadd.f32 %v3048, %v3604
  %v3679 = vadd.f32 %v3049, %v3609
  %v3680 = vadd.f32 %v3050, %v3614
  %v3681 = vadd.f32 %v3051, %v3619
  %v3682 = vadd.f32 %v3052, %v3624
  %v3683 = vld [vmem:[%s0 + $0x20] sm:$0xff]
  %v3684 = vld [vmem:[%s0 + $0x28] sm:$0xff]
  %v3685 = vld [vmem:[%s0 + $0x30] sm:$0xff]
  %v3686 = vld [vmem:[%s0 + $0x38] sm:$0xff]
  %v3687 = vld [vmem:[%s0 + $0x40] sm:$0xff]
  %v3688 = vld [vmem:[%s0 + $0x48] sm:$0xff]
  %v3689 = vld [vmem:[%s0 + $0x50] sm:$0xff]
  %v3690 = vld [vmem:[%s0 + $0x58] sm:$0xff]
  %v3691 = vld [vmem:[%s0 + $0x60] sm:$0xff]
  %v3692 = vld [vmem:[%s0 + $0x68] sm:$0xff]
  %v3693 = vld [vmem:[%s0 + $0x70] sm:$0xff]
  %v3694 = vld [vmem:[%s0 + $0x78] sm:$0xff]
  %v3695 = vld [vmem:[%s0 + $0x80] sm:$0xff]
  %v3696 = vld [vmem:[%s0 + $0x88] sm:$0xff]
  %v3697 = vld [vmem:[%s0 + $0x90] sm:$0xff]
  %v3698 = vld [vmem:[%s0 + $0x98] sm:$0xff]
  %v3699 = vld [vmem:[%s0 + $0xa0] sm:$0xff]
  %v3700 = vld [vmem:[%s0 + $0xa8] sm:$0xff]
  %v3701 = vld [vmem:[%s0 + $0xb0] sm:$0xff]
  %v3702 = vld [vmem:[%s0 + $0xb8] sm:$0xff]
  %v3703 = vld [vmem:[%s0 + $0xc0] sm:$0xff]
  %v3704 = vld [vmem:[%s0 + $0xc8] sm:$0xff]
  %v3705 = vld [vmem:[%s0 + $0xd0] sm:$0xff]
  %v3706 = vld [vmem:[%s0 + $0xd8] sm:$0xff]
  %v3707 = vld [vmem:[%s0 + $0xe0] sm:$0xff]
  %v3708 = vld [vmem:[%s0 + $0xe8] sm:$0xff]
  %v3709 = vld [vmem:[%s0 + $0xf0] sm:$0xff]
  %v3710 = vld [vmem:[%s0 + $0xf8] sm:$0xff]
  %v3711 = vld [vmem:[%s0 + $0x130] sm:$0xff]
  %v3712 = vld [vmem:[%s0 + $0x138] sm:$0xff]
  %v3713 = vld [vmem:[%s0 + $0x140] sm:$0xff]
  %v3714 = vld [vmem:[%s0 + $0x148] sm:$0xff]
  %v3715 = vld [vmem:[%s0 + $0x150] sm:$0xff]
  %v3716 = vld [vmem:[%s0 + $0x158] sm:$0xff]
  %v3717 = vld [vmem:[%s0 + $0x160] sm:$0xff]
  %v3718 = vld [vmem:[%s0 + $0x168] sm:$0xff]
  %v3719 = vld [vmem:[%s0 + $0x170] sm:$0xff]
  %v3720 = vld [vmem:[%s0 + $0x178] sm:$0xff]
  %v3721 = vld [vmem:[%s0 + $0x180] sm:$0xff]
  %v3722 = vld [vmem:[%s0 + $0x188] sm:$0xff]
  %v3723 = vld [vmem:[%s0 + $0x190] sm:$0xff]
  %v3724 = vld [vmem:[%s0 + $0x198] sm:$0xff]
  %v3725 = vld [vmem:[%s0 + $0x1a0] sm:$0xff]
  %v3726 = vld [vmem:[%s0 + $0x1a8] sm:$0xff]
  %v3727 = vld [vmem:[%s0 + $0x1b0] sm:$0xff]
  %v3728 = vld [vmem:[%s0 + $0x1b8] sm:$0xff]
  %v3729 = vld [vmem:[%s0 + $0x1c0] sm:$0xff]
  %v3730 = vld [vmem:[%s0 + $0x1c8] sm:$0xff]
  %v3731 = vld [vmem:[%s0 + $0x1d0] sm:$0xff]
  %v3732 = vld [vmem:[%s0 + $0x1d8] sm:$0xff]
  %v3733 = vld [vmem:[%s0 + $0x1e0] sm:$0xff]
  %v3734 = vld [vmem:[%s0 + $0x1e8] sm:$0xff]
  %v3735 = vld [vmem:[%s0 + $0x1f0] sm:$0xff]
  %v3736 = vld [vmem:[%s0 + $0x1f8] sm:$0xff]
  %v3737 = vld [vmem:[%s0 + $0x200] sm:$0xff]
  %v3738 = vld [vmem:[%s0 + $0x208] sm:$0xff]
  %s3739 = scalar_lea.vmem %s1, 24
  %v3740 = vld [vmem:[%s3739] sm:$0xf]
  %v3742 = vsel %vm129, %v3683, 0
  %v3745 = vsel %vm129, %v3684, 0
  %v3748 = vsel %vm129, %v3685, 0
  %v3751 = vsel %vm129, %v3686, 0
  %v3754 = vsel %vm129, %v3687, 0
  %v3757 = vsel %vm129, %v3688, 0
  %v3760 = vsel %vm129, %v3689, 0
  %v3763 = vsel %vm129, %v3690, 0
  %v3766 = vsel %vm129, %v3691, 0
  %v3769 = vsel %vm129, %v3692, 0
  %v3772 = vsel %vm129, %v3693, 0
  %v3775 = vsel %vm129, %v3694, 0
  %v3778 = vsel %vm129, %v3695, 0
  %v3781 = vsel %vm129, %v3696, 0
  %v3784 = vsel %vm129, %v3697, 0
  %v3787 = vsel %vm129, %v3698, 0
  %v3790 = vsel %vm129, %v3699, 0
  %v3793 = vsel %vm129, %v3700, 0
  %v3796 = vsel %vm129, %v3701, 0
  %v3799 = vsel %vm129, %v3702, 0
  %v3802 = vsel %vm129, %v3703, 0
  %v3805 = vsel %vm129, %v3704, 0
  %v3808 = vsel %vm129, %v3705, 0
  %v3811 = vsel %vm129, %v3706, 0
  %v3814 = vsel %vm129, %v3707, 0
  %v3817 = vsel %vm129, %v3708, 0
  %v3820 = vsel %vm129, %v3709, 0
  %v3823 = vsel %vm129, %v3710, 0
  %v3826 = vsel %vm129, %v3711, 0
  %v3829 = vsel %vm129, %v3712, 0
  %v3832 = vsel %vm129, %v3713, 0
  %v3835 = vsel %vm129, %v3714, 0
  %v3838 = vsel %vm129, %v3715, 0
  %v3841 = vsel %vm129, %v3716, 0
  %v3844 = vsel %vm129, %v3717, 0
  %v3847 = vsel %vm129, %v3718, 0
  %v3850 = vsel %vm129, %v3719, 0
  %v3853 = vsel %vm129, %v3720, 0
  %v3856 = vsel %vm129, %v3721, 0
  %v3859 = vsel %vm129, %v3722, 0
  %v3862 = vsel %vm129, %v3723, 0
  %v3865 = vsel %vm129, %v3724, 0
  %v3868 = vsel %vm129, %v3725, 0
  %v3871 = vsel %vm129, %v3726, 0
  %v3874 = vsel %vm129, %v3727, 0
  %v3877 = vsel %vm129, %v3728, 0
  %v3880 = vsel %vm129, %v3729, 0
  %v3883 = vsel %vm129, %v3730, 0
  %v3886 = vsel %vm129, %v3731, 0
  %v3889 = vsel %vm129, %v3732, 0
  %v3892 = vsel %vm129, %v3733, 0
  %v3895 = vsel %vm129, %v3734, 0
  %v3898 = vsel %vm129, %v3735, 0
  %v3901 = vsel %vm129, %v3736, 0
  %v3904 = vsel %vm129, %v3737, 0
  %v3907 = vsel %vm129, %v3738, 0
  %v3910 = vsel %vm298, %v3740, 0
  %3912 = vmatprep.subr.mxu0 0.0
  %3913 = vmatpush1.msra.mxu0 %v3910
  %3914 = vmatprep.subr.mxu0 0.0
  %3915 = vmatpush1.msra.mxu0 0.0
  %3916 = vmatprep.subr.mxu0 0.0
  %3917 = vmatpush1.msra.mxu0 0.0
  %3918 = vmatprep.subr.mxu0 0.0
  %3919 = vmatpush1.msra.mxu0 0.0
  %3920 = vmatprep.subr.mxu0 0.0
  %3921 = vmatpush1.msra.mxu0 0.0
  %3922 = vmatprep.subr.mxu0 0.0
  %3923 = vmatpush1.msra.mxu0 0.0
  %3924 = vmatprep.subr.mxu0 0.0
  %3925 = vmatpush1.msra.mxu0 0.0
  %3926 = vmatprep.subr.mxu0 0.0
  %3927 = vmatpush1.msra.mxu0 0.0
  %3928 = vmatprep.subr.mxu0 0.0
  %3929 = vmatpush1.msra.mxu0 0.0
  %3930 = vmatprep.subr.mxu0 0.0
  %3931 = vmatpush1.msra.mxu0 0.0
  %3932 = vmatprep.subr.mxu0 0.0
  %3933 = vmatpush1.msra.mxu0 0.0
  %3934 = vmatprep.subr.mxu0 0.0
  %3935 = vmatpush1.msra.mxu0 0.0
  %3936 = vmatprep.subr.mxu0 0.0
  %3937 = vmatpush1.msra.mxu0 0.0
  %3938 = vmatprep.subr.mxu0 0.0
  %3939 = vmatpush1.msra.mxu0 0.0
  %3940 = vmatprep.subr.mxu0 0.0
  %3941 = vmatpush1.msra.mxu0 0.0
  %3942 = vmatprep.subr.mxu0 0.0
  %3943 = vmatpush1.msra.mxu0 0.0
  %3944 = vmatprep.subr.mxu0 0.0
  %3945 = vmatpush1.msra.mxu0 0.0
  %3946 = vmatprep.subr.mxu0 0.0
  %3947 = vmatpush1.msra.mxu0 0.0
  %3948 = vmatprep.subr.mxu0 0.0
  %3949 = vmatpush1.msra.mxu0 0.0
  %3950 = vmatprep.subr.mxu0 0.0
  %3951 = vmatpush1.msra.mxu0 0.0
  %3952 = vmatprep.subr.mxu0 0.0
  %3953 = vmatpush1.msra.mxu0 0.0
  %3954 = vmatprep.subr.mxu0 0.0
  %3955 = vmatpush1.msra.mxu0 0.0
  %3956 = vmatprep.subr.mxu0 0.0
  %3957 = vmatpush1.msra.mxu0 0.0
  %3958 = vmatprep.subr.mxu0 0.0
  %3959 = vmatpush1.msra.mxu0 0.0
  %3960 = vmatprep.subr.mxu0 0.0
  %3961 = vmatpush1.msra.mxu0 0.0
  %3962 = vmatprep.subr.mxu0 0.0
  %3963 = vmatpush1.msra.mxu0 0.0
  %3964 = vmatprep.subr.mxu0 0.0
  %3965 = vmatpush1.msra.mxu0 0.0
  %3966 = vmatprep.subr.mxu0 0.0
  %3967 = vmatpush1.msra.mxu0 0.0
  %3968 = vmatprep.subr.mxu0 0.0
  %3969 = vmatpush1.msra.mxu0 0.0
  %3970 = vmatprep.subr.mxu0 0.0
  %3971 = vmatpush1.msra.mxu0 0.0
  %3972 = vmatprep.subr.mxu0 0.0
  %3973 = vmatpush1.msra.mxu0 0.0
  %3974 = vmatprep.subr.mxu0 0.0
  %3975 = vmatpush1.msra.mxu0 0.0
  %3976 = vmatprep.mubr.f32.mxu0 0.0
  %3977 = vmatmul.mubr.f32.gmra.mrb[0].mxu0 %v3742
  %v3978 = vpop.f32.mrb[0].mxu0
  %v3979 = vadd.f32 0.0, %v3978
  %v3980 = vpop.f32.mrb[0].mxu0
  %3981 = vmatprep.mubr.f32.mxu0 0.0
  %3982 = vmatmul.mubr.f32.gmra.mrb[0].mxu0 %v3745
  %v3983 = vpop.f32.mrb[0].mxu0
  %v3984 = vadd.f32 0.0, %v3983
  %v3985 = vpop.f32.mrb[0].mxu0
  %3986 = vmatprep.mubr.f32.mxu0 0.0
  %3987 = vmatmul.mubr.f32.gmra.mrb[0].mxu0 %v3748
  %v3988 = vpop.f32.mrb[0].mxu0
  %v3989 = vadd.f32 0.0, %v3988
  %v3990 = vpop.f32.mrb[0].mxu0
  %3991 = vmatprep.mubr.f32.mxu0 0.0
  %3992 = vmatmul.mubr.f32.gmra.mrb[0].mxu0 %v3751
  %v3993 = vpop.f32.mrb[0].mxu0
  %v3994 = vadd.f32 0.0, %v3993
  %v3995 = vpop.f32.mrb[0].mxu0
  %3996 = vmatprep.mubr.f32.mxu0 0.0
  %3997 = vmatmul.mubr.f32.gmra.mrb[0].mxu0 %v3754
  %v3998 = vpop.f32.mrb[0].mxu0
  %v3999 = vadd.f32 0.0, %v3998
  %v4000 = vpop.f32.mrb[0].mxu0
  %4001 = vmatprep.mubr.f32.mxu0 0.0
  %4002 = vmatmul.mubr.f32.gmra.mrb[0].mxu0 %v3757
  %v4003 = vpop.f32.mrb[0].mxu0
  %v4004 = vadd.f32 0.0, %v4003
  %v4005 = vpop.f32.mrb[0].mxu0
  %4006 = vmatprep.mubr.f32.mxu0 0.0
  %4007 = vmatmul.mubr.f32.gmra.mrb[0].mxu0 %v3760
  %v4008 = vpop.f32.mrb[0].mxu0
  %v4009 = vadd.f32 0.0, %v4008
  %v4010 = vpop.f32.mrb[0].mxu0
  %4011 = vmatprep.mubr.f32.mxu0 0.0
  %4012 = vmatmul.mubr.f32.gmra.mrb[0].mxu0 %v3763
  %v4013 = vpop.f32.mrb[0].mxu0
  %v4014 = vadd.f32 0.0, %v4013
  %v4015 = vpop.f32.mrb[0].mxu0
  %4016 = vmatprep.mubr.f32.mxu0 0.0
  %4017 = vmatmul.mubr.f32.gmra.mrb[0].mxu0 %v3766
  %v4018 = vpop.f32.mrb[0].mxu0
  %v4019 = vadd.f32 0.0, %v4018
  %v4020 = vpop.f32.mrb[0].mxu0
  %4021 = vmatprep.mubr.f32.mxu0 0.0
  %4022 = vmatmul.mubr.f32.gmra.mrb[0].mxu0 %v3769
  %v4023 = vpop.f32.mrb[0].mxu0
  %v4024 = vadd.f32 0.0, %v4023
  %v4025 = vpop.f32.mrb[0].mxu0
  %4026 = vmatprep.mubr.f32.mxu0 0.0
  %4027 = vmatmul.mubr.f32.gmra.mrb[0].mxu0 %v3772
  %v4028 = vpop.f32.mrb[0].mxu0
  %v4029 = vadd.f32 0.0, %v4028
  %v4030 = vpop.f32.mrb[0].mxu0
  %4031 = vmatprep.mubr.f32.mxu0 0.0
  %4032 = vmatmul.mubr.f32.gmra.mrb[0].mxu0 %v3775
  %v4033 = vpop.f32.mrb[0].mxu0
  %v4034 = vadd.f32 0.0, %v4033
  %v4035 = vpop.f32.mrb[0].mxu0
  %4036 = vmatprep.mubr.f32.mxu0 0.0
  %4037 = vmatmul.mubr.f32.gmra.mrb[0].mxu0 %v3778
  %v4038 = vpop.f32.mrb[0].mxu0
  %v4039 = vadd.f32 0.0, %v4038
  %v4040 = vpop.f32.mrb[0].mxu0
  %4041 = vmatprep.mubr.f32.mxu0 0.0
  %4042 = vmatmul.mubr.f32.gmra.mrb[0].mxu0 %v3781
  %v4043 = vpop.f32.mrb[0].mxu0
  %v4044 = vadd.f32 0.0, %v4043
  %v4045 = vpop.f32.mrb[0].mxu0
  %4046 = vmatprep.mubr.f32.mxu0 0.0
  %4047 = vmatmul.mubr.f32.gmra.mrb[0].mxu0 %v3784
  %v4048 = vpop.f32.mrb[0].mxu0
  %v4049 = vadd.f32 0.0, %v4048
  %v4050 = vpop.f32.mrb[0].mxu0
  %4051 = vmatprep.mubr.f32.mxu0 0.0
  %4052 = vmatmul.mubr.f32.gmra.mrb[0].mxu0 %v3787
  %v4053 = vpop.f32.mrb[0].mxu0
  %v4054 = vadd.f32 0.0, %v4053
  %v4055 = vpop.f32.mrb[0].mxu0
  %4056 = vmatprep.mubr.f32.mxu0 0.0
  %4057 = vmatmul.mubr.f32.gmra.mrb[0].mxu0 %v3790
  %v4058 = vpop.f32.mrb[0].mxu0
  %v4059 = vadd.f32 0.0, %v4058
  %v4060 = vpop.f32.mrb[0].mxu0
  %4061 = vmatprep.mubr.f32.mxu0 0.0
  %4062 = vmatmul.mubr.f32.gmra.mrb[0].mxu0 %v3793
  %v4063 = vpop.f32.mrb[0].mxu0
  %v4064 = vadd.f32 0.0, %v4063
  %v4065 = vpop.f32.mrb[0].mxu0
  %4066 = vmatprep.mubr.f32.mxu0 0.0
  %4067 = vmatmul.mubr.f32.gmra.mrb[0].mxu0 %v3796
  %v4068 = vpop.f32.mrb[0].mxu0
  %v4069 = vadd.f32 0.0, %v4068
  %v4070 = vpop.f32.mrb[0].mxu0
  %4071 = vmatprep.mubr.f32.mxu0 0.0
  %4072 = vmatmul.mubr.f32.gmra.mrb[0].mxu0 %v3799
  %v4073 = vpop.f32.mrb[0].mxu0
  %v4074 = vadd.f32 0.0, %v4073
  %v4075 = vpop.f32.mrb[0].mxu0
  %4076 = vmatprep.mubr.f32.mxu0 0.0
  %4077 = vmatmul.mubr.f32.gmra.mrb[0].mxu0 %v3802
  %v4078 = vpop.f32.mrb[0].mxu0
  %v4079 = vadd.f32 0.0, %v4078
  %v4080 = vpop.f32.mrb[0].mxu0
  %4081 = vmatprep.mubr.f32.mxu0 0.0
  %4082 = vmatmul.mubr.f32.gmra.mrb[0].mxu0 %v3805
  %v4083 = vpop.f32.mrb[0].mxu0
  %v4084 = vadd.f32 0.0, %v4083
  %v4085 = vpop.f32.mrb[0].mxu0
  %4086 = vmatprep.mubr.f32.mxu0 0.0
  %4087 = vmatmul.mubr.f32.gmra.mrb[0].mxu0 %v3808
  %v4088 = vpop.f32.mrb[0].mxu0
  %v4089 = vadd.f32 0.0, %v4088
  %v4090 = vpop.f32.mrb[0].mxu0
  %4091 = vmatprep.mubr.f32.mxu0 0.0
  %4092 = vmatmul.mubr.f32.gmra.mrb[0].mxu0 %v3811
  %v4093 = vpop.f32.mrb[0].mxu0
  %v4094 = vadd.f32 0.0, %v4093
  %v4095 = vpop.f32.mrb[0].mxu0
  %4096 = vmatprep.mubr.f32.mxu0 0.0
  %4097 = vmatmul.mubr.f32.gmra.mrb[0].mxu0 %v3814
  %v4098 = vpop.f32.mrb[0].mxu0
  %v4099 = vadd.f32 0.0, %v4098
  %v4100 = vpop.f32.mrb[0].mxu0
  %4101 = vmatprep.mubr.f32.mxu0 0.0
  %4102 = vmatmul.mubr.f32.gmra.mrb[0].mxu0 %v3817
  %v4103 = vpop.f32.mrb[0].mxu0
  %v4104 = vadd.f32 0.0, %v4103
  %v4105 = vpop.f32.mrb[0].mxu0
  %4106 = vmatprep.mubr.f32.mxu0 0.0
  %4107 = vmatmul.mubr.f32.gmra.mrb[0].mxu0 %v3820
  %v4108 = vpop.f32.mrb[0].mxu0
  %v4109 = vadd.f32 0.0, %v4108
  %v4110 = vpop.f32.mrb[0].mxu0
  %4111 = vmatprep.mubr.f32.mxu0 0.0
  %4112 = vmatmul.mubr.f32.gmra.mrb[0].mxu0 %v3823
  %v4113 = vpop.f32.mrb[0].mxu0
  %v4114 = vadd.f32 0.0, %v4113
  %v4115 = vpop.f32.mrb[0].mxu0
  %4116 = vmatprep.mubr.f32.mxu0 0.0
  %4117 = vmatmul.mubr.f32.gmra.mrb[0].mxu0 %v3826
  %v4118 = vpop.f32.mrb[0].mxu0
  %v4119 = vadd.f32 0.0, %v4118
  %v4120 = vpop.f32.mrb[0].mxu0
  %4121 = vmatprep.mubr.f32.mxu0 0.0
  %4122 = vmatmul.mubr.f32.gmra.mrb[0].mxu0 %v3829
  %v4123 = vpop.f32.mrb[0].mxu0
  %v4124 = vadd.f32 0.0, %v4123
  %v4125 = vpop.f32.mrb[0].mxu0
  %4126 = vmatprep.mubr.f32.mxu0 0.0
  %4127 = vmatmul.mubr.f32.gmra.mrb[0].mxu0 %v3832
  %v4128 = vpop.f32.mrb[0].mxu0
  %v4129 = vadd.f32 0.0, %v4128
  %v4130 = vpop.f32.mrb[0].mxu0
  %4131 = vmatprep.mubr.f32.mxu0 0.0
  %4132 = vmatmul.mubr.f32.gmra.mrb[0].mxu0 %v3835
  %v4133 = vpop.f32.mrb[0].mxu0
  %v4134 = vadd.f32 0.0, %v4133
  %v4135 = vpop.f32.mrb[0].mxu0
  %4136 = vmatprep.mubr.f32.mxu0 0.0
  %4137 = vmatmul.mubr.f32.gmra.mrb[0].mxu0 %v3838
  %v4138 = vpop.f32.mrb[0].mxu0
  %v4139 = vadd.f32 0.0, %v4138
  %v4140 = vpop.f32.mrb[0].mxu0
  %4141 = vmatprep.mubr.f32.mxu0 0.0
  %4142 = vmatmul.mubr.f32.gmra.mrb[0].mxu0 %v3841
  %v4143 = vpop.f32.mrb[0].mxu0
  %v4144 = vadd.f32 0.0, %v4143
  %v4145 = vpop.f32.mrb[0].mxu0
  %4146 = vmatprep.mubr.f32.mxu0 0.0
  %4147 = vmatmul.mubr.f32.gmra.mrb[0].mxu0 %v3844
  %v4148 = vpop.f32.mrb[0].mxu0
  %v4149 = vadd.f32 0.0, %v4148
  %v4150 = vpop.f32.mrb[0].mxu0
  %4151 = vmatprep.mubr.f32.mxu0 0.0
  %4152 = vmatmul.mubr.f32.gmra.mrb[0].mxu0 %v3847
  %v4153 = vpop.f32.mrb[0].mxu0
  %v4154 = vadd.f32 0.0, %v4153
  %v4155 = vpop.f32.mrb[0].mxu0
  %4156 = vmatprep.mubr.f32.mxu0 0.0
  %4157 = vmatmul.mubr.f32.gmra.mrb[0].mxu0 %v3850
  %v4158 = vpop.f32.mrb[0].mxu0
  %v4159 = vadd.f32 0.0, %v4158
  %v4160 = vpop.f32.mrb[0].mxu0
  %4161 = vmatprep.mubr.f32.mxu0 0.0
  %4162 = vmatmul.mubr.f32.gmra.mrb[0].mxu0 %v3853
  %v4163 = vpop.f32.mrb[0].mxu0
  %v4164 = vadd.f32 0.0, %v4163
  %v4165 = vpop.f32.mrb[0].mxu0
  %4166 = vmatprep.mubr.f32.mxu0 0.0
  %4167 = vmatmul.mubr.f32.gmra.mrb[0].mxu0 %v3856
  %v4168 = vpop.f32.mrb[0].mxu0
  %v4169 = vadd.f32 0.0, %v4168
  %v4170 = vpop.f32.mrb[0].mxu0
  %4171 = vmatprep.mubr.f32.mxu0 0.0
  %4172 = vmatmul.mubr.f32.gmra.mrb[0].mxu0 %v3859
  %v4173 = vpop.f32.mrb[0].mxu0
  %v4174 = vadd.f32 0.0, %v4173
  %v4175 = vpop.f32.mrb[0].mxu0
  %4176 = vmatprep.mubr.f32.mxu0 0.0
  %4177 = vmatmul.mubr.f32.gmra.mrb[0].mxu0 %v3862
  %v4178 = vpop.f32.mrb[0].mxu0
  %v4179 = vadd.f32 0.0, %v4178
  %v4180 = vpop.f32.mrb[0].mxu0
  %4181 = vmatprep.mubr.f32.mxu0 0.0
  %4182 = vmatmul.mubr.f32.gmra.mrb[0].mxu0 %v3865
  %v4183 = vpop.f32.mrb[0].mxu0
  %v4184 = vadd.f32 0.0, %v4183
  %v4185 = vpop.f32.mrb[0].mxu0
  %4186 = vmatprep.mubr.f32.mxu0 0.0
  %4187 = vmatmul.mubr.f32.gmra.mrb[0].mxu0 %v3868
  %v4188 = vpop.f32.mrb[0].mxu0
  %v4189 = vadd.f32 0.0, %v4188
  %v4190 = vpop.f32.mrb[0].mxu0
  %4191 = vmatprep.mubr.f32.mxu0 0.0
  %4192 = vmatmul.mubr.f32.gmra.mrb[0].mxu0 %v3871
  %v4193 = vpop.f32.mrb[0].mxu0
  %v4194 = vadd.f32 0.0, %v4193
  %v4195 = vpop.f32.mrb[0].mxu0
  %4196 = vmatprep.mubr.f32.mxu0 0.0
  %4197 = vmatmul.mubr.f32.gmra.mrb[0].mxu0 %v3874
  %v4198 = vpop.f32.mrb[0].mxu0
  %v4199 = vadd.f32 0.0, %v4198
  %v4200 = vpop.f32.mrb[0].mxu0
  %4201 = vmatprep.mubr.f32.mxu0 0.0
  %4202 = vmatmul.mubr.f32.gmra.mrb[0].mxu0 %v3877
  %v4203 = vpop.f32.mrb[0].mxu0
  %v4204 = vadd.f32 0.0, %v4203
  %v4205 = vpop.f32.mrb[0].mxu0
  %4206 = vmatprep.mubr.f32.mxu0 0.0
  %4207 = vmatmul.mubr.f32.gmra.mrb[0].mxu0 %v3880
  %v4208 = vpop.f32.mrb[0].mxu0
  %v4209 = vadd.f32 0.0, %v4208
  %v4210 = vpop.f32.mrb[0].mxu0
  %4211 = vmatprep.mubr.f32.mxu0 0.0
  %4212 = vmatmul.mubr.f32.gmra.mrb[0].mxu0 %v3883
  %v4213 = vpop.f32.mrb[0].mxu0
  %v4214 = vadd.f32 0.0, %v4213
  %v4215 = vpop.f32.mrb[0].mxu0
  %4216 = vmatprep.mubr.f32.mxu0 0.0
  %4217 = vmatmul.mubr.f32.gmra.mrb[0].mxu0 %v3886
  %v4218 = vpop.f32.mrb[0].mxu0
  %v4219 = vadd.f32 0.0, %v4218
  %v4220 = vpop.f32.mrb[0].mxu0
  %4221 = vmatprep.mubr.f32.mxu0 0.0
  %4222 = vmatmul.mubr.f32.gmra.mrb[0].mxu0 %v3889
  %v4223 = vpop.f32.mrb[0].mxu0
  %v4224 = vadd.f32 0.0, %v4223
  %v4225 = vpop.f32.mrb[0].mxu0
  %4226 = vmatprep.mubr.f32.mxu0 0.0
  %4227 = vmatmul.mubr.f32.gmra.mrb[0].mxu0 %v3892
  %v4228 = vpop.f32.mrb[0].mxu0
  %v4229 = vadd.f32 0.0, %v4228
  %v4230 = vpop.f32.mrb[0].mxu0
  %4231 = vmatprep.mubr.f32.mxu0 0.0
  %4232 = vmatmul.mubr.f32.gmra.mrb[0].mxu0 %v3895
  %v4233 = vpop.f32.mrb[0].mxu0
  %v4234 = vadd.f32 0.0, %v4233
  %v4235 = vpop.f32.mrb[0].mxu0
  %4236 = vmatprep.mubr.f32.mxu0 0.0
  %4237 = vmatmul.mubr.f32.gmra.mrb[0].mxu0 %v3898
  %v4238 = vpop.f32.mrb[0].mxu0
  %v4239 = vadd.f32 0.0, %v4238
  %v4240 = vpop.f32.mrb[0].mxu0
  %4241 = vmatprep.mubr.f32.mxu0 0.0
  %4242 = vmatmul.mubr.f32.gmra.mrb[0].mxu0 %v3901
  %v4243 = vpop.f32.mrb[0].mxu0
  %v4244 = vadd.f32 0.0, %v4243
  %v4245 = vpop.f32.mrb[0].mxu0
  %4246 = vmatprep.mubr.f32.mxu0 0.0
  %4247 = vmatmul.mubr.f32.gmra.mrb[0].mxu0 %v3904
  %v4248 = vpop.f32.mrb[0].mxu0
  %v4249 = vadd.f32 0.0, %v4248
  %v4250 = vpop.f32.mrb[0].mxu0
  %4251 = vmatprep.mubr.f32.mxu0 0.0
  %4252 = vmatmul.mubr.f32.gmra.mrb[0].mxu0 %v3907
  %v4253 = vpop.f32.mrb[0].mxu0
  %v4254 = vadd.f32 0.0, %v4253
  %v4255 = vpop.f32.mrb[0].mxu0
  %4256 = vdwg.mxu0
  %v4257 = vadd.f32 %v3627, %v3979
  %v4258 = vadd.f32 %v3628, %v3984
  %v4259 = vadd.f32 %v3629, %v3989
  %v4260 = vadd.f32 %v3630, %v3994
  %v4261 = vadd.f32 %v3631, %v3999
  %v4262 = vadd.f32 %v3632, %v4004
  %v4263 = vadd.f32 %v3633, %v4009
  %v4264 = vadd.f32 %v3634, %v4014
  %v4265 = vadd.f32 %v3635, %v4019
  %v4266 = vadd.f32 %v3636, %v4024
  %v4267 = vadd.f32 %v3637, %v4029
  %v4268 = vadd.f32 %v3638, %v4034
  %v4269 = vadd.f32 %v3639, %v4039
  %v4270 = vadd.f32 %v3640, %v4044
  %v4271 = vadd.f32 %v3641, %v4049
  %v4272 = vadd.f32 %v3642, %v4054
  %v4273 = vadd.f32 %v3643, %v4059
  %v4274 = vadd.f32 %v3644, %v4064
  %v4275 = vadd.f32 %v3645, %v4069
  %v4276 = vadd.f32 %v3646, %v4074
  %v4277 = vadd.f32 %v3647, %v4079
  %v4278 = vadd.f32 %v3648, %v4084
  %v4279 = vadd.f32 %v3649, %v4089
  %v4280 = vadd.f32 %v3650, %v4094
  %v4281 = vadd.f32 %v3651, %v4099
  %v4282 = vadd.f32 %v3652, %v4104
  %v4283 = vadd.f32 %v3653, %v4109
  %v4284 = vadd.f32 %v3654, %v4114
  %v4285 = vadd.f32 %v3655, %v4119
  %v4286 = vadd.f32 %v3656, %v4124
  %v4287 = vadd.f32 %v3657, %v4129
  %v4288 = vadd.f32 %v3658, %v4134
  %v4289 = vadd.f32 %v3659, %v4139
  %v4290 = vadd.f32 %v3660, %v4144
  %v4291 = vadd.f32 %v3661, %v4149
  %v4292 = vadd.f32 %v3662, %v4154
  %v4293 = vadd.f32 %v3663, %v4159
  %v4294 = vadd.f32 %v3664, %v4164
  %v4295 = vadd.f32 %v3665, %v4169
  %v4296 = vadd.f32 %v3666, %v4174
  %v4297 = vadd.f32 %v3667, %v4179
  %v4298 = vadd.f32 %v3668, %v4184
  %v4299 = vadd.f32 %v3669, %v4189
  %v4300 = vadd.f32 %v3670, %v4194
  %v4301 = vadd.f32 %v3671, %v4199
  %v4302 = vadd.f32 %v3672, %v4204
  %v4303 = vadd.f32 %v3673, %v4209
  %v4304 = vadd.f32 %v3674, %v4214
  %v4305 = vadd.f32 %v3675, %v4219
  %v4306 = vadd.f32 %v3676, %v4224
  %v4307 = vadd.f32 %v3677, %v4229
  %v4308 = vadd.f32 %v3678, %v4234
  %v4309 = vadd.f32 %v3679, %v4239
  %v4310 = vadd.f32 %v3680, %v4244
  %v4311 = vadd.f32 %v3681, %v4249
  %v4312 = vadd.f32 %v3682, %v4254
  %v4313 = vld [vmem:[%s0 + $0x21] sm:$0xff]
  %v4314 = vld [vmem:[%s0 + $0x29] sm:$0xff]
  %v4315 = vld [vmem:[%s0 + $0x31] sm:$0xff]
  %v4316 = vld [vmem:[%s0 + $0x39] sm:$0xff]
  %v4317 = vld [vmem:[%s0 + $0x41] sm:$0xff]
  %v4318 = vld [vmem:[%s0 + $0x49] sm:$0xff]
  %v4319 = vld [vmem:[%s0 + $0x51] sm:$0xff]
  %v4320 = vld [vmem:[%s0 + $0x59] sm:$0xff]
  %v4321 = vld [vmem:[%s0 + $0x61] sm:$0xff]
  %v4322 = vld [vmem:[%s0 + $0x69] sm:$0xff]
  %v4323 = vld [vmem:[%s0 + $0x71] sm:$0xff]
  %v4324 = vld [vmem:[%s0 + $0x79] sm:$0xff]
  %v4325 = vld [vmem:[%s0 + $0x81] sm:$0xff]
  %v4326 = vld [vmem:[%s0 + $0x89] sm:$0xff]
  %v4327 = vld [vmem:[%s0 + $0x91] sm:$0xff]
  %v4328 = vld [vmem:[%s0 + $0x99] sm:$0xff]
  %v4329 = vld [vmem:[%s0 + $0xa1] sm:$0xff]
  %v4330 = vld [vmem:[%s0 + $0xa9] sm:$0xff]
  %v4331 = vld [vmem:[%s0 + $0xb1] sm:$0xff]
  %v4332 = vld [vmem:[%s0 + $0xb9] sm:$0xff]
  %v4333 = vld [vmem:[%s0 + $0xc1] sm:$0xff]
  %v4334 = vld [vmem:[%s0 + $0xc9] sm:$0xff]
  %v4335 = vld [vmem:[%s0 + $0xd1] sm:$0xff]
  %v4336 = vld [vmem:[%s0 + $0xd9] sm:$0xff]
  %v4337 = vld [vmem:[%s0 + $0xe1] sm:$0xff]
  %v4338 = vld [vmem:[%s0 + $0xe9] sm:$0xff]
  %v4339 = vld [vmem:[%s0 + $0xf1] sm:$0xff]
  %v4340 = vld [vmem:[%s0 + $0xf9] sm:$0xff]
  %v4341 = vld [vmem:[%s0 + $0x131] sm:$0xff]
  %v4342 = vld [vmem:[%s0 + $0x139] sm:$0xff]
  %v4343 = vld [vmem:[%s0 + $0x141] sm:$0xff]
  %v4344 = vld [vmem:[%s0 + $0x149] sm:$0xff]
  %v4345 = vld [vmem:[%s0 + $0x151] sm:$0xff]
  %v4346 = vld [vmem:[%s0 + $0x159] sm:$0xff]
  %v4347 = vld [vmem:[%s0 + $0x161] sm:$0xff]
  %v4348 = vld [vmem:[%s0 + $0x169] sm:$0xff]
  %v4349 = vld [vmem:[%s0 + $0x171] sm:$0xff]
  %v4350 = vld [vmem:[%s0 + $0x179] sm:$0xff]
  %v4351 = vld [vmem:[%s0 + $0x181] sm:$0xff]
  %v4352 = vld [vmem:[%s0 + $0x189] sm:$0xff]
  %v4353 = vld [vmem:[%s0 + $0x191] sm:$0xff]
  %v4354 = vld [vmem:[%s0 + $0x199] sm:$0xff]
  %v4355 = vld [vmem:[%s0 + $0x1a1] sm:$0xff]
  %v4356 = vld [vmem:[%s0 + $0x1a9] sm:$0xff]
  %v4357 = vld [vmem:[%s0 + $0x1b1] sm:$0xff]
  %v4358 = vld [vmem:[%s0 + $0x1b9] sm:$0xff]
  %v4359 = vld [vmem:[%s0 + $0x1c1] sm:$0xff]
  %v4360 = vld [vmem:[%s0 + $0x1c9] sm:$0xff]
  %v4361 = vld [vmem:[%s0 + $0x1d1] sm:$0xff]
  %v4362 = vld [vmem:[%s0 + $0x1d9] sm:$0xff]
  %v4363 = vld [vmem:[%s0 + $0x1e1] sm:$0xff]
  %v4364 = vld [vmem:[%s0 + $0x1e9] sm:$0xff]
  %v4365 = vld [vmem:[%s0 + $0x1f1] sm:$0xff]
  %v4366 = vld [vmem:[%s0 + $0x1f9] sm:$0xff]
  %v4367 = vld [vmem:[%s0 + $0x201] sm:$0xff]
  %v4368 = vld [vmem:[%s0 + $0x209] sm:$0xff]
  %s4369 = scalar_lea.vmem %s1, 28
  %v4370 = vld [vmem:[%s4369] sm:$0xf]
  %v4372 = vsel %vm129, %v4313, 0
  %v4375 = vsel %vm129, %v4314, 0
  %v4378 = vsel %vm129, %v4315, 0
  %v4381 = vsel %vm129, %v4316, 0
  %v4384 = vsel %vm129, %v4317, 0
  %v4387 = vsel %vm129, %v4318, 0
  %v4390 = vsel %vm129, %v4319, 0
  %v4393 = vsel %vm129, %v4320, 0
  %v4396 = vsel %vm129, %v4321, 0
  %v4399 = vsel %vm129, %v4322, 0
  %v4402 = vsel %vm129, %v4323, 0
  %v4405 = vsel %vm129, %v4324, 0
  %v4408 = vsel %vm129, %v4325, 0
  %v4411 = vsel %vm129, %v4326, 0
  %v4414 = vsel %vm129, %v4327, 0
  %v4417 = vsel %vm129, %v4328, 0
  %v4420 = vsel %vm129, %v4329, 0
  %v4423 = vsel %vm129, %v4330, 0
  %v4426 = vsel %vm129, %v4331, 0
  %v4429 = vsel %vm129, %v4332, 0
  %v4432 = vsel %vm129, %v4333, 0
  %v4435 = vsel %vm129, %v4334, 0
  %v4438 = vsel %vm129, %v4335, 0
  %v4441 = vsel %vm129, %v4336, 0
  %v4444 = vsel %vm129, %v4337, 0
  %v4447 = vsel %vm129, %v4338, 0
  %v4450 = vsel %vm129, %v4339, 0
  %v4453 = vsel %vm129, %v4340, 0
  %v4456 = vsel %vm129, %v4341, 0
  %v4459 = vsel %vm129, %v4342, 0
  %v4462 = vsel %vm129, %v4343, 0
  %v4465 = vsel %vm129, %v4344, 0
  %v4468 = vsel %vm129, %v4345, 0
  %v4471 = vsel %vm129, %v4346, 0
  %v4474 = vsel %vm129, %v4347, 0
  %v4477 = vsel %vm129, %v4348, 0
  %v4480 = vsel %vm129, %v4349, 0
  %v4483 = vsel %vm129, %v4350, 0
  %v4486 = vsel %vm129, %v4351, 0
  %v4489 = vsel %vm129, %v4352, 0
  %v4492 = vsel %vm129, %v4353, 0
  %v4495 = vsel %vm129, %v4354, 0
  %v4498 = vsel %vm129, %v4355, 0
  %v4501 = vsel %vm129, %v4356, 0
  %v4504 = vsel %vm129, %v4357, 0
  %v4507 = vsel %vm129, %v4358, 0
  %v4510 = vsel %vm129, %v4359, 0
  %v4513 = vsel %vm129, %v4360, 0
  %v4516 = vsel %vm129, %v4361, 0
  %v4519 = vsel %vm129, %v4362, 0
  %v4522 = vsel %vm129, %v4363, 0
  %v4525 = vsel %vm129, %v4364, 0
  %v4528 = vsel %vm129, %v4365, 0
  %v4531 = vsel %vm129, %v4366, 0
  %v4534 = vsel %vm129, %v4367, 0
  %v4537 = vsel %vm129, %v4368, 0
  %v4540 = vsel %vm298, %v4370, 0
  %4542 = vmatprep.subr.mxu0 0.0
  %4543 = vmatpush1.msra.mxu0 %v4540
  %4544 = vmatprep.subr.mxu0 0.0
  %4545 = vmatpush1.msra.mxu0 0.0
  %4546 = vmatprep.subr.mxu0 0.0
  %4547 = vmatpush1.msra.mxu0 0.0
  %4548 = vmatprep.subr.mxu0 0.0
  %4549 = vmatpush1.msra.mxu0 0.0
  %4550 = vmatprep.subr.mxu0 0.0
  %4551 = vmatpush1.msra.mxu0 0.0
  %4552 = vmatprep.subr.mxu0 0.0
  %4553 = vmatpush1.msra.mxu0 0.0
  %4554 = vmatprep.subr.mxu0 0.0
  %4555 = vmatpush1.msra.mxu0 0.0
  %4556 = vmatprep.subr.mxu0 0.0
  %4557 = vmatpush1.msra.mxu0 0.0
  %4558 = vmatprep.subr.mxu0 0.0
  %4559 = vmatpush1.msra.mxu0 0.0
  %4560 = vmatprep.subr.mxu0 0.0
  %4561 = vmatpush1.msra.mxu0 0.0
  %4562 = vmatprep.subr.mxu0 0.0
  %4563 = vmatpush1.msra.mxu0 0.0
  %4564 = vmatprep.subr.mxu0 0.0
  %4565 = vmatpush1.msra.mxu0 0.0
  %4566 = vmatprep.subr.mxu0 0.0
  %4567 = vmatpush1.msra.mxu0 0.0
  %4568 = vmatprep.subr.mxu0 0.0
  %4569 = vmatpush1.msra.mxu0 0.0
  %4570 = vmatprep.subr.mxu0 0.0
  %4571 = vmatpush1.msra.mxu0 0.0
  %4572 = vmatprep.subr.mxu0 0.0
  %4573 = vmatpush1.msra.mxu0 0.0
  %4574 = vmatprep.subr.mxu0 0.0
  %4575 = vmatpush1.msra.mxu0 0.0
  %4576 = vmatprep.subr.mxu0 0.0
  %4577 = vmatpush1.msra.mxu0 0.0
  %4578 = vmatprep.subr.mxu0 0.0
  %4579 = vmatpush1.msra.mxu0 0.0
  %4580 = vmatprep.subr.mxu0 0.0
  %4581 = vmatpush1.msra.mxu0 0.0
  %4582 = vmatprep.subr.mxu0 0.0
  %4583 = vmatpush1.msra.mxu0 0.0
  %4584 = vmatprep.subr.mxu0 0.0
  %4585 = vmatpush1.msra.mxu0 0.0
  %4586 = vmatprep.subr.mxu0 0.0
  %4587 = vmatpush1.msra.mxu0 0.0
  %4588 = vmatprep.subr.mxu0 0.0
  %4589 = vmatpush1.msra.mxu0 0.0
  %4590 = vmatprep.subr.mxu0 0.0
  %4591 = vmatpush1.msra.mxu0 0.0
  %4592 = vmatprep.subr.mxu0 0.0
  %4593 = vmatpush1.msra.mxu0 0.0
  %4594 = vmatprep.subr.mxu0 0.0
  %4595 = vmatpush1.msra.mxu0 0.0
  %4596 = vmatprep.subr.mxu0 0.0
  %4597 = vmatpush1.msra.mxu0 0.0
  %4598 = vmatprep.subr.mxu0 0.0
  %4599 = vmatpush1.msra.mxu0 0.0
  %4600 = vmatprep.subr.mxu0 0.0
  %4601 = vmatpush1.msra.mxu0 0.0
  %4602 = vmatprep.subr.mxu0 0.0
  %4603 = vmatpush1.msra.mxu0 0.0
  %4604 = vmatprep.subr.mxu0 0.0
  %4605 = vmatpush1.msra.mxu0 0.0
  %4606 = vmatprep.mubr.f32.mxu0 0.0
  %4607 = vmatmul.mubr.f32.gmra.mrb[0].mxu0 %v4372
  %v4608 = vpop.f32.mrb[0].mxu0
  %v4609 = vadd.f32 0.0, %v4608
  %v4610 = vpop.f32.mrb[0].mxu0
  %4611 = vmatprep.mubr.f32.mxu0 0.0
  %4612 = vmatmul.mubr.f32.gmra.mrb[0].mxu0 %v4375
  %v4613 = vpop.f32.mrb[0].mxu0
  %v4614 = vadd.f32 0.0, %v4613
  %v4615 = vpop.f32.mrb[0].mxu0
  %4616 = vmatprep.mubr.f32.mxu0 0.0
  %4617 = vmatmul.mubr.f32.gmra.mrb[0].mxu0 %v4378
  %v4618 = vpop.f32.mrb[0].mxu0
  %v4619 = vadd.f32 0.0, %v4618
  %v4620 = vpop.f32.mrb[0].mxu0
  %4621 = vmatprep.mubr.f32.mxu0 0.0
  %4622 = vmatmul.mubr.f32.gmra.mrb[0].mxu0 %v4381
  %v4623 = vpop.f32.mrb[0].mxu0
  %v4624 = vadd.f32 0.0, %v4623
  %v4625 = vpop.f32.mrb[0].mxu0
  %4626 = vmatprep.mubr.f32.mxu0 0.0
  %4627 = vmatmul.mubr.f32.gmra.mrb[0].mxu0 %v4384
  %v4628 = vpop.f32.mrb[0].mxu0
  %v4629 = vadd.f32 0.0, %v4628
  %v4630 = vpop.f32.mrb[0].mxu0
  %4631 = vmatprep.mubr.f32.mxu0 0.0
  %4632 = vmatmul.mubr.f32.gmra.mrb[0].mxu0 %v4387
  %v4633 = vpop.f32.mrb[0].mxu0
  %v4634 = vadd.f32 0.0, %v4633
  %v4635 = vpop.f32.mrb[0].mxu0
  %4636 = vmatprep.mubr.f32.mxu0 0.0
  %4637 = vmatmul.mubr.f32.gmra.mrb[0].mxu0 %v4390
  %v4638 = vpop.f32.mrb[0].mxu0
  %v4639 = vadd.f32 0.0, %v4638
  %v4640 = vpop.f32.mrb[0].mxu0
  %4641 = vmatprep.mubr.f32.mxu0 0.0
  %4642 = vmatmul.mubr.f32.gmra.mrb[0].mxu0 %v4393
  %v4643 = vpop.f32.mrb[0].mxu0
  %v4644 = vadd.f32 0.0, %v4643
  %v4645 = vpop.f32.mrb[0].mxu0
  %4646 = vmatprep.mubr.f32.mxu0 0.0
  %4647 = vmatmul.mubr.f32.gmra.mrb[0].mxu0 %v4396
  %v4648 = vpop.f32.mrb[0].mxu0
  %v4649 = vadd.f32 0.0, %v4648
  %v4650 = vpop.f32.mrb[0].mxu0
  %4651 = vmatprep.mubr.f32.mxu0 0.0
  %4652 = vmatmul.mubr.f32.gmra.mrb[0].mxu0 %v4399
  %v4653 = vpop.f32.mrb[0].mxu0
  %v4654 = vadd.f32 0.0, %v4653
  %v4655 = vpop.f32.mrb[0].mxu0
  %4656 = vmatprep.mubr.f32.mxu0 0.0
  %4657 = vmatmul.mubr.f32.gmra.mrb[0].mxu0 %v4402
  %v4658 = vpop.f32.mrb[0].mxu0
  %v4659 = vadd.f32 0.0, %v4658
  %v4660 = vpop.f32.mrb[0].mxu0
  %4661 = vmatprep.mubr.f32.mxu0 0.0
  %4662 = vmatmul.mubr.f32.gmra.mrb[0].mxu0 %v4405
  %v4663 = vpop.f32.mrb[0].mxu0
  %v4664 = vadd.f32 0.0, %v4663
  %v4665 = vpop.f32.mrb[0].mxu0
  %4666 = vmatprep.mubr.f32.mxu0 0.0
  %4667 = vmatmul.mubr.f32.gmra.mrb[0].mxu0 %v4408
  %v4668 = vpop.f32.mrb[0].mxu0
  %v4669 = vadd.f32 0.0, %v4668
  %v4670 = vpop.f32.mrb[0].mxu0
  %4671 = vmatprep.mubr.f32.mxu0 0.0
  %4672 = vmatmul.mubr.f32.gmra.mrb[0].mxu0 %v4411
  %v4673 = vpop.f32.mrb[0].mxu0
  %v4674 = vadd.f32 0.0, %v4673
  %v4675 = vpop.f32.mrb[0].mxu0
  %4676 = vmatprep.mubr.f32.mxu0 0.0
  %4677 = vmatmul.mubr.f32.gmra.mrb[0].mxu0 %v4414
  %v4678 = vpop.f32.mrb[0].mxu0
  %v4679 = vadd.f32 0.0, %v4678
  %v4680 = vpop.f32.mrb[0].mxu0
  %4681 = vmatprep.mubr.f32.mxu0 0.0
  %4682 = vmatmul.mubr.f32.gmra.mrb[0].mxu0 %v4417
  %v4683 = vpop.f32.mrb[0].mxu0
  %v4684 = vadd.f32 0.0, %v4683
  %v4685 = vpop.f32.mrb[0].mxu0
  %4686 = vmatprep.mubr.f32.mxu0 0.0
  %4687 = vmatmul.mubr.f32.gmra.mrb[0].mxu0 %v4420
  %v4688 = vpop.f32.mrb[0].mxu0
  %v4689 = vadd.f32 0.0, %v4688
  %v4690 = vpop.f32.mrb[0].mxu0
  %4691 = vmatprep.mubr.f32.mxu0 0.0
  %4692 = vmatmul.mubr.f32.gmra.mrb[0].mxu0 %v4423
  %v4693 = vpop.f32.mrb[0].mxu0
  %v4694 = vadd.f32 0.0, %v4693
  %v4695 = vpop.f32.mrb[0].mxu0
  %4696 = vmatprep.mubr.f32.mxu0 0.0
  %4697 = vmatmul.mubr.f32.gmra.mrb[0].mxu0 %v4426
  %v4698 = vpop.f32.mrb[0].mxu0
  %v4699 = vadd.f32 0.0, %v4698
  %v4700 = vpop.f32.mrb[0].mxu0
  %4701 = vmatprep.mubr.f32.mxu0 0.0
  %4702 = vmatmul.mubr.f32.gmra.mrb[0].mxu0 %v4429
  %v4703 = vpop.f32.mrb[0].mxu0
  %v4704 = vadd.f32 0.0, %v4703
  %v4705 = vpop.f32.mrb[0].mxu0
  %4706 = vmatprep.mubr.f32.mxu0 0.0
  %4707 = vmatmul.mubr.f32.gmra.mrb[0].mxu0 %v4432
  %v4708 = vpop.f32.mrb[0].mxu0
  %v4709 = vadd.f32 0.0, %v4708
  %v4710 = vpop.f32.mrb[0].mxu0
  %4711 = vmatprep.mubr.f32.mxu0 0.0
  %4712 = vmatmul.mubr.f32.gmra.mrb[0].mxu0 %v4435
  %v4713 = vpop.f32.mrb[0].mxu0
  %v4714 = vadd.f32 0.0, %v4713
  %v4715 = vpop.f32.mrb[0].mxu0
  %4716 = vmatprep.mubr.f32.mxu0 0.0
  %4717 = vmatmul.mubr.f32.gmra.mrb[0].mxu0 %v4438
  %v4718 = vpop.f32.mrb[0].mxu0
  %v4719 = vadd.f32 0.0, %v4718
  %v4720 = vpop.f32.mrb[0].mxu0
  %4721 = vmatprep.mubr.f32.mxu0 0.0
  %4722 = vmatmul.mubr.f32.gmra.mrb[0].mxu0 %v4441
  %v4723 = vpop.f32.mrb[0].mxu0
  %v4724 = vadd.f32 0.0, %v4723
  %v4725 = vpop.f32.mrb[0].mxu0
  %4726 = vmatprep.mubr.f32.mxu0 0.0
  %4727 = vmatmul.mubr.f32.gmra.mrb[0].mxu0 %v4444
  %v4728 = vpop.f32.mrb[0].mxu0
  %v4729 = vadd.f32 0.0, %v4728
  %v4730 = vpop.f32.mrb[0].mxu0
  %4731 = vmatprep.mubr.f32.mxu0 0.0
  %4732 = vmatmul.mubr.f32.gmra.mrb[0].mxu0 %v4447
  %v4733 = vpop.f32.mrb[0].mxu0
  %v4734 = vadd.f32 0.0, %v4733
  %v4735 = vpop.f32.mrb[0].mxu0
  %4736 = vmatprep.mubr.f32.mxu0 0.0
  %4737 = vmatmul.mubr.f32.gmra.mrb[0].mxu0 %v4450
  %v4738 = vpop.f32.mrb[0].mxu0
  %v4739 = vadd.f32 0.0, %v4738
  %v4740 = vpop.f32.mrb[0].mxu0
  %4741 = vmatprep.mubr.f32.mxu0 0.0
  %4742 = vmatmul.mubr.f32.gmra.mrb[0].mxu0 %v4453
  %v4743 = vpop.f32.mrb[0].mxu0
  %v4744 = vadd.f32 0.0, %v4743
  %v4745 = vpop.f32.mrb[0].mxu0
  %4746 = vmatprep.mubr.f32.mxu0 0.0
  %4747 = vmatmul.mubr.f32.gmra.mrb[0].mxu0 %v4456
  %v4748 = vpop.f32.mrb[0].mxu0
  %v4749 = vadd.f32 0.0, %v4748
  %v4750 = vpop.f32.mrb[0].mxu0
  %4751 = vmatprep.mubr.f32.mxu0 0.0
  %4752 = vmatmul.mubr.f32.gmra.mrb[0].mxu0 %v4459
  %v4753 = vpop.f32.mrb[0].mxu0
  %v4754 = vadd.f32 0.0, %v4753
  %v4755 = vpop.f32.mrb[0].mxu0
  %4756 = vmatprep.mubr.f32.mxu0 0.0
  %4757 = vmatmul.mubr.f32.gmra.mrb[0].mxu0 %v4462
  %v4758 = vpop.f32.mrb[0].mxu0
  %v4759 = vadd.f32 0.0, %v4758
  %v4760 = vpop.f32.mrb[0].mxu0
  %4761 = vmatprep.mubr.f32.mxu0 0.0
  %4762 = vmatmul.mubr.f32.gmra.mrb[0].mxu0 %v4465
  %v4763 = vpop.f32.mrb[0].mxu0
  %v4764 = vadd.f32 0.0, %v4763
  %v4765 = vpop.f32.mrb[0].mxu0
  %4766 = vmatprep.mubr.f32.mxu0 0.0
  %4767 = vmatmul.mubr.f32.gmra.mrb[0].mxu0 %v4468
  %v4768 = vpop.f32.mrb[0].mxu0
  %v4769 = vadd.f32 0.0, %v4768
  %v4770 = vpop.f32.mrb[0].mxu0
  %4771 = vmatprep.mubr.f32.mxu0 0.0
  %4772 = vmatmul.mubr.f32.gmra.mrb[0].mxu0 %v4471
  %v4773 = vpop.f32.mrb[0].mxu0
  %v4774 = vadd.f32 0.0, %v4773
  %v4775 = vpop.f32.mrb[0].mxu0
  %4776 = vmatprep.mubr.f32.mxu0 0.0
  %4777 = vmatmul.mubr.f32.gmra.mrb[0].mxu0 %v4474
  %v4778 = vpop.f32.mrb[0].mxu0
  %v4779 = vadd.f32 0.0, %v4778
  %v4780 = vpop.f32.mrb[0].mxu0
  %4781 = vmatprep.mubr.f32.mxu0 0.0
  %4782 = vmatmul.mubr.f32.gmra.mrb[0].mxu0 %v4477
  %v4783 = vpop.f32.mrb[0].mxu0
  %v4784 = vadd.f32 0.0, %v4783
  %v4785 = vpop.f32.mrb[0].mxu0
  %4786 = vmatprep.mubr.f32.mxu0 0.0
  %4787 = vmatmul.mubr.f32.gmra.mrb[0].mxu0 %v4480
  %v4788 = vpop.f32.mrb[0].mxu0
  %v4789 = vadd.f32 0.0, %v4788
  %v4790 = vpop.f32.mrb[0].mxu0
  %4791 = vmatprep.mubr.f32.mxu0 0.0
  %4792 = vmatmul.mubr.f32.gmra.mrb[0].mxu0 %v4483
  %v4793 = vpop.f32.mrb[0].mxu0
  %v4794 = vadd.f32 0.0, %v4793
  %v4795 = vpop.f32.mrb[0].mxu0
  %4796 = vmatprep.mubr.f32.mxu0 0.0
  %4797 = vmatmul.mubr.f32.gmra.mrb[0].mxu0 %v4486
  %v4798 = vpop.f32.mrb[0].mxu0
  %v4799 = vadd.f32 0.0, %v4798
  %v4800 = vpop.f32.mrb[0].mxu0
  %4801 = vmatprep.mubr.f32.mxu0 0.0
  %4802 = vmatmul.mubr.f32.gmra.mrb[0].mxu0 %v4489
  %v4803 = vpop.f32.mrb[0].mxu0
  %v4804 = vadd.f32 0.0, %v4803
  %v4805 = vpop.f32.mrb[0].mxu0
  %4806 = vmatprep.mubr.f32.mxu0 0.0
  %4807 = vmatmul.mubr.f32.gmra.mrb[0].mxu0 %v4492
  %v4808 = vpop.f32.mrb[0].mxu0
  %v4809 = vadd.f32 0.0, %v4808
  %v4810 = vpop.f32.mrb[0].mxu0
  %4811 = vmatprep.mubr.f32.mxu0 0.0
  %4812 = vmatmul.mubr.f32.gmra.mrb[0].mxu0 %v4495
  %v4813 = vpop.f32.mrb[0].mxu0
  %v4814 = vadd.f32 0.0, %v4813
  %v4815 = vpop.f32.mrb[0].mxu0
  %4816 = vmatprep.mubr.f32.mxu0 0.0
  %4817 = vmatmul.mubr.f32.gmra.mrb[0].mxu0 %v4498
  %v4818 = vpop.f32.mrb[0].mxu0
  %v4819 = vadd.f32 0.0, %v4818
  %v4820 = vpop.f32.mrb[0].mxu0
  %4821 = vmatprep.mubr.f32.mxu0 0.0
  %4822 = vmatmul.mubr.f32.gmra.mrb[0].mxu0 %v4501
  %v4823 = vpop.f32.mrb[0].mxu0
  %v4824 = vadd.f32 0.0, %v4823
  %v4825 = vpop.f32.mrb[0].mxu0
  %4826 = vmatprep.mubr.f32.mxu0 0.0
  %4827 = vmatmul.mubr.f32.gmra.mrb[0].mxu0 %v4504
  %v4828 = vpop.f32.mrb[0].mxu0
  %v4829 = vadd.f32 0.0, %v4828
  %v4830 = vpop.f32.mrb[0].mxu0
  %4831 = vmatprep.mubr.f32.mxu0 0.0
  %4832 = vmatmul.mubr.f32.gmra.mrb[0].mxu0 %v4507
  %v4833 = vpop.f32.mrb[0].mxu0
  %v4834 = vadd.f32 0.0, %v4833
  %v4835 = vpop.f32.mrb[0].mxu0
  %4836 = vmatprep.mubr.f32.mxu0 0.0
  %4837 = vmatmul.mubr.f32.gmra.mrb[0].mxu0 %v4510
  %v4838 = vpop.f32.mrb[0].mxu0
  %v4839 = vadd.f32 0.0, %v4838
  %v4840 = vpop.f32.mrb[0].mxu0
  %4841 = vmatprep.mubr.f32.mxu0 0.0
  %4842 = vmatmul.mubr.f32.gmra.mrb[0].mxu0 %v4513
  %v4843 = vpop.f32.mrb[0].mxu0
  %v4844 = vadd.f32 0.0, %v4843
  %v4845 = vpop.f32.mrb[0].mxu0
  %4846 = vmatprep.mubr.f32.mxu0 0.0
  %4847 = vmatmul.mubr.f32.gmra.mrb[0].mxu0 %v4516
  %v4848 = vpop.f32.mrb[0].mxu0
  %v4849 = vadd.f32 0.0, %v4848
  %v4850 = vpop.f32.mrb[0].mxu0
  %4851 = vmatprep.mubr.f32.mxu0 0.0
  %4852 = vmatmul.mubr.f32.gmra.mrb[0].mxu0 %v4519
  %v4853 = vpop.f32.mrb[0].mxu0
  %v4854 = vadd.f32 0.0, %v4853
  %v4855 = vpop.f32.mrb[0].mxu0
  %4856 = vmatprep.mubr.f32.mxu0 0.0
  %4857 = vmatmul.mubr.f32.gmra.mrb[0].mxu0 %v4522
  %v4858 = vpop.f32.mrb[0].mxu0
  %v4859 = vadd.f32 0.0, %v4858
  %v4860 = vpop.f32.mrb[0].mxu0
  %4861 = vmatprep.mubr.f32.mxu0 0.0
  %4862 = vmatmul.mubr.f32.gmra.mrb[0].mxu0 %v4525
  %v4863 = vpop.f32.mrb[0].mxu0
  %v4864 = vadd.f32 0.0, %v4863
  %v4865 = vpop.f32.mrb[0].mxu0
  %4866 = vmatprep.mubr.f32.mxu0 0.0
  %4867 = vmatmul.mubr.f32.gmra.mrb[0].mxu0 %v4528
  %v4868 = vpop.f32.mrb[0].mxu0
  %v4869 = vadd.f32 0.0, %v4868
  %v4870 = vpop.f32.mrb[0].mxu0
  %4871 = vmatprep.mubr.f32.mxu0 0.0
  %4872 = vmatmul.mubr.f32.gmra.mrb[0].mxu0 %v4531
  %v4873 = vpop.f32.mrb[0].mxu0
  %v4874 = vadd.f32 0.0, %v4873
  %v4875 = vpop.f32.mrb[0].mxu0
  %4876 = vmatprep.mubr.f32.mxu0 0.0
  %4877 = vmatmul.mubr.f32.gmra.mrb[0].mxu0 %v4534
  %v4878 = vpop.f32.mrb[0].mxu0
  %v4879 = vadd.f32 0.0, %v4878
  %v4880 = vpop.f32.mrb[0].mxu0
  %4881 = vmatprep.mubr.f32.mxu0 0.0
  %4882 = vmatmul.mubr.f32.gmra.mrb[0].mxu0 %v4537
  %v4883 = vpop.f32.mrb[0].mxu0
  %v4884 = vadd.f32 0.0, %v4883
  %v4885 = vpop.f32.mrb[0].mxu0
  %4886 = vdwg.mxu0
  %v4887 = vadd.f32 %v4257, %v4609
  %v4888 = vadd.f32 %v4258, %v4614
  %v4889 = vadd.f32 %v4259, %v4619
  %v4890 = vadd.f32 %v4260, %v4624
  %v4891 = vadd.f32 %v4261, %v4629
  %v4892 = vadd.f32 %v4262, %v4634
  %v4893 = vadd.f32 %v4263, %v4639
  %v4894 = vadd.f32 %v4264, %v4644
  %v4895 = vadd.f32 %v4265, %v4649
  %v4896 = vadd.f32 %v4266, %v4654
  %v4897 = vadd.f32 %v4267, %v4659
  %v4898 = vadd.f32 %v4268, %v4664
  %v4899 = vadd.f32 %v4269, %v4669
  %v4900 = vadd.f32 %v4270, %v4674
  %v4901 = vadd.f32 %v4271, %v4679
  %v4902 = vadd.f32 %v4272, %v4684
  %v4903 = vadd.f32 %v4273, %v4689
  %v4904 = vadd.f32 %v4274, %v4694
  %v4905 = vadd.f32 %v4275, %v4699
  %v4906 = vadd.f32 %v4276, %v4704
  %v4907 = vadd.f32 %v4277, %v4709
  %v4908 = vadd.f32 %v4278, %v4714
  %v4909 = vadd.f32 %v4279, %v4719
  %v4910 = vadd.f32 %v4280, %v4724
  %v4911 = vadd.f32 %v4281, %v4729
  %v4912 = vadd.f32 %v4282, %v4734
  %v4913 = vadd.f32 %v4283, %v4739
  %v4914 = vadd.f32 %v4284, %v4744
  %v4915 = vadd.f32 %v4285, %v4749
  %v4916 = vadd.f32 %v4286, %v4754
  %v4917 = vadd.f32 %v4287, %v4759
  %v4918 = vadd.f32 %v4288, %v4764
  %v4919 = vadd.f32 %v4289, %v4769
  %v4920 = vadd.f32 %v4290, %v4774
  %v4921 = vadd.f32 %v4291, %v4779
  %v4922 = vadd.f32 %v4292, %v4784
  %v4923 = vadd.f32 %v4293, %v4789
  %v4924 = vadd.f32 %v4294, %v4794
  %v4925 = vadd.f32 %v4295, %v4799
  %v4926 = vadd.f32 %v4296, %v4804
  %v4927 = vadd.f32 %v4297, %v4809
  %v4928 = vadd.f32 %v4298, %v4814
  %v4929 = vadd.f32 %v4299, %v4819
  %v4930 = vadd.f32 %v4300, %v4824
  %v4931 = vadd.f32 %v4301, %v4829
  %v4932 = vadd.f32 %v4302, %v4834
  %v4933 = vadd.f32 %v4303, %v4839
  %v4934 = vadd.f32 %v4304, %v4844
  %v4935 = vadd.f32 %v4305, %v4849
  %v4936 = vadd.f32 %v4306, %v4854
  %v4937 = vadd.f32 %v4307, %v4859
  %v4938 = vadd.f32 %v4308, %v4864
  %v4939 = vadd.f32 %v4309, %v4869
  %v4940 = vadd.f32 %v4310, %v4874
  %v4941 = vadd.f32 %v4311, %v4879
  %v4942 = vadd.f32 %v4312, %v4884
  %v4943 = vld [vmem:[%s0 + $0x22] sm:$0xff]
  %v4944 = vld [vmem:[%s0 + $0x2a] sm:$0xff]
  %v4945 = vld [vmem:[%s0 + $0x32] sm:$0xff]
  %v4946 = vld [vmem:[%s0 + $0x3a] sm:$0xff]
  %v4947 = vld [vmem:[%s0 + $0x42] sm:$0xff]
  %v4948 = vld [vmem:[%s0 + $0x4a] sm:$0xff]
  %v4949 = vld [vmem:[%s0 + $0x52] sm:$0xff]
  %v4950 = vld [vmem:[%s0 + $0x5a] sm:$0xff]
  %v4951 = vld [vmem:[%s0 + $0x62] sm:$0xff]
  %v4952 = vld [vmem:[%s0 + $0x6a] sm:$0xff]
  %v4953 = vld [vmem:[%s0 + $0x72] sm:$0xff]
  %v4954 = vld [vmem:[%s0 + $0x7a] sm:$0xff]
  %v4955 = vld [vmem:[%s0 + $0x82] sm:$0xff]
  %v4956 = vld [vmem:[%s0 + $0x8a] sm:$0xff]
  %v4957 = vld [vmem:[%s0 + $0x92] sm:$0xff]
  %v4958 = vld [vmem:[%s0 + $0x9a] sm:$0xff]
  %v4959 = vld [vmem:[%s0 + $0xa2] sm:$0xff]
  %v4960 = vld [vmem:[%s0 + $0xaa] sm:$0xff]
  %v4961 = vld [vmem:[%s0 + $0xb2] sm:$0xff]
  %v4962 = vld [vmem:[%s0 + $0xba] sm:$0xff]
  %v4963 = vld [vmem:[%s0 + $0xc2] sm:$0xff]
  %v4964 = vld [vmem:[%s0 + $0xca] sm:$0xff]
  %v4965 = vld [vmem:[%s0 + $0xd2] sm:$0xff]
  %v4966 = vld [vmem:[%s0 + $0xda] sm:$0xff]
  %v4967 = vld [vmem:[%s0 + $0xe2] sm:$0xff]
  %v4968 = vld [vmem:[%s0 + $0xea] sm:$0xff]
  %v4969 = vld [vmem:[%s0 + $0xf2] sm:$0xff]
  %v4970 = vld [vmem:[%s0 + $0xfa] sm:$0xff]
  %v4971 = vld [vmem:[%s0 + $0x132] sm:$0xff]
  %v4972 = vld [vmem:[%s0 + $0x13a] sm:$0xff]
  %v4973 = vld [vmem:[%s0 + $0x142] sm:$0xff]
  %v4974 = vld [vmem:[%s0 + $0x14a] sm:$0xff]
  %v4975 = vld [vmem:[%s0 + $0x152] sm:$0xff]
  %v4976 = vld [vmem:[%s0 + $0x15a] sm:$0xff]
  %v4977 = vld [vmem:[%s0 + $0x162] sm:$0xff]
  %v4978 = vld [vmem:[%s0 + $0x16a] sm:$0xff]
  %v4979 = vld [vmem:[%s0 + $0x172] sm:$0xff]
  %v4980 = vld [vmem:[%s0 + $0x17a] sm:$0xff]
  %v4981 = vld [vmem:[%s0 + $0x182] sm:$0xff]
  %v4982 = vld [vmem:[%s0 + $0x18a] sm:$0xff]
  %v4983 = vld [vmem:[%s0 + $0x192] sm:$0xff]
  %v4984 = vld [vmem:[%s0 + $0x19a] sm:$0xff]
  %v4985 = vld [vmem:[%s0 + $0x1a2] sm:$0xff]
  %v4986 = vld [vmem:[%s0 + $0x1aa] sm:$0xff]
  %v4987 = vld [vmem:[%s0 + $0x1b2] sm:$0xff]
  %v4988 = vld [vmem:[%s0 + $0x1ba] sm:$0xff]
  %v4989 = vld [vmem:[%s0 + $0x1c2] sm:$0xff]
  %v4990 = vld [vmem:[%s0 + $0x1ca] sm:$0xff]
  %v4991 = vld [vmem:[%s0 + $0x1d2] sm:$0xff]
  %v4992 = vld [vmem:[%s0 + $0x1da] sm:$0xff]
  %v4993 = vld [vmem:[%s0 + $0x1e2] sm:$0xff]
  %v4994 = vld [vmem:[%s0 + $0x1ea] sm:$0xff]
  %v4995 = vld [vmem:[%s0 + $0x1f2] sm:$0xff]
  %v4996 = vld [vmem:[%s0 + $0x1fa] sm:$0xff]
  %v4997 = vld [vmem:[%s0 + $0x202] sm:$0xff]
  %v4998 = vld [vmem:[%s0 + $0x20a] sm:$0xff]
  %s4999 = scalar_lea.vmem %s1, 32
  %v5000 = vld [vmem:[%s4999] sm:$0xf]
  %v5002 = vsel %vm129, %v4943, 0
  %v5005 = vsel %vm129, %v4944, 0
  %v5008 = vsel %vm129, %v4945, 0
  %v5011 = vsel %vm129, %v4946, 0
  %v5014 = vsel %vm129, %v4947, 0
  %v5017 = vsel %vm129, %v4948, 0
  %v5020 = vsel %vm129, %v4949, 0
  %v5023 = vsel %vm129, %v4950, 0
  %v5026 = vsel %vm129, %v4951, 0
  %v5029 = vsel %vm129, %v4952, 0
  %v5032 = vsel %vm129, %v4953, 0
  %v5035 = vsel %vm129, %v4954, 0
  %v5038 = vsel %vm129, %v4955, 0
  %v5041 = vsel %vm129, %v4956, 0
  %v5044 = vsel %vm129, %v4957, 0
  %v5047 = vsel %vm129, %v4958, 0
  %v5050 = vsel %vm129, %v4959, 0
  %v5053 = vsel %vm129, %v4960, 0
  %v5056 = vsel %vm129, %v4961, 0
  %v5059 = vsel %vm129, %v4962, 0
  %v5062 = vsel %vm129, %v4963, 0
  %v5065 = vsel %vm129, %v4964, 0
  %v5068 = vsel %vm129, %v4965, 0
  %v5071 = vsel %vm129, %v4966, 0
  %v5074 = vsel %vm129, %v4967, 0
  %v5077 = vsel %vm129, %v4968, 0
  %v5080 = vsel %vm129, %v4969, 0
  %v5083 = vsel %vm129, %v4970, 0
  %v5086 = vsel %vm129, %v4971, 0
  %v5089 = vsel %vm129, %v4972, 0
  %v5092 = vsel %vm129, %v4973, 0
  %v5095 = vsel %vm129, %v4974, 0
  %v5098 = vsel %vm129, %v4975, 0
  %v5101 = vsel %vm129, %v4976, 0
  %v5104 = vsel %vm129, %v4977, 0
  %v5107 = vsel %vm129, %v4978, 0
  %v5110 = vsel %vm129, %v4979, 0
  %v5113 = vsel %vm129, %v4980, 0
  %v5116 = vsel %vm129, %v4981, 0
  %v5119 = vsel %vm129, %v4982, 0
  %v5122 = vsel %vm129, %v4983, 0
  %v5125 = vsel %vm129, %v4984, 0
  %v5128 = vsel %vm129, %v4985, 0
  %v5131 = vsel %vm129, %v4986, 0
  %v5134 = vsel %vm129, %v4987, 0
  %v5137 = vsel %vm129, %v4988, 0
  %v5140 = vsel %vm129, %v4989, 0
  %v5143 = vsel %vm129, %v4990, 0
  %v5146 = vsel %vm129, %v4991, 0
  %v5149 = vsel %vm129, %v4992, 0
  %v5152 = vsel %vm129, %v4993, 0
  %v5155 = vsel %vm129, %v4994, 0
  %v5158 = vsel %vm129, %v4995, 0
  %v5161 = vsel %vm129, %v4996, 0
  %v5164 = vsel %vm129, %v4997, 0
  %v5167 = vsel %vm129, %v4998, 0
  %v5170 = vsel %vm298, %v5000, 0
  %5172 = vmatprep.subr.mxu0 0.0
  %5173 = vmatpush1.msra.mxu0 %v5170
  %5174 = vmatprep.subr.mxu0 0.0
  %5175 = vmatpush1.msra.mxu0 0.0
  %5176 = vmatprep.subr.mxu0 0.0
  %5177 = vmatpush1.msra.mxu0 0.0
  %5178 = vmatprep.subr.mxu0 0.0
  %5179 = vmatpush1.msra.mxu0 0.0
  %5180 = vmatprep.subr.mxu0 0.0
  %5181 = vmatpush1.msra.mxu0 0.0
  %5182 = vmatprep.subr.mxu0 0.0
  %5183 = vmatpush1.msra.mxu0 0.0
  %5184 = vmatprep.subr.mxu0 0.0
  %5185 = vmatpush1.msra.mxu0 0.0
  %5186 = vmatprep.subr.mxu0 0.0
  %5187 = vmatpush1.msra.mxu0 0.0
  %5188 = vmatprep.subr.mxu0 0.0
  %5189 = vmatpush1.msra.mxu0 0.0
  %5190 = vmatprep.subr.mxu0 0.0
  %5191 = vmatpush1.msra.mxu0 0.0
  %5192 = vmatprep.subr.mxu0 0.0
  %5193 = vmatpush1.msra.mxu0 0.0
  %5194 = vmatprep.subr.mxu0 0.0
  %5195 = vmatpush1.msra.mxu0 0.0
  %5196 = vmatprep.subr.mxu0 0.0
  %5197 = vmatpush1.msra.mxu0 0.0
  %5198 = vmatprep.subr.mxu0 0.0
  %5199 = vmatpush1.msra.mxu0 0.0
  %5200 = vmatprep.subr.mxu0 0.0
  %5201 = vmatpush1.msra.mxu0 0.0
  %5202 = vmatprep.subr.mxu0 0.0
  %5203 = vmatpush1.msra.mxu0 0.0
  %5204 = vmatprep.subr.mxu0 0.0
  %5205 = vmatpush1.msra.mxu0 0.0
  %5206 = vmatprep.subr.mxu0 0.0
  %5207 = vmatpush1.msra.mxu0 0.0
  %5208 = vmatprep.subr.mxu0 0.0
  %5209 = vmatpush1.msra.mxu0 0.0
  %5210 = vmatprep.subr.mxu0 0.0
  %5211 = vmatpush1.msra.mxu0 0.0
  %5212 = vmatprep.subr.mxu0 0.0
  %5213 = vmatpush1.msra.mxu0 0.0
  %5214 = vmatprep.subr.mxu0 0.0
  %5215 = vmatpush1.msra.mxu0 0.0
  %5216 = vmatprep.subr.mxu0 0.0
  %5217 = vmatpush1.msra.mxu0 0.0
  %5218 = vmatprep.subr.mxu0 0.0
  %5219 = vmatpush1.msra.mxu0 0.0
  %5220 = vmatprep.subr.mxu0 0.0
  %5221 = vmatpush1.msra.mxu0 0.0
  %5222 = vmatprep.subr.mxu0 0.0
  %5223 = vmatpush1.msra.mxu0 0.0
  %5224 = vmatprep.subr.mxu0 0.0
  %5225 = vmatpush1.msra.mxu0 0.0
  %5226 = vmatprep.subr.mxu0 0.0
  %5227 = vmatpush1.msra.mxu0 0.0
  %5228 = vmatprep.subr.mxu0 0.0
  %5229 = vmatpush1.msra.mxu0 0.0
  %5230 = vmatprep.subr.mxu0 0.0
  %5231 = vmatpush1.msra.mxu0 0.0
  %5232 = vmatprep.subr.mxu0 0.0
  %5233 = vmatpush1.msra.mxu0 0.0
  %5234 = vmatprep.subr.mxu0 0.0
  %5235 = vmatpush1.msra.mxu0 0.0
  %5236 = vmatprep.mubr.f32.mxu0 0.0
  %5237 = vmatmul.mubr.f32.gmra.mrb[0].mxu0 %v5002
  %v5238 = vpop.f32.mrb[0].mxu0
  %v5239 = vadd.f32 0.0, %v5238
  %v5240 = vpop.f32.mrb[0].mxu0
  %5241 = vmatprep.mubr.f32.mxu0 0.0
  %5242 = vmatmul.mubr.f32.gmra.mrb[0].mxu0 %v5005
  %v5243 = vpop.f32.mrb[0].mxu0
  %v5244 = vadd.f32 0.0, %v5243
  %v5245 = vpop.f32.mrb[0].mxu0
  %5246 = vmatprep.mubr.f32.mxu0 0.0
  %5247 = vmatmul.mubr.f32.gmra.mrb[0].mxu0 %v5008
  %v5248 = vpop.f32.mrb[0].mxu0
  %v5249 = vadd.f32 0.0, %v5248
  %v5250 = vpop.f32.mrb[0].mxu0
  %5251 = vmatprep.mubr.f32.mxu0 0.0
  %5252 = vmatmul.mubr.f32.gmra.mrb[0].mxu0 %v5011
  %v5253 = vpop.f32.mrb[0].mxu0
  %v5254 = vadd.f32 0.0, %v5253
  %v5255 = vpop.f32.mrb[0].mxu0
  %5256 = vmatprep.mubr.f32.mxu0 0.0
  %5257 = vmatmul.mubr.f32.gmra.mrb[0].mxu0 %v5014
  %v5258 = vpop.f32.mrb[0].mxu0
  %v5259 = vadd.f32 0.0, %v5258
  %v5260 = vpop.f32.mrb[0].mxu0
  %5261 = vmatprep.mubr.f32.mxu0 0.0
  %5262 = vmatmul.mubr.f32.gmra.mrb[0].mxu0 %v5017
  %v5263 = vpop.f32.mrb[0].mxu0
  %v5264 = vadd.f32 0.0, %v5263
  %v5265 = vpop.f32.mrb[0].mxu0
  %5266 = vmatprep.mubr.f32.mxu0 0.0
  %5267 = vmatmul.mubr.f32.gmra.mrb[0].mxu0 %v5020
  %v5268 = vpop.f32.mrb[0].mxu0
  %v5269 = vadd.f32 0.0, %v5268
  %v5270 = vpop.f32.mrb[0].mxu0
  %5271 = vmatprep.mubr.f32.mxu0 0.0
  %5272 = vmatmul.mubr.f32.gmra.mrb[0].mxu0 %v5023
  %v5273 = vpop.f32.mrb[0].mxu0
  %v5274 = vadd.f32 0.0, %v5273
  %v5275 = vpop.f32.mrb[0].mxu0
  %5276 = vmatprep.mubr.f32.mxu0 0.0
  %5277 = vmatmul.mubr.f32.gmra.mrb[0].mxu0 %v5026
  %v5278 = vpop.f32.mrb[0].mxu0
  %v5279 = vadd.f32 0.0, %v5278
  %v5280 = vpop.f32.mrb[0].mxu0
  %5281 = vmatprep.mubr.f32.mxu0 0.0
  %5282 = vmatmul.mubr.f32.gmra.mrb[0].mxu0 %v5029
  %v5283 = vpop.f32.mrb[0].mxu0
  %v5284 = vadd.f32 0.0, %v5283
  %v5285 = vpop.f32.mrb[0].mxu0
  %5286 = vmatprep.mubr.f32.mxu0 0.0
  %5287 = vmatmul.mubr.f32.gmra.mrb[0].mxu0 %v5032
  %v5288 = vpop.f32.mrb[0].mxu0
  %v5289 = vadd.f32 0.0, %v5288
  %v5290 = vpop.f32.mrb[0].mxu0
  %5291 = vmatprep.mubr.f32.mxu0 0.0
  %5292 = vmatmul.mubr.f32.gmra.mrb[0].mxu0 %v5035
  %v5293 = vpop.f32.mrb[0].mxu0
  %v5294 = vadd.f32 0.0, %v5293
  %v5295 = vpop.f32.mrb[0].mxu0
  %5296 = vmatprep.mubr.f32.mxu0 0.0
  %5297 = vmatmul.mubr.f32.gmra.mrb[0].mxu0 %v5038
  %v5298 = vpop.f32.mrb[0].mxu0
  %v5299 = vadd.f32 0.0, %v5298
  %v5300 = vpop.f32.mrb[0].mxu0
  %5301 = vmatprep.mubr.f32.mxu0 0.0
  %5302 = vmatmul.mubr.f32.gmra.mrb[0].mxu0 %v5041
  %v5303 = vpop.f32.mrb[0].mxu0
  %v5304 = vadd.f32 0.0, %v5303
  %v5305 = vpop.f32.mrb[0].mxu0
  %5306 = vmatprep.mubr.f32.mxu0 0.0
  %5307 = vmatmul.mubr.f32.gmra.mrb[0].mxu0 %v5044
  %v5308 = vpop.f32.mrb[0].mxu0
  %v5309 = vadd.f32 0.0, %v5308
  %v5310 = vpop.f32.mrb[0].mxu0
  %5311 = vmatprep.mubr.f32.mxu0 0.0
  %5312 = vmatmul.mubr.f32.gmra.mrb[0].mxu0 %v5047
  %v5313 = vpop.f32.mrb[0].mxu0
  %v5314 = vadd.f32 0.0, %v5313
  %v5315 = vpop.f32.mrb[0].mxu0
  %5316 = vmatprep.mubr.f32.mxu0 0.0
  %5317 = vmatmul.mubr.f32.gmra.mrb[0].mxu0 %v5050
  %v5318 = vpop.f32.mrb[0].mxu0
  %v5319 = vadd.f32 0.0, %v5318
  %v5320 = vpop.f32.mrb[0].mxu0
  %5321 = vmatprep.mubr.f32.mxu0 0.0
  %5322 = vmatmul.mubr.f32.gmra.mrb[0].mxu0 %v5053
  %v5323 = vpop.f32.mrb[0].mxu0
  %v5324 = vadd.f32 0.0, %v5323
  %v5325 = vpop.f32.mrb[0].mxu0
  %5326 = vmatprep.mubr.f32.mxu0 0.0
  %5327 = vmatmul.mubr.f32.gmra.mrb[0].mxu0 %v5056
  %v5328 = vpop.f32.mrb[0].mxu0
  %v5329 = vadd.f32 0.0, %v5328
  %v5330 = vpop.f32.mrb[0].mxu0
  %5331 = vmatprep.mubr.f32.mxu0 0.0
  %5332 = vmatmul.mubr.f32.gmra.mrb[0].mxu0 %v5059
  %v5333 = vpop.f32.mrb[0].mxu0
  %v5334 = vadd.f32 0.0, %v5333
  %v5335 = vpop.f32.mrb[0].mxu0
  %5336 = vmatprep.mubr.f32.mxu0 0.0
  %5337 = vmatmul.mubr.f32.gmra.mrb[0].mxu0 %v5062
  %v5338 = vpop.f32.mrb[0].mxu0
  %v5339 = vadd.f32 0.0, %v5338
  %v5340 = vpop.f32.mrb[0].mxu0
  %5341 = vmatprep.mubr.f32.mxu0 0.0
  %5342 = vmatmul.mubr.f32.gmra.mrb[0].mxu0 %v5065
  %v5343 = vpop.f32.mrb[0].mxu0
  %v5344 = vadd.f32 0.0, %v5343
  %v5345 = vpop.f32.mrb[0].mxu0
  %5346 = vmatprep.mubr.f32.mxu0 0.0
  %5347 = vmatmul.mubr.f32.gmra.mrb[0].mxu0 %v5068
  %v5348 = vpop.f32.mrb[0].mxu0
  %v5349 = vadd.f32 0.0, %v5348
  %v5350 = vpop.f32.mrb[0].mxu0
  %5351 = vmatprep.mubr.f32.mxu0 0.0
  %5352 = vmatmul.mubr.f32.gmra.mrb[0].mxu0 %v5071
  %v5353 = vpop.f32.mrb[0].mxu0
  %v5354 = vadd.f32 0.0, %v5353
  %v5355 = vpop.f32.mrb[0].mxu0
  %5356 = vmatprep.mubr.f32.mxu0 0.0
  %5357 = vmatmul.mubr.f32.gmra.mrb[0].mxu0 %v5074
  %v5358 = vpop.f32.mrb[0].mxu0
  %v5359 = vadd.f32 0.0, %v5358
  %v5360 = vpop.f32.mrb[0].mxu0
  %5361 = vmatprep.mubr.f32.mxu0 0.0
  %5362 = vmatmul.mubr.f32.gmra.mrb[0].mxu0 %v5077
  %v5363 = vpop.f32.mrb[0].mxu0
  %v5364 = vadd.f32 0.0, %v5363
  %v5365 = vpop.f32.mrb[0].mxu0
  %5366 = vmatprep.mubr.f32.mxu0 0.0
  %5367 = vmatmul.mubr.f32.gmra.mrb[0].mxu0 %v5080
  %v5368 = vpop.f32.mrb[0].mxu0
  %v5369 = vadd.f32 0.0, %v5368
  %v5370 = vpop.f32.mrb[0].mxu0
  %5371 = vmatprep.mubr.f32.mxu0 0.0
  %5372 = vmatmul.mubr.f32.gmra.mrb[0].mxu0 %v5083
  %v5373 = vpop.f32.mrb[0].mxu0
  %v5374 = vadd.f32 0.0, %v5373
  %v5375 = vpop.f32.mrb[0].mxu0
  %5376 = vmatprep.mubr.f32.mxu0 0.0
  %5377 = vmatmul.mubr.f32.gmra.mrb[0].mxu0 %v5086
  %v5378 = vpop.f32.mrb[0].mxu0
  %v5379 = vadd.f32 0.0, %v5378
  %v5380 = vpop.f32.mrb[0].mxu0
  %5381 = vmatprep.mubr.f32.mxu0 0.0
  %5382 = vmatmul.mubr.f32.gmra.mrb[0].mxu0 %v5089
  %v5383 = vpop.f32.mrb[0].mxu0
  %v5384 = vadd.f32 0.0, %v5383
  %v5385 = vpop.f32.mrb[0].mxu0
  %5386 = vmatprep.mubr.f32.mxu0 0.0
  %5387 = vmatmul.mubr.f32.gmra.mrb[0].mxu0 %v5092
  %v5388 = vpop.f32.mrb[0].mxu0
  %v5389 = vadd.f32 0.0, %v5388
  %v5390 = vpop.f32.mrb[0].mxu0
  %5391 = vmatprep.mubr.f32.mxu0 0.0
  %5392 = vmatmul.mubr.f32.gmra.mrb[0].mxu0 %v5095
  %v5393 = vpop.f32.mrb[0].mxu0
  %v5394 = vadd.f32 0.0, %v5393
  %v5395 = vpop.f32.mrb[0].mxu0
  %5396 = vmatprep.mubr.f32.mxu0 0.0
  %5397 = vmatmul.mubr.f32.gmra.mrb[0].mxu0 %v5098
  %v5398 = vpop.f32.mrb[0].mxu0
  %v5399 = vadd.f32 0.0, %v5398
  %v5400 = vpop.f32.mrb[0].mxu0
  %5401 = vmatprep.mubr.f32.mxu0 0.0
  %5402 = vmatmul.mubr.f32.gmra.mrb[0].mxu0 %v5101
  %v5403 = vpop.f32.mrb[0].mxu0
  %v5404 = vadd.f32 0.0, %v5403
  %v5405 = vpop.f32.mrb[0].mxu0
  %5406 = vmatprep.mubr.f32.mxu0 0.0
  %5407 = vmatmul.mubr.f32.gmra.mrb[0].mxu0 %v5104
  %v5408 = vpop.f32.mrb[0].mxu0
  %v5409 = vadd.f32 0.0, %v5408
  %v5410 = vpop.f32.mrb[0].mxu0
  %5411 = vmatprep.mubr.f32.mxu0 0.0
  %5412 = vmatmul.mubr.f32.gmra.mrb[0].mxu0 %v5107
  %v5413 = vpop.f32.mrb[0].mxu0
  %v5414 = vadd.f32 0.0, %v5413
  %v5415 = vpop.f32.mrb[0].mxu0
  %5416 = vmatprep.mubr.f32.mxu0 0.0
  %5417 = vmatmul.mubr.f32.gmra.mrb[0].mxu0 %v5110
  %v5418 = vpop.f32.mrb[0].mxu0
  %v5419 = vadd.f32 0.0, %v5418
  %v5420 = vpop.f32.mrb[0].mxu0
  %5421 = vmatprep.mubr.f32.mxu0 0.0
  %5422 = vmatmul.mubr.f32.gmra.mrb[0].mxu0 %v5113
  %v5423 = vpop.f32.mrb[0].mxu0
  %v5424 = vadd.f32 0.0, %v5423
  %v5425 = vpop.f32.mrb[0].mxu0
  %5426 = vmatprep.mubr.f32.mxu0 0.0
  %5427 = vmatmul.mubr.f32.gmra.mrb[0].mxu0 %v5116
  %v5428 = vpop.f32.mrb[0].mxu0
  %v5429 = vadd.f32 0.0, %v5428
  %v5430 = vpop.f32.mrb[0].mxu0
  %5431 = vmatprep.mubr.f32.mxu0 0.0
  %5432 = vmatmul.mubr.f32.gmra.mrb[0].mxu0 %v5119
  %v5433 = vpop.f32.mrb[0].mxu0
  %v5434 = vadd.f32 0.0, %v5433
  %v5435 = vpop.f32.mrb[0].mxu0
  %5436 = vmatprep.mubr.f32.mxu0 0.0
  %5437 = vmatmul.mubr.f32.gmra.mrb[0].mxu0 %v5122
  %v5438 = vpop.f32.mrb[0].mxu0
  %v5439 = vadd.f32 0.0, %v5438
  %v5440 = vpop.f32.mrb[0].mxu0
  %5441 = vmatprep.mubr.f32.mxu0 0.0
  %5442 = vmatmul.mubr.f32.gmra.mrb[0].mxu0 %v5125
  %v5443 = vpop.f32.mrb[0].mxu0
  %v5444 = vadd.f32 0.0, %v5443
  %v5445 = vpop.f32.mrb[0].mxu0
  %5446 = vmatprep.mubr.f32.mxu0 0.0
  %5447 = vmatmul.mubr.f32.gmra.mrb[0].mxu0 %v5128
  %v5448 = vpop.f32.mrb[0].mxu0
  %v5449 = vadd.f32 0.0, %v5448
  %v5450 = vpop.f32.mrb[0].mxu0
  %5451 = vmatprep.mubr.f32.mxu0 0.0
  %5452 = vmatmul.mubr.f32.gmra.mrb[0].mxu0 %v5131
  %v5453 = vpop.f32.mrb[0].mxu0
  %v5454 = vadd.f32 0.0, %v5453
  %v5455 = vpop.f32.mrb[0].mxu0
  %5456 = vmatprep.mubr.f32.mxu0 0.0
  %5457 = vmatmul.mubr.f32.gmra.mrb[0].mxu0 %v5134
  %v5458 = vpop.f32.mrb[0].mxu0
  %v5459 = vadd.f32 0.0, %v5458
  %v5460 = vpop.f32.mrb[0].mxu0
  %5461 = vmatprep.mubr.f32.mxu0 0.0
  %5462 = vmatmul.mubr.f32.gmra.mrb[0].mxu0 %v5137
  %v5463 = vpop.f32.mrb[0].mxu0
  %v5464 = vadd.f32 0.0, %v5463
  %v5465 = vpop.f32.mrb[0].mxu0
  %5466 = vmatprep.mubr.f32.mxu0 0.0
  %5467 = vmatmul.mubr.f32.gmra.mrb[0].mxu0 %v5140
  %v5468 = vpop.f32.mrb[0].mxu0
  %v5469 = vadd.f32 0.0, %v5468
  %v5470 = vpop.f32.mrb[0].mxu0
  %5471 = vmatprep.mubr.f32.mxu0 0.0
  %5472 = vmatmul.mubr.f32.gmra.mrb[0].mxu0 %v5143
  %v5473 = vpop.f32.mrb[0].mxu0
  %v5474 = vadd.f32 0.0, %v5473
  %v5475 = vpop.f32.mrb[0].mxu0
  %5476 = vmatprep.mubr.f32.mxu0 0.0
  %5477 = vmatmul.mubr.f32.gmra.mrb[0].mxu0 %v5146
  %v5478 = vpop.f32.mrb[0].mxu0
  %v5479 = vadd.f32 0.0, %v5478
  %v5480 = vpop.f32.mrb[0].mxu0
  %5481 = vmatprep.mubr.f32.mxu0 0.0
  %5482 = vmatmul.mubr.f32.gmra.mrb[0].mxu0 %v5149
  %v5483 = vpop.f32.mrb[0].mxu0
  %v5484 = vadd.f32 0.0, %v5483
  %v5485 = vpop.f32.mrb[0].mxu0
  %5486 = vmatprep.mubr.f32.mxu0 0.0
  %5487 = vmatmul.mubr.f32.gmra.mrb[0].mxu0 %v5152
  %v5488 = vpop.f32.mrb[0].mxu0
  %v5489 = vadd.f32 0.0, %v5488
  %v5490 = vpop.f32.mrb[0].mxu0
  %5491 = vmatprep.mubr.f32.mxu0 0.0
  %5492 = vmatmul.mubr.f32.gmra.mrb[0].mxu0 %v5155
  %v5493 = vpop.f32.mrb[0].mxu0
  %v5494 = vadd.f32 0.0, %v5493
  %v5495 = vpop.f32.mrb[0].mxu0
  %5496 = vmatprep.mubr.f32.mxu0 0.0
  %5497 = vmatmul.mubr.f32.gmra.mrb[0].mxu0 %v5158
  %v5498 = vpop.f32.mrb[0].mxu0
  %v5499 = vadd.f32 0.0, %v5498
  %v5500 = vpop.f32.mrb[0].mxu0
  %5501 = vmatprep.mubr.f32.mxu0 0.0
  %5502 = vmatmul.mubr.f32.gmra.mrb[0].mxu0 %v5161
  %v5503 = vpop.f32.mrb[0].mxu0
  %v5504 = vadd.f32 0.0, %v5503
  %v5505 = vpop.f32.mrb[0].mxu0
  %5506 = vmatprep.mubr.f32.mxu0 0.0
  %5507 = vmatmul.mubr.f32.gmra.mrb[0].mxu0 %v5164
  %v5508 = vpop.f32.mrb[0].mxu0
  %v5509 = vadd.f32 0.0, %v5508
  %v5510 = vpop.f32.mrb[0].mxu0
  %5511 = vmatprep.mubr.f32.mxu0 0.0
  %5512 = vmatmul.mubr.f32.gmra.mrb[0].mxu0 %v5167
  %v5513 = vpop.f32.mrb[0].mxu0
  %v5514 = vadd.f32 0.0, %v5513
  %v5515 = vpop.f32.mrb[0].mxu0
  %5516 = vdwg.mxu0
  %v5517 = vadd.f32 %v4887, %v5239
  %v5518 = vadd.f32 %v4888, %v5244
  %v5519 = vadd.f32 %v4889, %v5249
  %v5520 = vadd.f32 %v4890, %v5254
  %v5521 = vadd.f32 %v4891, %v5259
  %v5522 = vadd.f32 %v4892, %v5264
  %v5523 = vadd.f32 %v4893, %v5269
  %v5524 = vadd.f32 %v4894, %v5274
  %v5525 = vadd.f32 %v4895, %v5279
  %v5526 = vadd.f32 %v4896, %v5284
  %v5527 = vadd.f32 %v4897, %v5289
  %v5528 = vadd.f32 %v4898, %v5294
  %v5529 = vadd.f32 %v4899, %v5299
  %v5530 = vadd.f32 %v4900, %v5304
  %v5531 = vadd.f32 %v4901, %v5309
  %v5532 = vadd.f32 %v4902, %v5314
  %v5533 = vadd.f32 %v4903, %v5319
  %v5534 = vadd.f32 %v4904, %v5324
  %v5535 = vadd.f32 %v4905, %v5329
  %v5536 = vadd.f32 %v4906, %v5334
  %v5537 = vadd.f32 %v4907, %v5339
  %v5538 = vadd.f32 %v4908, %v5344
  %v5539 = vadd.f32 %v4909, %v5349
  %v5540 = vadd.f32 %v4910, %v5354
  %v5541 = vadd.f32 %v4911, %v5359
  %v5542 = vadd.f32 %v4912, %v5364
  %v5543 = vadd.f32 %v4913, %v5369
  %v5544 = vadd.f32 %v4914, %v5374
  %v5545 = vadd.f32 %v4915, %v5379
  %v5546 = vadd.f32 %v4916, %v5384
  %v5547 = vadd.f32 %v4917, %v5389
  %v5548 = vadd.f32 %v4918, %v5394
  %v5549 = vadd.f32 %v4919, %v5399
  %v5550 = vadd.f32 %v4920, %v5404
  %v5551 = vadd.f32 %v4921, %v5409
  %v5552 = vadd.f32 %v4922, %v5414
  %v5553 = vadd.f32 %v4923, %v5419
  %v5554 = vadd.f32 %v4924, %v5424
  %v5555 = vadd.f32 %v4925, %v5429
  %v5556 = vadd.f32 %v4926, %v5434
  %v5557 = vadd.f32 %v4927, %v5439
  %v5558 = vadd.f32 %v4928, %v5444
  %v5559 = vadd.f32 %v4929, %v5449
  %v5560 = vadd.f32 %v4930, %v5454
  %v5561 = vadd.f32 %v4931, %v5459
  %v5562 = vadd.f32 %v4932, %v5464
  %v5563 = vadd.f32 %v4933, %v5469
  %v5564 = vadd.f32 %v4934, %v5474
  %v5565 = vadd.f32 %v4935, %v5479
  %v5566 = vadd.f32 %v4936, %v5484
  %v5567 = vadd.f32 %v4937, %v5489
  %v5568 = vadd.f32 %v4938, %v5494
  %v5569 = vadd.f32 %v4939, %v5499
  %v5570 = vadd.f32 %v4940, %v5504
  %v5571 = vadd.f32 %v4941, %v5509
  %v5572 = vadd.f32 %v4942, %v5514
  %5629 = vrot.lane.b32.xlu0 %v5517, 112
  %v5630 = vpop.permute.xlu0 %5629
  %5631 = vrot.lane.b32.xlu0 %v5518, 112
  %v5632 = vpop.permute.xlu0 %5631
  %5633 = vrot.lane.b32.xlu0 %v5519, 112
  %v5634 = vpop.permute.xlu0 %5633
  %5635 = vrot.lane.b32.xlu0 %v5520, 112
  %v5636 = vpop.permute.xlu0 %5635
  %5637 = vrot.lane.b32.xlu0 %v5521, 112
  %v5638 = vpop.permute.xlu0 %5637
  %5639 = vrot.lane.b32.xlu0 %v5522, 112
  %v5640 = vpop.permute.xlu0 %5639
  %5641 = vrot.lane.b32.xlu0 %v5523, 112
  %v5642 = vpop.permute.xlu0 %5641
  %5643 = vrot.lane.b32.xlu0 %v5524, 112
  %v5644 = vpop.permute.xlu0 %5643
  %5645 = vrot.lane.b32.xlu0 %v5525, 112
  %v5646 = vpop.permute.xlu0 %5645
  %5647 = vrot.lane.b32.xlu0 %v5526, 112
  %v5648 = vpop.permute.xlu0 %5647
  %5649 = vrot.lane.b32.xlu0 %v5527, 112
  %v5650 = vpop.permute.xlu0 %5649
  %5651 = vrot.lane.b32.xlu0 %v5528, 112
  %v5652 = vpop.permute.xlu0 %5651
  %5653 = vrot.lane.b32.xlu0 %v5529, 112
  %v5654 = vpop.permute.xlu0 %5653
  %5655 = vrot.lane.b32.xlu0 %v5530, 112
  %v5656 = vpop.permute.xlu0 %5655
  %5657 = vrot.lane.b32.xlu0 %v5531, 112
  %v5658 = vpop.permute.xlu0 %5657
  %5659 = vrot.lane.b32.xlu0 %v5532, 112
  %v5660 = vpop.permute.xlu0 %5659
  %5661 = vrot.lane.b32.xlu0 %v5533, 112
  %v5662 = vpop.permute.xlu0 %5661
  %5663 = vrot.lane.b32.xlu0 %v5534, 112
  %v5664 = vpop.permute.xlu0 %5663
  %5665 = vrot.lane.b32.xlu0 %v5535, 112
  %v5666 = vpop.permute.xlu0 %5665
  %5667 = vrot.lane.b32.xlu0 %v5536, 112
  %v5668 = vpop.permute.xlu0 %5667
  %5669 = vrot.lane.b32.xlu0 %v5537, 112
  %v5670 = vpop.permute.xlu0 %5669
  %5671 = vrot.lane.b32.xlu0 %v5538, 112
  %v5672 = vpop.permute.xlu0 %5671
  %5673 = vrot.lane.b32.xlu0 %v5539, 112
  %v5674 = vpop.permute.xlu0 %5673
  %5675 = vrot.lane.b32.xlu0 %v5540, 112
  %v5676 = vpop.permute.xlu0 %5675
  %5677 = vrot.lane.b32.xlu0 %v5541, 112
  %v5678 = vpop.permute.xlu0 %5677
  %5679 = vrot.lane.b32.xlu0 %v5542, 112
  %v5680 = vpop.permute.xlu0 %5679
  %5681 = vrot.lane.b32.xlu0 %v5543, 112
  %v5682 = vpop.permute.xlu0 %5681
  %5683 = vrot.lane.b32.xlu0 %v5544, 112
  %v5684 = vpop.permute.xlu0 %5683
  %5685 = vrot.lane.b32.xlu0 %v5545, 112
  %v5686 = vpop.permute.xlu0 %5685
  %5687 = vrot.lane.b32.xlu0 %v5546, 112
  %v5688 = vpop.permute.xlu0 %5687
  %5689 = vrot.lane.b32.xlu0 %v5547, 112
  %v5690 = vpop.permute.xlu0 %5689
  %5691 = vrot.lane.b32.xlu0 %v5548, 112
  %v5692 = vpop.permute.xlu0 %5691
  %5693 = vrot.lane.b32.xlu0 %v5549, 112
  %v5694 = vpop.permute.xlu0 %5693
  %5695 = vrot.lane.b32.xlu0 %v5550, 112
  %v5696 = vpop.permute.xlu0 %5695
  %5697 = vrot.lane.b32.xlu0 %v5551, 112
  %v5698 = vpop.permute.xlu0 %5697
  %5699 = vrot.lane.b32.xlu0 %v5552, 112
  %v5700 = vpop.permute.xlu0 %5699
  %5701 = vrot.lane.b32.xlu0 %v5553, 112
  %v5702 = vpop.permute.xlu0 %5701
  %5703 = vrot.lane.b32.xlu0 %v5554, 112
  %v5704 = vpop.permute.xlu0 %5703
  %5705 = vrot.lane.b32.xlu0 %v5555, 112
  %v5706 = vpop.permute.xlu0 %5705
  %5707 = vrot.lane.b32.xlu0 %v5556, 112
  %v5708 = vpop.permute.xlu0 %5707
  %5709 = vrot.lane.b32.xlu0 %v5557, 112
  %v5710 = vpop.permute.xlu0 %5709
  %5711 = vrot.lane.b32.xlu0 %v5558, 112
  %v5712 = vpop.permute.xlu0 %5711
  %5713 = vrot.lane.b32.xlu0 %v5559, 112
  %v5714 = vpop.permute.xlu0 %5713
  %5715 = vrot.lane.b32.xlu0 %v5560, 112
  %v5716 = vpop.permute.xlu0 %5715
  %5717 = vrot.lane.b32.xlu0 %v5561, 112
  %v5718 = vpop.permute.xlu0 %5717
  %5719 = vrot.lane.b32.xlu0 %v5562, 112
  %v5720 = vpop.permute.xlu0 %5719
  %5721 = vrot.lane.b32.xlu0 %v5563, 112
  %v5722 = vpop.permute.xlu0 %5721
  %5723 = vrot.lane.b32.xlu0 %v5564, 112
  %v5724 = vpop.permute.xlu0 %5723
  %5725 = vrot.lane.b32.xlu0 %v5565, 112
  %v5726 = vpop.permute.xlu0 %5725
  %5727 = vrot.lane.b32.xlu0 %v5566, 112
  %v5728 = vpop.permute.xlu0 %5727
  %5729 = vrot.lane.b32.xlu0 %v5567, 112
  %v5730 = vpop.permute.xlu0 %5729
  %5731 = vrot.lane.b32.xlu0 %v5568, 112
  %v5732 = vpop.permute.xlu0 %5731
  %5733 = vrot.lane.b32.xlu0 %v5569, 112
  %v5734 = vpop.permute.xlu0 %5733
  %5735 = vrot.lane.b32.xlu0 %v5570, 112
  %v5736 = vpop.permute.xlu0 %5735
  %5737 = vrot.lane.b32.xlu0 %v5571, 112
  %v5738 = vpop.permute.xlu0 %5737
  %5739 = vrot.lane.b32.xlu0 %v5572, 112
  %v5740 = vpop.permute.xlu0 %5739
  %v5797 = vmax.f32 %v5517, %v5630
  %v5798 = vmax.f32 %v5518, %v5632
  %v5799 = vmax.f32 %v5519, %v5634
  %v5800 = vmax.f32 %v5520, %v5636
  %v5801 = vmax.f32 %v5521, %v5638
  %v5802 = vmax.f32 %v5522, %v5640
  %v5803 = vmax.f32 %v5523, %v5642
  %v5804 = vmax.f32 %v5524, %v5644
  %v5805 = vmax.f32 %v5525, %v5646
  %v5806 = vmax.f32 %v5526, %v5648
  %v5807 = vmax.f32 %v5527, %v5650
  %v5808 = vmax.f32 %v5528, %v5652
  %v5809 = vmax.f32 %v5529, %v5654
  %v5810 = vmax.f32 %v5530, %v5656
  %v5811 = vmax.f32 %v5531, %v5658
  %v5812 = vmax.f32 %v5532, %v5660
  %v5813 = vmax.f32 %v5533, %v5662
  %v5814 = vmax.f32 %v5534, %v5664
  %v5815 = vmax.f32 %v5535, %v5666
  %v5816 = vmax.f32 %v5536, %v5668
  %v5817 = vmax.f32 %v5537, %v5670
  %v5818 = vmax.f32 %v5538, %v5672
  %v5819 = vmax.f32 %v5539, %v5674
  %v5820 = vmax.f32 %v5540, %v5676
  %v5821 = vmax.f32 %v5541, %v5678
  %v5822 = vmax.f32 %v5542, %v5680
  %v5823 = vmax.f32 %v5543, %v5682
  %v5824 = vmax.f32 %v5544, %v5684
  %v5825 = vmax.f32 %v5545, %v5686
  %v5826 = vmax.f32 %v5546, %v5688
  %v5827 = vmax.f32 %v5547, %v5690
  %v5828 = vmax.f32 %v5548, %v5692
  %v5829 = vmax.f32 %v5549, %v5694
  %v5830 = vmax.f32 %v5550, %v5696
  %v5831 = vmax.f32 %v5551, %v5698
  %v5832 = vmax.f32 %v5552, %v5700
  %v5833 = vmax.f32 %v5553, %v5702
  %v5834 = vmax.f32 %v5554, %v5704
  %v5835 = vmax.f32 %v5555, %v5706
  %v5836 = vmax.f32 %v5556, %v5708
  %v5837 = vmax.f32 %v5557, %v5710
  %v5838 = vmax.f32 %v5558, %v5712
  %v5839 = vmax.f32 %v5559, %v5714
  %v5840 = vmax.f32 %v5560, %v5716
  %v5841 = vmax.f32 %v5561, %v5718
  %v5842 = vmax.f32 %v5562, %v5720
  %v5843 = vmax.f32 %v5563, %v5722
  %v5844 = vmax.f32 %v5564, %v5724
  %v5845 = vmax.f32 %v5565, %v5726
  %v5846 = vmax.f32 %v5566, %v5728
  %v5847 = vmax.f32 %v5567, %v5730
  %v5848 = vmax.f32 %v5568, %v5732
  %v5849 = vmax.f32 %v5569, %v5734
  %v5850 = vmax.f32 %v5570, %v5736
  %v5851 = vmax.f32 %v5571, %v5738
  %v5852 = vmax.f32 %v5572, %v5740
  %5853 = vrot.lane.b32.xlu0 %v5517, 96
  %v5854 = vpop.permute.xlu0 %5853
  %5855 = vrot.lane.b32.xlu0 %v5518, 96
  %v5856 = vpop.permute.xlu0 %5855
  %5857 = vrot.lane.b32.xlu0 %v5519, 96
  %v5858 = vpop.permute.xlu0 %5857
  %5859 = vrot.lane.b32.xlu0 %v5520, 96
  %v5860 = vpop.permute.xlu0 %5859
  %5861 = vrot.lane.b32.xlu0 %v5521, 96
  %v5862 = vpop.permute.xlu0 %5861
  %5863 = vrot.lane.b32.xlu0 %v5522, 96
  %v5864 = vpop.permute.xlu0 %5863
  %5865 = vrot.lane.b32.xlu0 %v5523, 96
  %v5866 = vpop.permute.xlu0 %5865
  %5867 = vrot.lane.b32.xlu0 %v5524, 96
  %v5868 = vpop.permute.xlu0 %5867
  %5869 = vrot.lane.b32.xlu0 %v5525, 96
  %v5870 = vpop.permute.xlu0 %5869
  %5871 = vrot.lane.b32.xlu0 %v5526, 96
  %v5872 = vpop.permute.xlu0 %5871
  %5873 = vrot.lane.b32.xlu0 %v5527, 96
  %v5874 = vpop.permute.xlu0 %5873
  %5875 = vrot.lane.b32.xlu0 %v5528, 96
  %v5876 = vpop.permute.xlu0 %5875
  %5877 = vrot.lane.b32.xlu0 %v5529, 96
  %v5878 = vpop.permute.xlu0 %5877
  %5879 = vrot.lane.b32.xlu0 %v5530, 96
  %v5880 = vpop.permute.xlu0 %5879
  %5881 = vrot.lane.b32.xlu0 %v5531, 96
  %v5882 = vpop.permute.xlu0 %5881
  %5883 = vrot.lane.b32.xlu0 %v5532, 96
  %v5884 = vpop.permute.xlu0 %5883
  %5885 = vrot.lane.b32.xlu0 %v5533, 96
  %v5886 = vpop.permute.xlu0 %5885
  %5887 = vrot.lane.b32.xlu0 %v5534, 96
  %v5888 = vpop.permute.xlu0 %5887
  %5889 = vrot.lane.b32.xlu0 %v5535, 96
  %v5890 = vpop.permute.xlu0 %5889
  %5891 = vrot.lane.b32.xlu0 %v5536, 96
  %v5892 = vpop.permute.xlu0 %5891
  %5893 = vrot.lane.b32.xlu0 %v5537, 96
  %v5894 = vpop.permute.xlu0 %5893
  %5895 = vrot.lane.b32.xlu0 %v5538, 96
  %v5896 = vpop.permute.xlu0 %5895
  %5897 = vrot.lane.b32.xlu0 %v5539, 96
  %v5898 = vpop.permute.xlu0 %5897
  %5899 = vrot.lane.b32.xlu0 %v5540, 96
  %v5900 = vpop.permute.xlu0 %5899
  %5901 = vrot.lane.b32.xlu0 %v5541, 96
  %v5902 = vpop.permute.xlu0 %5901
  %5903 = vrot.lane.b32.xlu0 %v5542, 96
  %v5904 = vpop.permute.xlu0 %5903
  %5905 = vrot.lane.b32.xlu0 %v5543, 96
  %v5906 = vpop.permute.xlu0 %5905
  %5907 = vrot.lane.b32.xlu0 %v5544, 96
  %v5908 = vpop.permute.xlu0 %5907
  %5909 = vrot.lane.b32.xlu0 %v5545, 96
  %v5910 = vpop.permute.xlu0 %5909
  %5911 = vrot.lane.b32.xlu0 %v5546, 96
  %v5912 = vpop.permute.xlu0 %5911
  %5913 = vrot.lane.b32.xlu0 %v5547, 96
  %v5914 = vpop.permute.xlu0 %5913
  %5915 = vrot.lane.b32.xlu0 %v5548, 96
  %v5916 = vpop.permute.xlu0 %5915
  %5917 = vrot.lane.b32.xlu0 %v5549, 96
  %v5918 = vpop.permute.xlu0 %5917
  %5919 = vrot.lane.b32.xlu0 %v5550, 96
  %v5920 = vpop.permute.xlu0 %5919
  %5921 = vrot.lane.b32.xlu0 %v5551, 96
  %v5922 = vpop.permute.xlu0 %5921
  %5923 = vrot.lane.b32.xlu0 %v5552, 96
  %v5924 = vpop.permute.xlu0 %5923
  %5925 = vrot.lane.b32.xlu0 %v5553, 96
  %v5926 = vpop.permute.xlu0 %5925
  %5927 = vrot.lane.b32.xlu0 %v5554, 96
  %v5928 = vpop.permute.xlu0 %5927
  %5929 = vrot.lane.b32.xlu0 %v5555, 96
  %v5930 = vpop.permute.xlu0 %5929
  %5931 = vrot.lane.b32.xlu0 %v5556, 96
  %v5932 = vpop.permute.xlu0 %5931
  %5933 = vrot.lane.b32.xlu0 %v5557, 96
  %v5934 = vpop.permute.xlu0 %5933
  %5935 = vrot.lane.b32.xlu0 %v5558, 96
  %v5936 = vpop.permute.xlu0 %5935
  %5937 = vrot.lane.b32.xlu0 %v5559, 96
  %v5938 = vpop.permute.xlu0 %5937
  %5939 = vrot.lane.b32.xlu0 %v5560, 96
  %v5940 = vpop.permute.xlu0 %5939
  %5941 = vrot.lane.b32.xlu0 %v5561, 96
  %v5942 = vpop.permute.xlu0 %5941
  %5943 = vrot.lane.b32.xlu0 %v5562, 96
  %v5944 = vpop.permute.xlu0 %5943
  %5945 = vrot.lane.b32.xlu0 %v5563, 96
  %v5946 = vpop.permute.xlu0 %5945
  %5947 = vrot.lane.b32.xlu0 %v5564, 96
  %v5948 = vpop.permute.xlu0 %5947
  %5949 = vrot.lane.b32.xlu0 %v5565, 96
  %v5950 = vpop.permute.xlu0 %5949
  %5951 = vrot.lane.b32.xlu0 %v5566, 96
  %v5952 = vpop.permute.xlu0 %5951
  %5953 = vrot.lane.b32.xlu0 %v5567, 96
  %v5954 = vpop.permute.xlu0 %5953
  %5955 = vrot.lane.b32.xlu0 %v5568, 96
  %v5956 = vpop.permute.xlu0 %5955
  %5957 = vrot.lane.b32.xlu0 %v5569, 96
  %v5958 = vpop.permute.xlu0 %5957
  %5959 = vrot.lane.b32.xlu0 %v5570, 96
  %v5960 = vpop.permute.xlu0 %5959
  %5961 = vrot.lane.b32.xlu0 %v5571, 96
  %v5962 = vpop.permute.xlu0 %5961
  %5963 = vrot.lane.b32.xlu0 %v5572, 96
  %v5964 = vpop.permute.xlu0 %5963
  %v6021 = vmax.f32 %v5797, %v5854
  %v6022 = vmax.f32 %v5798, %v5856
  %v6023 = vmax.f32 %v5799, %v5858
  %v6024 = vmax.f32 %v5800, %v5860
  %v6025 = vmax.f32 %v5801, %v5862
  %v6026 = vmax.f32 %v5802, %v5864
  %v6027 = vmax.f32 %v5803, %v5866
  %v6028 = vmax.f32 %v5804, %v5868
  %v6029 = vmax.f32 %v5805, %v5870
  %v6030 = vmax.f32 %v5806, %v5872
  %v6031 = vmax.f32 %v5807, %v5874
  %v6032 = vmax.f32 %v5808, %v5876
  %v6033 = vmax.f32 %v5809, %v5878
  %v6034 = vmax.f32 %v5810, %v5880
  %v6035 = vmax.f32 %v5811, %v5882
  %v6036 = vmax.f32 %v5812, %v5884
  %v6037 = vmax.f32 %v5813, %v5886
  %v6038 = vmax.f32 %v5814, %v5888
  %v6039 = vmax.f32 %v5815, %v5890
  %v6040 = vmax.f32 %v5816, %v5892
  %v6041 = vmax.f32 %v5817, %v5894
  %v6042 = vmax.f32 %v5818, %v5896
  %v6043 = vmax.f32 %v5819, %v5898
  %v6044 = vmax.f32 %v5820, %v5900
  %v6045 = vmax.f32 %v5821, %v5902
  %v6046 = vmax.f32 %v5822, %v5904
  %v6047 = vmax.f32 %v5823, %v5906
  %v6048 = vmax.f32 %v5824, %v5908
  %v6049 = vmax.f32 %v5825, %v5910
  %v6050 = vmax.f32 %v5826, %v5912
  %v6051 = vmax.f32 %v5827, %v5914
  %v6052 = vmax.f32 %v5828, %v5916
  %v6053 = vmax.f32 %v5829, %v5918
  %v6054 = vmax.f32 %v5830, %v5920
  %v6055 = vmax.f32 %v5831, %v5922
  %v6056 = vmax.f32 %v5832, %v5924
  %v6057 = vmax.f32 %v5833, %v5926
  %v6058 = vmax.f32 %v5834, %v5928
  %v6059 = vmax.f32 %v5835, %v5930
  %v6060 = vmax.f32 %v5836, %v5932
  %v6061 = vmax.f32 %v5837, %v5934
  %v6062 = vmax.f32 %v5838, %v5936
  %v6063 = vmax.f32 %v5839, %v5938
  %v6064 = vmax.f32 %v5840, %v5940
  %v6065 = vmax.f32 %v5841, %v5942
  %v6066 = vmax.f32 %v5842, %v5944
  %v6067 = vmax.f32 %v5843, %v5946
  %v6068 = vmax.f32 %v5844, %v5948
  %v6069 = vmax.f32 %v5845, %v5950
  %v6070 = vmax.f32 %v5846, %v5952
  %v6071 = vmax.f32 %v5847, %v5954
  %v6072 = vmax.f32 %v5848, %v5956
  %v6073 = vmax.f32 %v5849, %v5958
  %v6074 = vmax.f32 %v5850, %v5960
  %v6075 = vmax.f32 %v5851, %v5962
  %v6076 = vmax.f32 %v5852, %v5964
  %6077 = vrot.lane.b32.xlu0 %v5517, 80
  %v6078 = vpop.permute.xlu0 %6077
  %6079 = vrot.lane.b32.xlu0 %v5518, 80
  %v6080 = vpop.permute.xlu0 %6079
  %6081 = vrot.lane.b32.xlu0 %v5519, 80
  %v6082 = vpop.permute.xlu0 %6081
  %6083 = vrot.lane.b32.xlu0 %v5520, 80
  %v6084 = vpop.permute.xlu0 %6083
  %6085 = vrot.lane.b32.xlu0 %v5521, 80
  %v6086 = vpop.permute.xlu0 %6085
  %6087 = vrot.lane.b32.xlu0 %v5522, 80
  %v6088 = vpop.permute.xlu0 %6087
  %6089 = vrot.lane.b32.xlu0 %v5523, 80
  %v6090 = vpop.permute.xlu0 %6089
  %6091 = vrot.lane.b32.xlu0 %v5524, 80
  %v6092 = vpop.permute.xlu0 %6091
  %6093 = vrot.lane.b32.xlu0 %v5525, 80
  %v6094 = vpop.permute.xlu0 %6093
  %6095 = vrot.lane.b32.xlu0 %v5526, 80
  %v6096 = vpop.permute.xlu0 %6095
  %6097 = vrot.lane.b32.xlu0 %v5527, 80
  %v6098 = vpop.permute.xlu0 %6097
  %6099 = vrot.lane.b32.xlu0 %v5528, 80
  %v6100 = vpop.permute.xlu0 %6099
  %6101 = vrot.lane.b32.xlu0 %v5529, 80
  %v6102 = vpop.permute.xlu0 %6101
  %6103 = vrot.lane.b32.xlu0 %v5530, 80
  %v6104 = vpop.permute.xlu0 %6103
  %6105 = vrot.lane.b32.xlu0 %v5531, 80
  %v6106 = vpop.permute.xlu0 %6105
  %6107 = vrot.lane.b32.xlu0 %v5532, 80
  %v6108 = vpop.permute.xlu0 %6107
  %6109 = vrot.lane.b32.xlu0 %v5533, 80
  %v6110 = vpop.permute.xlu0 %6109
  %6111 = vrot.lane.b32.xlu0 %v5534, 80
  %v6112 = vpop.permute.xlu0 %6111
  %6113 = vrot.lane.b32.xlu0 %v5535, 80
  %v6114 = vpop.permute.xlu0 %6113
  %6115 = vrot.lane.b32.xlu0 %v5536, 80
  %v6116 = vpop.permute.xlu0 %6115
  %6117 = vrot.lane.b32.xlu0 %v5537, 80
  %v6118 = vpop.permute.xlu0 %6117
  %6119 = vrot.lane.b32.xlu0 %v5538, 80
  %v6120 = vpop.permute.xlu0 %6119
  %6121 = vrot.lane.b32.xlu0 %v5539, 80
  %v6122 = vpop.permute.xlu0 %6121
  %6123 = vrot.lane.b32.xlu0 %v5540, 80
  %v6124 = vpop.permute.xlu0 %6123
  %6125 = vrot.lane.b32.xlu0 %v5541, 80
  %v6126 = vpop.permute.xlu0 %6125
  %6127 = vrot.lane.b32.xlu0 %v5542, 80
  %v6128 = vpop.permute.xlu0 %6127
  %6129 = vrot.lane.b32.xlu0 %v5543, 80
  %v6130 = vpop.permute.xlu0 %6129
  %6131 = vrot.lane.b32.xlu0 %v5544, 80
  %v6132 = vpop.permute.xlu0 %6131
  %6133 = vrot.lane.b32.xlu0 %v5545, 80
  %v6134 = vpop.permute.xlu0 %6133
  %6135 = vrot.lane.b32.xlu0 %v5546, 80
  %v6136 = vpop.permute.xlu0 %6135
  %6137 = vrot.lane.b32.xlu0 %v5547, 80
  %v6138 = vpop.permute.xlu0 %6137
  %6139 = vrot.lane.b32.xlu0 %v5548, 80
  %v6140 = vpop.permute.xlu0 %6139
  %6141 = vrot.lane.b32.xlu0 %v5549, 80
  %v6142 = vpop.permute.xlu0 %6141
  %6143 = vrot.lane.b32.xlu0 %v5550, 80
  %v6144 = vpop.permute.xlu0 %6143
  %6145 = vrot.lane.b32.xlu0 %v5551, 80
  %v6146 = vpop.permute.xlu0 %6145
  %6147 = vrot.lane.b32.xlu0 %v5552, 80
  %v6148 = vpop.permute.xlu0 %6147
  %6149 = vrot.lane.b32.xlu0 %v5553, 80
  %v6150 = vpop.permute.xlu0 %6149
  %6151 = vrot.lane.b32.xlu0 %v5554, 80
  %v6152 = vpop.permute.xlu0 %6151
  %6153 = vrot.lane.b32.xlu0 %v5555, 80
  %v6154 = vpop.permute.xlu0 %6153
  %6155 = vrot.lane.b32.xlu0 %v5556, 80
  %v6156 = vpop.permute.xlu0 %6155
  %6157 = vrot.lane.b32.xlu0 %v5557, 80
  %v6158 = vpop.permute.xlu0 %6157
  %6159 = vrot.lane.b32.xlu0 %v5558, 80
  %v6160 = vpop.permute.xlu0 %6159
  %6161 = vrot.lane.b32.xlu0 %v5559, 80
  %v6162 = vpop.permute.xlu0 %6161
  %6163 = vrot.lane.b32.xlu0 %v5560, 80
  %v6164 = vpop.permute.xlu0 %6163
  %6165 = vrot.lane.b32.xlu0 %v5561, 80
  %v6166 = vpop.permute.xlu0 %6165
  %6167 = vrot.lane.b32.xlu0 %v5562, 80
  %v6168 = vpop.permute.xlu0 %6167
  %6169 = vrot.lane.b32.xlu0 %v5563, 80
  %v6170 = vpop.permute.xlu0 %6169
  %6171 = vrot.lane.b32.xlu0 %v5564, 80
  %v6172 = vpop.permute.xlu0 %6171
  %6173 = vrot.lane.b32.xlu0 %v5565, 80
  %v6174 = vpop.permute.xlu0 %6173
  %6175 = vrot.lane.b32.xlu0 %v5566, 80
  %v6176 = vpop.permute.xlu0 %6175
  %6177 = vrot.lane.b32.xlu0 %v5567, 80
  %v6178 = vpop.permute.xlu0 %6177
  %6179 = vrot.lane.b32.xlu0 %v5568, 80
  %v6180 = vpop.permute.xlu0 %6179
  %6181 = vrot.lane.b32.xlu0 %v5569, 80
  %v6182 = vpop.permute.xlu0 %6181
  %6183 = vrot.lane.b32.xlu0 %v5570, 80
  %v6184 = vpop.permute.xlu0 %6183
  %6185 = vrot.lane.b32.xlu0 %v5571, 80
  %v6186 = vpop.permute.xlu0 %6185
  %6187 = vrot.lane.b32.xlu0 %v5572, 80
  %v6188 = vpop.permute.xlu0 %6187
  %v6245 = vmax.f32 %v6021, %v6078
  %v6246 = vmax.f32 %v6022, %v6080
  %v6247 = vmax.f32 %v6023, %v6082
  %v6248 = vmax.f32 %v6024, %v6084
  %v6249 = vmax.f32 %v6025, %v6086
  %v6250 = vmax.f32 %v6026, %v6088
  %v6251 = vmax.f32 %v6027, %v6090
  %v6252 = vmax.f32 %v6028, %v6092
  %v6253 = vmax.f32 %v6029, %v6094
  %v6254 = vmax.f32 %v6030, %v6096
  %v6255 = vmax.f32 %v6031, %v6098
  %v6256 = vmax.f32 %v6032, %v6100
  %v6257 = vmax.f32 %v6033, %v6102
  %v6258 = vmax.f32 %v6034, %v6104
  %v6259 = vmax.f32 %v6035, %v6106
  %v6260 = vmax.f32 %v6036, %v6108
  %v6261 = vmax.f32 %v6037, %v6110
  %v6262 = vmax.f32 %v6038, %v6112
  %v6263 = vmax.f32 %v6039, %v6114
  %v6264 = vmax.f32 %v6040, %v6116
  %v6265 = vmax.f32 %v6041, %v6118
  %v6266 = vmax.f32 %v6042, %v6120
  %v6267 = vmax.f32 %v6043, %v6122
  %v6268 = vmax.f32 %v6044, %v6124
  %v6269 = vmax.f32 %v6045, %v6126
  %v6270 = vmax.f32 %v6046, %v6128
  %v6271 = vmax.f32 %v6047, %v6130
  %v6272 = vmax.f32 %v6048, %v6132
  %v6273 = vmax.f32 %v6049, %v6134
  %v6274 = vmax.f32 %v6050, %v6136
  %v6275 = vmax.f32 %v6051, %v6138
  %v6276 = vmax.f32 %v6052, %v6140
  %v6277 = vmax.f32 %v6053, %v6142
  %v6278 = vmax.f32 %v6054, %v6144
  %v6279 = vmax.f32 %v6055, %v6146
  %v6280 = vmax.f32 %v6056, %v6148
  %v6281 = vmax.f32 %v6057, %v6150
  %v6282 = vmax.f32 %v6058, %v6152
  %v6283 = vmax.f32 %v6059, %v6154
  %v6284 = vmax.f32 %v6060, %v6156
  %v6285 = vmax.f32 %v6061, %v6158
  %v6286 = vmax.f32 %v6062, %v6160
  %v6287 = vmax.f32 %v6063, %v6162
  %v6288 = vmax.f32 %v6064, %v6164
  %v6289 = vmax.f32 %v6065, %v6166
  %v6290 = vmax.f32 %v6066, %v6168
  %v6291 = vmax.f32 %v6067, %v6170
  %v6292 = vmax.f32 %v6068, %v6172
  %v6293 = vmax.f32 %v6069, %v6174
  %v6294 = vmax.f32 %v6070, %v6176
  %v6295 = vmax.f32 %v6071, %v6178
  %v6296 = vmax.f32 %v6072, %v6180
  %v6297 = vmax.f32 %v6073, %v6182
  %v6298 = vmax.f32 %v6074, %v6184
  %v6299 = vmax.f32 %v6075, %v6186
  %v6300 = vmax.f32 %v6076, %v6188
  %v6301 = vld [vmem:[%s2] sm:$0x1]
  %v6303 = vlaneseq
  %v6304 = vshrl.u32 %v6303, 7
  %v6305 = vsub.s32 0, %v6304
  %v6306 = vrot.slane %v6301, %v6305
  %v6308 = vadd.f32 %v6245, %v6306
  %v6309 = vadd.f32 %v6246, %v6306
  %v6310 = vadd.f32 %v6247, %v6306
  %v6311 = vadd.f32 %v6248, %v6306
  %v6312 = vadd.f32 %v6249, %v6306
  %v6313 = vadd.f32 %v6250, %v6306
  %v6314 = vadd.f32 %v6251, %v6306
  %v6315 = vadd.f32 %v6252, %v6306
  %v6316 = vadd.f32 %v6253, %v6306
  %v6317 = vadd.f32 %v6254, %v6306
  %v6318 = vadd.f32 %v6255, %v6306
  %v6319 = vadd.f32 %v6256, %v6306
  %v6320 = vadd.f32 %v6257, %v6306
  %v6321 = vadd.f32 %v6258, %v6306
  %v6322 = vadd.f32 %v6259, %v6306
  %v6323 = vadd.f32 %v6260, %v6306
  %v6324 = vadd.f32 %v6261, %v6306
  %v6325 = vadd.f32 %v6262, %v6306
  %v6326 = vadd.f32 %v6263, %v6306
  %v6327 = vadd.f32 %v6264, %v6306
  %v6328 = vadd.f32 %v6265, %v6306
  %v6329 = vadd.f32 %v6266, %v6306
  %v6330 = vadd.f32 %v6267, %v6306
  %v6331 = vadd.f32 %v6268, %v6306
  %v6332 = vadd.f32 %v6269, %v6306
  %v6333 = vadd.f32 %v6270, %v6306
  %v6334 = vadd.f32 %v6271, %v6306
  %v6335 = vadd.f32 %v6272, %v6306
  %v6336 = vadd.f32 %v6273, %v6306
  %v6337 = vadd.f32 %v6274, %v6306
  %v6338 = vadd.f32 %v6275, %v6306
  %v6339 = vadd.f32 %v6276, %v6306
  %v6340 = vadd.f32 %v6277, %v6306
  %v6341 = vadd.f32 %v6278, %v6306
  %v6342 = vadd.f32 %v6279, %v6306
  %v6343 = vadd.f32 %v6280, %v6306
  %v6344 = vadd.f32 %v6281, %v6306
  %v6345 = vadd.f32 %v6282, %v6306
  %v6346 = vadd.f32 %v6283, %v6306
  %v6347 = vadd.f32 %v6284, %v6306
  %v6348 = vadd.f32 %v6285, %v6306
  %v6349 = vadd.f32 %v6286, %v6306
  %v6350 = vadd.f32 %v6287, %v6306
  %v6351 = vadd.f32 %v6288, %v6306
  %v6352 = vadd.f32 %v6289, %v6306
  %v6353 = vadd.f32 %v6290, %v6306
  %v6354 = vadd.f32 %v6291, %v6306
  %v6355 = vadd.f32 %v6292, %v6306
  %v6356 = vadd.f32 %v6293, %v6306
  %v6357 = vadd.f32 %v6294, %v6306
  %v6358 = vadd.f32 %v6295, %v6306
  %v6359 = vadd.f32 %v6296, %v6306
  %v6360 = vadd.f32 %v6297, %v6306
  %v6361 = vadd.f32 %v6298, %v6306
  %v6362 = vadd.f32 %v6299, %v6306
  %v6363 = vadd.f32 %v6300, %v6306
  %v6364 = vmax.f32 %v6308, 0.0
  %v6365 = vmax.f32 %v6309, 0.0
  %v6366 = vmax.f32 %v6310, 0.0
  %v6367 = vmax.f32 %v6311, 0.0
  %v6368 = vmax.f32 %v6312, 0.0
  %v6369 = vmax.f32 %v6313, 0.0
  %v6370 = vmax.f32 %v6314, 0.0
  %v6371 = vmax.f32 %v6315, 0.0
  %v6372 = vmax.f32 %v6316, 0.0
  %v6373 = vmax.f32 %v6317, 0.0
  %v6374 = vmax.f32 %v6318, 0.0
  %v6375 = vmax.f32 %v6319, 0.0
  %v6376 = vmax.f32 %v6320, 0.0
  %v6377 = vmax.f32 %v6321, 0.0
  %v6378 = vmax.f32 %v6322, 0.0
  %v6379 = vmax.f32 %v6323, 0.0
  %v6380 = vmax.f32 %v6324, 0.0
  %v6381 = vmax.f32 %v6325, 0.0
  %v6382 = vmax.f32 %v6326, 0.0
  %v6383 = vmax.f32 %v6327, 0.0
  %v6384 = vmax.f32 %v6328, 0.0
  %v6385 = vmax.f32 %v6329, 0.0
  %v6386 = vmax.f32 %v6330, 0.0
  %v6387 = vmax.f32 %v6331, 0.0
  %v6388 = vmax.f32 %v6332, 0.0
  %v6389 = vmax.f32 %v6333, 0.0
  %v6390 = vmax.f32 %v6334, 0.0
  %v6391 = vmax.f32 %v6335, 0.0
  %v6392 = vmax.f32 %v6336, 0.0
  %v6393 = vmax.f32 %v6337, 0.0
  %v6394 = vmax.f32 %v6338, 0.0
  %v6395 = vmax.f32 %v6339, 0.0
  %v6396 = vmax.f32 %v6340, 0.0
  %v6397 = vmax.f32 %v6341, 0.0
  %v6398 = vmax.f32 %v6342, 0.0
  %v6399 = vmax.f32 %v6343, 0.0
  %v6400 = vmax.f32 %v6344, 0.0
  %v6401 = vmax.f32 %v6345, 0.0
  %v6402 = vmax.f32 %v6346, 0.0
  %v6403 = vmax.f32 %v6347, 0.0
  %v6404 = vmax.f32 %v6348, 0.0
  %v6405 = vmax.f32 %v6349, 0.0
  %v6406 = vmax.f32 %v6350, 0.0
  %v6407 = vmax.f32 %v6351, 0.0
  %v6408 = vmax.f32 %v6352, 0.0
  %v6409 = vmax.f32 %v6353, 0.0
  %v6410 = vmax.f32 %v6354, 0.0
  %v6411 = vmax.f32 %v6355, 0.0
  %v6412 = vmax.f32 %v6356, 0.0
  %v6413 = vmax.f32 %v6357, 0.0
  %v6414 = vmax.f32 %v6358, 0.0
  %v6415 = vmax.f32 %v6359, 0.0
  %v6416 = vmax.f32 %v6360, 0.0
  %v6417 = vmax.f32 %v6361, 0.0
  %v6418 = vmax.f32 %v6362, 0.0
  %v6419 = vmax.f32 %v6363, 0.0
  %vm6420 = vcmask 130048
  %6421 = vst.msk [vmem:[%s3] sm:$0xff] %vm6420, %v6364
  %6422 = vst.msk [vmem:[%s3 + $0x8] sm:$0xff] %vm6420, %v6365
  %6423 = vst.msk [vmem:[%s3 + $0x10] sm:$0xff] %vm6420, %v6366
  %6424 = vst.msk [vmem:[%s3 + $0x18] sm:$0xff] %vm6420, %v6367
  %6425 = vst.msk [vmem:[%s3 + $0x20] sm:$0xff] %vm6420, %v6368
  %6426 = vst.msk [vmem:[%s3 + $0x28] sm:$0xff] %vm6420, %v6369
  %6427 = vst.msk [vmem:[%s3 + $0x30] sm:$0xff] %vm6420, %v6370
  %6428 = vst.msk [vmem:[%s3 + $0x38] sm:$0xff] %vm6420, %v6371
  %6429 = vst.msk [vmem:[%s3 + $0x40] sm:$0xff] %vm6420, %v6372
  %6430 = vst.msk [vmem:[%s3 + $0x48] sm:$0xff] %vm6420, %v6373
  %6431 = vst.msk [vmem:[%s3 + $0x50] sm:$0xff] %vm6420, %v6374
  %6432 = vst.msk [vmem:[%s3 + $0x58] sm:$0xff] %vm6420, %v6375
  %6433 = vst.msk [vmem:[%s3 + $0x60] sm:$0xff] %vm6420, %v6376
  %6434 = vst.msk [vmem:[%s3 + $0x68] sm:$0xff] %vm6420, %v6377
  %6435 = vst.msk [vmem:[%s3 + $0x70] sm:$0xff] %vm6420, %v6378
  %6436 = vst.msk [vmem:[%s3 + $0x78] sm:$0xff] %vm6420, %v6379
  %6437 = vst.msk [vmem:[%s3 + $0x80] sm:$0xff] %vm6420, %v6380
  %6438 = vst.msk [vmem:[%s3 + $0x88] sm:$0xff] %vm6420, %v6381
  %6439 = vst.msk [vmem:[%s3 + $0x90] sm:$0xff] %vm6420, %v6382
  %6440 = vst.msk [vmem:[%s3 + $0x98] sm:$0xff] %vm6420, %v6383
  %6441 = vst.msk [vmem:[%s3 + $0xa0] sm:$0xff] %vm6420, %v6384
  %6442 = vst.msk [vmem:[%s3 + $0xa8] sm:$0xff] %vm6420, %v6385
  %6443 = vst.msk [vmem:[%s3 + $0xb0] sm:$0xff] %vm6420, %v6386
  %6444 = vst.msk [vmem:[%s3 + $0xb8] sm:$0xff] %vm6420, %v6387
  %6445 = vst.msk [vmem:[%s3 + $0xc0] sm:$0xff] %vm6420, %v6388
  %6446 = vst.msk [vmem:[%s3 + $0xc8] sm:$0xff] %vm6420, %v6389
  %6447 = vst.msk [vmem:[%s3 + $0xd0] sm:$0xff] %vm6420, %v6390
  %6448 = vst.msk [vmem:[%s3 + $0xd8] sm:$0xff] %vm6420, %v6391
  %6449 = vst.msk [vmem:[%s3 + $0xe0] sm:$0xff] %vm6420, %v6392
  %6450 = vst.msk [vmem:[%s3 + $0xe8] sm:$0xff] %vm6420, %v6393
  %6451 = vst.msk [vmem:[%s3 + $0xf0] sm:$0xff] %vm6420, %v6394
  %6452 = vst.msk [vmem:[%s3 + $0xf8] sm:$0xff] %vm6420, %v6395
  %6453 = vst.msk [vmem:[%s3 + $0x100] sm:$0xff] %vm6420, %v6396
  %6454 = vst.msk [vmem:[%s3 + $0x108] sm:$0xff] %vm6420, %v6397
  %6455 = vst.msk [vmem:[%s3 + $0x110] sm:$0xff] %vm6420, %v6398
  %6456 = vst.msk [vmem:[%s3 + $0x118] sm:$0xff] %vm6420, %v6399
  %6457 = vst.msk [vmem:[%s3 + $0x120] sm:$0xff] %vm6420, %v6400
  %6458 = vst.msk [vmem:[%s3 + $0x128] sm:$0xff] %vm6420, %v6401
  %6459 = vst.msk [vmem:[%s3 + $0x130] sm:$0xff] %vm6420, %v6402
  %6460 = vst.msk [vmem:[%s3 + $0x138] sm:$0xff] %vm6420, %v6403
  %6461 = vst.msk [vmem:[%s3 + $0x140] sm:$0xff] %vm6420, %v6404
  %6462 = vst.msk [vmem:[%s3 + $0x148] sm:$0xff] %vm6420, %v6405
  %6463 = vst.msk [vmem:[%s3 + $0x150] sm:$0xff] %vm6420, %v6406
  %6464 = vst.msk [vmem:[%s3 + $0x158] sm:$0xff] %vm6420, %v6407
  %6465 = vst.msk [vmem:[%s3 + $0x160] sm:$0xff] %vm6420, %v6408
  %6466 = vst.msk [vmem:[%s3 + $0x168] sm:$0xff] %vm6420, %v6409
  %6467 = vst.msk [vmem:[%s3 + $0x170] sm:$0xff] %vm6420, %v6410
  %6468 = vst.msk [vmem:[%s3 + $0x178] sm:$0xff] %vm6420, %v6411
  %6469 = vst.msk [vmem:[%s3 + $0x180] sm:$0xff] %vm6420, %v6412
  %6470 = vst.msk [vmem:[%s3 + $0x188] sm:$0xff] %vm6420, %v6413
  %6471 = vst.msk [vmem:[%s3 + $0x190] sm:$0xff] %vm6420, %v6414
  %6472 = vst.msk [vmem:[%s3 + $0x198] sm:$0xff] %vm6420, %v6415
  %6473 = vst.msk [vmem:[%s3 + $0x1a0] sm:$0xff] %vm6420, %v6416
  %6474 = vst.msk [vmem:[%s3 + $0x1a8] sm:$0xff] %vm6420, %v6417
  %6475 = vst.msk [vmem:[%s3 + $0x1b0] sm:$0xff] %vm6420, %v6418
  %6476 = vst.msk [vmem:[%s3 + $0x1b8] sm:$0xff] %vm6420, %v6419
  // Predicated region
  $region14: #{cnn_forward.3} parent=0 // pred_check
    _
  $region15: #{cnn_forward.3} parent=0 // pred_check_branch
    %6478 = sbr.rel (0) target = $region17
  $region16: #{cnn_forward.3} parent=0 // pred_region
    _
  $region17: #{cnn_forward.3} parent=0 // pred_fallthru
    _
  // Predicated region
  $region18: #{cnn_forward.3} parent=0 // pred_check
    _
  $region19: #{cnn_forward.3} parent=0 // pred_check_branch
    %6480 = sbr.rel (0) target = $region21
  $region20: #{cnn_forward.3} parent=0 // pred_region
    _
  $region21: #{cnn_forward.3} parent=0 // pred_fallthru
    _

</llo_original>
